<compile_context>
chip_gen: v5e
topology: v5e:2x2
jax: 0.10.0
libtpu: 0.0.40
codegen_flags: <defaults>
</compile_context>

<pallas_src>
import functools
import math

import jax
import jax.numpy as jnp
from jax import lax
from jax.experimental import pallas as pl
from jax.experimental.pallas import tpu as pltpu


# ----------------------------------------------------------------------------
# In-kernel helpers
# ----------------------------------------------------------------------------
def _gn_relu(x2, gamma, beta, member, n_per_group, eps):
    """GroupNorm + ReLU on a (H*W, C) f32 slab.

    member is the (C, G) one-hot channel->group matrix; group stats use small
    MXU matmuls and a centered two-pass variance (robust vs cancellation).
    """
    s = jnp.sum(x2, axis=0, keepdims=True)                                   # (1, C)
    g_mean = jnp.dot(s, member, preferred_element_type=jnp.float32) / n_per_group
    dn = (((1,), (1,)), ((), ()))                                            # contract G
    mean_c = lax.dot_general(g_mean, member, dn, preferred_element_type=jnp.float32)
    xc = x2 - mean_c
    ss = jnp.sum(xc * xc, axis=0, keepdims=True)                             # (1, C)
    g_var = jnp.dot(ss, member, preferred_element_type=jnp.float32) / n_per_group
    var_c = lax.dot_general(g_var, member, dn, preferred_element_type=jnp.float32)
    y = xc * lax.rsqrt(var_c + eps) * gamma + beta
    return jnp.maximum(y, 0.0)


def _conv3x3_from_pad(pad_ref, w_ref, H, W):
    """3x3 'same' conv as ONE im2col matmul on the MXU.

    pad_ref: (H+2, W+2, C) bf16 halo-padded activation in VMEM scratch.
    w_ref:   (9*C, Cout)   bf16 weights (HWIO flattened).
    Returns  (H*W, Cout)   f32 accumulator.
    """
    p = pad_ref[...]
    C = p.shape[-1]
    taps = [p[dy:dy + H, dx:dx + W, :] for dy in range(3) for dx in range(3)]
    slab = jnp.concatenate(taps, axis=-1).reshape(H * W, 9 * C)              # (HW, 9C) bf16
    return jnp.dot(slab, w_ref[...], preferred_element_type=jnp.float32)


# ----------------------------------------------------------------------------
# Fused ResidualBlock kernel (one batch element per grid step)
# ----------------------------------------------------------------------------
def _res_block_kernel(*refs, eps, has_sc):
    if has_sc:
        (x_ref, g1_ref, bt1_ref, m1_ref, w1_ref, b1_ref,
         g2_ref, bt2_ref, m2_ref, w2_ref, b2_ref,
         wsc_ref, bsc_ref,
         o_ref, pad1_ref, pad2_ref, padsc_ref) = refs
    else:
        (x_ref, g1_ref, bt1_ref, m1_ref, w1_ref, b1_ref,
         g2_ref, bt2_ref, m2_ref, w2_ref, b2_ref,
         o_ref, pad1_ref, pad2_ref) = refs

    _, H, W, Cin = x_ref.shape
    Cout = o_ref.shape[-1]
    G = m1_ref.shape[1]

    x = x_ref[0].astype(jnp.float32)                      # (H, W, Cin)
    x2 = x.reshape(H * W, Cin)

    # ---- in_layers: GroupNorm + ReLU + conv3x3 ------------------------------
    h1 = _gn_relu(x2, g1_ref[...], bt1_ref[...], m1_ref[...],
                  float(H * W * (Cin // G)), eps)
    pad1_ref[...] = jnp.zeros_like(pad1_ref)              # halo zeros (in VMEM, no HBM pad pass)
    pad1_ref[1:H + 1, 1:W + 1, :] = h1.reshape(H, W, Cin).astype(pad1_ref.dtype)
    h = _conv3x3_from_pad(pad1_ref, w1_ref, H, W) + b1_ref[...]      # (HW, Cout) f32

    # ---- out_layers: GroupNorm + ReLU + Dropout + zero-init conv3x3 ---------
    h2 = _gn_relu(h, g2_ref[...], bt2_ref[...], m2_ref[...],
                  float(H * W * (Cout // G)), eps)
    # TODO(synk): Dropout(p=0.1) is inference-mode identity here (no RNG mask);
    #             DropPath(0.0) is identity.
    pad2_ref[...] = jnp.zeros_like(pad2_ref)
    pad2_ref[1:H + 1, 1:W + 1, :] = h2.reshape(H, W, Cout).astype(pad2_ref.dtype)
    out = _conv3x3_from_pad(pad2_ref, w2_ref, H, W) + b2_ref[...]    # (HW, Cout) f32

    # ---- shortcut + residual add --------------------------------------------
    if has_sc:
        padsc_ref[...] = jnp.zeros_like(padsc_ref)
        padsc_ref[1:H + 1, 1:W + 1, :] = x.astype(padsc_ref.dtype)
        sc = _conv3x3_from_pad(padsc_ref, wsc_ref, H, W) + bsc_ref[...]
    else:
        sc = x2

    o_ref[0] = (out + sc).reshape(H, W, Cout).astype(o_ref.dtype)


# ----------------------------------------------------------------------------
# Wrapper (NCHW in / NCHW out, PyTorch convention)
# ----------------------------------------------------------------------------
def _membership(C, G):
    cg = C // G
    return ((jnp.arange(C) // cg)[:, None] == jnp.arange(G)[None, :]).astype(jnp.float32)


def residual_block_forward(x_nchw, params, *, num_groups=32, eps=1e-5):
    x = jnp.transpose(x_nchw, (0, 2, 3, 1))               # NHWC (lane = channels)
    N, H, W, Cin = x.shape
    Cout = params["conv1_w"].shape[-1]
    G = num_groups
    has_sc = "sc_w" in params

    # Tiny one-time weight prep: flatten HWIO -> (9*Cin, Cout) and cast to bf16
    # (MXU-native operands; f32 accumulation happens in-kernel).
    w1 = params["conv1_w"].reshape(9 * Cin, Cout).astype(jnp.bfloat16)
    w2 = params["conv2_w"].reshape(9 * Cout, Cout).astype(jnp.bfloat16)
    b1 = params["conv1_b"].reshape(1, Cout).astype(jnp.float32)
    b2 = params["conv2_b"].reshape(1, Cout).astype(jnp.float32)
    g1 = params["gn1_gamma"].reshape(1, Cin).astype(jnp.float32)
    bt1 = params["gn1_beta"].reshape(1, Cin).astype(jnp.float32)
    g2 = params["gn2_gamma"].reshape(1, Cout).astype(jnp.float32)
    bt2 = params["gn2_beta"].reshape(1, Cout).astype(jnp.float32)
    m1 = _membership(Cin, G)
    m2 = _membership(Cout, G)

    bcast = lambda n: (0, 0)
    args = [x, g1, bt1, m1, w1, b1, g2, bt2, m2, w2, b2]
    in_specs = [
        pl.BlockSpec((1, H, W, Cin), lambda n: (n, 0, 0, 0)),
        pl.BlockSpec((1, Cin), bcast),
        pl.BlockSpec((1, Cin), bcast),
        pl.BlockSpec((Cin, G), bcast),
        pl.BlockSpec((9 * Cin, Cout), bcast),
        pl.BlockSpec((1, Cout), bcast),
        pl.BlockSpec((1, Cout), bcast),
        pl.BlockSpec((1, Cout), bcast),
        pl.BlockSpec((Cout, G), bcast),
        pl.BlockSpec((9 * Cout, Cout), bcast),
        pl.BlockSpec((1, Cout), bcast),
    ]
    scratch = [
        pltpu.VMEM((H + 2, W + 2, Cin), jnp.bfloat16),     # GN1+ReLU halo buffer
        pltpu.VMEM((H + 2, W + 2, Cout), jnp.bfloat16),    # GN2+ReLU halo buffer
    ]
    if has_sc:
        wsc = params["sc_w"].reshape(9 * Cin, Cout).astype(jnp.bfloat16)
        bsc = params["sc_b"].reshape(1, Cout).astype(jnp.float32)
        args += [wsc, bsc]
        in_specs += [pl.BlockSpec((9 * Cin, Cout), bcast),
                     pl.BlockSpec((1, Cout), bcast)]
        scratch.append(pltpu.VMEM((H + 2, W + 2, Cin), jnp.bfloat16))

    # Cost hint for the XLA scheduler around the custom call.
    flops_per_n = 2 * H * W * 9 * Cin * Cout + 2 * H * W * 9 * Cout * Cout
    if has_sc:
        flops_per_n += 2 * H * W * 9 * Cin * Cout
    bytes_acc = x.size * 4 + N * H * W * Cout * 4
    for a in args[1:]:
        bytes_acc += int(a.size) * a.dtype.itemsize
    cost = pl.CostEstimate(flops=int(N * flops_per_n),
                           transcendentals=int(N * (Cin + Cout)),
                           bytes_accessed=int(bytes_acc))

    kernel = functools.partial(_res_block_kernel, eps=eps, has_sc=has_sc)
    out = pl.pallas_call(
        kernel,
        out_shape=jax.ShapeDtypeStruct((N, H, W, Cout), x.dtype),
        grid=(N,),
        in_specs=in_specs,
        out_specs=pl.BlockSpec((1, H, W, Cout), lambda n: (n, 0, 0, 0)),
        scratch_shapes=scratch,
        compiler_params=pltpu.CompilerParams(dimension_semantics=("parallel",)),
        cost_estimate=cost,
    )(*args)

    return jnp.transpose(out, (0, 3, 1, 2))                # back to NCHW


# ----------------------------------------------------------------------------
# Parameter init (matches the PyTorch module: zero_module on the final conv)
# ----------------------------------------------------------------------------
def init_residual_block_params(key, in_channels, out_channels):
    def conv_init(k, cin, cout):
        fan_in = cin * 9
        bound = 1.0 / math.sqrt(fan_in)
        kw, kb = jax.random.split(k)
        w = jax.random.uniform(kw, (3, 3, cin, cout), jnp.float32, -bound, bound)
        b = jax.random.uniform(kb, (cout,), jnp.float32, -bound, bound)
        return w, b

    k1, k2 = jax.random.split(key, 2)
    p = {}
    p["gn1_gamma"] = jnp.ones((in_channels,), jnp.float32)
    p["gn1_beta"] = jnp.zeros((in_channels,), jnp.float32)
    p["conv1_w"], p["conv1_b"] = conv_init(k1, in_channels, out_channels)
    p["gn2_gamma"] = jnp.ones((out_channels,), jnp.float32)
    p["gn2_beta"] = jnp.zeros((out_channels,), jnp.float32)
    p["conv2_w"] = jnp.zeros((3, 3, out_channels, out_channels), jnp.float32)
    p["conv2_b"] = jnp.zeros((out_channels,), jnp.float32)
    if in_channels != out_channels:                         # use_conv=True path
        p["sc_w"], p["sc_b"] = conv_init(k2, in_channels, out_channels)
    return p


# ----------------------------------------------------------------------------
# Pure-JAX references (for correctness checks)
# ----------------------------------------------------------------------------
def _gn_ref(x, gamma, beta, G, eps=1e-5):
    N, H, W, C = x.shape
    xg = x.reshape(N, H, W, G, C // G)
    mean = xg.mean(axis=(1, 2, 4), keepdims=True)
    var = xg.var(axis=(1, 2, 4), keepdims=True)
    xn = ((xg - mean) / jnp.sqrt(var + eps)).reshape(N, H, W, C)
    return xn * gamma + beta


def _conv_ref(x, w, b, operand_dtype=None):
    if operand_dtype is not None:
        x = x.astype(operand_dtype)
        w = w.astype(operand_dtype)
    y = lax.conv_general_dilated(x, w, (1, 1), "SAME",
                                 dimension_numbers=("NHWC", "HWIO", "NHWC"),
                                 preferred_element_type=jnp.float32)
    return y + b


def _forward_ref(x_nchw, params, num_groups=32, operand_dtype=None):
    x = jnp.transpose(x_nchw, (0, 2, 3, 1))
    h = jnp.maximum(_gn_ref(x, params["gn1_gamma"], params["gn1_beta"], num_groups), 0.0)
    h = _conv_ref(h, params["conv1_w"], params["conv1_b"], operand_dtype)
    h = jnp.maximum(_gn_ref(h, params["gn2_gamma"], params["gn2_beta"], num_groups), 0.0)
    h = _conv_ref(h, params["conv2_w"], params["conv2_b"], operand_dtype)
    if "sc_w" in params:
        sc = _conv_ref(x, params["sc_w"], params["sc_b"], operand_dtype)
    else:
        sc = x
    return jnp.transpose(h + sc, (0, 3, 1, 2))


# ----------------------------------------------------------------------------
if __name__ == "__main__":
    key = jax.random.PRNGKey(0)
    k_x, k_p, k_p2, k_w = jax.random.split(key, 4)

    N, Cin, Cout, H, W = 2, 32, 64, 16, 16
    x = jax.random.normal(k_x, (N, Cin, H, W), jnp.float32)

    # --- module exactly as specified (zero-init conv2, conv shortcut) --------
    params = init_residual_block_params(k_p, Cin, Cout)
    out = jax.block_until_ready(residual_block_forward(x, params))
    assert out.shape == (N, Cout, H, W)
    ref = _forward_ref(x, params)
    assert jnp.max(jnp.abs(out - ref)) < 2e-2, "mismatch (zero-init conv2 path)"

    # --- full-chain numeric check: non-zero conv2 so GN2->conv2 is exercised;
    #     reference uses matching bf16 matmul operands (f32 accumulation).
    bound = 1.0 / math.sqrt(9 * Cout)
    kw2, kb2 = jax.random.split(k_w)
    params_nz = dict(params)
    params_nz["conv2_w"] = jax.random.uniform(kw2, (3, 3, Cout, Cout), jnp.float32, -bound, bound)
    params_nz["conv2_b"] = jax.random.uniform(kb2, (Cout,), jnp.float32, -bound, bound)
    out2 = jax.block_until_ready(residual_block_forward(x, params_nz))
    ref2 = _forward_ref(x, params_nz, operand_dtype=jnp.bfloat16)
    assert jnp.max(jnp.abs(out2 - ref2)) < 2e-2, "mismatch (full-chain path)"

    # --- identity-shortcut variant (Cin == Cout) ------------------------------
    params_id = init_residual_block_params(k_p2, Cin, Cin)
    params_id["conv2_w"] = jax.random.uniform(kw2, (3, 3, Cin, Cin), jnp.float32, -bound, bound)
    params_id["conv2_b"] = jax.random.uniform(kb2, (Cin,), jnp.float32, -bound, bound)
    out3 = jax.block_until_ready(residual_block_forward(x, params_id))
    assert out3.shape == (N, Cin, H, W)
    ref3 = _forward_ref(x, params_id, operand_dtype=jnp.bfloat16)
    assert jnp.max(jnp.abs(out3 - ref3)) < 2e-2, "mismatch (identity shortcut path)"

    print("KERNEL_OK")
</pallas_src>

<mosaic_0001>
module attributes {stable_mosaic.version = 11 : i64} {
  func.func @_res_block_kernel(%arg0: i32, %arg1: memref<1x16x16x32xf32, #tpu.memory_space<vmem>>, %arg2: memref<1x32xf32, #tpu.memory_space<vmem>>, %arg3: memref<1x32xf32, #tpu.memory_space<vmem>>, %arg4: memref<32x32xf32, #tpu.memory_space<vmem>>, %arg5: memref<288x64xbf16, #tpu.memory_space<vmem>>, %arg6: memref<1x64xf32, #tpu.memory_space<vmem>>, %arg7: memref<1x64xf32, #tpu.memory_space<vmem>>, %arg8: memref<1x64xf32, #tpu.memory_space<vmem>>, %arg9: memref<64x32xf32, #tpu.memory_space<vmem>>, %arg10: memref<576x64xbf16, #tpu.memory_space<vmem>>, %arg11: memref<1x64xf32, #tpu.memory_space<vmem>>, %arg12: memref<288x64xbf16, #tpu.memory_space<vmem>>, %arg13: memref<1x64xf32, #tpu.memory_space<vmem>>, %arg14: memref<1x16x16x64xf32, #tpu.memory_space<vmem>>, %arg15: memref<18x18x32xbf16, #tpu.memory_space<vmem>>, %arg16: memref<18x18x64xbf16, #tpu.memory_space<vmem>>, %arg17: memref<18x18x32xbf16, #tpu.memory_space<vmem>>) attributes {dimension_semantics = [#tpu.dimension_semantics<parallel>], iteration_bounds = array<i64: 2>, scalar_prefetch = 0 : i64, scratch_operands = 3 : i64, tpu.core_type = #tpu.core_type<tc>, window_params = [{transform_indices = @transform_0, window_bounds = array<i64: 1, 16, 16, 32>}, {pipeline_mode = #tpu.pipeline_mode<synchronous>, transform_indices = @transform_1, window_bounds = array<i64: 1, 32>}, {pipeline_mode = #tpu.pipeline_mode<synchronous>, transform_indices = @transform_2, window_bounds = array<i64: 1, 32>}, {pipeline_mode = #tpu.pipeline_mode<synchronous>, transform_indices = @transform_3, window_bounds = array<i64: 32, 32>}, {pipeline_mode = #tpu.pipeline_mode<synchronous>, transform_indices = @transform_4, window_bounds = array<i64: 288, 64>}, {pipeline_mode = #tpu.pipeline_mode<synchronous>, transform_indices = @transform_5, window_bounds = array<i64: 1, 64>}, {pipeline_mode = #tpu.pipeline_mode<synchronous>, transform_indices = @transform_6, window_bounds = array<i64: 1, 64>}, {pipeline_mode = #tpu.pipeline_mode<synchronous>, transform_indices = @transform_7, window_bounds = array<i64: 1, 64>}, {pipeline_mode = #tpu.pipeline_mode<synchronous>, transform_indices = @transform_8, window_bounds = array<i64: 64, 32>}, {pipeline_mode = #tpu.pipeline_mode<synchronous>, transform_indices = @transform_9, window_bounds = array<i64: 576, 64>}, {pipeline_mode = #tpu.pipeline_mode<synchronous>, transform_indices = @transform_10, window_bounds = array<i64: 1, 64>}, {pipeline_mode = #tpu.pipeline_mode<synchronous>, transform_indices = @transform_11, window_bounds = array<i64: 288, 64>}, {pipeline_mode = #tpu.pipeline_mode<synchronous>, transform_indices = @transform_12, window_bounds = array<i64: 1, 64>}, {transform_indices = @transform_13, window_bounds = array<i64: 1, 16, 16, 64>}]} {
    %c0 = arith.constant 0 : index
    %c0_0 = arith.constant 0 : index
    %c0_1 = arith.constant 0 : index
    %c0_2 = arith.constant 0 : index
    %0 = vector.load %arg1[%c0, %c0_0, %c0_1, %c0_2] : memref<1x16x16x32xf32, #tpu.memory_space<vmem>>, vector<1x16x16x32xf32>
    %1 = vector.shape_cast %0 : vector<1x16x16x32xf32> to vector<16x16x32xf32>
    %2 = vector.shape_cast %1 : vector<16x16x32xf32> to vector<256x32xf32>
    %c0_3 = arith.constant 0 : index
    %c0_4 = arith.constant 0 : index
    %3 = vector.load %arg2[%c0_3, %c0_4] : memref<1x32xf32, #tpu.memory_space<vmem>>, vector<1x32xf32>
    %c0_5 = arith.constant 0 : index
    %c0_6 = arith.constant 0 : index
    %4 = vector.load %arg3[%c0_5, %c0_6] : memref<1x32xf32, #tpu.memory_space<vmem>>, vector<1x32xf32>
    %c0_7 = arith.constant 0 : index
    %c0_8 = arith.constant 0 : index
    %5 = vector.load %arg4[%c0_7, %c0_8] : memref<32x32xf32, #tpu.memory_space<vmem>>, vector<32x32xf32>
    %cst = arith.constant dense<0.000000e+00> : vector<32xf32>
    %6 = vector.multi_reduction <add>, %2, %cst [0] : vector<256x32xf32> to vector<32xf32>
    %7 = vector.shape_cast %6 : vector<32xf32> to vector<1x32xf32>
    %cst_9 = arith.constant dense<0.000000e+00> : vector<1x32xf32>
    %8 = tpu.matmul %7, %5, %cst_9 {dimension_numbers = #tpu.dot_dimension_numbers<[1], [0], [0], [1], [0, 0, 1, 1], [], []>} : vector<1x32xf32>, vector<32x32xf32>, vector<1x32xf32> -> vector<1x32xf32>
    %cst_10 = arith.constant 2.560000e+02 : f32
    %9 = vector.broadcast %cst_10 : f32 to vector<1x32xf32>
    %10 = arith.divf %8, %9 : vector<1x32xf32>
    %cst_11 = arith.constant dense<0.000000e+00> : vector<1x32xf32>
    %11 = tpu.matmul %10, %5, %cst_11 {dimension_numbers = #tpu.dot_dimension_numbers<[1], [1], [0], [0], [0, 0, 1, 0], [], []>} : vector<1x32xf32>, vector<32x32xf32>, vector<1x32xf32> -> vector<1x32xf32>
    %12 = vector.broadcast %11 : vector<1x32xf32> to vector<256x32xf32>
    %13 = arith.subf %2, %12 : vector<256x32xf32>
    %14 = arith.mulf %13, %13 : vector<256x32xf32>
    %cst_12 = arith.constant dense<0.000000e+00> : vector<32xf32>
    %15 = vector.multi_reduction <add>, %14, %cst_12 [0] : vector<256x32xf32> to vector<32xf32>
    %16 = vector.shape_cast %15 : vector<32xf32> to vector<1x32xf32>
    %cst_13 = arith.constant dense<0.000000e+00> : vector<1x32xf32>
    %17 = tpu.matmul %16, %5, %cst_13 {dimension_numbers = #tpu.dot_dimension_numbers<[1], [0], [0], [1], [0, 0, 1, 1], [], []>} : vector<1x32xf32>, vector<32x32xf32>, vector<1x32xf32> -> vector<1x32xf32>
    %cst_14 = arith.constant 2.560000e+02 : f32
    %18 = vector.broadcast %cst_14 : f32 to vector<1x32xf32>
    %19 = arith.divf %17, %18 : vector<1x32xf32>
    %cst_15 = arith.constant dense<0.000000e+00> : vector<1x32xf32>
    %20 = tpu.matmul %19, %5, %cst_15 {dimension_numbers = #tpu.dot_dimension_numbers<[1], [1], [0], [0], [0, 0, 1, 0], [], []>} : vector<1x32xf32>, vector<32x32xf32>, vector<1x32xf32> -> vector<1x32xf32>
    %cst_16 = arith.constant 9.99999974E-6 : f32
    %21 = vector.broadcast %cst_16 : f32 to vector<1x32xf32>
    %22 = arith.addf %20, %21 : vector<1x32xf32>
    %23 = math.rsqrt %22 : vector<1x32xf32>
    %24 = vector.broadcast %23 : vector<1x32xf32> to vector<256x32xf32>
    %25 = arith.mulf %13, %24 : vector<256x32xf32>
    %26 = vector.broadcast %3 : vector<1x32xf32> to vector<256x32xf32>
    %27 = arith.mulf %25, %26 : vector<256x32xf32>
    %28 = vector.broadcast %4 : vector<1x32xf32> to vector<256x32xf32>
    %29 = arith.addf %27, %28 : vector<256x32xf32>
    %cst_17 = arith.constant 0.000000e+00 : f32
    %30 = vector.broadcast %cst_17 : f32 to vector<256x32xf32>
    %31 = arith.maximumf %29, %30 : vector<256x32xf32>
    %cst_18 = arith.constant 0.000000e+00 : bf16
    %32 = vector.broadcast %cst_18 : bf16 to vector<18x18x32xbf16>
    %c0_19 = arith.constant 0 : index
    %c0_20 = arith.constant 0 : index
    %c0_21 = arith.constant 0 : index
    %33 = vector.load %arg15[%c0_19, %c0_20, %c0_21] : memref<18x18x32xbf16, #tpu.memory_space<vmem>>, vector<18x18x32xbf16>
    tpu.vector_store %arg15[%c0_19, %c0_20, %c0_21], %32 {strides = array<i32>} : memref<18x18x32xbf16, #tpu.memory_space<vmem>>, vector<18x18x32xbf16>,
    %34 = vector.shape_cast %31 : vector<256x32xf32> to vector<16x16x32xf32>
    %35 = arith.truncf %34 : vector<16x16x32xf32> to vector<16x16x32xbf16>
    %c1 = arith.constant 1 : index
    %c1_22 = arith.constant 1 : index
    %c0_23 = arith.constant 0 : index
    %36 = vector.load %arg15[%c1, %c1_22, %c0_23] : memref<18x18x32xbf16, #tpu.memory_space<vmem>>, vector<16x16x32xbf16>
    tpu.vector_store %arg15[%c1, %c1_22, %c0_23], %35 {strides = array<i32>} : memref<18x18x32xbf16, #tpu.memory_space<vmem>>, vector<16x16x32xbf16>,
    %c0_24 = arith.constant 0 : index
    %c0_25 = arith.constant 0 : index
    %c0_26 = arith.constant 0 : index
    %37 = vector.load %arg15[%c0_24, %c0_25, %c0_26] : memref<18x18x32xbf16, #tpu.memory_space<vmem>>, vector<18x18x32xbf16>
    %38 = vector.extract_strided_slice %37 {offsets = [0, 0, 0], sizes = [16, 16, 32], strides = [1, 1, 1]} : vector<18x18x32xbf16> to vector<16x16x32xbf16>
    %39 = vector.extract_strided_slice %37 {offsets = [0, 1, 0], sizes = [16, 16, 32], strides = [1, 1, 1]} : vector<18x18x32xbf16> to vector<16x16x32xbf16>
    %40 = vector.extract_strided_slice %37 {offsets = [0, 2, 0], sizes = [16, 16, 32], strides = [1, 1, 1]} : vector<18x18x32xbf16> to vector<16x16x32xbf16>
    %41 = vector.extract_strided_slice %37 {offsets = [1, 0, 0], sizes = [16, 16, 32], strides = [1, 1, 1]} : vector<18x18x32xbf16> to vector<16x16x32xbf16>
    %42 = vector.extract_strided_slice %37 {offsets = [1, 1, 0], sizes = [16, 16, 32], strides = [1, 1, 1]} : vector<18x18x32xbf16> to vector<16x16x32xbf16>
    %43 = vector.extract_strided_slice %37 {offsets = [1, 2, 0], sizes = [16, 16, 32], strides = [1, 1, 1]} : vector<18x18x32xbf16> to vector<16x16x32xbf16>
    %44 = vector.extract_strided_slice %37 {offsets = [2, 0, 0], sizes = [16, 16, 32], strides = [1, 1, 1]} : vector<18x18x32xbf16> to vector<16x16x32xbf16>
    %45 = vector.extract_strided_slice %37 {offsets = [2, 1, 0], sizes = [16, 16, 32], strides = [1, 1, 1]} : vector<18x18x32xbf16> to vector<16x16x32xbf16>
    %46 = vector.extract_strided_slice %37 {offsets = [2, 2, 0], sizes = [16, 16, 32], strides = [1, 1, 1]} : vector<18x18x32xbf16> to vector<16x16x32xbf16>
    %47 = tpu.concatenate %38, %39, %40, %41, %42, %43, %44, %45, %46 in 2 : vector<16x16x32xbf16>, vector<16x16x32xbf16>, vector<16x16x32xbf16>, vector<16x16x32xbf16>, vector<16x16x32xbf16>, vector<16x16x32xbf16>, vector<16x16x32xbf16>, vector<16x16x32xbf16>, vector<16x16x32xbf16> -> vector<16x16x288xbf16>
    %48 = vector.shape_cast %47 : vector<16x16x288xbf16> to vector<256x288xbf16>
    %c0_27 = arith.constant 0 : index
    %c0_28 = arith.constant 0 : index
    %49 = vector.load %arg5[%c0_27, %c0_28] : memref<288x64xbf16, #tpu.memory_space<vmem>>, vector<288x64xbf16>
    %cst_29 = arith.constant dense<0.000000e+00> : vector<256x64xf32>
    %50 = tpu.matmul %48, %49, %cst_29 {dimension_numbers = #tpu.dot_dimension_numbers<[1], [0], [0], [1], [0, 0, 1, 1], [], []>} : vector<256x288xbf16>, vector<288x64xbf16>, vector<256x64xf32> -> vector<256x64xf32>
    %c0_30 = arith.constant 0 : index
    %c0_31 = arith.constant 0 : index
    %51 = vector.load %arg6[%c0_30, %c0_31] : memref<1x64xf32, #tpu.memory_space<vmem>>, vector<1x64xf32>
    %52 = vector.broadcast %51 : vector<1x64xf32> to vector<256x64xf32>
    %53 = arith.addf %50, %52 : vector<256x64xf32>
    %c0_32 = arith.constant 0 : index
    %c0_33 = arith.constant 0 : index
    %54 = vector.load %arg7[%c0_32, %c0_33] : memref<1x64xf32, #tpu.memory_space<vmem>>, vector<1x64xf32>
    %c0_34 = arith.constant 0 : index
    %c0_35 = arith.constant 0 : index
    %55 = vector.load %arg8[%c0_34, %c0_35] : memref<1x64xf32, #tpu.memory_space<vmem>>, vector<1x64xf32>
    %c0_36 = arith.constant 0 : index
    %c0_37 = arith.constant 0 : index
    %56 = vector.load %arg9[%c0_36, %c0_37] : memref<64x32xf32, #tpu.memory_space<vmem>>, vector<64x32xf32>
    %cst_38 = arith.constant dense<0.000000e+00> : vector<64xf32>
    %57 = vector.multi_reduction <add>, %53, %cst_38 [0] : vector<256x64xf32> to vector<64xf32>
    %58 = vector.shape_cast %57 : vector<64xf32> to vector<1x64xf32>
    %cst_39 = arith.constant dense<0.000000e+00> : vector<1x32xf32>
    %59 = tpu.matmul %58, %56, %cst_39 {dimension_numbers = #tpu.dot_dimension_numbers<[1], [0], [0], [1], [0, 0, 1, 1], [], []>} : vector<1x64xf32>, vector<64x32xf32>, vector<1x32xf32> -> vector<1x32xf32>
    %cst_40 = arith.constant 5.120000e+02 : f32
    %60 = vector.broadcast %cst_40 : f32 to vector<1x32xf32>
    %61 = arith.divf %59, %60 : vector<1x32xf32>
    %cst_41 = arith.constant dense<0.000000e+00> : vector<1x64xf32>
    %62 = tpu.matmul %61, %56, %cst_41 {dimension_numbers = #tpu.dot_dimension_numbers<[1], [1], [0], [0], [0, 0, 1, 0], [], []>} : vector<1x32xf32>, vector<64x32xf32>, vector<1x64xf32> -> vector<1x64xf32>
    %63 = vector.broadcast %62 : vector<1x64xf32> to vector<256x64xf32>
    %64 = arith.subf %53, %63 : vector<256x64xf32>
    %65 = arith.mulf %64, %64 : vector<256x64xf32>
    %cst_42 = arith.constant dense<0.000000e+00> : vector<64xf32>
    %66 = vector.multi_reduction <add>, %65, %cst_42 [0] : vector<256x64xf32> to vector<64xf32>
    %67 = vector.shape_cast %66 : vector<64xf32> to vector<1x64xf32>
    %cst_43 = arith.constant dense<0.000000e+00> : vector<1x32xf32>
    %68 = tpu.matmul %67, %56, %cst_43 {dimension_numbers = #tpu.dot_dimension_numbers<[1], [0], [0], [1], [0, 0, 1, 1], [], []>} : vector<1x64xf32>, vector<64x32xf32>, vector<1x32xf32> -> vector<1x32xf32>
    %cst_44 = arith.constant 5.120000e+02 : f32
    %69 = vector.broadcast %cst_44 : f32 to vector<1x32xf32>
    %70 = arith.divf %68, %69 : vector<1x32xf32>
    %cst_45 = arith.constant dense<0.000000e+00> : vector<1x64xf32>
    %71 = tpu.matmul %70, %56, %cst_45 {dimension_numbers = #tpu.dot_dimension_numbers<[1], [1], [0], [0], [0, 0, 1, 0], [], []>} : vector<1x32xf32>, vector<64x32xf32>, vector<1x64xf32> -> vector<1x64xf32>
    %cst_46 = arith.constant 9.99999974E-6 : f32
    %72 = vector.broadcast %cst_46 : f32 to vector<1x64xf32>
    %73 = arith.addf %71, %72 : vector<1x64xf32>
    %74 = math.rsqrt %73 : vector<1x64xf32>
    %75 = vector.broadcast %74 : vector<1x64xf32> to vector<256x64xf32>
    %76 = arith.mulf %64, %75 : vector<256x64xf32>
    %77 = vector.broadcast %54 : vector<1x64xf32> to vector<256x64xf32>
    %78 = arith.mulf %76, %77 : vector<256x64xf32>
    %79 = vector.broadcast %55 : vector<1x64xf32> to vector<256x64xf32>
    %80 = arith.addf %78, %79 : vector<256x64xf32>
    %cst_47 = arith.constant 0.000000e+00 : f32
    %81 = vector.broadcast %cst_47 : f32 to vector<256x64xf32>
    %82 = arith.maximumf %80, %81 : vector<256x64xf32>
    %cst_48 = arith.constant 0.000000e+00 : bf16
    %83 = vector.broadcast %cst_48 : bf16 to vector<18x18x64xbf16>
    %c0_49 = arith.constant 0 : index
    %c0_50 = arith.constant 0 : index
    %c0_51 = arith.constant 0 : index
    %84 = vector.load %arg16[%c0_49, %c0_50, %c0_51] : memref<18x18x64xbf16, #tpu.memory_space<vmem>>, vector<18x18x64xbf16>
    tpu.vector_store %arg16[%c0_49, %c0_50, %c0_51], %83 {strides = array<i32>} : memref<18x18x64xbf16, #tpu.memory_space<vmem>>, vector<18x18x64xbf16>,
    %85 = vector.shape_cast %82 : vector<256x64xf32> to vector<16x16x64xf32>
    %86 = arith.truncf %85 : vector<16x16x64xf32> to vector<16x16x64xbf16>
    %c1_52 = arith.constant 1 : index
    %c1_53 = arith.constant 1 : index
    %c0_54 = arith.constant 0 : index
    %87 = vector.load %arg16[%c1_52, %c1_53, %c0_54] : memref<18x18x64xbf16, #tpu.memory_space<vmem>>, vector<16x16x64xbf16>
    tpu.vector_store %arg16[%c1_52, %c1_53, %c0_54], %86 {strides = array<i32>} : memref<18x18x64xbf16, #tpu.memory_space<vmem>>, vector<16x16x64xbf16>,
    %c0_55 = arith.constant 0 : index
    %c0_56 = arith.constant 0 : index
    %c0_57 = arith.constant 0 : index
    %88 = vector.load %arg16[%c0_55, %c0_56, %c0_57] : memref<18x18x64xbf16, #tpu.memory_space<vmem>>, vector<18x18x64xbf16>
    %89 = vector.extract_strided_slice %88 {offsets = [0, 0, 0], sizes = [16, 16, 64], strides = [1, 1, 1]} : vector<18x18x64xbf16> to vector<16x16x64xbf16>
    %90 = vector.extract_strided_slice %88 {offsets = [0, 1, 0], sizes = [16, 16, 64], strides = [1, 1, 1]} : vector<18x18x64xbf16> to vector<16x16x64xbf16>
    %91 = vector.extract_strided_slice %88 {offsets = [0, 2, 0], sizes = [16, 16, 64], strides = [1, 1, 1]} : vector<18x18x64xbf16> to vector<16x16x64xbf16>
    %92 = vector.extract_strided_slice %88 {offsets = [1, 0, 0], sizes = [16, 16, 64], strides = [1, 1, 1]} : vector<18x18x64xbf16> to vector<16x16x64xbf16>
    %93 = vector.extract_strided_slice %88 {offsets = [1, 1, 0], sizes = [16, 16, 64], strides = [1, 1, 1]} : vector<18x18x64xbf16> to vector<16x16x64xbf16>
    %94 = vector.extract_strided_slice %88 {offsets = [1, 2, 0], sizes = [16, 16, 64], strides = [1, 1, 1]} : vector<18x18x64xbf16> to vector<16x16x64xbf16>
    %95 = vector.extract_strided_slice %88 {offsets = [2, 0, 0], sizes = [16, 16, 64], strides = [1, 1, 1]} : vector<18x18x64xbf16> to vector<16x16x64xbf16>
    %96 = vector.extract_strided_slice %88 {offsets = [2, 1, 0], sizes = [16, 16, 64], strides = [1, 1, 1]} : vector<18x18x64xbf16> to vector<16x16x64xbf16>
    %97 = vector.extract_strided_slice %88 {offsets = [2, 2, 0], sizes = [16, 16, 64], strides = [1, 1, 1]} : vector<18x18x64xbf16> to vector<16x16x64xbf16>
    %98 = tpu.concatenate %89, %90, %91, %92, %93, %94, %95, %96, %97 in 2 : vector<16x16x64xbf16>, vector<16x16x64xbf16>, vector<16x16x64xbf16>, vector<16x16x64xbf16>, vector<16x16x64xbf16>, vector<16x16x64xbf16>, vector<16x16x64xbf16>, vector<16x16x64xbf16>, vector<16x16x64xbf16> -> vector<16x16x576xbf16>
    %99 = vector.shape_cast %98 : vector<16x16x576xbf16> to vector<256x576xbf16>
    %c0_58 = arith.constant 0 : index
    %c0_59 = arith.constant 0 : index
    %100 = vector.load %arg10[%c0_58, %c0_59] : memref<576x64xbf16, #tpu.memory_space<vmem>>, vector<576x64xbf16>
    %cst_60 = arith.constant dense<0.000000e+00> : vector<256x64xf32>
    %101 = tpu.matmul %99, %100, %cst_60 {dimension_numbers = #tpu.dot_dimension_numbers<[1], [0], [0], [1], [0, 0, 1, 1], [], []>} : vector<256x576xbf16>, vector<576x64xbf16>, vector<256x64xf32> -> vector<256x64xf32>
    %c0_61 = arith.constant 0 : index
    %c0_62 = arith.constant 0 : index
    %102 = vector.load %arg11[%c0_61, %c0_62] : memref<1x64xf32, #tpu.memory_space<vmem>>, vector<1x64xf32>
    %103 = vector.broadcast %102 : vector<1x64xf32> to vector<256x64xf32>
    %104 = arith.addf %101, %103 : vector<256x64xf32>
    %cst_63 = arith.constant 0.000000e+00 : bf16
    %105 = vector.broadcast %cst_63 : bf16 to vector<18x18x32xbf16>
    %c0_64 = arith.constant 0 : index
    %c0_65 = arith.constant 0 : index
    %c0_66 = arith.constant 0 : index
    %106 = vector.load %arg17[%c0_64, %c0_65, %c0_66] : memref<18x18x32xbf16, #tpu.memory_space<vmem>>, vector<18x18x32xbf16>
    tpu.vector_store %arg17[%c0_64, %c0_65, %c0_66], %105 {strides = array<i32>} : memref<18x18x32xbf16, #tpu.memory_space<vmem>>, vector<18x18x32xbf16>,
    %107 = arith.truncf %1 : vector<16x16x32xf32> to vector<16x16x32xbf16>
    %c1_67 = arith.constant 1 : index
    %c1_68 = arith.constant 1 : index
    %c0_69 = arith.constant 0 : index
    %108 = vector.load %arg17[%c1_67, %c1_68, %c0_69] : memref<18x18x32xbf16, #tpu.memory_space<vmem>>, vector<16x16x32xbf16>
    tpu.vector_store %arg17[%c1_67, %c1_68, %c0_69], %107 {strides = array<i32>} : memref<18x18x32xbf16, #tpu.memory_space<vmem>>, vector<16x16x32xbf16>,
    %c0_70 = arith.constant 0 : index
    %c0_71 = arith.constant 0 : index
    %c0_72 = arith.constant 0 : index
    %109 = vector.load %arg17[%c0_70, %c0_71, %c0_72] : memref<18x18x32xbf16, #tpu.memory_space<vmem>>, vector<18x18x32xbf16>
    %110 = vector.extract_strided_slice %109 {offsets = [0, 0, 0], sizes = [16, 16, 32], strides = [1, 1, 1]} : vector<18x18x32xbf16> to vector<16x16x32xbf16>
    %111 = vector.extract_strided_slice %109 {offsets = [0, 1, 0], sizes = [16, 16, 32], strides = [1, 1, 1]} : vector<18x18x32xbf16> to vector<16x16x32xbf16>
    %112 = vector.extract_strided_slice %109 {offsets = [0, 2, 0], sizes = [16, 16, 32], strides = [1, 1, 1]} : vector<18x18x32xbf16> to vector<16x16x32xbf16>
    %113 = vector.extract_strided_slice %109 {offsets = [1, 0, 0], sizes = [16, 16, 32], strides = [1, 1, 1]} : vector<18x18x32xbf16> to vector<16x16x32xbf16>
    %114 = vector.extract_strided_slice %109 {offsets = [1, 1, 0], sizes = [16, 16, 32], strides = [1, 1, 1]} : vector<18x18x32xbf16> to vector<16x16x32xbf16>
    %115 = vector.extract_strided_slice %109 {offsets = [1, 2, 0], sizes = [16, 16, 32], strides = [1, 1, 1]} : vector<18x18x32xbf16> to vector<16x16x32xbf16>
    %116 = vector.extract_strided_slice %109 {offsets = [2, 0, 0], sizes = [16, 16, 32], strides = [1, 1, 1]} : vector<18x18x32xbf16> to vector<16x16x32xbf16>
    %117 = vector.extract_strided_slice %109 {offsets = [2, 1, 0], sizes = [16, 16, 32], strides = [1, 1, 1]} : vector<18x18x32xbf16> to vector<16x16x32xbf16>
    %118 = vector.extract_strided_slice %109 {offsets = [2, 2, 0], sizes = [16, 16, 32], strides = [1, 1, 1]} : vector<18x18x32xbf16> to vector<16x16x32xbf16>
    %119 = tpu.concatenate %110, %111, %112, %113, %114, %115, %116, %117, %118 in 2 : vector<16x16x32xbf16>, vector<16x16x32xbf16>, vector<16x16x32xbf16>, vector<16x16x32xbf16>, vector<16x16x32xbf16>, vector<16x16x32xbf16>, vector<16x16x32xbf16>, vector<16x16x32xbf16>, vector<16x16x32xbf16> -> vector<16x16x288xbf16>
    %120 = vector.shape_cast %119 : vector<16x16x288xbf16> to vector<256x288xbf16>
    %c0_73 = arith.constant 0 : index
    %c0_74 = arith.constant 0 : index
    %121 = vector.load %arg12[%c0_73, %c0_74] : memref<288x64xbf16, #tpu.memory_space<vmem>>, vector<288x64xbf16>
    %cst_75 = arith.constant dense<0.000000e+00> : vector<256x64xf32>
    %122 = tpu.matmul %120, %121, %cst_75 {dimension_numbers = #tpu.dot_dimension_numbers<[1], [0], [0], [1], [0, 0, 1, 1], [], []>} : vector<256x288xbf16>, vector<288x64xbf16>, vector<256x64xf32> -> vector<256x64xf32>
    %c0_76 = arith.constant 0 : index
    %c0_77 = arith.constant 0 : index
    %123 = vector.load %arg13[%c0_76, %c0_77] : memref<1x64xf32, #tpu.memory_space<vmem>>, vector<1x64xf32>
    %124 = vector.broadcast %123 : vector<1x64xf32> to vector<256x64xf32>
    %125 = arith.addf %122, %124 : vector<256x64xf32>
    %126 = arith.addf %104, %125 : vector<256x64xf32>
    %127 = vector.shape_cast %126 : vector<256x64xf32> to vector<16x16x64xf32>
    %c0_78 = arith.constant 0 : index
    %c0_79 = arith.constant 0 : index
    %c0_80 = arith.constant 0 : index
    %c0_81 = arith.constant 0 : index
    %128 = vector.load %arg14[%c0_78, %c0_79, %c0_80, %c0_81] : memref<1x16x16x64xf32, #tpu.memory_space<vmem>>, vector<1x16x16x64xf32>
    %129 = vector.shape_cast %128 : vector<1x16x16x64xf32> to vector<16x16x64xf32>
    %130 = vector.shape_cast %127 : vector<16x16x64xf32> to vector<1x16x16x64xf32>
    tpu.vector_store %arg14[%c0_78, %c0_79, %c0_80, %c0_81], %130 {strides = array<i32>} : memref<1x16x16x64xf32, #tpu.memory_space<vmem>>, vector<1x16x16x64xf32>,
    return
  }
  func.func @transform_0(%arg0: i32) -> (i32, i32, i32, i32) {
    %c0_i32 = arith.constant 0 : i32
    %c0_i32_0 = arith.constant 0 : i32
    %c0_i32_1 = arith.constant 0 : i32
    %c0_i32_2 = arith.constant 0 : i32
    return %arg0, %c0_i32, %c0_i32_0, %c0_i32_1 : i32, i32, i32, i32
  }
  func.func @transform_1(%arg0: i32) -> (i32, i32) {
    %c0_i32 = arith.constant 0 : i32
    %c0_i32_0 = arith.constant 0 : i32
    %c0_i32_1 = arith.constant 0 : i32
    return %c0_i32, %c0_i32_0 : i32, i32
  }
  func.func @transform_2(%arg0: i32) -> (i32, i32) {
    %c0_i32 = arith.constant 0 : i32
    %c0_i32_0 = arith.constant 0 : i32
    %c0_i32_1 = arith.constant 0 : i32
    return %c0_i32, %c0_i32_0 : i32, i32
  }
  func.func @transform_3(%arg0: i32) -> (i32, i32) {
    %c0_i32 = arith.constant 0 : i32
    %c0_i32_0 = arith.constant 0 : i32
    %c0_i32_1 = arith.constant 0 : i32
    return %c0_i32, %c0_i32_0 : i32, i32
  }
  func.func @transform_4(%arg0: i32) -> (i32, i32) {
    %c0_i32 = arith.constant 0 : i32
    %c0_i32_0 = arith.constant 0 : i32
    %c0_i32_1 = arith.constant 0 : i32
    return %c0_i32, %c0_i32_0 : i32, i32
  }
  func.func @transform_5(%arg0: i32) -> (i32, i32) {
    %c0_i32 = arith.constant 0 : i32
    %c0_i32_0 = arith.constant 0 : i32
    %c0_i32_1 = arith.constant 0 : i32
    return %c0_i32, %c0_i32_0 : i32, i32
  }
  func.func @transform_6(%arg0: i32) -> (i32, i32) {
    %c0_i32 = arith.constant 0 : i32
    %c0_i32_0 = arith.constant 0 : i32
    %c0_i32_1 = arith.constant 0 : i32
    return %c0_i32, %c0_i32_0 : i32, i32
  }
  func.func @transform_7(%arg0: i32) -> (i32, i32) {
    %c0_i32 = arith.constant 0 : i32
    %c0_i32_0 = arith.constant 0 : i32
    %c0_i32_1 = arith.constant 0 : i32
    return %c0_i32, %c0_i32_0 : i32, i32
  }
  func.func @transform_8(%arg0: i32) -> (i32, i32) {
    %c0_i32 = arith.constant 0 : i32
    %c0_i32_0 = arith.constant 0 : i32
    %c0_i32_1 = arith.constant 0 : i32
    return %c0_i32, %c0_i32_0 : i32, i32
  }
  func.func @transform_9(%arg0: i32) -> (i32, i32) {
    %c0_i32 = arith.constant 0 : i32
    %c0_i32_0 = arith.constant 0 : i32
    %c0_i32_1 = arith.constant 0 : i32
    return %c0_i32, %c0_i32_0 : i32, i32
  }
  func.func @transform_10(%arg0: i32) -> (i32, i32) {
    %c0_i32 = arith.constant 0 : i32
    %c0_i32_0 = arith.constant 0 : i32
    %c0_i32_1 = arith.constant 0 : i32
    return %c0_i32, %c0_i32_0 : i32, i32
  }
  func.func @transform_11(%arg0: i32) -> (i32, i32) {
    %c0_i32 = arith.constant 0 : i32
    %c0_i32_0 = arith.constant 0 : i32
    %c0_i32_1 = arith.constant 0 : i32
    return %c0_i32, %c0_i32_0 : i32, i32
  }
  func.func @transform_12(%arg0: i32) -> (i32, i32) {
    %c0_i32 = arith.constant 0 : i32
    %c0_i32_0 = arith.constant 0 : i32
    %c0_i32_1 = arith.constant 0 : i32
    return %c0_i32, %c0_i32_0 : i32, i32
  }
  func.func @transform_13(%arg0: i32) -> (i32, i32, i32, i32) {
    %c0_i32 = arith.constant 0 : i32
    %c0_i32_0 = arith.constant 0 : i32
    %c0_i32_1 = arith.constant 0 : i32
    %c0_i32_2 = arith.constant 0 : i32
    return %arg0, %c0_i32, %c0_i32_0, %c0_i32_1 : i32, i32, i32, i32
  }
}

</mosaic_0001>

<llo_original>
// kernel: tpu_custom_call.1
$region0: #{tpu_custom_call.1}
  #allocation0 [shape = 'u32[]', space=smem, size = 0x4, offset = 0x4, fixed_abs, tag = 'smem constant byte address 0x4 - core index']
  #allocation1 [shape = 'u32[72,128]{1,0:T(1,128)}', space=vmem, size = 0x9000, scoped, tag = 'internal scratch']
  #allocation2 [shape = 'bf16[18,18,32]{2,1,0:T(8,128)(2,1)}', space=vmem, size = 0x1b000, scoped, tag = 'scratch operand']
  #allocation3 [shape = 'bf16[18,18,64]{2,1,0:T(8,128)(2,1)}', space=vmem, size = 0x1b000, scoped, tag = 'scratch operand']
  #allocation4 [shape = 'bf16[18,18,32]{2,1,0:T(8,128)(2,1)}', space=vmem, size = 0x1b000, scoped, tag = 'scratch operand']
  %s0 = inlined_call_operand.vmem [shape: f32[2,16,16,32], index: 0, kind: input, shape index: {}]
  %s1 = inlined_call_operand.vmem [shape: f32[1,32], index: 1, kind: input, shape index: {}]
  %s2 = inlined_call_operand.vmem [shape: f32[1,32], index: 2, kind: input, shape index: {}]
  %s3 = inlined_call_operand.vmem [shape: f32[32,32], index: 3, kind: input, shape index: {}]
  %s4 = inlined_call_operand.vmem [shape: bf16[288,64], index: 4, kind: input, shape index: {}]
  %s5 = inlined_call_operand.vmem [shape: f32[1,64], index: 5, kind: input, shape index: {}]
  %s6 = inlined_call_operand.vmem [shape: f32[1,64], index: 6, kind: input, shape index: {}]
  %s7 = inlined_call_operand.vmem [shape: f32[1,64], index: 7, kind: input, shape index: {}]
  %s8 = inlined_call_operand.vmem [shape: f32[64,32], index: 8, kind: input, shape index: {}]
  %s9 = inlined_call_operand.vmem [shape: bf16[576,64], index: 9, kind: input, shape index: {}]
  %s10 = inlined_call_operand.vmem [shape: f32[1,64], index: 10, kind: input, shape index: {}]
  %s11 = inlined_call_operand.vmem [shape: bf16[288,64], index: 11, kind: input, shape index: {}]
  %s12 = inlined_call_operand.vmem [shape: f32[1,64], index: 12, kind: input, shape index: {}]
  %s13 = inlined_call_operand.hbm [shape: f32[2,16,16,64], index: 13, kind: output, shape index: {}]
  %s14 = sld [smem:[#allocation0]]
  $region85: #{tpu_custom_call.1} parent=0
    _
  %s16 = ssub.s32 1, %s14
  %s17 = scalar_select 0, %s16, %s14
  $region1: #{tpu_custom_call.1} parent=0
    #allocation5 [shape = 'u8[262144]{0}', space=vmem, size = 0x40000, scoped, tag = 'output window, operand 0']
    #allocation6 [shape = 's32[2]{0}', space=sflag, size = 0x8, scoped, tag = 'scoped memory for tpu_custom_call.1']
    %18 = vsyncpa [#allocation6], 0
    %s19 = scalar_lea.sflag [#allocation6], 1
    %20 = vsyncpa %s19, 0
    loop: start=0, step=1, limit=4
    $region2: #{tpu_custom_call.1} parent=1 // loop_pre_header
      _
    $region3: #{tpu_custom_call.1} parent=1 // loop_header
      %s22 = sphi 0, %s26
      %p23 = scmp.ge.s32.totalorder %s22, 4
      %s32 = sphi 0, %s34
      %s35 = sphi 0, %s32
      %s36 = sphi 0, %s35
      %s52 = sphi 0, %s36
      %s56 = sphi 0, %s56
      %s58 = sphi 0, %s56
      %s59 = sphi 0, %s58
      %s73 = sphi 0, %s59
      %s77 = sphi 0, %s77
      %s79 = sphi 0, %s77
      %s80 = sphi 0, %s79
      %s94 = sphi 0, %s80
      %s98 = sphi 0, %s98
      %s100 = sphi 0, %s98
      %s101 = sphi 0, %s100
      %s115 = sphi 0, %s101
      %s119 = sphi 0, %s119
      %s121 = sphi 0, %s119
      %s122 = sphi 0, %s121
      %s136 = sphi 0, %s122
      %s140 = sphi 0, %s140
      %s142 = sphi 0, %s140
      %s143 = sphi 0, %s142
      %s157 = sphi 0, %s143
      %s161 = sphi 0, %s161
      %s163 = sphi 0, %s161
      %s164 = sphi 0, %s163
      %s178 = sphi 0, %s164
      %s182 = sphi 0, %s182
      %s184 = sphi 0, %s182
      %s185 = sphi 0, %s184
      %s199 = sphi 0, %s185
      %s203 = sphi 0, %s203
      %s205 = sphi 0, %s203
      %s206 = sphi 0, %s205
      %s220 = sphi 0, %s206
      %s224 = sphi 0, %s224
      %s226 = sphi 0, %s224
      %s227 = sphi 0, %s226
      %s241 = sphi 0, %s227
      %s245 = sphi 0, %s245
      %s247 = sphi 0, %s245
      %s248 = sphi 0, %s247
      %s262 = sphi 0, %s248
      %s266 = sphi 0, %s266
      %s268 = sphi 0, %s266
      %s269 = sphi 0, %s268
      %s283 = sphi 0, %s269
      %s287 = sphi 0, %s287
      %s289 = sphi 0, %s287
      %s290 = sphi 0, %s289
      %s304 = sphi 0, %s290
      %s310 = sphi 0, %s312
      %s313 = sphi 0, %s310
      %s314 = sphi 0, %s313
      %s330 = sphi 0, %s314
    $region4: #{tpu_custom_call.1} parent=1 // loop_header_branch
      %25 = sbr.rel (%p23) target = $region8
    $region5: #{tpu_custom_call.1} parent=1 // loop_body
      %s27 = ssub.s32 %s22, 1
      %s28 = ssub.s32 %s22, 2
      %s29 = sadd.s32 %s22, 1
      %s30 = ssub.s32 %s22, %s29
      %p31 = scmp.eq.s32.totalorder %s30, 0
      %s33 = sadd.s32 %s32, 1
      %s34 = scalar_select %p31, %s32, %s33
      %p37 = pneg %p31
      %p38 = scmp.eq.s32.totalorder %s22, 1
      %p39 = por %p37, %p38
      %p40 = scmp.ne.s32.totalorder %s32, %s35
      %p41 = scmp.eq.s32.totalorder %s22, 0
      %p42 = por %p40, %p41
      %p43 = scmp.ne.s32.totalorder %s32, %s35
      %p44 = scmp.eq.s32.totalorder %s27, 1
      %p45 = por %p43, %p44
      %p46 = scmp.ne.s32.totalorder %s35, %s36
      %p47 = scmp.eq.s32.totalorder %s27, 0
      %p48 = por %p46, %p47
      %p49 = scmp.ne.s32.totalorder %s35, %s36
      %p50 = scmp.eq.s32.totalorder %s28, 1
      %p51 = por %p49, %p50
      %p53 = scmp.ne.s32.totalorder %s36, %s52
      %p54 = scmp.eq.s32.totalorder %s28, 0
      %p55 = por %p53, %p54
      %s57 = sadd.s32 %s56, 1
      %p60 = scmp.eq.s32.totalorder %s22, 1
      %p61 = scmp.ne.s32.totalorder %s56, %s58
      %p62 = scmp.eq.s32.totalorder %s22, 0
      %p63 = por %p61, %p62
      %p64 = scmp.ne.s32.totalorder %s56, %s58
      %p65 = scmp.eq.s32.totalorder %s27, 1
      %p66 = por %p64, %p65
      %p67 = scmp.ne.s32.totalorder %s58, %s59
      %p68 = scmp.eq.s32.totalorder %s27, 0
      %p69 = por %p67, %p68
      %p70 = scmp.ne.s32.totalorder %s58, %s59
      %p71 = scmp.eq.s32.totalorder %s28, 1
      %p72 = por %p70, %p71
      %p74 = scmp.ne.s32.totalorder %s59, %s73
      %p75 = scmp.eq.s32.totalorder %s28, 0
      %p76 = por %p74, %p75
      %s78 = sadd.s32 %s77, 1
      %p81 = scmp.eq.s32.totalorder %s22, 1
      %p82 = scmp.ne.s32.totalorder %s77, %s79
      %p83 = scmp.eq.s32.totalorder %s22, 0
      %p84 = por %p82, %p83
      %p85 = scmp.ne.s32.totalorder %s77, %s79
      %p86 = scmp.eq.s32.totalorder %s27, 1
      %p87 = por %p85, %p86
      %p88 = scmp.ne.s32.totalorder %s79, %s80
      %p89 = scmp.eq.s32.totalorder %s27, 0
      %p90 = por %p88, %p89
      %p91 = scmp.ne.s32.totalorder %s79, %s80
      %p92 = scmp.eq.s32.totalorder %s28, 1
      %p93 = por %p91, %p92
      %p95 = scmp.ne.s32.totalorder %s80, %s94
      %p96 = scmp.eq.s32.totalorder %s28, 0
      %p97 = por %p95, %p96
      %s99 = sadd.s32 %s98, 1
      %p102 = scmp.eq.s32.totalorder %s22, 1
      %p103 = scmp.ne.s32.totalorder %s98, %s100
      %p104 = scmp.eq.s32.totalorder %s22, 0
      %p105 = por %p103, %p104
      %p106 = scmp.ne.s32.totalorder %s98, %s100
      %p107 = scmp.eq.s32.totalorder %s27, 1
      %p108 = por %p106, %p107
      %p109 = scmp.ne.s32.totalorder %s100, %s101
      %p110 = scmp.eq.s32.totalorder %s27, 0
      %p111 = por %p109, %p110
      %p112 = scmp.ne.s32.totalorder %s100, %s101
      %p113 = scmp.eq.s32.totalorder %s28, 1
      %p114 = por %p112, %p113
      %p116 = scmp.ne.s32.totalorder %s101, %s115
      %p117 = scmp.eq.s32.totalorder %s28, 0
      %p118 = por %p116, %p117
      %s120 = sadd.s32 %s119, 1
      %p123 = scmp.eq.s32.totalorder %s22, 1
      %p124 = scmp.ne.s32.totalorder %s119, %s121
      %p125 = scmp.eq.s32.totalorder %s22, 0
      %p126 = por %p124, %p125
      %p127 = scmp.ne.s32.totalorder %s119, %s121
      %p128 = scmp.eq.s32.totalorder %s27, 1
      %p129 = por %p127, %p128
      %p130 = scmp.ne.s32.totalorder %s121, %s122
      %p131 = scmp.eq.s32.totalorder %s27, 0
      %p132 = por %p130, %p131
      %p133 = scmp.ne.s32.totalorder %s121, %s122
      %p134 = scmp.eq.s32.totalorder %s28, 1
      %p135 = por %p133, %p134
      %p137 = scmp.ne.s32.totalorder %s122, %s136
      %p138 = scmp.eq.s32.totalorder %s28, 0
      %p139 = por %p137, %p138
      %s141 = sadd.s32 %s140, 1
      %p144 = scmp.eq.s32.totalorder %s22, 1
      %p145 = scmp.ne.s32.totalorder %s140, %s142
      %p146 = scmp.eq.s32.totalorder %s22, 0
      %p147 = por %p145, %p146
      %p148 = scmp.ne.s32.totalorder %s140, %s142
      %p149 = scmp.eq.s32.totalorder %s27, 1
      %p150 = por %p148, %p149
      %p151 = scmp.ne.s32.totalorder %s142, %s143
      %p152 = scmp.eq.s32.totalorder %s27, 0
      %p153 = por %p151, %p152
      %p154 = scmp.ne.s32.totalorder %s142, %s143
      %p155 = scmp.eq.s32.totalorder %s28, 1
      %p156 = por %p154, %p155
      %p158 = scmp.ne.s32.totalorder %s143, %s157
      %p159 = scmp.eq.s32.totalorder %s28, 0
      %p160 = por %p158, %p159
      %s162 = sadd.s32 %s161, 1
      %p165 = scmp.eq.s32.totalorder %s22, 1
      %p166 = scmp.ne.s32.totalorder %s161, %s163
      %p167 = scmp.eq.s32.totalorder %s22, 0
      %p168 = por %p166, %p167
      %p169 = scmp.ne.s32.totalorder %s161, %s163
      %p170 = scmp.eq.s32.totalorder %s27, 1
      %p171 = por %p169, %p170
      %p172 = scmp.ne.s32.totalorder %s163, %s164
      %p173 = scmp.eq.s32.totalorder %s27, 0
      %p174 = por %p172, %p173
      %p175 = scmp.ne.s32.totalorder %s163, %s164
      %p176 = scmp.eq.s32.totalorder %s28, 1
      %p177 = por %p175, %p176
      %p179 = scmp.ne.s32.totalorder %s164, %s178
      %p180 = scmp.eq.s32.totalorder %s28, 0
      %p181 = por %p179, %p180
      %s183 = sadd.s32 %s182, 1
      %p186 = scmp.eq.s32.totalorder %s22, 1
      %p187 = scmp.ne.s32.totalorder %s182, %s184
      %p188 = scmp.eq.s32.totalorder %s22, 0
      %p189 = por %p187, %p188
      %p190 = scmp.ne.s32.totalorder %s182, %s184
      %p191 = scmp.eq.s32.totalorder %s27, 1
      %p192 = por %p190, %p191
      %p193 = scmp.ne.s32.totalorder %s184, %s185
      %p194 = scmp.eq.s32.totalorder %s27, 0
      %p195 = por %p193, %p194
      %p196 = scmp.ne.s32.totalorder %s184, %s185
      %p197 = scmp.eq.s32.totalorder %s28, 1
      %p198 = por %p196, %p197
      %p200 = scmp.ne.s32.totalorder %s185, %s199
      %p201 = scmp.eq.s32.totalorder %s28, 0
      %p202 = por %p200, %p201
      %s204 = sadd.s32 %s203, 1
      %p207 = scmp.eq.s32.totalorder %s22, 1
      %p208 = scmp.ne.s32.totalorder %s203, %s205
      %p209 = scmp.eq.s32.totalorder %s22, 0
      %p210 = por %p208, %p209
      %p211 = scmp.ne.s32.totalorder %s203, %s205
      %p212 = scmp.eq.s32.totalorder %s27, 1
      %p213 = por %p211, %p212
      %p214 = scmp.ne.s32.totalorder %s205, %s206
      %p215 = scmp.eq.s32.totalorder %s27, 0
      %p216 = por %p214, %p215
      %p217 = scmp.ne.s32.totalorder %s205, %s206
      %p218 = scmp.eq.s32.totalorder %s28, 1
      %p219 = por %p217, %p218
      %p221 = scmp.ne.s32.totalorder %s206, %s220
      %p222 = scmp.eq.s32.totalorder %s28, 0
      %p223 = por %p221, %p222
      %s225 = sadd.s32 %s224, 1
      %p228 = scmp.eq.s32.totalorder %s22, 1
      %p229 = scmp.ne.s32.totalorder %s224, %s226
      %p230 = scmp.eq.s32.totalorder %s22, 0
      %p231 = por %p229, %p230
      %p232 = scmp.ne.s32.totalorder %s224, %s226
      %p233 = scmp.eq.s32.totalorder %s27, 1
      %p234 = por %p232, %p233
      %p235 = scmp.ne.s32.totalorder %s226, %s227
      %p236 = scmp.eq.s32.totalorder %s27, 0
      %p237 = por %p235, %p236
      %p238 = scmp.ne.s32.totalorder %s226, %s227
      %p239 = scmp.eq.s32.totalorder %s28, 1
      %p240 = por %p238, %p239
      %p242 = scmp.ne.s32.totalorder %s227, %s241
      %p243 = scmp.eq.s32.totalorder %s28, 0
      %p244 = por %p242, %p243
      %s246 = sadd.s32 %s245, 1
      %p249 = scmp.eq.s32.totalorder %s22, 1
      %p250 = scmp.ne.s32.totalorder %s245, %s247
      %p251 = scmp.eq.s32.totalorder %s22, 0
      %p252 = por %p250, %p251
      %p253 = scmp.ne.s32.totalorder %s245, %s247
      %p254 = scmp.eq.s32.totalorder %s27, 1
      %p255 = por %p253, %p254
      %p256 = scmp.ne.s32.totalorder %s247, %s248
      %p257 = scmp.eq.s32.totalorder %s27, 0
      %p258 = por %p256, %p257
      %p259 = scmp.ne.s32.totalorder %s247, %s248
      %p260 = scmp.eq.s32.totalorder %s28, 1
      %p261 = por %p259, %p260
      %p263 = scmp.ne.s32.totalorder %s248, %s262
      %p264 = scmp.eq.s32.totalorder %s28, 0
      %p265 = por %p263, %p264
      %s267 = sadd.s32 %s266, 1
      %p270 = scmp.eq.s32.totalorder %s22, 1
      %p271 = scmp.ne.s32.totalorder %s266, %s268
      %p272 = scmp.eq.s32.totalorder %s22, 0
      %p273 = por %p271, %p272
      %p274 = scmp.ne.s32.totalorder %s266, %s268
      %p275 = scmp.eq.s32.totalorder %s27, 1
      %p276 = por %p274, %p275
      %p277 = scmp.ne.s32.totalorder %s268, %s269
      %p278 = scmp.eq.s32.totalorder %s27, 0
      %p279 = por %p277, %p278
      %p280 = scmp.ne.s32.totalorder %s268, %s269
      %p281 = scmp.eq.s32.totalorder %s28, 1
      %p282 = por %p280, %p281
      %p284 = scmp.ne.s32.totalorder %s269, %s283
      %p285 = scmp.eq.s32.totalorder %s28, 0
      %p286 = por %p284, %p285
      %s288 = sadd.s32 %s287, 1
      %p291 = scmp.eq.s32.totalorder %s22, 1
      %p292 = scmp.ne.s32.totalorder %s287, %s289
      %p293 = scmp.eq.s32.totalorder %s22, 0
      %p294 = por %p292, %p293
      %p295 = scmp.ne.s32.totalorder %s287, %s289
      %p296 = scmp.eq.s32.totalorder %s27, 1
      %p297 = por %p295, %p296
      %p298 = scmp.ne.s32.totalorder %s289, %s290
      %p299 = scmp.eq.s32.totalorder %s27, 0
      %p300 = por %p298, %p299
      %p301 = scmp.ne.s32.totalorder %s289, %s290
      %p302 = scmp.eq.s32.totalorder %s28, 1
      %p303 = por %p301, %p302
      %p305 = scmp.ne.s32.totalorder %s290, %s304
      %p306 = scmp.eq.s32.totalorder %s28, 0
      %p307 = por %p305, %p306
      %s308 = ssub.s32 %s22, %s29
      %p309 = scmp.eq.s32.totalorder %s308, 0
      %s311 = sadd.s32 %s310, 1
      %s312 = scalar_select %p309, %s310, %s311
      %p315 = pneg %p309
      %p316 = scmp.eq.s32.totalorder %s22, 1
      %p317 = por %p315, %p316
      %p318 = scmp.ne.s32.totalorder %s310, %s313
      %p319 = scmp.eq.s32.totalorder %s22, 0
      %p320 = por %p318, %p319
      %p321 = scmp.ne.s32.totalorder %s310, %s313
      %p322 = scmp.eq.s32.totalorder %s27, 1
      %p323 = por %p321, %p322
      %p324 = scmp.ne.s32.totalorder %s313, %s314
      %p325 = scmp.eq.s32.totalorder %s27, 0
      %p326 = por %p324, %p325
      %p327 = scmp.ne.s32.totalorder %s313, %s314
      %p328 = scmp.eq.s32.totalorder %s28, 1
      %p329 = por %p327, %p328
      %p331 = scmp.ne.s32.totalorder %s314, %s330
      %p332 = scmp.eq.s32.totalorder %s28, 0
      %p333 = por %p331, %p332
      %p334 = scmp.le.s32.totalorder 1, %s22
      %p335 = scmp.lt.s32.totalorder %s22, 3
      %p336 = pnand %p334, %p335
      %p337 = pneg %p336
      // Predicated region
      $region9: #{tpu_custom_call.1} parent=5 // pred_check
        _
      $region10: #{tpu_custom_call.1} parent=5 // pred_check_branch
        %339 = sbr.rel (%p336) target = $region12
      $region11: #{tpu_custom_call.1} parent=5 // pred_region
        %s340 = ssub.s32 %s22, 1
        // Predicated region
        $region13: #{tpu_custom_call.1} parent=11 // pred_check
          %p341 = pneg %p69
        $region14: #{tpu_custom_call.1} parent=11 // pred_check_branch
          %343 = sbr.rel (%p341) target = $region16
        $region15: #{tpu_custom_call.1} parent=11 // pred_region
          _
        $region16: #{tpu_custom_call.1} parent=11 // pred_fallthru
          _
        // Predicated region
        $region17: #{tpu_custom_call.1} parent=11 // pred_check
          %p344 = pneg %p90
        $region18: #{tpu_custom_call.1} parent=11 // pred_check_branch
          %346 = sbr.rel (%p344) target = $region20
        $region19: #{tpu_custom_call.1} parent=11 // pred_region
          _
        $region20: #{tpu_custom_call.1} parent=11 // pred_fallthru
          _
        // Predicated region
        $region21: #{tpu_custom_call.1} parent=11 // pred_check
          %p347 = pneg %p111
        $region22: #{tpu_custom_call.1} parent=11 // pred_check_branch
          %349 = sbr.rel (%p347) target = $region24
        $region23: #{tpu_custom_call.1} parent=11 // pred_region
          _
        $region24: #{tpu_custom_call.1} parent=11 // pred_fallthru
          _
        // Predicated region
        $region25: #{tpu_custom_call.1} parent=11 // pred_check
          %p350 = pneg %p132
        $region26: #{tpu_custom_call.1} parent=11 // pred_check_branch
          %352 = sbr.rel (%p350) target = $region28
        $region27: #{tpu_custom_call.1} parent=11 // pred_region
          _
        $region28: #{tpu_custom_call.1} parent=11 // pred_fallthru
          _
        // Predicated region
        $region29: #{tpu_custom_call.1} parent=11 // pred_check
          %p353 = pneg %p153
        $region30: #{tpu_custom_call.1} parent=11 // pred_check_branch
          %355 = sbr.rel (%p353) target = $region32
        $region31: #{tpu_custom_call.1} parent=11 // pred_region
          _
        $region32: #{tpu_custom_call.1} parent=11 // pred_fallthru
          _
        // Predicated region
        $region33: #{tpu_custom_call.1} parent=11 // pred_check
          %p356 = pneg %p174
        $region34: #{tpu_custom_call.1} parent=11 // pred_check_branch
          %358 = sbr.rel (%p356) target = $region36
        $region35: #{tpu_custom_call.1} parent=11 // pred_region
          _
        $region36: #{tpu_custom_call.1} parent=11 // pred_fallthru
          _
        // Predicated region
        $region37: #{tpu_custom_call.1} parent=11 // pred_check
          %p359 = pneg %p195
        $region38: #{tpu_custom_call.1} parent=11 // pred_check_branch
          %361 = sbr.rel (%p359) target = $region40
        $region39: #{tpu_custom_call.1} parent=11 // pred_region
          _
        $region40: #{tpu_custom_call.1} parent=11 // pred_fallthru
          _
        // Predicated region
        $region41: #{tpu_custom_call.1} parent=11 // pred_check
          %p362 = pneg %p216
        $region42: #{tpu_custom_call.1} parent=11 // pred_check_branch
          %364 = sbr.rel (%p362) target = $region44
        $region43: #{tpu_custom_call.1} parent=11 // pred_region
          _
        $region44: #{tpu_custom_call.1} parent=11 // pred_fallthru
          _
        // Predicated region
        $region45: #{tpu_custom_call.1} parent=11 // pred_check
          %p365 = pneg %p237
        $region46: #{tpu_custom_call.1} parent=11 // pred_check_branch
          %367 = sbr.rel (%p365) target = $region48
        $region47: #{tpu_custom_call.1} parent=11 // pred_region
          _
        $region48: #{tpu_custom_call.1} parent=11 // pred_fallthru
          _
        // Predicated region
        $region49: #{tpu_custom_call.1} parent=11 // pred_check
          %p368 = pneg %p258
        $region50: #{tpu_custom_call.1} parent=11 // pred_check_branch
          %370 = sbr.rel (%p368) target = $region52
        $region51: #{tpu_custom_call.1} parent=11 // pred_region
          _
        $region52: #{tpu_custom_call.1} parent=11 // pred_fallthru
          _
        // Predicated region
        $region53: #{tpu_custom_call.1} parent=11 // pred_check
          %p371 = pneg %p279
        $region54: #{tpu_custom_call.1} parent=11 // pred_check_branch
          %373 = sbr.rel (%p371) target = $region56
        $region55: #{tpu_custom_call.1} parent=11 // pred_region
          _
        $region56: #{tpu_custom_call.1} parent=11 // pred_fallthru
          _
        // Predicated region
        $region57: #{tpu_custom_call.1} parent=11 // pred_check
          %p374 = pneg %p300
        $region58: #{tpu_custom_call.1} parent=11 // pred_check_branch
          %376 = sbr.rel (%p374) target = $region60
        $region59: #{tpu_custom_call.1} parent=11 // pred_region
          _
        $region60: #{tpu_custom_call.1} parent=11 // pred_fallthru
          _
      $region12: #{tpu_custom_call.1} parent=5 // pred_fallthru
        _
      %p377 = scmp.lt.s32.totalorder %s22, 2
      // Predicated region
      $region61: #{tpu_custom_call.1} parent=5 // pred_check
        %p378 = pneg %p377
      $region62: #{tpu_custom_call.1} parent=5 // pred_check_branch
        %380 = sbr.rel (%p378) target = $region64
      $region63: #{tpu_custom_call.1} parent=5 // pred_region
        // Predicated region
        $region65: #{tpu_custom_call.1} parent=63 // pred_check
          %p381 = pneg %p42
        $region66: #{tpu_custom_call.1} parent=63 // pred_check_branch
          %383 = sbr.rel (%p381) target = $region68
        $region67: #{tpu_custom_call.1} parent=63 // pred_region
          %p384 = scmp.lt.s32.totalorder %s22, 1
          %s385 = scalar_select %p384, %s22, 1
          %s386 = smul.addr %s385, 32
          %s387 = smul.addr %s386, 8
          %s388 = scalar_lea.vmem %s0, %s387
        $region68: #{tpu_custom_call.1} parent=63 // pred_fallthru
          _
      $region64: #{tpu_custom_call.1} parent=5 // pred_fallthru
        _
      %p389 = scmp.le.s32.totalorder 1, %s22
      %p390 = scmp.lt.s32.totalorder %s22, 3
      %p391 = pnand %p389, %p390
      %p392 = pneg %p391
      // Predicated region
      $region69: #{tpu_custom_call.1} parent=5 // pred_check
        _
      $region70: #{tpu_custom_call.1} parent=5 // pred_check_branch
        %394 = sbr.rel (%p391) target = $region72
      $region71: #{tpu_custom_call.1} parent=5 // pred_region
        %s395 = ssub.s32 %s22, 1
        %p396 = scmp.lt.s32.totalorder %s27, 1
        %s397 = scalar_select %p396, %s27, 1
        %s398 = smul.addr %s397, 32
        %s399 = smul.addr %s398, 8
        %s400 = scalar_lea.vmem %s0, %s399
        %p401 = pneg %p48
        %p402 = pneg %p45
        %p403 = pneg %p69
        %p404 = pneg %p66
        %p405 = pneg %p90
        %p406 = pneg %p87
        %p407 = pneg %p111
        %p408 = pneg %p108
        %p409 = pneg %p132
        %p410 = pneg %p129
        %p411 = pneg %p153
        %p412 = pneg %p150
        %p413 = pneg %p174
        %p414 = pneg %p171
        %p415 = pneg %p195
        %p416 = pneg %p192
        %p417 = pneg %p216
        %p418 = pneg %p213
        %p419 = pneg %p237
        %p420 = pneg %p234
        %p421 = pneg %p258
        %p422 = pneg %p255
        %p423 = pneg %p279
        %p424 = pneg %p276
        %p425 = pneg %p300
        %p426 = pneg %p297
        %p427 = pneg %p326
        %p428 = pneg %p323
        %s429 = sand.u32 %s313, 1
        %s430 = scalar_lea.sflag [#allocation6], %s429
        %s431 = sand.u32 %s313, 1
        %s432 = smul.addr %s431, 256
        %s433 = scalar_lea.vmem [#allocation5], %s432
        %p434 = scmp.lt.s32.totalorder %s27, 1
        %s435 = scalar_select %p434, %s27, 1
        %s436 = smul.addr %s435, 32
        %s437 = smul.addr %s436, 8
        %s438 = scalar_lea.vmem %s0, %s437
        %v440 = vld [vmem:[%s438] sm:$0xff]
        %v441 = vld [vmem:[%s438 + $0x8] sm:$0xff]
        %v442 = vld [vmem:[%s438 + $0x10] sm:$0xff]
        %v443 = vld [vmem:[%s438 + $0x18] sm:$0xff]
        %v444 = vld [vmem:[%s438 + $0x20] sm:$0xff]
        %v445 = vld [vmem:[%s438 + $0x28] sm:$0xff]
        %v446 = vld [vmem:[%s438 + $0x30] sm:$0xff]
        %v447 = vld [vmem:[%s438 + $0x38] sm:$0xff]
        %v448 = vld [vmem:[%s438 + $0x40] sm:$0xff]
        %v449 = vld [vmem:[%s438 + $0x48] sm:$0xff]
        %v450 = vld [vmem:[%s438 + $0x50] sm:$0xff]
        %v451 = vld [vmem:[%s438 + $0x58] sm:$0xff]
        %v452 = vld [vmem:[%s438 + $0x60] sm:$0xff]
        %v453 = vld [vmem:[%s438 + $0x68] sm:$0xff]
        %v454 = vld [vmem:[%s438 + $0x70] sm:$0xff]
        %v455 = vld [vmem:[%s438 + $0x78] sm:$0xff]
        %v456 = vld [vmem:[%s438 + $0x80] sm:$0xff]
        %v457 = vld [vmem:[%s438 + $0x88] sm:$0xff]
        %v458 = vld [vmem:[%s438 + $0x90] sm:$0xff]
        %v459 = vld [vmem:[%s438 + $0x98] sm:$0xff]
        %v460 = vld [vmem:[%s438 + $0xa0] sm:$0xff]
        %v461 = vld [vmem:[%s438 + $0xa8] sm:$0xff]
        %v462 = vld [vmem:[%s438 + $0xb0] sm:$0xff]
        %v463 = vld [vmem:[%s438 + $0xb8] sm:$0xff]
        %v464 = vld [vmem:[%s438 + $0xc0] sm:$0xff]
        %v465 = vld [vmem:[%s438 + $0xc8] sm:$0xff]
        %v466 = vld [vmem:[%s438 + $0xd0] sm:$0xff]
        %v467 = vld [vmem:[%s438 + $0xd8] sm:$0xff]
        %v468 = vld [vmem:[%s438 + $0xe0] sm:$0xff]
        %v469 = vld [vmem:[%s438 + $0xe8] sm:$0xff]
        %v470 = vld [vmem:[%s438 + $0xf0] sm:$0xff]
        %v471 = vld [vmem:[%s438 + $0xf8] sm:$0xff]
        %v472 = vld [vmem:[%s1] sm:$0x1]
        %v473 = vld [vmem:[%s2] sm:$0x1]
        %v474 = vld [vmem:[%s3] sm:$0xff]
        %v475 = vld [vmem:[%s3 + $0x8] sm:$0xff]
        %v476 = vld [vmem:[%s3 + $0x10] sm:$0xff]
        %v477 = vld [vmem:[%s3 + $0x18] sm:$0xff]
        %vm478 = vcmask 261120
        %v479 = vsel %vm478, %v440, 0.0
        %v480 = vsel %vm478, %v441, 0.0
        %v481 = vadd.f32 %v479, %v480
        %v482 = vsel %vm478, %v442, 0.0
        %v483 = vadd.f32 %v481, %v482
        %v484 = vsel %vm478, %v443, 0.0
        %v485 = vadd.f32 %v483, %v484
        %v486 = vsel %vm478, %v444, 0.0
        %v487 = vadd.f32 %v485, %v486
        %v488 = vsel %vm478, %v445, 0.0
        %v489 = vadd.f32 %v487, %v488
        %v490 = vsel %vm478, %v446, 0.0
        %v491 = vadd.f32 %v489, %v490
        %v492 = vsel %vm478, %v447, 0.0
        %v493 = vadd.f32 %v491, %v492
        %v494 = vsel %vm478, %v448, 0.0
        %v495 = vadd.f32 %v493, %v494
        %v496 = vsel %vm478, %v449, 0.0
        %v497 = vadd.f32 %v495, %v496
        %v498 = vsel %vm478, %v450, 0.0
        %v499 = vadd.f32 %v497, %v498
        %v500 = vsel %vm478, %v451, 0.0
        %v501 = vadd.f32 %v499, %v500
        %v502 = vsel %vm478, %v452, 0.0
        %v503 = vadd.f32 %v501, %v502
        %v504 = vsel %vm478, %v453, 0.0
        %v505 = vadd.f32 %v503, %v504
        %v506 = vsel %vm478, %v454, 0.0
        %v507 = vadd.f32 %v505, %v506
        %v508 = vsel %vm478, %v455, 0.0
        %v509 = vadd.f32 %v507, %v508
        %v510 = vsel %vm478, %v456, 0.0
        %v511 = vadd.f32 %v509, %v510
        %v512 = vsel %vm478, %v457, 0.0
        %v513 = vadd.f32 %v511, %v512
        %v514 = vsel %vm478, %v458, 0.0
        %v515 = vadd.f32 %v513, %v514
        %v516 = vsel %vm478, %v459, 0.0
        %v517 = vadd.f32 %v515, %v516
        %v518 = vsel %vm478, %v460, 0.0
        %v519 = vadd.f32 %v517, %v518
        %v520 = vsel %vm478, %v461, 0.0
        %v521 = vadd.f32 %v519, %v520
        %v522 = vsel %vm478, %v462, 0.0
        %v523 = vadd.f32 %v521, %v522
        %v524 = vsel %vm478, %v463, 0.0
        %v525 = vadd.f32 %v523, %v524
        %v526 = vsel %vm478, %v464, 0.0
        %v527 = vadd.f32 %v525, %v526
        %v528 = vsel %vm478, %v465, 0.0
        %v529 = vadd.f32 %v527, %v528
        %v530 = vsel %vm478, %v466, 0.0
        %v531 = vadd.f32 %v529, %v530
        %v532 = vsel %vm478, %v467, 0.0
        %v533 = vadd.f32 %v531, %v532
        %v534 = vsel %vm478, %v468, 0.0
        %v535 = vadd.f32 %v533, %v534
        %v536 = vsel %vm478, %v469, 0.0
        %v537 = vadd.f32 %v535, %v536
        %v538 = vsel %vm478, %v470, 0.0
        %v539 = vadd.f32 %v537, %v538
        %v540 = vsel %vm478, %v471, 0.0
        %v541 = vadd.f32 %v539, %v540
        %v542 = vrot.slane %v541, 4
        %v543 = vadd.f32 %v541, %v542
        %v544 = vrot.slane %v543, 2
        %v545 = vadd.f32 %v543, %v544
        %v546 = vrot.slane %v545, 1
        %v547 = vadd.f32 %v545, %v546
        %v549 = vsel %vm478, %v547, 0
        %551 = vmatpush.msra.mxu0 0.0
        %552 = vmatpush.msra.mxu0 0.0
        %553 = vmatpush.msra.mxu0 0.0
        %554 = vmatpush.msra.mxu0 0.0
        %555 = vmatpush.msra.mxu0 0.0
        %556 = vmatpush.msra.mxu0 0.0
        %557 = vmatpush.msra.mxu0 0.0
        %558 = vmatpush.msra.mxu0 0.0
        %559 = vmatpush.msra.mxu0 0.0
        %560 = vmatpush.msra.mxu0 0.0
        %561 = vmatpush.msra.mxu0 0.0
        %562 = vmatpush.msra.mxu0 0.0
        %563 = vmatpush.msra.mxu0 %v477
        %564 = vmatpush.msra.mxu0 %v476
        %565 = vmatpush.msra.mxu0 %v475
        %566 = vmatpush.msra.mxu0 %v474
        %567 = vmatmul.f32.gmra.mxu0 %v549
        %v568 = vpop.f32.mrf.mxu0
        %v569 = vadd.f32 0.0, %v568
        %570 = vdwg.mxu0
        %v571 = vrcp.pop 256.0
        %v572 = vmul.f32 256.0, %v571
        %v573 = vsub.f32 1.0, %v572
        %v574 = vmul.f32 %v571, %v573
        %v575 = vadd.f32 %v571, %v574
        %vm576 = vweird.f32 %v571
        %v577 = vsel %vm576, %v571, %v575
        %v578 = vmul.f32 %v569, %v577
        %v580 = vsel %vm478, %v578, 0
        %v583 = vsel %vm478, %v474, 0
        %v586 = vsel %vm478, %v475, 0
        %v589 = vsel %vm478, %v476, 0
        %v592 = vsel %vm478, %v477, 0
        %594 = vmatpush.xpose.msra.mxu0 0.0
        %595 = vmatpush.xpose.msra.mxu0 0.0
        %596 = vmatpush.xpose.msra.mxu0 0.0
        %597 = vmatpush.xpose.msra.mxu0 0.0
        %598 = vmatpush.xpose.msra.mxu0 0.0
        %599 = vmatpush.xpose.msra.mxu0 0.0
        %600 = vmatpush.xpose.msra.mxu0 0.0
        %601 = vmatpush.xpose.msra.mxu0 0.0
        %602 = vmatpush.xpose.msra.mxu0 0.0
        %603 = vmatpush.xpose.msra.mxu0 0.0
        %604 = vmatpush.xpose.msra.mxu0 0.0
        %605 = vmatpush.xpose.msra.mxu0 0.0
        %606 = vmatpush.xpose.msra.mxu0 %v592
        %607 = vmatpush.xpose.msra.mxu0 %v589
        %608 = vmatpush.xpose.msra.mxu0 %v586
        %609 = vmatpush.xpose.msra.mxu0 %v583
        %610 = vmatmul.f32.gmra.mxu0 %v580
        %v611 = vpop.f32.mrf.mxu0
        %v612 = vadd.f32 0.0, %v611
        %613 = vdwg.mxu0
        %v614 = vperm.slane %v612, 0
        %v615 = vsub.f32 %v440, %v614
        %v616 = vsub.f32 %v441, %v614
        %v617 = vsub.f32 %v442, %v614
        %v618 = vsub.f32 %v443, %v614
        %v619 = vsub.f32 %v444, %v614
        %v620 = vsub.f32 %v445, %v614
        %v621 = vsub.f32 %v446, %v614
        %v622 = vsub.f32 %v447, %v614
        %v623 = vsub.f32 %v448, %v614
        %v624 = vsub.f32 %v449, %v614
        %v625 = vsub.f32 %v450, %v614
        %v626 = vsub.f32 %v451, %v614
        %v627 = vsub.f32 %v452, %v614
        %v628 = vsub.f32 %v453, %v614
        %v629 = vsub.f32 %v454, %v614
        %v630 = vsub.f32 %v455, %v614
        %v631 = vsub.f32 %v456, %v614
        %v632 = vsub.f32 %v457, %v614
        %v633 = vsub.f32 %v458, %v614
        %v634 = vsub.f32 %v459, %v614
        %v635 = vsub.f32 %v460, %v614
        %v636 = vsub.f32 %v461, %v614
        %v637 = vsub.f32 %v462, %v614
        %v638 = vsub.f32 %v463, %v614
        %v639 = vsub.f32 %v464, %v614
        %v640 = vsub.f32 %v465, %v614
        %v641 = vsub.f32 %v466, %v614
        %v642 = vsub.f32 %v467, %v614
        %v643 = vsub.f32 %v468, %v614
        %v644 = vsub.f32 %v469, %v614
        %v645 = vsub.f32 %v470, %v614
        %v646 = vsub.f32 %v471, %v614
        %v647 = vmul.f32 %v615, %v615
        %v648 = vmul.f32 %v616, %v616
        %v649 = vmul.f32 %v617, %v617
        %v650 = vmul.f32 %v618, %v618
        %v651 = vmul.f32 %v619, %v619
        %v652 = vmul.f32 %v620, %v620
        %v653 = vmul.f32 %v621, %v621
        %v654 = vmul.f32 %v622, %v622
        %v655 = vmul.f32 %v623, %v623
        %v656 = vmul.f32 %v624, %v624
        %v657 = vmul.f32 %v625, %v625
        %v658 = vmul.f32 %v626, %v626
        %v659 = vmul.f32 %v627, %v627
        %v660 = vmul.f32 %v628, %v628
        %v661 = vmul.f32 %v629, %v629
        %v662 = vmul.f32 %v630, %v630
        %v663 = vmul.f32 %v631, %v631
        %v664 = vmul.f32 %v632, %v632
        %v665 = vmul.f32 %v633, %v633
        %v666 = vmul.f32 %v634, %v634
        %v667 = vmul.f32 %v635, %v635
        %v668 = vmul.f32 %v636, %v636
        %v669 = vmul.f32 %v637, %v637
        %v670 = vmul.f32 %v638, %v638
        %v671 = vmul.f32 %v639, %v639
        %v672 = vmul.f32 %v640, %v640
        %v673 = vmul.f32 %v641, %v641
        %v674 = vmul.f32 %v642, %v642
        %v675 = vmul.f32 %v643, %v643
        %v676 = vmul.f32 %v644, %v644
        %v677 = vmul.f32 %v645, %v645
        %v678 = vmul.f32 %v646, %v646
        %v679 = vsel %vm478, %v647, 0.0
        %v680 = vsel %vm478, %v648, 0.0
        %v681 = vadd.f32 %v679, %v680
        %v682 = vsel %vm478, %v649, 0.0
        %v683 = vadd.f32 %v681, %v682
        %v684 = vsel %vm478, %v650, 0.0
        %v685 = vadd.f32 %v683, %v684
        %v686 = vsel %vm478, %v651, 0.0
        %v687 = vadd.f32 %v685, %v686
        %v688 = vsel %vm478, %v652, 0.0
        %v689 = vadd.f32 %v687, %v688
        %v690 = vsel %vm478, %v653, 0.0
        %v691 = vadd.f32 %v689, %v690
        %v692 = vsel %vm478, %v654, 0.0
        %v693 = vadd.f32 %v691, %v692
        %v694 = vsel %vm478, %v655, 0.0
        %v695 = vadd.f32 %v693, %v694
        %v696 = vsel %vm478, %v656, 0.0
        %v697 = vadd.f32 %v695, %v696
        %v698 = vsel %vm478, %v657, 0.0
        %v699 = vadd.f32 %v697, %v698
        %v700 = vsel %vm478, %v658, 0.0
        %v701 = vadd.f32 %v699, %v700
        %v702 = vsel %vm478, %v659, 0.0
        %v703 = vadd.f32 %v701, %v702
        %v704 = vsel %vm478, %v660, 0.0
        %v705 = vadd.f32 %v703, %v704
        %v706 = vsel %vm478, %v661, 0.0
        %v707 = vadd.f32 %v705, %v706
        %v708 = vsel %vm478, %v662, 0.0
        %v709 = vadd.f32 %v707, %v708
        %v710 = vsel %vm478, %v663, 0.0
        %v711 = vadd.f32 %v709, %v710
        %v712 = vsel %vm478, %v664, 0.0
        %v713 = vadd.f32 %v711, %v712
        %v714 = vsel %vm478, %v665, 0.0
        %v715 = vadd.f32 %v713, %v714
        %v716 = vsel %vm478, %v666, 0.0
        %v717 = vadd.f32 %v715, %v716
        %v718 = vsel %vm478, %v667, 0.0
        %v719 = vadd.f32 %v717, %v718
        %v720 = vsel %vm478, %v668, 0.0
        %v721 = vadd.f32 %v719, %v720
        %v722 = vsel %vm478, %v669, 0.0
        %v723 = vadd.f32 %v721, %v722
        %v724 = vsel %vm478, %v670, 0.0
        %v725 = vadd.f32 %v723, %v724
        %v726 = vsel %vm478, %v671, 0.0
        %v727 = vadd.f32 %v725, %v726
        %v728 = vsel %vm478, %v672, 0.0
        %v729 = vadd.f32 %v727, %v728
        %v730 = vsel %vm478, %v673, 0.0
        %v731 = vadd.f32 %v729, %v730
        %v732 = vsel %vm478, %v674, 0.0
        %v733 = vadd.f32 %v731, %v732
        %v734 = vsel %vm478, %v675, 0.0
        %v735 = vadd.f32 %v733, %v734
        %v736 = vsel %vm478, %v676, 0.0
        %v737 = vadd.f32 %v735, %v736
        %v738 = vsel %vm478, %v677, 0.0
        %v739 = vadd.f32 %v737, %v738
        %v740 = vsel %vm478, %v678, 0.0
        %v741 = vadd.f32 %v739, %v740
        %v742 = vrot.slane %v741, 4
        %v743 = vadd.f32 %v741, %v742
        %v744 = vrot.slane %v743, 2
        %v745 = vadd.f32 %v743, %v744
        %v746 = vrot.slane %v745, 1
        %v747 = vadd.f32 %v745, %v746
        %v749 = vsel %vm478, %v747, 0
        %751 = vmatpush.msra.mxu0 0.0
        %752 = vmatpush.msra.mxu0 0.0
        %753 = vmatpush.msra.mxu0 0.0
        %754 = vmatpush.msra.mxu0 0.0
        %755 = vmatpush.msra.mxu0 0.0
        %756 = vmatpush.msra.mxu0 0.0
        %757 = vmatpush.msra.mxu0 0.0
        %758 = vmatpush.msra.mxu0 0.0
        %759 = vmatpush.msra.mxu0 0.0
        %760 = vmatpush.msra.mxu0 0.0
        %761 = vmatpush.msra.mxu0 0.0
        %762 = vmatpush.msra.mxu0 0.0
        %763 = vmatpush.msra.mxu0 %v477
        %764 = vmatpush.msra.mxu0 %v476
        %765 = vmatpush.msra.mxu0 %v475
        %766 = vmatpush.msra.mxu0 %v474
        %767 = vmatmul.f32.gmra.mxu0 %v749
        %v768 = vpop.f32.mrf.mxu0
        %v769 = vadd.f32 0.0, %v768
        %770 = vdwg.mxu0
        %v771 = vmul.f32 %v769, %v577
        %v773 = vsel %vm478, %v771, 0
        %775 = vmatpush.xpose.msra.mxu0 0.0
        %776 = vmatpush.xpose.msra.mxu0 0.0
        %777 = vmatpush.xpose.msra.mxu0 0.0
        %778 = vmatpush.xpose.msra.mxu0 0.0
        %779 = vmatpush.xpose.msra.mxu0 0.0
        %780 = vmatpush.xpose.msra.mxu0 0.0
        %781 = vmatpush.xpose.msra.mxu0 0.0
        %782 = vmatpush.xpose.msra.mxu0 0.0
        %783 = vmatpush.xpose.msra.mxu0 0.0
        %784 = vmatpush.xpose.msra.mxu0 0.0
        %785 = vmatpush.xpose.msra.mxu0 0.0
        %786 = vmatpush.xpose.msra.mxu0 0.0
        %787 = vmatpush.xpose.msra.mxu0 %v592
        %788 = vmatpush.xpose.msra.mxu0 %v589
        %789 = vmatpush.xpose.msra.mxu0 %v586
        %790 = vmatpush.xpose.msra.mxu0 %v583
        %791 = vmatmul.f32.gmra.mxu0 %v773
        %v792 = vpop.f32.mrf.mxu0
        %v793 = vadd.f32 1e-05, %v792
        %794 = vdwg.mxu0
        %v795 = vrsqrt.pop %v793
        %v796 = vmul.f32 %v795, %v793
        %v797 = vmul.f32 %v796, %v795
        %v798 = vmul.f32 0.5, %v797
        %v799 = vsub.f32 1.5, %v798
        %v800 = vmul.f32 %v795, %v799
        %vm801 = vweird.f32 %v793
        %vm802 = vweird.f32 %v795
        %vm803 = vmor %vm801, %vm802
        %v804 = vsel %vm803, %v795, %v800
        %v805 = vperm.slane %v804, 0
        %v806 = vmul.f32 %v615, %v805
        %v807 = vmul.f32 %v616, %v805
        %v808 = vmul.f32 %v617, %v805
        %v809 = vmul.f32 %v618, %v805
        %v810 = vmul.f32 %v619, %v805
        %v811 = vmul.f32 %v620, %v805
        %v812 = vmul.f32 %v621, %v805
        %v813 = vmul.f32 %v622, %v805
        %v814 = vmul.f32 %v623, %v805
        %v815 = vmul.f32 %v624, %v805
        %v816 = vmul.f32 %v625, %v805
        %v817 = vmul.f32 %v626, %v805
        %v818 = vmul.f32 %v627, %v805
        %v819 = vmul.f32 %v628, %v805
        %v820 = vmul.f32 %v629, %v805
        %v821 = vmul.f32 %v630, %v805
        %v822 = vmul.f32 %v631, %v805
        %v823 = vmul.f32 %v632, %v805
        %v824 = vmul.f32 %v633, %v805
        %v825 = vmul.f32 %v634, %v805
        %v826 = vmul.f32 %v635, %v805
        %v827 = vmul.f32 %v636, %v805
        %v828 = vmul.f32 %v637, %v805
        %v829 = vmul.f32 %v638, %v805
        %v830 = vmul.f32 %v639, %v805
        %v831 = vmul.f32 %v640, %v805
        %v832 = vmul.f32 %v641, %v805
        %v833 = vmul.f32 %v642, %v805
        %v834 = vmul.f32 %v643, %v805
        %v835 = vmul.f32 %v644, %v805
        %v836 = vmul.f32 %v645, %v805
        %v837 = vmul.f32 %v646, %v805
        %v839 = vperm.slane %v472, 0
        %v841 = vmul.f32 %v806, %v839
        %v842 = vmul.f32 %v807, %v839
        %v843 = vmul.f32 %v808, %v839
        %v844 = vmul.f32 %v809, %v839
        %v845 = vmul.f32 %v810, %v839
        %v846 = vmul.f32 %v811, %v839
        %v847 = vmul.f32 %v812, %v839
        %v848 = vmul.f32 %v813, %v839
        %v849 = vmul.f32 %v814, %v839
        %v850 = vmul.f32 %v815, %v839
        %v851 = vmul.f32 %v816, %v839
        %v852 = vmul.f32 %v817, %v839
        %v853 = vmul.f32 %v818, %v839
        %v854 = vmul.f32 %v819, %v839
        %v855 = vmul.f32 %v820, %v839
        %v856 = vmul.f32 %v821, %v839
        %v857 = vmul.f32 %v822, %v839
        %v858 = vmul.f32 %v823, %v839
        %v859 = vmul.f32 %v824, %v839
        %v860 = vmul.f32 %v825, %v839
        %v861 = vmul.f32 %v826, %v839
        %v862 = vmul.f32 %v827, %v839
        %v863 = vmul.f32 %v828, %v839
        %v864 = vmul.f32 %v829, %v839
        %v865 = vmul.f32 %v830, %v839
        %v866 = vmul.f32 %v831, %v839
        %v867 = vmul.f32 %v832, %v839
        %v868 = vmul.f32 %v833, %v839
        %v869 = vmul.f32 %v834, %v839
        %v870 = vmul.f32 %v835, %v839
        %v871 = vmul.f32 %v836, %v839
        %v872 = vmul.f32 %v837, %v839
        %v874 = vperm.slane %v473, 0
        %v876 = vadd.f32 %v841, %v874
        %v877 = vadd.f32 %v842, %v874
        %v878 = vadd.f32 %v843, %v874
        %v879 = vadd.f32 %v844, %v874
        %v880 = vadd.f32 %v845, %v874
        %v881 = vadd.f32 %v846, %v874
        %v882 = vadd.f32 %v847, %v874
        %v883 = vadd.f32 %v848, %v874
        %v884 = vadd.f32 %v849, %v874
        %v885 = vadd.f32 %v850, %v874
        %v886 = vadd.f32 %v851, %v874
        %v887 = vadd.f32 %v852, %v874
        %v888 = vadd.f32 %v853, %v874
        %v889 = vadd.f32 %v854, %v874
        %v890 = vadd.f32 %v855, %v874
        %v891 = vadd.f32 %v856, %v874
        %v892 = vadd.f32 %v857, %v874
        %v893 = vadd.f32 %v858, %v874
        %v894 = vadd.f32 %v859, %v874
        %v895 = vadd.f32 %v860, %v874
        %v896 = vadd.f32 %v861, %v874
        %v897 = vadd.f32 %v862, %v874
        %v898 = vadd.f32 %v863, %v874
        %v899 = vadd.f32 %v864, %v874
        %v900 = vadd.f32 %v865, %v874
        %v901 = vadd.f32 %v866, %v874
        %v902 = vadd.f32 %v867, %v874
        %v903 = vadd.f32 %v868, %v874
        %v904 = vadd.f32 %v869, %v874
        %v905 = vadd.f32 %v870, %v874
        %v906 = vadd.f32 %v871, %v874
        %v907 = vadd.f32 %v872, %v874
        %v908 = vmax.f32 %v876, 0.0
        %v909 = vmax.f32 %v877, 0.0
        %v910 = vmax.f32 %v878, 0.0
        %v911 = vmax.f32 %v879, 0.0
        %v912 = vmax.f32 %v880, 0.0
        %v913 = vmax.f32 %v881, 0.0
        %v914 = vmax.f32 %v882, 0.0
        %v915 = vmax.f32 %v883, 0.0
        %v916 = vmax.f32 %v884, 0.0
        %v917 = vmax.f32 %v885, 0.0
        %v918 = vmax.f32 %v886, 0.0
        %v919 = vmax.f32 %v887, 0.0
        %v920 = vmax.f32 %v888, 0.0
        %v921 = vmax.f32 %v889, 0.0
        %v922 = vmax.f32 %v890, 0.0
        %v923 = vmax.f32 %v891, 0.0
        %v924 = vmax.f32 %v892, 0.0
        %v925 = vmax.f32 %v893, 0.0
        %v926 = vmax.f32 %v894, 0.0
        %v927 = vmax.f32 %v895, 0.0
        %v928 = vmax.f32 %v896, 0.0
        %v929 = vmax.f32 %v897, 0.0
        %v930 = vmax.f32 %v898, 0.0
        %v931 = vmax.f32 %v899, 0.0
        %v932 = vmax.f32 %v900, 0.0
        %v933 = vmax.f32 %v901, 0.0
        %v934 = vmax.f32 %v902, 0.0
        %v935 = vmax.f32 %v903, 0.0
        %v936 = vmax.f32 %v904, 0.0
        %v937 = vmax.f32 %v905, 0.0
        %v938 = vmax.f32 %v906, 0.0
        %v939 = vmax.f32 %v907, 0.0
        %vm940 = vcmask 257024
        %941 = vst.msk [vmem:[#allocation2] sm:$0xf] %vm940, 0
        %942 = vst.msk [vmem:[#allocation2 + $0x4] sm:$0xf] %vm940, 0
        %vm943 = vcmask 253952
        %944 = vst.msk [vmem:[#allocation2 + $0x8] sm:$0x1] %vm943, 0
        %945 = vst.msk [vmem:[#allocation2 + $0xc] sm:$0xf] %vm940, 0
        %946 = vst.msk [vmem:[#allocation2 + $0x10] sm:$0xf] %vm940, 0
        %947 = vst.msk [vmem:[#allocation2 + $0x14] sm:$0x1] %vm943, 0
        %948 = vst.msk [vmem:[#allocation2 + $0x18] sm:$0xf] %vm940, 0
        %949 = vst.msk [vmem:[#allocation2 + $0x1c] sm:$0xf] %vm940, 0
        %950 = vst.msk [vmem:[#allocation2 + $0x20] sm:$0x1] %vm943, 0
        %951 = vst.msk [vmem:[#allocation2 + $0x24] sm:$0xf] %vm940, 0
        %952 = vst.msk [vmem:[#allocation2 + $0x28] sm:$0xf] %vm940, 0
        %953 = vst.msk [vmem:[#allocation2 + $0x2c] sm:$0x1] %vm943, 0
        %954 = vst.msk [vmem:[#allocation2 + $0x30] sm:$0xf] %vm940, 0
        %955 = vst.msk [vmem:[#allocation2 + $0x34] sm:$0xf] %vm940, 0
        %956 = vst.msk [vmem:[#allocation2 + $0x38] sm:$0x1] %vm943, 0
        %957 = vst.msk [vmem:[#allocation2 + $0x3c] sm:$0xf] %vm940, 0
        %958 = vst.msk [vmem:[#allocation2 + $0x40] sm:$0xf] %vm940, 0
        %959 = vst.msk [vmem:[#allocation2 + $0x44] sm:$0x1] %vm943, 0
        %960 = vst.msk [vmem:[#allocation2 + $0x48] sm:$0xf] %vm940, 0
        %961 = vst.msk [vmem:[#allocation2 + $0x4c] sm:$0xf] %vm940, 0
        %962 = vst.msk [vmem:[#allocation2 + $0x50] sm:$0x1] %vm943, 0
        %963 = vst.msk [vmem:[#allocation2 + $0x54] sm:$0xf] %vm940, 0
        %964 = vst.msk [vmem:[#allocation2 + $0x58] sm:$0xf] %vm940, 0
        %965 = vst.msk [vmem:[#allocation2 + $0x5c] sm:$0x1] %vm943, 0
        %966 = vst.msk [vmem:[#allocation2 + $0x60] sm:$0xf] %vm940, 0
        %967 = vst.msk [vmem:[#allocation2 + $0x64] sm:$0xf] %vm940, 0
        %968 = vst.msk [vmem:[#allocation2 + $0x68] sm:$0x1] %vm943, 0
        %969 = vst.msk [vmem:[#allocation2 + $0x6c] sm:$0xf] %vm940, 0
        %970 = vst.msk [vmem:[#allocation2 + $0x70] sm:$0xf] %vm940, 0
        %971 = vst.msk [vmem:[#allocation2 + $0x74] sm:$0x1] %vm943, 0
        %972 = vst.msk [vmem:[#allocation2 + $0x78] sm:$0xf] %vm940, 0
        %973 = vst.msk [vmem:[#allocation2 + $0x7c] sm:$0xf] %vm940, 0
        %974 = vst.msk [vmem:[#allocation2 + $0x80] sm:$0x1] %vm943, 0
        %975 = vst.msk [vmem:[#allocation2 + $0x84] sm:$0xf] %vm940, 0
        %976 = vst.msk [vmem:[#allocation2 + $0x88] sm:$0xf] %vm940, 0
        %977 = vst.msk [vmem:[#allocation2 + $0x8c] sm:$0x1] %vm943, 0
        %978 = vst.msk [vmem:[#allocation2 + $0x90] sm:$0xf] %vm940, 0
        %979 = vst.msk [vmem:[#allocation2 + $0x94] sm:$0xf] %vm940, 0
        %980 = vst.msk [vmem:[#allocation2 + $0x98] sm:$0x1] %vm943, 0
        %981 = vst.msk [vmem:[#allocation2 + $0x9c] sm:$0xf] %vm940, 0
        %982 = vst.msk [vmem:[#allocation2 + $0xa0] sm:$0xf] %vm940, 0
        %983 = vst.msk [vmem:[#allocation2 + $0xa4] sm:$0x1] %vm943, 0
        %984 = vst.msk [vmem:[#allocation2 + $0xa8] sm:$0xf] %vm940, 0
        %985 = vst.msk [vmem:[#allocation2 + $0xac] sm:$0xf] %vm940, 0
        %986 = vst.msk [vmem:[#allocation2 + $0xb0] sm:$0x1] %vm943, 0
        %987 = vst.msk [vmem:[#allocation2 + $0xb4] sm:$0xf] %vm940, 0
        %988 = vst.msk [vmem:[#allocation2 + $0xb8] sm:$0xf] %vm940, 0
        %989 = vst.msk [vmem:[#allocation2 + $0xbc] sm:$0x1] %vm943, 0
        %990 = vst.msk [vmem:[#allocation2 + $0xc0] sm:$0xf] %vm940, 0
        %991 = vst.msk [vmem:[#allocation2 + $0xc4] sm:$0xf] %vm940, 0
        %992 = vst.msk [vmem:[#allocation2 + $0xc8] sm:$0x1] %vm943, 0
        %993 = vst.msk [vmem:[#allocation2 + $0xcc] sm:$0xf] %vm940, 0
        %994 = vst.msk [vmem:[#allocation2 + $0xd0] sm:$0xf] %vm940, 0
        %995 = vst.msk [vmem:[#allocation2 + $0xd4] sm:$0x1] %vm943, 0
        %v996 = vpack.c.bf16 %v908, %v908
        %v997 = vpack.c.bf16 %v909, %v909
        %v998 = vpack.c.bf16 %v910, %v910
        %v999 = vpack.c.bf16 %v911, %v911
        %v1000 = vpack.c.bf16 %v912, %v912
        %v1001 = vpack.c.bf16 %v913, %v913
        %v1002 = vpack.c.bf16 %v914, %v914
        %v1003 = vpack.c.bf16 %v915, %v915
        %v1004 = vpack.c.bf16 %v916, %v916
        %v1005 = vpack.c.bf16 %v917, %v917
        %v1006 = vpack.c.bf16 %v918, %v918
        %v1007 = vpack.c.bf16 %v919, %v919
        %v1008 = vpack.c.bf16 %v920, %v920
        %v1009 = vpack.c.bf16 %v921, %v921
        %v1010 = vpack.c.bf16 %v922, %v922
        %v1011 = vpack.c.bf16 %v923, %v923
        %v1012 = vpack.c.bf16 %v924, %v924
        %v1013 = vpack.c.bf16 %v925, %v925
        %v1014 = vpack.c.bf16 %v926, %v926
        %v1015 = vpack.c.bf16 %v927, %v927
        %v1016 = vpack.c.bf16 %v928, %v928
        %v1017 = vpack.c.bf16 %v929, %v929
        %v1018 = vpack.c.bf16 %v930, %v930
        %v1019 = vpack.c.bf16 %v931, %v931
        %v1020 = vpack.c.bf16 %v932, %v932
        %v1021 = vpack.c.bf16 %v933, %v933
        %v1022 = vpack.c.bf16 %v934, %v934
        %v1023 = vpack.c.bf16 %v935, %v935
        %v1024 = vpack.c.bf16 %v936, %v936
        %v1025 = vpack.c.bf16 %v937, %v937
        %v1026 = vpack.c.bf16 %v938, %v938
        %v1027 = vpack.c.bf16 %v939, %v939
        %vm1028 = vsmask.f32 256
        %vm1029 = vsmask.f32 4368
        %vm1030 = vmor %vm1028, %vm1029
        %v1032 = vshrl.u32 %v996, 16
        %v1034 = vrot.slane %v1032, 7
        %v1035 = vshll.u32 %v996, 16
        %v1037 = vor.u32 %v1034, %v1035
        %v1038 = vrot.slane %v1034, 4
        %v1040 = vshrl.u32 %v997, 16
        %v1042 = vrot.slane %v1040, 7
        %v1043 = vshll.u32 %v997, 16
        %v1045 = vor.u32 %v1042, %v1043
        %v1046 = vsel %vm1030, %v1038, %v1045
        %v1047 = vrot.slane %v1042, 4
        %v1049 = vshrl.u32 %v998, 16
        %v1051 = vrot.slane %v1049, 7
        %v1052 = vshll.u32 %v998, 16
        %v1054 = vor.u32 %v1051, %v1052
        %v1055 = vrot.slane %v1051, 4
        %v1057 = vshrl.u32 %v999, 16
        %v1059 = vrot.slane %v1057, 7
        %v1060 = vshll.u32 %v999, 16
        %v1062 = vor.u32 %v1059, %v1060
        %v1063 = vsel %vm1030, %v1055, %v1062
        %v1064 = vrot.slane %v1059, 4
        %v1066 = vshrl.u32 %v1000, 16
        %v1068 = vrot.slane %v1066, 7
        %v1069 = vshll.u32 %v1000, 16
        %v1071 = vor.u32 %v1068, %v1069
        %v1072 = vrot.slane %v1068, 4
        %v1074 = vshrl.u32 %v1001, 16
        %v1076 = vrot.slane %v1074, 7
        %v1077 = vshll.u32 %v1001, 16
        %v1079 = vor.u32 %v1076, %v1077
        %v1080 = vsel %vm1030, %v1072, %v1079
        %v1081 = vrot.slane %v1076, 4
        %v1083 = vshrl.u32 %v1002, 16
        %v1085 = vrot.slane %v1083, 7
        %v1086 = vshll.u32 %v1002, 16
        %v1088 = vor.u32 %v1085, %v1086
        %v1089 = vrot.slane %v1085, 4
        %v1091 = vshrl.u32 %v1003, 16
        %v1093 = vrot.slane %v1091, 7
        %v1094 = vshll.u32 %v1003, 16
        %v1096 = vor.u32 %v1093, %v1094
        %v1097 = vsel %vm1030, %v1089, %v1096
        %v1098 = vrot.slane %v1093, 4
        %v1100 = vshrl.u32 %v1004, 16
        %v1102 = vrot.slane %v1100, 7
        %v1103 = vshll.u32 %v1004, 16
        %v1105 = vor.u32 %v1102, %v1103
        %v1106 = vrot.slane %v1102, 4
        %v1108 = vshrl.u32 %v1005, 16
        %v1110 = vrot.slane %v1108, 7
        %v1111 = vshll.u32 %v1005, 16
        %v1113 = vor.u32 %v1110, %v1111
        %v1114 = vsel %vm1030, %v1106, %v1113
        %v1115 = vrot.slane %v1110, 4
        %v1117 = vshrl.u32 %v1006, 16
        %v1119 = vrot.slane %v1117, 7
        %v1120 = vshll.u32 %v1006, 16
        %v1122 = vor.u32 %v1119, %v1120
        %v1123 = vrot.slane %v1119, 4
        %v1125 = vshrl.u32 %v1007, 16
        %v1127 = vrot.slane %v1125, 7
        %v1128 = vshll.u32 %v1007, 16
        %v1130 = vor.u32 %v1127, %v1128
        %v1131 = vsel %vm1030, %v1123, %v1130
        %v1132 = vrot.slane %v1127, 4
        %v1134 = vshrl.u32 %v1008, 16
        %v1136 = vrot.slane %v1134, 7
        %v1137 = vshll.u32 %v1008, 16
        %v1139 = vor.u32 %v1136, %v1137
        %v1140 = vrot.slane %v1136, 4
        %v1142 = vshrl.u32 %v1009, 16
        %v1144 = vrot.slane %v1142, 7
        %v1145 = vshll.u32 %v1009, 16
        %v1147 = vor.u32 %v1144, %v1145
        %v1148 = vsel %vm1030, %v1140, %v1147
        %v1149 = vrot.slane %v1144, 4
        %v1151 = vshrl.u32 %v1010, 16
        %v1153 = vrot.slane %v1151, 7
        %v1154 = vshll.u32 %v1010, 16
        %v1156 = vor.u32 %v1153, %v1154
        %v1157 = vrot.slane %v1153, 4
        %v1159 = vshrl.u32 %v1011, 16
        %v1161 = vrot.slane %v1159, 7
        %v1162 = vshll.u32 %v1011, 16
        %v1164 = vor.u32 %v1161, %v1162
        %v1165 = vsel %vm1030, %v1157, %v1164
        %v1166 = vrot.slane %v1161, 4
        %v1168 = vshrl.u32 %v1012, 16
        %v1170 = vrot.slane %v1168, 7
        %v1171 = vshll.u32 %v1012, 16
        %v1173 = vor.u32 %v1170, %v1171
        %v1174 = vrot.slane %v1170, 4
        %v1176 = vshrl.u32 %v1013, 16
        %v1178 = vrot.slane %v1176, 7
        %v1179 = vshll.u32 %v1013, 16
        %v1181 = vor.u32 %v1178, %v1179
        %v1182 = vsel %vm1030, %v1174, %v1181
        %v1183 = vrot.slane %v1178, 4
        %v1185 = vshrl.u32 %v1014, 16
        %v1187 = vrot.slane %v1185, 7
        %v1188 = vshll.u32 %v1014, 16
        %v1190 = vor.u32 %v1187, %v1188
        %v1191 = vrot.slane %v1187, 4
        %v1193 = vshrl.u32 %v1015, 16
        %v1195 = vrot.slane %v1193, 7
        %v1196 = vshll.u32 %v1015, 16
        %v1198 = vor.u32 %v1195, %v1196
        %v1199 = vsel %vm1030, %v1191, %v1198
        %v1200 = vrot.slane %v1195, 4
        %v1202 = vshrl.u32 %v1016, 16
        %v1204 = vrot.slane %v1202, 7
        %v1205 = vshll.u32 %v1016, 16
        %v1207 = vor.u32 %v1204, %v1205
        %v1208 = vrot.slane %v1204, 4
        %v1210 = vshrl.u32 %v1017, 16
        %v1212 = vrot.slane %v1210, 7
        %v1213 = vshll.u32 %v1017, 16
        %v1215 = vor.u32 %v1212, %v1213
        %v1216 = vsel %vm1030, %v1208, %v1215
        %v1217 = vrot.slane %v1212, 4
        %v1219 = vshrl.u32 %v1018, 16
        %v1221 = vrot.slane %v1219, 7
        %v1222 = vshll.u32 %v1018, 16
        %v1224 = vor.u32 %v1221, %v1222
        %v1225 = vrot.slane %v1221, 4
        %v1227 = vshrl.u32 %v1019, 16
        %v1229 = vrot.slane %v1227, 7
        %v1230 = vshll.u32 %v1019, 16
        %v1232 = vor.u32 %v1229, %v1230
        %v1233 = vsel %vm1030, %v1225, %v1232
        %v1234 = vrot.slane %v1229, 4
        %v1236 = vshrl.u32 %v1020, 16
        %v1238 = vrot.slane %v1236, 7
        %v1239 = vshll.u32 %v1020, 16
        %v1241 = vor.u32 %v1238, %v1239
        %v1242 = vrot.slane %v1238, 4
        %v1244 = vshrl.u32 %v1021, 16
        %v1246 = vrot.slane %v1244, 7
        %v1247 = vshll.u32 %v1021, 16
        %v1249 = vor.u32 %v1246, %v1247
        %v1250 = vsel %vm1030, %v1242, %v1249
        %v1251 = vrot.slane %v1246, 4
        %v1253 = vshrl.u32 %v1022, 16
        %v1255 = vrot.slane %v1253, 7
        %v1256 = vshll.u32 %v1022, 16
        %v1258 = vor.u32 %v1255, %v1256
        %v1259 = vrot.slane %v1255, 4
        %v1261 = vshrl.u32 %v1023, 16
        %v1263 = vrot.slane %v1261, 7
        %v1264 = vshll.u32 %v1023, 16
        %v1266 = vor.u32 %v1263, %v1264
        %v1267 = vsel %vm1030, %v1259, %v1266
        %v1268 = vrot.slane %v1263, 4
        %v1270 = vshrl.u32 %v1024, 16
        %v1272 = vrot.slane %v1270, 7
        %v1273 = vshll.u32 %v1024, 16
        %v1275 = vor.u32 %v1272, %v1273
        %v1276 = vrot.slane %v1272, 4
        %v1278 = vshrl.u32 %v1025, 16
        %v1280 = vrot.slane %v1278, 7
        %v1281 = vshll.u32 %v1025, 16
        %v1283 = vor.u32 %v1280, %v1281
        %v1284 = vsel %vm1030, %v1276, %v1283
        %v1285 = vrot.slane %v1280, 4
        %v1287 = vshrl.u32 %v1026, 16
        %v1289 = vrot.slane %v1287, 7
        %v1290 = vshll.u32 %v1026, 16
        %v1292 = vor.u32 %v1289, %v1290
        %v1293 = vrot.slane %v1289, 4
        %v1295 = vshrl.u32 %v1027, 16
        %v1297 = vrot.slane %v1295, 7
        %v1298 = vshll.u32 %v1027, 16
        %v1300 = vor.u32 %v1297, %v1298
        %v1301 = vsel %vm1030, %v1293, %v1300
        %v1302 = vrot.slane %v1297, 4
        %s1351 = scalar_lea.vmem [#allocation2], 12
        %vm1352 = vcmask 257024
        %vm1353 = vsmask.f32 7938
        %vm1354 = vmand %vm1352, %vm1353
        %v1355 = vld [vmem:[%s1351] sm:$0xf]
        %v1356 = vsel %vm1354, %v1037, %v1355
        %1357 = vst [vmem:[%s1351] sm:$0xf] %v1356
        %1358 = vst.msk [vmem:[%s1351 + $0x4] sm:$0xf] %vm940, %v1046
        %vm1359 = vcmask 253952
        %vm1360 = vmand %vm1359, %vm1028
        %v1361 = vld [vmem:[%s1351 + $0x8] sm:$0x1]
        %v1362 = vsel %vm1360, %v1047, %v1361
        %1363 = vst [vmem:[%s1351 + $0x8] sm:$0x1] %v1362
        %v1364 = vld [vmem:[%s1351 + $0xc] sm:$0xf]
        %v1365 = vsel %vm1354, %v1054, %v1364
        %1366 = vst [vmem:[%s1351 + $0xc] sm:$0xf] %v1365
        %1367 = vst.msk [vmem:[%s1351 + $0x10] sm:$0xf] %vm940, %v1063
        %v1368 = vld [vmem:[%s1351 + $0x14] sm:$0x1]
        %v1369 = vsel %vm1360, %v1064, %v1368
        %1370 = vst [vmem:[%s1351 + $0x14] sm:$0x1] %v1369
        %v1371 = vld [vmem:[%s1351 + $0x18] sm:$0xf]
        %v1372 = vsel %vm1354, %v1071, %v1371
        %1373 = vst [vmem:[%s1351 + $0x18] sm:$0xf] %v1372
        %1374 = vst.msk [vmem:[%s1351 + $0x1c] sm:$0xf] %vm940, %v1080
        %v1375 = vld [vmem:[%s1351 + $0x20] sm:$0x1]
        %v1376 = vsel %vm1360, %v1081, %v1375
        %1377 = vst [vmem:[%s1351 + $0x20] sm:$0x1] %v1376
        %v1378 = vld [vmem:[%s1351 + $0x24] sm:$0xf]
        %v1379 = vsel %vm1354, %v1088, %v1378
        %1380 = vst [vmem:[%s1351 + $0x24] sm:$0xf] %v1379
        %1381 = vst.msk [vmem:[%s1351 + $0x28] sm:$0xf] %vm940, %v1097
        %v1382 = vld [vmem:[%s1351 + $0x2c] sm:$0x1]
        %v1383 = vsel %vm1360, %v1098, %v1382
        %1384 = vst [vmem:[%s1351 + $0x2c] sm:$0x1] %v1383
        %v1385 = vld [vmem:[%s1351 + $0x30] sm:$0xf]
        %v1386 = vsel %vm1354, %v1105, %v1385
        %1387 = vst [vmem:[%s1351 + $0x30] sm:$0xf] %v1386
        %1388 = vst.msk [vmem:[%s1351 + $0x34] sm:$0xf] %vm940, %v1114
        %v1389 = vld [vmem:[%s1351 + $0x38] sm:$0x1]
        %v1390 = vsel %vm1360, %v1115, %v1389
        %1391 = vst [vmem:[%s1351 + $0x38] sm:$0x1] %v1390
        %v1392 = vld [vmem:[%s1351 + $0x3c] sm:$0xf]
        %v1393 = vsel %vm1354, %v1122, %v1392
        %1394 = vst [vmem:[%s1351 + $0x3c] sm:$0xf] %v1393
        %1395 = vst.msk [vmem:[%s1351 + $0x40] sm:$0xf] %vm940, %v1131
        %v1396 = vld [vmem:[%s1351 + $0x44] sm:$0x1]
        %v1397 = vsel %vm1360, %v1132, %v1396
        %1398 = vst [vmem:[%s1351 + $0x44] sm:$0x1] %v1397
        %v1399 = vld [vmem:[%s1351 + $0x48] sm:$0xf]
        %v1400 = vsel %vm1354, %v1139, %v1399
        %1401 = vst [vmem:[%s1351 + $0x48] sm:$0xf] %v1400
        %1402 = vst.msk [vmem:[%s1351 + $0x4c] sm:$0xf] %vm940, %v1148
        %v1403 = vld [vmem:[%s1351 + $0x50] sm:$0x1]
        %v1404 = vsel %vm1360, %v1149, %v1403
        %1405 = vst [vmem:[%s1351 + $0x50] sm:$0x1] %v1404
        %v1406 = vld [vmem:[%s1351 + $0x54] sm:$0xf]
        %v1407 = vsel %vm1354, %v1156, %v1406
        %1408 = vst [vmem:[%s1351 + $0x54] sm:$0xf] %v1407
        %1409 = vst.msk [vmem:[%s1351 + $0x58] sm:$0xf] %vm940, %v1165
        %v1410 = vld [vmem:[%s1351 + $0x5c] sm:$0x1]
        %v1411 = vsel %vm1360, %v1166, %v1410
        %1412 = vst [vmem:[%s1351 + $0x5c] sm:$0x1] %v1411
        %v1413 = vld [vmem:[%s1351 + $0x60] sm:$0xf]
        %v1414 = vsel %vm1354, %v1173, %v1413
        %1415 = vst [vmem:[%s1351 + $0x60] sm:$0xf] %v1414
        %1416 = vst.msk [vmem:[%s1351 + $0x64] sm:$0xf] %vm940, %v1182
        %v1417 = vld [vmem:[%s1351 + $0x68] sm:$0x1]
        %v1418 = vsel %vm1360, %v1183, %v1417
        %1419 = vst [vmem:[%s1351 + $0x68] sm:$0x1] %v1418
        %v1420 = vld [vmem:[%s1351 + $0x6c] sm:$0xf]
        %v1421 = vsel %vm1354, %v1190, %v1420
        %1422 = vst [vmem:[%s1351 + $0x6c] sm:$0xf] %v1421
        %1423 = vst.msk [vmem:[%s1351 + $0x70] sm:$0xf] %vm940, %v1199
        %v1424 = vld [vmem:[%s1351 + $0x74] sm:$0x1]
        %v1425 = vsel %vm1360, %v1200, %v1424
        %1426 = vst [vmem:[%s1351 + $0x74] sm:$0x1] %v1425
        %v1427 = vld [vmem:[%s1351 + $0x78] sm:$0xf]
        %v1428 = vsel %vm1354, %v1207, %v1427
        %1429 = vst [vmem:[%s1351 + $0x78] sm:$0xf] %v1428
        %1430 = vst.msk [vmem:[%s1351 + $0x7c] sm:$0xf] %vm940, %v1216
        %v1431 = vld [vmem:[%s1351 + $0x80] sm:$0x1]
        %v1432 = vsel %vm1360, %v1217, %v1431
        %1433 = vst [vmem:[%s1351 + $0x80] sm:$0x1] %v1432
        %v1434 = vld [vmem:[%s1351 + $0x84] sm:$0xf]
        %v1435 = vsel %vm1354, %v1224, %v1434
        %1436 = vst [vmem:[%s1351 + $0x84] sm:$0xf] %v1435
        %1437 = vst.msk [vmem:[%s1351 + $0x88] sm:$0xf] %vm940, %v1233
        %v1438 = vld [vmem:[%s1351 + $0x8c] sm:$0x1]
        %v1439 = vsel %vm1360, %v1234, %v1438
        %1440 = vst [vmem:[%s1351 + $0x8c] sm:$0x1] %v1439
        %v1441 = vld [vmem:[%s1351 + $0x90] sm:$0xf]
        %v1442 = vsel %vm1354, %v1241, %v1441
        %1443 = vst [vmem:[%s1351 + $0x90] sm:$0xf] %v1442
        %1444 = vst.msk [vmem:[%s1351 + $0x94] sm:$0xf] %vm940, %v1250
        %v1445 = vld [vmem:[%s1351 + $0x98] sm:$0x1]
        %v1446 = vsel %vm1360, %v1251, %v1445
        %1447 = vst [vmem:[%s1351 + $0x98] sm:$0x1] %v1446
        %v1448 = vld [vmem:[%s1351 + $0x9c] sm:$0xf]
        %v1449 = vsel %vm1354, %v1258, %v1448
        %1450 = vst [vmem:[%s1351 + $0x9c] sm:$0xf] %v1449
        %1451 = vst.msk [vmem:[%s1351 + $0xa0] sm:$0xf] %vm940, %v1267
        %v1452 = vld [vmem:[%s1351 + $0xa4] sm:$0x1]
        %v1453 = vsel %vm1360, %v1268, %v1452
        %1454 = vst [vmem:[%s1351 + $0xa4] sm:$0x1] %v1453
        %v1455 = vld [vmem:[%s1351 + $0xa8] sm:$0xf]
        %v1456 = vsel %vm1354, %v1275, %v1455
        %1457 = vst [vmem:[%s1351 + $0xa8] sm:$0xf] %v1456
        %1458 = vst.msk [vmem:[%s1351 + $0xac] sm:$0xf] %vm940, %v1284
        %v1459 = vld [vmem:[%s1351 + $0xb0] sm:$0x1]
        %v1460 = vsel %vm1360, %v1285, %v1459
        %1461 = vst [vmem:[%s1351 + $0xb0] sm:$0x1] %v1460
        %v1462 = vld [vmem:[%s1351 + $0xb4] sm:$0xf]
        %v1463 = vsel %vm1354, %v1292, %v1462
        %1464 = vst [vmem:[%s1351 + $0xb4] sm:$0xf] %v1463
        %1465 = vst.msk [vmem:[%s1351 + $0xb8] sm:$0xf] %vm940, %v1301
        %v1466 = vld [vmem:[%s1351 + $0xbc] sm:$0x1]
        %v1467 = vsel %vm1360, %v1302, %v1466
        %1468 = vst [vmem:[%s1351 + $0xbc] sm:$0x1] %v1467
        %v1469 = vld [vmem:[#allocation2] sm:$0xf]
        %v1470 = vld [vmem:[#allocation2 + $0x4] sm:$0xf]
        %v1471 = vld [vmem:[#allocation2 + $0x8] sm:$0x1]
        %v1472 = vld [vmem:[#allocation2 + $0xc] sm:$0xf]
        %v1473 = vld [vmem:[#allocation2 + $0x10] sm:$0xf]
        %v1474 = vld [vmem:[#allocation2 + $0x14] sm:$0x1]
        %v1475 = vld [vmem:[#allocation2 + $0x18] sm:$0xf]
        %v1476 = vld [vmem:[#allocation2 + $0x1c] sm:$0xf]
        %v1477 = vld [vmem:[#allocation2 + $0x20] sm:$0x1]
        %v1478 = vld [vmem:[#allocation2 + $0x24] sm:$0xf]
        %v1479 = vld [vmem:[#allocation2 + $0x28] sm:$0xf]
        %v1480 = vld [vmem:[#allocation2 + $0x2c] sm:$0x1]
        %v1481 = vld [vmem:[#allocation2 + $0x30] sm:$0xf]
        %v1482 = vld [vmem:[#allocation2 + $0x34] sm:$0xf]
        %v1483 = vld [vmem:[#allocation2 + $0x38] sm:$0x1]
        %v1484 = vld [vmem:[#allocation2 + $0x3c] sm:$0xf]
        %v1485 = vld [vmem:[#allocation2 + $0x40] sm:$0xf]
        %v1486 = vld [vmem:[#allocation2 + $0x44] sm:$0x1]
        %v1487 = vld [vmem:[#allocation2 + $0x48] sm:$0xf]
        %v1488 = vld [vmem:[#allocation2 + $0x4c] sm:$0xf]
        %v1489 = vld [vmem:[#allocation2 + $0x50] sm:$0x1]
        %v1490 = vld [vmem:[#allocation2 + $0x54] sm:$0xf]
        %v1491 = vld [vmem:[#allocation2 + $0x58] sm:$0xf]
        %v1492 = vld [vmem:[#allocation2 + $0x5c] sm:$0x1]
        %v1493 = vld [vmem:[#allocation2 + $0x60] sm:$0xf]
        %v1494 = vld [vmem:[#allocation2 + $0x64] sm:$0xf]
        %v1495 = vld [vmem:[#allocation2 + $0x68] sm:$0x1]
        %v1496 = vld [vmem:[#allocation2 + $0x6c] sm:$0xf]
        %v1497 = vld [vmem:[#allocation2 + $0x70] sm:$0xf]
        %v1498 = vld [vmem:[#allocation2 + $0x74] sm:$0x1]
        %v1499 = vld [vmem:[#allocation2 + $0x78] sm:$0xf]
        %v1500 = vld [vmem:[#allocation2 + $0x7c] sm:$0xf]
        %v1501 = vld [vmem:[#allocation2 + $0x80] sm:$0x1]
        %v1502 = vld [vmem:[#allocation2 + $0x84] sm:$0xf]
        %v1503 = vld [vmem:[#allocation2 + $0x88] sm:$0xf]
        %v1504 = vld [vmem:[#allocation2 + $0x8c] sm:$0x1]
        %v1505 = vld [vmem:[#allocation2 + $0x90] sm:$0xf]
        %v1506 = vld [vmem:[#allocation2 + $0x94] sm:$0xf]
        %v1507 = vld [vmem:[#allocation2 + $0x98] sm:$0x1]
        %v1508 = vld [vmem:[#allocation2 + $0x9c] sm:$0xf]
        %v1509 = vld [vmem:[#allocation2 + $0xa0] sm:$0xf]
        %v1510 = vld [vmem:[#allocation2 + $0xa4] sm:$0x1]
        %v1511 = vld [vmem:[#allocation2 + $0xa8] sm:$0xf]
        %v1512 = vld [vmem:[#allocation2 + $0xac] sm:$0xf]
        %v1513 = vld [vmem:[#allocation2 + $0xb0] sm:$0x1]
        %v1514 = vld [vmem:[#allocation2 + $0xb4] sm:$0xf]
        %v1515 = vld [vmem:[#allocation2 + $0xb8] sm:$0xf]
        %v1516 = vld [vmem:[#allocation2 + $0xbc] sm:$0x1]
        %v1517 = vld [vmem:[#allocation2 + $0xc0] sm:$0xf]
        %v1518 = vld [vmem:[#allocation2 + $0xc4] sm:$0xf]
        %v1519 = vld [vmem:[#allocation2 + $0xc8] sm:$0x1]
        %v1520 = vld [vmem:[#allocation2 + $0xcc] sm:$0xf]
        %v1521 = vld [vmem:[#allocation2 + $0xd0] sm:$0xf]
        %v1522 = vld [vmem:[#allocation2 + $0xd4] sm:$0x1]
        %v1555 = vunpack.c.l.b16 %v1469
        %v1556 = vunpack.c.l.b16 %v1470
        %v1557 = vunpack.c.l.b16 %v1472
        %v1558 = vunpack.c.l.b16 %v1473
        %v1559 = vunpack.c.l.b16 %v1475
        %v1560 = vunpack.c.l.b16 %v1476
        %v1561 = vunpack.c.l.b16 %v1478
        %v1562 = vunpack.c.l.b16 %v1479
        %v1563 = vunpack.c.l.b16 %v1481
        %v1564 = vunpack.c.l.b16 %v1482
        %v1565 = vunpack.c.l.b16 %v1484
        %v1566 = vunpack.c.l.b16 %v1485
        %v1567 = vunpack.c.l.b16 %v1487
        %v1568 = vunpack.c.l.b16 %v1488
        %v1569 = vunpack.c.l.b16 %v1490
        %v1570 = vunpack.c.l.b16 %v1491
        %v1571 = vunpack.c.l.b16 %v1493
        %v1572 = vunpack.c.l.b16 %v1494
        %v1573 = vunpack.c.l.b16 %v1496
        %v1574 = vunpack.c.l.b16 %v1497
        %v1575 = vunpack.c.l.b16 %v1499
        %v1576 = vunpack.c.l.b16 %v1500
        %v1577 = vunpack.c.l.b16 %v1502
        %v1578 = vunpack.c.l.b16 %v1503
        %v1579 = vunpack.c.l.b16 %v1505
        %v1580 = vunpack.c.l.b16 %v1506
        %v1581 = vunpack.c.l.b16 %v1508
        %v1582 = vunpack.c.l.b16 %v1509
        %v1583 = vunpack.c.l.b16 %v1511
        %v1584 = vunpack.c.l.b16 %v1512
        %v1585 = vunpack.c.l.b16 %v1514
        %v1586 = vunpack.c.l.b16 %v1515
        %v1587 = vpack.c.b16 %v1556, %v1555
        %v1588 = vpack.c.b16 %v1558, %v1557
        %v1589 = vpack.c.b16 %v1560, %v1559
        %v1590 = vpack.c.b16 %v1562, %v1561
        %v1591 = vpack.c.b16 %v1564, %v1563
        %v1592 = vpack.c.b16 %v1566, %v1565
        %v1593 = vpack.c.b16 %v1568, %v1567
        %v1594 = vpack.c.b16 %v1570, %v1569
        %v1595 = vpack.c.b16 %v1572, %v1571
        %v1596 = vpack.c.b16 %v1574, %v1573
        %v1597 = vpack.c.b16 %v1576, %v1575
        %v1598 = vpack.c.b16 %v1578, %v1577
        %v1599 = vpack.c.b16 %v1580, %v1579
        %v1600 = vpack.c.b16 %v1582, %v1581
        %v1601 = vpack.c.b16 %v1584, %v1583
        %v1602 = vpack.c.b16 %v1586, %v1585
        %v1619 = vunpack.c.l.b16 %v1471
        %v1620 = vunpack.c.l.b16 %v1474
        %v1621 = vunpack.c.l.b16 %v1477
        %v1622 = vunpack.c.l.b16 %v1480
        %v1623 = vunpack.c.l.b16 %v1483
        %v1624 = vunpack.c.l.b16 %v1486
        %v1625 = vunpack.c.l.b16 %v1489
        %v1626 = vunpack.c.l.b16 %v1492
        %v1627 = vunpack.c.l.b16 %v1495
        %v1628 = vunpack.c.l.b16 %v1498
        %v1629 = vunpack.c.l.b16 %v1501
        %v1630 = vunpack.c.l.b16 %v1504
        %v1631 = vunpack.c.l.b16 %v1507
        %v1632 = vunpack.c.l.b16 %v1510
        %v1633 = vunpack.c.l.b16 %v1513
        %v1634 = vunpack.c.l.b16 %v1516
        %v1635 = vpack.c.b16 %v1619, %v1619
        %v1636 = vpack.c.b16 %v1620, %v1620
        %v1637 = vpack.c.b16 %v1621, %v1621
        %v1638 = vpack.c.b16 %v1622, %v1622
        %v1639 = vpack.c.b16 %v1623, %v1623
        %v1640 = vpack.c.b16 %v1624, %v1624
        %v1641 = vpack.c.b16 %v1625, %v1625
        %v1642 = vpack.c.b16 %v1626, %v1626
        %v1643 = vpack.c.b16 %v1627, %v1627
        %v1644 = vpack.c.b16 %v1628, %v1628
        %v1645 = vpack.c.b16 %v1629, %v1629
        %v1646 = vpack.c.b16 %v1630, %v1630
        %v1647 = vpack.c.b16 %v1631, %v1631
        %v1648 = vpack.c.b16 %v1632, %v1632
        %v1649 = vpack.c.b16 %v1633, %v1633
        %v1650 = vpack.c.b16 %v1634, %v1634
        %vm1651 = vsmask.f32 7424
        %v1653 = vshrl.u32 %v1587, 16
        %v1655 = vshll.u32 %v1587, 16
        %v1657 = vrot.slane %v1655, 1
        %v1658 = vor.u32 %v1653, %v1657
        %v1660 = vshll.u32 %v1635, 16
        %v1662 = vrot.slane %v1660, 1
        %v1663 = vsel %vm1651, %v1658, %v1662
        %v1665 = vshrl.u32 %v1588, 16
        %v1667 = vshll.u32 %v1588, 16
        %v1669 = vrot.slane %v1667, 1
        %v1670 = vor.u32 %v1665, %v1669
        %v1672 = vshll.u32 %v1636, 16
        %v1674 = vrot.slane %v1672, 1
        %v1675 = vsel %vm1651, %v1670, %v1674
        %v1677 = vshrl.u32 %v1589, 16
        %v1679 = vshll.u32 %v1589, 16
        %v1681 = vrot.slane %v1679, 1
        %v1682 = vor.u32 %v1677, %v1681
        %v1684 = vshll.u32 %v1637, 16
        %v1686 = vrot.slane %v1684, 1
        %v1687 = vsel %vm1651, %v1682, %v1686
        %v1689 = vshrl.u32 %v1590, 16
        %v1691 = vshll.u32 %v1590, 16
        %v1693 = vrot.slane %v1691, 1
        %v1694 = vor.u32 %v1689, %v1693
        %v1696 = vshll.u32 %v1638, 16
        %v1698 = vrot.slane %v1696, 1
        %v1699 = vsel %vm1651, %v1694, %v1698
        %v1701 = vshrl.u32 %v1591, 16
        %v1703 = vshll.u32 %v1591, 16
        %v1705 = vrot.slane %v1703, 1
        %v1706 = vor.u32 %v1701, %v1705
        %v1708 = vshll.u32 %v1639, 16
        %v1710 = vrot.slane %v1708, 1
        %v1711 = vsel %vm1651, %v1706, %v1710
        %v1713 = vshrl.u32 %v1592, 16
        %v1715 = vshll.u32 %v1592, 16
        %v1717 = vrot.slane %v1715, 1
        %v1718 = vor.u32 %v1713, %v1717
        %v1720 = vshll.u32 %v1640, 16
        %v1722 = vrot.slane %v1720, 1
        %v1723 = vsel %vm1651, %v1718, %v1722
        %v1725 = vshrl.u32 %v1593, 16
        %v1727 = vshll.u32 %v1593, 16
        %v1729 = vrot.slane %v1727, 1
        %v1730 = vor.u32 %v1725, %v1729
        %v1732 = vshll.u32 %v1641, 16
        %v1734 = vrot.slane %v1732, 1
        %v1735 = vsel %vm1651, %v1730, %v1734
        %v1737 = vshrl.u32 %v1594, 16
        %v1739 = vshll.u32 %v1594, 16
        %v1741 = vrot.slane %v1739, 1
        %v1742 = vor.u32 %v1737, %v1741
        %v1744 = vshll.u32 %v1642, 16
        %v1746 = vrot.slane %v1744, 1
        %v1747 = vsel %vm1651, %v1742, %v1746
        %v1749 = vshrl.u32 %v1595, 16
        %v1751 = vshll.u32 %v1595, 16
        %v1753 = vrot.slane %v1751, 1
        %v1754 = vor.u32 %v1749, %v1753
        %v1756 = vshll.u32 %v1643, 16
        %v1758 = vrot.slane %v1756, 1
        %v1759 = vsel %vm1651, %v1754, %v1758
        %v1761 = vshrl.u32 %v1596, 16
        %v1763 = vshll.u32 %v1596, 16
        %v1765 = vrot.slane %v1763, 1
        %v1766 = vor.u32 %v1761, %v1765
        %v1768 = vshll.u32 %v1644, 16
        %v1770 = vrot.slane %v1768, 1
        %v1771 = vsel %vm1651, %v1766, %v1770
        %v1773 = vshrl.u32 %v1597, 16
        %v1775 = vshll.u32 %v1597, 16
        %v1777 = vrot.slane %v1775, 1
        %v1778 = vor.u32 %v1773, %v1777
        %v1780 = vshll.u32 %v1645, 16
        %v1782 = vrot.slane %v1780, 1
        %v1783 = vsel %vm1651, %v1778, %v1782
        %v1785 = vshrl.u32 %v1598, 16
        %v1787 = vshll.u32 %v1598, 16
        %v1789 = vrot.slane %v1787, 1
        %v1790 = vor.u32 %v1785, %v1789
        %v1792 = vshll.u32 %v1646, 16
        %v1794 = vrot.slane %v1792, 1
        %v1795 = vsel %vm1651, %v1790, %v1794
        %v1797 = vshrl.u32 %v1599, 16
        %v1799 = vshll.u32 %v1599, 16
        %v1801 = vrot.slane %v1799, 1
        %v1802 = vor.u32 %v1797, %v1801
        %v1804 = vshll.u32 %v1647, 16
        %v1806 = vrot.slane %v1804, 1
        %v1807 = vsel %vm1651, %v1802, %v1806
        %v1809 = vshrl.u32 %v1600, 16
        %v1811 = vshll.u32 %v1600, 16
        %v1813 = vrot.slane %v1811, 1
        %v1814 = vor.u32 %v1809, %v1813
        %v1816 = vshll.u32 %v1648, 16
        %v1818 = vrot.slane %v1816, 1
        %v1819 = vsel %vm1651, %v1814, %v1818
        %v1821 = vshrl.u32 %v1601, 16
        %v1823 = vshll.u32 %v1601, 16
        %v1825 = vrot.slane %v1823, 1
        %v1826 = vor.u32 %v1821, %v1825
        %v1828 = vshll.u32 %v1649, 16
        %v1830 = vrot.slane %v1828, 1
        %v1831 = vsel %vm1651, %v1826, %v1830
        %v1833 = vshrl.u32 %v1602, 16
        %v1835 = vshll.u32 %v1602, 16
        %v1837 = vrot.slane %v1835, 1
        %v1838 = vor.u32 %v1833, %v1837
        %v1840 = vshll.u32 %v1650, 16
        %v1842 = vrot.slane %v1840, 1
        %v1843 = vsel %vm1651, %v1838, %v1842
        %1844 = vrot.lane.b32.xlu0 %v1663, 32
        %v1845 = vpop.permute.xlu0 %1844
        %1846 = vrot.lane.b32.xlu0 %v1675, 32
        %v1847 = vpop.permute.xlu0 %1846
        %1848 = vrot.lane.b32.xlu0 %v1687, 32
        %v1849 = vpop.permute.xlu0 %1848
        %1850 = vrot.lane.b32.xlu0 %v1699, 32
        %v1851 = vpop.permute.xlu0 %1850
        %1852 = vrot.lane.b32.xlu0 %v1711, 32
        %v1853 = vpop.permute.xlu0 %1852
        %1854 = vrot.lane.b32.xlu0 %v1723, 32
        %v1855 = vpop.permute.xlu0 %1854
        %1856 = vrot.lane.b32.xlu0 %v1735, 32
        %v1857 = vpop.permute.xlu0 %1856
        %1858 = vrot.lane.b32.xlu0 %v1747, 32
        %v1859 = vpop.permute.xlu0 %1858
        %1860 = vrot.lane.b32.xlu0 %v1759, 32
        %v1861 = vpop.permute.xlu0 %1860
        %1862 = vrot.lane.b32.xlu0 %v1771, 32
        %v1863 = vpop.permute.xlu0 %1862
        %1864 = vrot.lane.b32.xlu0 %v1783, 32
        %v1865 = vpop.permute.xlu0 %1864
        %1866 = vrot.lane.b32.xlu0 %v1795, 32
        %v1867 = vpop.permute.xlu0 %1866
        %1868 = vrot.lane.b32.xlu0 %v1807, 32
        %v1869 = vpop.permute.xlu0 %1868
        %1870 = vrot.lane.b32.xlu0 %v1819, 32
        %v1871 = vpop.permute.xlu0 %1870
        %1872 = vrot.lane.b32.xlu0 %v1831, 32
        %v1873 = vpop.permute.xlu0 %1872
        %1874 = vrot.lane.b32.xlu0 %v1843, 32
        %v1875 = vpop.permute.xlu0 %1874
        %vm1876 = vcmask 1046528
        %v1877 = vrot.slane %v1587, 1
        %v1878 = vrot.slane %v1635, 1
        %v1879 = vsel %vm1876, %v1877, %v1878
        %v1880 = vrot.slane %v1588, 1
        %v1881 = vrot.slane %v1636, 1
        %v1882 = vsel %vm1876, %v1880, %v1881
        %v1883 = vrot.slane %v1589, 1
        %v1884 = vrot.slane %v1637, 1
        %v1885 = vsel %vm1876, %v1883, %v1884
        %v1886 = vrot.slane %v1590, 1
        %v1887 = vrot.slane %v1638, 1
        %v1888 = vsel %vm1876, %v1886, %v1887
        %v1889 = vrot.slane %v1591, 1
        %v1890 = vrot.slane %v1639, 1
        %v1891 = vsel %vm1876, %v1889, %v1890
        %v1892 = vrot.slane %v1592, 1
        %v1893 = vrot.slane %v1640, 1
        %v1894 = vsel %vm1876, %v1892, %v1893
        %v1895 = vrot.slane %v1593, 1
        %v1896 = vrot.slane %v1641, 1
        %v1897 = vsel %vm1876, %v1895, %v1896
        %v1898 = vrot.slane %v1594, 1
        %v1899 = vrot.slane %v1642, 1
        %v1900 = vsel %vm1876, %v1898, %v1899
        %v1901 = vrot.slane %v1595, 1
        %v1902 = vrot.slane %v1643, 1
        %v1903 = vsel %vm1876, %v1901, %v1902
        %v1904 = vrot.slane %v1596, 1
        %v1905 = vrot.slane %v1644, 1
        %v1906 = vsel %vm1876, %v1904, %v1905
        %v1907 = vrot.slane %v1597, 1
        %v1908 = vrot.slane %v1645, 1
        %v1909 = vsel %vm1876, %v1907, %v1908
        %v1910 = vrot.slane %v1598, 1
        %v1911 = vrot.slane %v1646, 1
        %v1912 = vsel %vm1876, %v1910, %v1911
        %v1913 = vrot.slane %v1599, 1
        %v1914 = vrot.slane %v1647, 1
        %v1915 = vsel %vm1876, %v1913, %v1914
        %v1916 = vrot.slane %v1600, 1
        %v1917 = vrot.slane %v1648, 1
        %v1918 = vsel %vm1876, %v1916, %v1917
        %v1919 = vrot.slane %v1601, 1
        %v1920 = vrot.slane %v1649, 1
        %v1921 = vsel %vm1876, %v1919, %v1920
        %v1922 = vrot.slane %v1602, 1
        %v1923 = vrot.slane %v1650, 1
        %v1924 = vsel %vm1876, %v1922, %v1923
        %1925 = vrot.lane.b32.xlu0 %v1879, 64
        %v1926 = vpop.permute.xlu0 %1925
        %1927 = vrot.lane.b32.xlu0 %v1882, 64
        %v1928 = vpop.permute.xlu0 %1927
        %1929 = vrot.lane.b32.xlu0 %v1885, 64
        %v1930 = vpop.permute.xlu0 %1929
        %1931 = vrot.lane.b32.xlu0 %v1888, 64
        %v1932 = vpop.permute.xlu0 %1931
        %1933 = vrot.lane.b32.xlu0 %v1891, 64
        %v1934 = vpop.permute.xlu0 %1933
        %1935 = vrot.lane.b32.xlu0 %v1894, 64
        %v1936 = vpop.permute.xlu0 %1935
        %1937 = vrot.lane.b32.xlu0 %v1897, 64
        %v1938 = vpop.permute.xlu0 %1937
        %1939 = vrot.lane.b32.xlu0 %v1900, 64
        %v1940 = vpop.permute.xlu0 %1939
        %1941 = vrot.lane.b32.xlu0 %v1903, 64
        %v1942 = vpop.permute.xlu0 %1941
        %1943 = vrot.lane.b32.xlu0 %v1906, 64
        %v1944 = vpop.permute.xlu0 %1943
        %1945 = vrot.lane.b32.xlu0 %v1909, 64
        %v1946 = vpop.permute.xlu0 %1945
        %1947 = vrot.lane.b32.xlu0 %v1912, 64
        %v1948 = vpop.permute.xlu0 %1947
        %1949 = vrot.lane.b32.xlu0 %v1915, 64
        %v1950 = vpop.permute.xlu0 %1949
        %1951 = vrot.lane.b32.xlu0 %v1918, 64
        %v1952 = vpop.permute.xlu0 %1951
        %1953 = vrot.lane.b32.xlu0 %v1921, 64
        %v1954 = vpop.permute.xlu0 %1953
        %1955 = vrot.lane.b32.xlu0 %v1924, 64
        %v1956 = vpop.permute.xlu0 %1955
        %v1959 = vunpack.c.l.b16 %v1517
        %v1960 = vunpack.c.l.b16 %v1518
        %v1961 = vpack.c.b16 %v1960, %v1959
        %1962 = vrot.lane.b32.xlu0 %v1588, 96
        %v1963 = vpop.permute.xlu0 %1962
        %1964 = vrot.lane.b32.xlu0 %v1589, 96
        %v1965 = vpop.permute.xlu0 %1964
        %1966 = vrot.lane.b32.xlu0 %v1590, 96
        %v1967 = vpop.permute.xlu0 %1966
        %1968 = vrot.lane.b32.xlu0 %v1591, 96
        %v1969 = vpop.permute.xlu0 %1968
        %1970 = vrot.lane.b32.xlu0 %v1592, 96
        %v1971 = vpop.permute.xlu0 %1970
        %1972 = vrot.lane.b32.xlu0 %v1593, 96
        %v1973 = vpop.permute.xlu0 %1972
        %1974 = vrot.lane.b32.xlu0 %v1594, 96
        %v1975 = vpop.permute.xlu0 %1974
        %1976 = vrot.lane.b32.xlu0 %v1595, 96
        %v1977 = vpop.permute.xlu0 %1976
        %1978 = vrot.lane.b32.xlu0 %v1596, 96
        %v1979 = vpop.permute.xlu0 %1978
        %1980 = vrot.lane.b32.xlu0 %v1597, 96
        %v1981 = vpop.permute.xlu0 %1980
        %1982 = vrot.lane.b32.xlu0 %v1598, 96
        %v1983 = vpop.permute.xlu0 %1982
        %1984 = vrot.lane.b32.xlu0 %v1599, 96
        %v1985 = vpop.permute.xlu0 %1984
        %1986 = vrot.lane.b32.xlu0 %v1600, 96
        %v1987 = vpop.permute.xlu0 %1986
        %1988 = vrot.lane.b32.xlu0 %v1601, 96
        %v1989 = vpop.permute.xlu0 %1988
        %1990 = vrot.lane.b32.xlu0 %v1602, 96
        %v1991 = vpop.permute.xlu0 %1990
        %1992 = vrot.lane.b32.xlu0 %v1961, 96
        %v1993 = vpop.permute.xlu0 %1992
        %v1995 = vunpack.c.l.b16 %v1519
        %v1996 = vpack.c.b16 %v1995, %v1995
        %v1998 = vshrl.u32 %v1961, 16
        %v2000 = vshll.u32 %v1961, 16
        %v2002 = vrot.slane %v2000, 1
        %v2003 = vor.u32 %v1998, %v2002
        %v2005 = vshll.u32 %v1996, 16
        %v2007 = vrot.slane %v2005, 1
        %v2008 = vsel %vm1651, %v2003, %v2007
        %v2009 = vrot.slane %v1961, 1
        %v2010 = vrot.slane %v1996, 1
        %v2011 = vsel %vm1876, %v2009, %v2010
        %2012 = vrot.lane.b32.xlu0 %v1882, 32
        %v2013 = vpop.permute.xlu0 %2012
        %2014 = vrot.lane.b32.xlu0 %v1885, 32
        %v2015 = vpop.permute.xlu0 %2014
        %2016 = vrot.lane.b32.xlu0 %v1888, 32
        %v2017 = vpop.permute.xlu0 %2016
        %2018 = vrot.lane.b32.xlu0 %v1891, 32
        %v2019 = vpop.permute.xlu0 %2018
        %2020 = vrot.lane.b32.xlu0 %v1894, 32
        %v2021 = vpop.permute.xlu0 %2020
        %2022 = vrot.lane.b32.xlu0 %v1897, 32
        %v2023 = vpop.permute.xlu0 %2022
        %2024 = vrot.lane.b32.xlu0 %v1900, 32
        %v2025 = vpop.permute.xlu0 %2024
        %2026 = vrot.lane.b32.xlu0 %v1903, 32
        %v2027 = vpop.permute.xlu0 %2026
        %2028 = vrot.lane.b32.xlu0 %v1906, 32
        %v2029 = vpop.permute.xlu0 %2028
        %2030 = vrot.lane.b32.xlu0 %v1909, 32
        %v2031 = vpop.permute.xlu0 %2030
        %2032 = vrot.lane.b32.xlu0 %v1912, 32
        %v2033 = vpop.permute.xlu0 %2032
        %2034 = vrot.lane.b32.xlu0 %v1915, 32
        %v2035 = vpop.permute.xlu0 %2034
        %2036 = vrot.lane.b32.xlu0 %v1918, 32
        %v2037 = vpop.permute.xlu0 %2036
        %2038 = vrot.lane.b32.xlu0 %v1921, 32
        %v2039 = vpop.permute.xlu0 %2038
        %2040 = vrot.lane.b32.xlu0 %v1924, 32
        %v2041 = vpop.permute.xlu0 %2040
        %2042 = vrot.lane.b32.xlu0 %v2011, 32
        %v2043 = vpop.permute.xlu0 %2042
        %v2046 = vunpack.c.l.b16 %v1520
        %v2047 = vunpack.c.l.b16 %v1521
        %v2048 = vpack.c.b16 %v2047, %v2046
        %2049 = vrot.lane.b32.xlu0 %v1589, 64
        %v2050 = vpop.permute.xlu0 %2049
        %2051 = vrot.lane.b32.xlu0 %v1590, 64
        %v2052 = vpop.permute.xlu0 %2051
        %2053 = vrot.lane.b32.xlu0 %v1591, 64
        %v2054 = vpop.permute.xlu0 %2053
        %2055 = vrot.lane.b32.xlu0 %v1592, 64
        %v2056 = vpop.permute.xlu0 %2055
        %2057 = vrot.lane.b32.xlu0 %v1593, 64
        %v2058 = vpop.permute.xlu0 %2057
        %2059 = vrot.lane.b32.xlu0 %v1594, 64
        %v2060 = vpop.permute.xlu0 %2059
        %2061 = vrot.lane.b32.xlu0 %v1595, 64
        %v2062 = vpop.permute.xlu0 %2061
        %2063 = vrot.lane.b32.xlu0 %v1596, 64
        %v2064 = vpop.permute.xlu0 %2063
        %2065 = vrot.lane.b32.xlu0 %v1597, 64
        %v2066 = vpop.permute.xlu0 %2065
        %2067 = vrot.lane.b32.xlu0 %v1598, 64
        %v2068 = vpop.permute.xlu0 %2067
        %2069 = vrot.lane.b32.xlu0 %v1599, 64
        %v2070 = vpop.permute.xlu0 %2069
        %2071 = vrot.lane.b32.xlu0 %v1600, 64
        %v2072 = vpop.permute.xlu0 %2071
        %2073 = vrot.lane.b32.xlu0 %v1601, 64
        %v2074 = vpop.permute.xlu0 %2073
        %2075 = vrot.lane.b32.xlu0 %v1602, 64
        %v2076 = vpop.permute.xlu0 %2075
        %2077 = vrot.lane.b32.xlu0 %v1961, 64
        %v2078 = vpop.permute.xlu0 %2077
        %2079 = vrot.lane.b32.xlu0 %v2048, 64
        %v2080 = vpop.permute.xlu0 %2079
        %v2082 = vunpack.c.l.b16 %v1522
        %v2083 = vpack.c.b16 %v2082, %v2082
        %v2085 = vshrl.u32 %v2048, 16
        %v2087 = vshll.u32 %v2048, 16
        %v2089 = vrot.slane %v2087, 1
        %v2090 = vor.u32 %v2085, %v2089
        %v2092 = vshll.u32 %v2083, 16
        %v2094 = vrot.slane %v2092, 1
        %v2095 = vsel %vm1651, %v2090, %v2094
        %2096 = vrot.lane.b32.xlu0 %v1687, 96
        %v2097 = vpop.permute.xlu0 %2096
        %2098 = vrot.lane.b32.xlu0 %v1699, 96
        %v2099 = vpop.permute.xlu0 %2098
        %2100 = vrot.lane.b32.xlu0 %v1711, 96
        %v2101 = vpop.permute.xlu0 %2100
        %2102 = vrot.lane.b32.xlu0 %v1723, 96
        %v2103 = vpop.permute.xlu0 %2102
        %2104 = vrot.lane.b32.xlu0 %v1735, 96
        %v2105 = vpop.permute.xlu0 %2104
        %2106 = vrot.lane.b32.xlu0 %v1747, 96
        %v2107 = vpop.permute.xlu0 %2106
        %2108 = vrot.lane.b32.xlu0 %v1759, 96
        %v2109 = vpop.permute.xlu0 %2108
        %2110 = vrot.lane.b32.xlu0 %v1771, 96
        %v2111 = vpop.permute.xlu0 %2110
        %2112 = vrot.lane.b32.xlu0 %v1783, 96
        %v2113 = vpop.permute.xlu0 %2112
        %2114 = vrot.lane.b32.xlu0 %v1795, 96
        %v2115 = vpop.permute.xlu0 %2114
        %2116 = vrot.lane.b32.xlu0 %v1807, 96
        %v2117 = vpop.permute.xlu0 %2116
        %2118 = vrot.lane.b32.xlu0 %v1819, 96
        %v2119 = vpop.permute.xlu0 %2118
        %2120 = vrot.lane.b32.xlu0 %v1831, 96
        %v2121 = vpop.permute.xlu0 %2120
        %2122 = vrot.lane.b32.xlu0 %v1843, 96
        %v2123 = vpop.permute.xlu0 %2122
        %2124 = vrot.lane.b32.xlu0 %v2008, 96
        %v2125 = vpop.permute.xlu0 %2124
        %2126 = vrot.lane.b32.xlu0 %v2095, 96
        %v2127 = vpop.permute.xlu0 %2126
        %v2128 = vrot.slane %v2048, 1
        %v2129 = vrot.slane %v2083, 1
        %v2130 = vsel %vm1876, %v2128, %v2129
        %v2132 = vsel %vm478, %v1587, %v1845
        %v2134 = vsel %vm478, %v1588, %v1847
        %v2136 = vsel %vm478, %v1589, %v1849
        %v2138 = vsel %vm478, %v1590, %v1851
        %v2140 = vsel %vm478, %v1591, %v1853
        %v2142 = vsel %vm478, %v1592, %v1855
        %v2144 = vsel %vm478, %v1593, %v1857
        %v2146 = vsel %vm478, %v1594, %v1859
        %v2148 = vsel %vm478, %v1595, %v1861
        %v2150 = vsel %vm478, %v1596, %v1863
        %v2152 = vsel %vm478, %v1597, %v1865
        %v2154 = vsel %vm478, %v1598, %v1867
        %v2156 = vsel %vm478, %v1599, %v1869
        %v2158 = vsel %vm478, %v1600, %v1871
        %v2160 = vsel %vm478, %v1601, %v1873
        %v2162 = vsel %vm478, %v1602, %v1875
        %vm2163 = vcmask 523264
        %v2165 = vsel %vm2163, %v2132, %v1926
        %v2167 = vsel %vm2163, %v2134, %v1928
        %v2169 = vsel %vm2163, %v2136, %v1930
        %v2171 = vsel %vm2163, %v2138, %v1932
        %v2173 = vsel %vm2163, %v2140, %v1934
        %v2175 = vsel %vm2163, %v2142, %v1936
        %v2177 = vsel %vm2163, %v2144, %v1938
        %v2179 = vsel %vm2163, %v2146, %v1940
        %v2181 = vsel %vm2163, %v2148, %v1942
        %v2183 = vsel %vm2163, %v2150, %v1944
        %v2185 = vsel %vm2163, %v2152, %v1946
        %v2187 = vsel %vm2163, %v2154, %v1948
        %v2189 = vsel %vm2163, %v2156, %v1950
        %v2191 = vsel %vm2163, %v2158, %v1952
        %v2193 = vsel %vm2163, %v2160, %v1954
        %v2195 = vsel %vm2163, %v2162, %v1956
        %vm2196 = vcmask 785408
        %v2198 = vsel %vm2196, %v2165, %v1963
        %v2201 = vsel %vm2196, %v2167, %v1965
        %v2204 = vsel %vm2196, %v2169, %v1967
        %v2207 = vsel %vm2196, %v2171, %v1969
        %v2210 = vsel %vm2196, %v2173, %v1971
        %v2213 = vsel %vm2196, %v2175, %v1973
        %v2216 = vsel %vm2196, %v2177, %v1975
        %v2219 = vsel %vm2196, %v2179, %v1977
        %v2222 = vsel %vm2196, %v2181, %v1979
        %v2225 = vsel %vm2196, %v2183, %v1981
        %v2228 = vsel %vm2196, %v2185, %v1983
        %v2231 = vsel %vm2196, %v2187, %v1985
        %v2234 = vsel %vm2196, %v2189, %v1987
        %v2237 = vsel %vm2196, %v2191, %v1989
        %v2240 = vsel %vm2196, %v2193, %v1991
        %v2243 = vsel %vm2196, %v2195, %v1993
        %v2247 = vsel %vm478, %v1675, %v2013
        %v2250 = vsel %vm478, %v1687, %v2015
        %v2253 = vsel %vm478, %v1699, %v2017
        %v2256 = vsel %vm478, %v1711, %v2019
        %v2259 = vsel %vm478, %v1723, %v2021
        %v2262 = vsel %vm478, %v1735, %v2023
        %v2265 = vsel %vm478, %v1747, %v2025
        %v2268 = vsel %vm478, %v1759, %v2027
        %v2271 = vsel %vm478, %v1771, %v2029
        %v2274 = vsel %vm478, %v1783, %v2031
        %v2277 = vsel %vm478, %v1795, %v2033
        %v2280 = vsel %vm478, %v1807, %v2035
        %v2283 = vsel %vm478, %v1819, %v2037
        %v2286 = vsel %vm478, %v1831, %v2039
        %v2289 = vsel %vm478, %v1843, %v2041
        %v2292 = vsel %vm478, %v2008, %v2043
        %v2294 = vsel %vm2163, %v2247, %v2050
        %v2296 = vsel %vm2163, %v2250, %v2052
        %v2298 = vsel %vm2163, %v2253, %v2054
        %v2300 = vsel %vm2163, %v2256, %v2056
        %v2302 = vsel %vm2163, %v2259, %v2058
        %v2304 = vsel %vm2163, %v2262, %v2060
        %v2306 = vsel %vm2163, %v2265, %v2062
        %v2308 = vsel %vm2163, %v2268, %v2064
        %v2310 = vsel %vm2163, %v2271, %v2066
        %v2312 = vsel %vm2163, %v2274, %v2068
        %v2314 = vsel %vm2163, %v2277, %v2070
        %v2316 = vsel %vm2163, %v2280, %v2072
        %v2318 = vsel %vm2163, %v2283, %v2074
        %v2320 = vsel %vm2163, %v2286, %v2076
        %v2322 = vsel %vm2163, %v2289, %v2078
        %v2324 = vsel %vm2163, %v2292, %v2080
        %v2326 = vsel %vm2196, %v2294, %v2097
        %v2329 = vsel %vm2196, %v2296, %v2099
        %v2332 = vsel %vm2196, %v2298, %v2101
        %v2335 = vsel %vm2196, %v2300, %v2103
        %v2338 = vsel %vm2196, %v2302, %v2105
        %v2341 = vsel %vm2196, %v2304, %v2107
        %v2344 = vsel %vm2196, %v2306, %v2109
        %v2347 = vsel %vm2196, %v2308, %v2111
        %v2350 = vsel %vm2196, %v2310, %v2113
        %v2353 = vsel %vm2196, %v2312, %v2115
        %v2356 = vsel %vm2196, %v2314, %v2117
        %v2359 = vsel %vm2196, %v2316, %v2119
        %v2362 = vsel %vm2196, %v2318, %v2121
        %v2365 = vsel %vm2196, %v2320, %v2123
        %v2368 = vsel %vm2196, %v2322, %v2125
        %v2371 = vsel %vm2196, %v2324, %v2127
        %v2373 = vld [vmem:[%s4] sm:$0xf]
        %v2374 = vld [vmem:[%s4 + $0x4] sm:$0xf]
        %v2375 = vld [vmem:[%s4 + $0x8] sm:$0xf]
        %v2376 = vld [vmem:[%s4 + $0xc] sm:$0xf]
        %v2377 = vld [vmem:[%s4 + $0x10] sm:$0xf]
        %v2378 = vld [vmem:[%s4 + $0x14] sm:$0xf]
        %v2379 = vld [vmem:[%s4 + $0x18] sm:$0xf]
        %v2380 = vld [vmem:[%s4 + $0x1c] sm:$0xf]
        %v2381 = vld [vmem:[%s4 + $0x20] sm:$0xf]
        %v2382 = vld [vmem:[%s4 + $0x24] sm:$0xf]
        %v2383 = vld [vmem:[%s4 + $0x28] sm:$0xf]
        %v2384 = vld [vmem:[%s4 + $0x2c] sm:$0xf]
        %v2385 = vld [vmem:[%s4 + $0x30] sm:$0xf]
        %v2386 = vld [vmem:[%s4 + $0x34] sm:$0xf]
        %v2387 = vld [vmem:[%s4 + $0x38] sm:$0xf]
        %v2388 = vld [vmem:[%s4 + $0x3c] sm:$0xf]
        %v2389 = vld [vmem:[%s4 + $0x40] sm:$0xf]
        %v2390 = vld [vmem:[%s4 + $0x44] sm:$0xf]
        %v2391 = vld [vmem:[%s4 + $0x48] sm:$0xf]
        %v2392 = vld [vmem:[%s4 + $0x4c] sm:$0xf]
        %v2393 = vld [vmem:[%s4 + $0x50] sm:$0xf]
        %v2394 = vld [vmem:[%s4 + $0x54] sm:$0xf]
        %v2395 = vld [vmem:[%s4 + $0x58] sm:$0xf]
        %v2396 = vld [vmem:[%s4 + $0x5c] sm:$0xf]
        %v2397 = vld [vmem:[%s4 + $0x60] sm:$0xf]
        %v2398 = vld [vmem:[%s4 + $0x64] sm:$0xf]
        %v2399 = vld [vmem:[%s4 + $0x68] sm:$0xf]
        %v2400 = vld [vmem:[%s4 + $0x6c] sm:$0xf]
        %v2401 = vld [vmem:[%s4 + $0x70] sm:$0xf]
        %v2402 = vld [vmem:[%s4 + $0x74] sm:$0xf]
        %v2403 = vld [vmem:[%s4 + $0x78] sm:$0xf]
        %v2404 = vld [vmem:[%s4 + $0x7c] sm:$0xf]
        %v2405 = vld [vmem:[%s4 + $0x80] sm:$0xf]
        %v2406 = vld [vmem:[%s4 + $0x84] sm:$0xf]
        %v2407 = vld [vmem:[%s4 + $0x88] sm:$0xf]
        %v2408 = vld [vmem:[%s4 + $0x8c] sm:$0xf]
        %v2409 = vld [vmem:[%s5] sm:$0x1]
        %v2411 = vperm.slane %v2409, 0
        %v2449 = vunpack.c.l.b16 %v2373
        %v2450 = vunpack.c.l.b16 %v2374
        %v2451 = vunpack.c.l.b16 %v2375
        %v2452 = vunpack.c.l.b16 %v2376
        %v2453 = vunpack.c.l.b16 %v2377
        %v2454 = vunpack.c.l.b16 %v2378
        %v2455 = vunpack.c.l.b16 %v2379
        %v2456 = vunpack.c.l.b16 %v2380
        %v2457 = vunpack.c.l.b16 %v2381
        %v2458 = vunpack.c.l.b16 %v2382
        %v2459 = vunpack.c.l.b16 %v2383
        %v2460 = vunpack.c.l.b16 %v2384
        %v2461 = vunpack.c.l.b16 %v2385
        %v2462 = vunpack.c.l.b16 %v2386
        %v2463 = vunpack.c.l.b16 %v2387
        %v2464 = vunpack.c.l.b16 %v2388
        %v2465 = vunpack.c.l.b16 %v2389
        %v2466 = vunpack.c.l.b16 %v2390
        %v2467 = vunpack.c.l.b16 %v2391
        %v2468 = vunpack.c.l.b16 %v2392
        %v2469 = vunpack.c.l.b16 %v2393
        %v2470 = vunpack.c.l.b16 %v2394
        %v2471 = vunpack.c.l.b16 %v2395
        %v2472 = vunpack.c.l.b16 %v2396
        %v2473 = vunpack.c.l.b16 %v2397
        %v2474 = vunpack.c.l.b16 %v2398
        %v2475 = vunpack.c.l.b16 %v2399
        %v2476 = vunpack.c.l.b16 %v2400
        %v2477 = vunpack.c.l.b16 %v2401
        %v2478 = vunpack.c.l.b16 %v2402
        %v2479 = vunpack.c.l.b16 %v2403
        %v2480 = vunpack.c.l.b16 %v2404
        %v2481 = vunpack.c.l.b16 %v2405
        %v2482 = vunpack.c.l.b16 %v2406
        %v2483 = vunpack.c.l.b16 %v2407
        %v2484 = vunpack.c.l.b16 %v2408
        %v2485 = vpack.c.b16 %v2450, %v2449
        %v2486 = vpack.c.b16 %v2452, %v2451
        %v2487 = vpack.c.b16 %v2454, %v2453
        %v2488 = vpack.c.b16 %v2456, %v2455
        %v2489 = vpack.c.b16 %v2458, %v2457
        %v2490 = vpack.c.b16 %v2460, %v2459
        %v2491 = vpack.c.b16 %v2462, %v2461
        %v2492 = vpack.c.b16 %v2464, %v2463
        %v2493 = vpack.c.b16 %v2466, %v2465
        %v2494 = vpack.c.b16 %v2468, %v2467
        %v2495 = vpack.c.b16 %v2470, %v2469
        %v2496 = vpack.c.b16 %v2472, %v2471
        %v2497 = vpack.c.b16 %v2474, %v2473
        %v2498 = vpack.c.b16 %v2476, %v2475
        %v2499 = vpack.c.b16 %v2478, %v2477
        %v2500 = vpack.c.b16 %v2480, %v2479
        %v2501 = vpack.c.b16 %v2482, %v2481
        %v2502 = vpack.c.b16 %v2484, %v2483
        %v2522 = vsel %vm478, %v1885, 0
        %v2525 = vsel %vm478, %v1888, 0
        %v2528 = vsel %vm478, %v1891, 0
        %v2531 = vsel %vm478, %v1894, 0
        %v2534 = vsel %vm478, %v1897, 0
        %v2537 = vsel %vm478, %v1900, 0
        %v2540 = vsel %vm478, %v1903, 0
        %v2543 = vsel %vm478, %v1906, 0
        %v2546 = vsel %vm478, %v1909, 0
        %v2549 = vsel %vm478, %v1912, 0
        %v2552 = vsel %vm478, %v1915, 0
        %v2555 = vsel %vm478, %v1918, 0
        %v2558 = vsel %vm478, %v1921, 0
        %v2561 = vsel %vm478, %v1924, 0
        %v2564 = vsel %vm478, %v2011, 0
        %v2567 = vsel %vm478, %v2130, 0
        %2569 = vmatpush.bf16.msra.mxu0 %v2492
        %2570 = vmatpush.bf16.msra.mxu0 %v2491
        %2571 = vmatpush.bf16.msra.mxu0 %v2490
        %2572 = vmatpush.bf16.msra.mxu0 %v2489
        %2573 = vmatpush.bf16.msra.mxu0 %v2488
        %2574 = vmatpush.bf16.msra.mxu0 %v2487
        %2575 = vmatpush.bf16.msra.mxu0 %v2486
        %2576 = vmatpush.bf16.msra.mxu0 %v2485
        %2577 = vmatmul.bf16.gmra.mxu0 %v2198
        %v2578 = vpop.f32.mrf.mxu0
        %v2579 = vadd.f32 %v2411, %v2578
        %v2580 = vpop.f32.mrf.mxu0
        %v2581 = vadd.f32 %v2411, %v2580
        %2582 = vmatmul.bf16.gmra.mxu0 %v2201
        %v2583 = vpop.f32.mrf.mxu0
        %v2584 = vadd.f32 %v2411, %v2583
        %v2585 = vpop.f32.mrf.mxu0
        %v2586 = vadd.f32 %v2411, %v2585
        %2587 = vmatmul.bf16.gmra.mxu0 %v2204
        %v2588 = vpop.f32.mrf.mxu0
        %v2589 = vadd.f32 %v2411, %v2588
        %v2590 = vpop.f32.mrf.mxu0
        %v2591 = vadd.f32 %v2411, %v2590
        %2592 = vmatmul.bf16.gmra.mxu0 %v2207
        %v2593 = vpop.f32.mrf.mxu0
        %v2594 = vadd.f32 %v2411, %v2593
        %v2595 = vpop.f32.mrf.mxu0
        %v2596 = vadd.f32 %v2411, %v2595
        %2597 = vmatmul.bf16.gmra.mxu0 %v2210
        %v2598 = vpop.f32.mrf.mxu0
        %v2599 = vadd.f32 %v2411, %v2598
        %v2600 = vpop.f32.mrf.mxu0
        %v2601 = vadd.f32 %v2411, %v2600
        %2602 = vmatmul.bf16.gmra.mxu0 %v2213
        %v2603 = vpop.f32.mrf.mxu0
        %v2604 = vadd.f32 %v2411, %v2603
        %v2605 = vpop.f32.mrf.mxu0
        %v2606 = vadd.f32 %v2411, %v2605
        %2607 = vmatmul.bf16.gmra.mxu0 %v2216
        %v2608 = vpop.f32.mrf.mxu0
        %v2609 = vadd.f32 %v2411, %v2608
        %v2610 = vpop.f32.mrf.mxu0
        %v2611 = vadd.f32 %v2411, %v2610
        %2612 = vmatmul.bf16.gmra.mxu0 %v2219
        %v2613 = vpop.f32.mrf.mxu0
        %v2614 = vadd.f32 %v2411, %v2613
        %v2615 = vpop.f32.mrf.mxu0
        %v2616 = vadd.f32 %v2411, %v2615
        %2617 = vmatmul.bf16.gmra.mxu0 %v2222
        %v2618 = vpop.f32.mrf.mxu0
        %v2619 = vadd.f32 %v2411, %v2618
        %v2620 = vpop.f32.mrf.mxu0
        %v2621 = vadd.f32 %v2411, %v2620
        %2622 = vmatmul.bf16.gmra.mxu0 %v2225
        %v2623 = vpop.f32.mrf.mxu0
        %v2624 = vadd.f32 %v2411, %v2623
        %v2625 = vpop.f32.mrf.mxu0
        %v2626 = vadd.f32 %v2411, %v2625
        %2627 = vmatmul.bf16.gmra.mxu0 %v2228
        %v2628 = vpop.f32.mrf.mxu0
        %v2629 = vadd.f32 %v2411, %v2628
        %v2630 = vpop.f32.mrf.mxu0
        %v2631 = vadd.f32 %v2411, %v2630
        %2632 = vmatmul.bf16.gmra.mxu0 %v2231
        %v2633 = vpop.f32.mrf.mxu0
        %v2634 = vadd.f32 %v2411, %v2633
        %v2635 = vpop.f32.mrf.mxu0
        %v2636 = vadd.f32 %v2411, %v2635
        %2637 = vmatmul.bf16.gmra.mxu0 %v2234
        %v2638 = vpop.f32.mrf.mxu0
        %v2639 = vadd.f32 %v2411, %v2638
        %v2640 = vpop.f32.mrf.mxu0
        %v2641 = vadd.f32 %v2411, %v2640
        %2642 = vmatmul.bf16.gmra.mxu0 %v2237
        %v2643 = vpop.f32.mrf.mxu0
        %v2644 = vadd.f32 %v2411, %v2643
        %v2645 = vpop.f32.mrf.mxu0
        %v2646 = vadd.f32 %v2411, %v2645
        %2647 = vmatmul.bf16.gmra.mxu0 %v2240
        %v2648 = vpop.f32.mrf.mxu0
        %v2649 = vadd.f32 %v2411, %v2648
        %v2650 = vpop.f32.mrf.mxu0
        %v2651 = vadd.f32 %v2411, %v2650
        %2652 = vmatmul.bf16.gmra.mxu0 %v2243
        %v2653 = vpop.f32.mrf.mxu0
        %v2654 = vadd.f32 %v2411, %v2653
        %v2655 = vpop.f32.mrf.mxu0
        %v2656 = vadd.f32 %v2411, %v2655
        %2657 = vdwg.mxu0
        %2658 = vmatpush.bf16.msra.mxu0 %v2500
        %2659 = vmatpush.bf16.msra.mxu0 %v2499
        %2660 = vmatpush.bf16.msra.mxu0 %v2498
        %2661 = vmatpush.bf16.msra.mxu0 %v2497
        %2662 = vmatpush.bf16.msra.mxu0 %v2496
        %2663 = vmatpush.bf16.msra.mxu0 %v2495
        %2664 = vmatpush.bf16.msra.mxu0 %v2494
        %2665 = vmatpush.bf16.msra.mxu0 %v2493
        %2666 = vmatmul.bf16.gmra.mxu0 %v2326
        %v2667 = vpop.f32.mrf.mxu0
        %v2668 = vadd.f32 %v2579, %v2667
        %v2669 = vpop.f32.mrf.mxu0
        %v2670 = vadd.f32 %v2581, %v2669
        %2671 = vmatmul.bf16.gmra.mxu0 %v2329
        %v2672 = vpop.f32.mrf.mxu0
        %v2673 = vadd.f32 %v2584, %v2672
        %v2674 = vpop.f32.mrf.mxu0
        %v2675 = vadd.f32 %v2586, %v2674
        %2676 = vmatmul.bf16.gmra.mxu0 %v2332
        %v2677 = vpop.f32.mrf.mxu0
        %v2678 = vadd.f32 %v2589, %v2677
        %v2679 = vpop.f32.mrf.mxu0
        %v2680 = vadd.f32 %v2591, %v2679
        %2681 = vmatmul.bf16.gmra.mxu0 %v2335
        %v2682 = vpop.f32.mrf.mxu0
        %v2683 = vadd.f32 %v2594, %v2682
        %v2684 = vpop.f32.mrf.mxu0
        %v2685 = vadd.f32 %v2596, %v2684
        %2686 = vmatmul.bf16.gmra.mxu0 %v2338
        %v2687 = vpop.f32.mrf.mxu0
        %v2688 = vadd.f32 %v2599, %v2687
        %v2689 = vpop.f32.mrf.mxu0
        %v2690 = vadd.f32 %v2601, %v2689
        %2691 = vmatmul.bf16.gmra.mxu0 %v2341
        %v2692 = vpop.f32.mrf.mxu0
        %v2693 = vadd.f32 %v2604, %v2692
        %v2694 = vpop.f32.mrf.mxu0
        %v2695 = vadd.f32 %v2606, %v2694
        %2696 = vmatmul.bf16.gmra.mxu0 %v2344
        %v2697 = vpop.f32.mrf.mxu0
        %v2698 = vadd.f32 %v2609, %v2697
        %v2699 = vpop.f32.mrf.mxu0
        %v2700 = vadd.f32 %v2611, %v2699
        %2701 = vmatmul.bf16.gmra.mxu0 %v2347
        %v2702 = vpop.f32.mrf.mxu0
        %v2703 = vadd.f32 %v2614, %v2702
        %v2704 = vpop.f32.mrf.mxu0
        %v2705 = vadd.f32 %v2616, %v2704
        %2706 = vmatmul.bf16.gmra.mxu0 %v2350
        %v2707 = vpop.f32.mrf.mxu0
        %v2708 = vadd.f32 %v2619, %v2707
        %v2709 = vpop.f32.mrf.mxu0
        %v2710 = vadd.f32 %v2621, %v2709
        %2711 = vmatmul.bf16.gmra.mxu0 %v2353
        %v2712 = vpop.f32.mrf.mxu0
        %v2713 = vadd.f32 %v2624, %v2712
        %v2714 = vpop.f32.mrf.mxu0
        %v2715 = vadd.f32 %v2626, %v2714
        %2716 = vmatmul.bf16.gmra.mxu0 %v2356
        %v2717 = vpop.f32.mrf.mxu0
        %v2718 = vadd.f32 %v2629, %v2717
        %v2719 = vpop.f32.mrf.mxu0
        %v2720 = vadd.f32 %v2631, %v2719
        %2721 = vmatmul.bf16.gmra.mxu0 %v2359
        %v2722 = vpop.f32.mrf.mxu0
        %v2723 = vadd.f32 %v2634, %v2722
        %v2724 = vpop.f32.mrf.mxu0
        %v2725 = vadd.f32 %v2636, %v2724
        %2726 = vmatmul.bf16.gmra.mxu0 %v2362
        %v2727 = vpop.f32.mrf.mxu0
        %v2728 = vadd.f32 %v2639, %v2727
        %v2729 = vpop.f32.mrf.mxu0
        %v2730 = vadd.f32 %v2641, %v2729
        %2731 = vmatmul.bf16.gmra.mxu0 %v2365
        %v2732 = vpop.f32.mrf.mxu0
        %v2733 = vadd.f32 %v2644, %v2732
        %v2734 = vpop.f32.mrf.mxu0
        %v2735 = vadd.f32 %v2646, %v2734
        %2736 = vmatmul.bf16.gmra.mxu0 %v2368
        %v2737 = vpop.f32.mrf.mxu0
        %v2738 = vadd.f32 %v2649, %v2737
        %v2739 = vpop.f32.mrf.mxu0
        %v2740 = vadd.f32 %v2651, %v2739
        %2741 = vmatmul.bf16.gmra.mxu0 %v2371
        %v2742 = vpop.f32.mrf.mxu0
        %v2743 = vadd.f32 %v2654, %v2742
        %v2744 = vpop.f32.mrf.mxu0
        %v2745 = vadd.f32 %v2656, %v2744
        %2746 = vdwg.mxu0
        %2747 = vmatpush.bf16.msra.mxu0 0
        %2748 = vmatpush.bf16.msra.mxu0 0
        %2749 = vmatpush.bf16.msra.mxu0 0
        %2750 = vmatpush.bf16.msra.mxu0 0
        %2751 = vmatpush.bf16.msra.mxu0 0
        %2752 = vmatpush.bf16.msra.mxu0 0
        %2753 = vmatpush.bf16.msra.mxu0 %v2502
        %2754 = vmatpush.bf16.msra.mxu0 %v2501
        %2755 = vmatmul.bf16.gmra.mxu0 %v2522
        %v2756 = vpop.f32.mrf.mxu0
        %v2757 = vadd.f32 %v2668, %v2756
        %v2758 = vpop.f32.mrf.mxu0
        %v2759 = vadd.f32 %v2670, %v2758
        %2760 = vmatmul.bf16.gmra.mxu0 %v2525
        %v2761 = vpop.f32.mrf.mxu0
        %v2762 = vadd.f32 %v2673, %v2761
        %v2763 = vpop.f32.mrf.mxu0
        %v2764 = vadd.f32 %v2675, %v2763
        %2765 = vmatmul.bf16.gmra.mxu0 %v2528
        %v2766 = vpop.f32.mrf.mxu0
        %v2767 = vadd.f32 %v2678, %v2766
        %v2768 = vpop.f32.mrf.mxu0
        %v2769 = vadd.f32 %v2680, %v2768
        %2770 = vmatmul.bf16.gmra.mxu0 %v2531
        %v2771 = vpop.f32.mrf.mxu0
        %v2772 = vadd.f32 %v2683, %v2771
        %v2773 = vpop.f32.mrf.mxu0
        %v2774 = vadd.f32 %v2685, %v2773
        %2775 = vmatmul.bf16.gmra.mxu0 %v2534
        %v2776 = vpop.f32.mrf.mxu0
        %v2777 = vadd.f32 %v2688, %v2776
        %v2778 = vpop.f32.mrf.mxu0
        %v2779 = vadd.f32 %v2690, %v2778
        %2780 = vmatmul.bf16.gmra.mxu0 %v2537
        %v2781 = vpop.f32.mrf.mxu0
        %v2782 = vadd.f32 %v2693, %v2781
        %v2783 = vpop.f32.mrf.mxu0
        %v2784 = vadd.f32 %v2695, %v2783
        %2785 = vmatmul.bf16.gmra.mxu0 %v2540
        %v2786 = vpop.f32.mrf.mxu0
        %v2787 = vadd.f32 %v2698, %v2786
        %v2788 = vpop.f32.mrf.mxu0
        %v2789 = vadd.f32 %v2700, %v2788
        %2790 = vmatmul.bf16.gmra.mxu0 %v2543
        %v2791 = vpop.f32.mrf.mxu0
        %v2792 = vadd.f32 %v2703, %v2791
        %v2793 = vpop.f32.mrf.mxu0
        %v2794 = vadd.f32 %v2705, %v2793
        %2795 = vmatmul.bf16.gmra.mxu0 %v2546
        %v2796 = vpop.f32.mrf.mxu0
        %v2797 = vadd.f32 %v2708, %v2796
        %v2798 = vpop.f32.mrf.mxu0
        %v2799 = vadd.f32 %v2710, %v2798
        %2800 = vmatmul.bf16.gmra.mxu0 %v2549
        %v2801 = vpop.f32.mrf.mxu0
        %v2802 = vadd.f32 %v2713, %v2801
        %v2803 = vpop.f32.mrf.mxu0
        %v2804 = vadd.f32 %v2715, %v2803
        %2805 = vmatmul.bf16.gmra.mxu0 %v2552
        %v2806 = vpop.f32.mrf.mxu0
        %v2807 = vadd.f32 %v2718, %v2806
        %v2808 = vpop.f32.mrf.mxu0
        %v2809 = vadd.f32 %v2720, %v2808
        %2810 = vmatmul.bf16.gmra.mxu0 %v2555
        %v2811 = vpop.f32.mrf.mxu0
        %v2812 = vadd.f32 %v2723, %v2811
        %v2813 = vpop.f32.mrf.mxu0
        %v2814 = vadd.f32 %v2725, %v2813
        %2815 = vmatmul.bf16.gmra.mxu0 %v2558
        %v2816 = vpop.f32.mrf.mxu0
        %v2817 = vadd.f32 %v2728, %v2816
        %v2818 = vpop.f32.mrf.mxu0
        %v2819 = vadd.f32 %v2730, %v2818
        %2820 = vmatmul.bf16.gmra.mxu0 %v2561
        %v2821 = vpop.f32.mrf.mxu0
        %v2822 = vadd.f32 %v2733, %v2821
        %v2823 = vpop.f32.mrf.mxu0
        %v2824 = vadd.f32 %v2735, %v2823
        %2825 = vmatmul.bf16.gmra.mxu0 %v2564
        %v2826 = vpop.f32.mrf.mxu0
        %v2827 = vadd.f32 %v2738, %v2826
        %v2828 = vpop.f32.mrf.mxu0
        %v2829 = vadd.f32 %v2740, %v2828
        %2830 = vmatmul.bf16.gmra.mxu0 %v2567
        %v2831 = vpop.f32.mrf.mxu0
        %v2832 = vadd.f32 %v2743, %v2831
        %v2833 = vpop.f32.mrf.mxu0
        %v2834 = vadd.f32 %v2745, %v2833
        %2835 = vdwg.mxu0
        %v2836 = vld [vmem:[%s6] sm:$0x1]
        %v2837 = vld [vmem:[%s7] sm:$0x1]
        %v2838 = vld [vmem:[%s8] sm:$0xff]
        %v2839 = vld [vmem:[%s8 + $0x8] sm:$0xff]
        %v2840 = vld [vmem:[%s8 + $0x10] sm:$0xff]
        %v2841 = vld [vmem:[%s8 + $0x18] sm:$0xff]
        %v2842 = vld [vmem:[%s8 + $0x20] sm:$0xff]
        %v2843 = vld [vmem:[%s8 + $0x28] sm:$0xff]
        %v2844 = vld [vmem:[%s8 + $0x30] sm:$0xff]
        %v2845 = vld [vmem:[%s8 + $0x38] sm:$0xff]
        %v2846 = vsel %vm2163, %v2757, 0.0
        %v2847 = vsel %vm2163, %v2759, 0.0
        %v2848 = vadd.f32 %v2846, %v2847
        %v2849 = vsel %vm2163, %v2762, 0.0
        %v2850 = vadd.f32 %v2848, %v2849
        %v2851 = vsel %vm2163, %v2764, 0.0
        %v2852 = vadd.f32 %v2850, %v2851
        %v2853 = vsel %vm2163, %v2767, 0.0
        %v2854 = vadd.f32 %v2852, %v2853
        %v2855 = vsel %vm2163, %v2769, 0.0
        %v2856 = vadd.f32 %v2854, %v2855
        %v2857 = vsel %vm2163, %v2772, 0.0
        %v2858 = vadd.f32 %v2856, %v2857
        %v2859 = vsel %vm2163, %v2774, 0.0
        %v2860 = vadd.f32 %v2858, %v2859
        %v2861 = vsel %vm2163, %v2777, 0.0
        %v2862 = vadd.f32 %v2860, %v2861
        %v2863 = vsel %vm2163, %v2779, 0.0
        %v2864 = vadd.f32 %v2862, %v2863
        %v2865 = vsel %vm2163, %v2782, 0.0
        %v2866 = vadd.f32 %v2864, %v2865
        %v2867 = vsel %vm2163, %v2784, 0.0
        %v2868 = vadd.f32 %v2866, %v2867
        %v2869 = vsel %vm2163, %v2787, 0.0
        %v2870 = vadd.f32 %v2868, %v2869
        %v2871 = vsel %vm2163, %v2789, 0.0
        %v2872 = vadd.f32 %v2870, %v2871
        %v2873 = vsel %vm2163, %v2792, 0.0
        %v2874 = vadd.f32 %v2872, %v2873
        %v2875 = vsel %vm2163, %v2794, 0.0
        %v2876 = vadd.f32 %v2874, %v2875
        %v2877 = vsel %vm2163, %v2797, 0.0
        %v2878 = vadd.f32 %v2876, %v2877
        %v2879 = vsel %vm2163, %v2799, 0.0
        %v2880 = vadd.f32 %v2878, %v2879
        %v2881 = vsel %vm2163, %v2802, 0.0
        %v2882 = vadd.f32 %v2880, %v2881
        %v2883 = vsel %vm2163, %v2804, 0.0
        %v2884 = vadd.f32 %v2882, %v2883
        %v2885 = vsel %vm2163, %v2807, 0.0
        %v2886 = vadd.f32 %v2884, %v2885
        %v2887 = vsel %vm2163, %v2809, 0.0
        %v2888 = vadd.f32 %v2886, %v2887
        %v2889 = vsel %vm2163, %v2812, 0.0
        %v2890 = vadd.f32 %v2888, %v2889
        %v2891 = vsel %vm2163, %v2814, 0.0
        %v2892 = vadd.f32 %v2890, %v2891
        %v2893 = vsel %vm2163, %v2817, 0.0
        %v2894 = vadd.f32 %v2892, %v2893
        %v2895 = vsel %vm2163, %v2819, 0.0
        %v2896 = vadd.f32 %v2894, %v2895
        %v2897 = vsel %vm2163, %v2822, 0.0
        %v2898 = vadd.f32 %v2896, %v2897
        %v2899 = vsel %vm2163, %v2824, 0.0
        %v2900 = vadd.f32 %v2898, %v2899
        %v2901 = vsel %vm2163, %v2827, 0.0
        %v2902 = vadd.f32 %v2900, %v2901
        %v2903 = vsel %vm2163, %v2829, 0.0
        %v2904 = vadd.f32 %v2902, %v2903
        %v2905 = vsel %vm2163, %v2832, 0.0
        %v2906 = vadd.f32 %v2904, %v2905
        %v2907 = vsel %vm2163, %v2834, 0.0
        %v2908 = vadd.f32 %v2906, %v2907
        %v2909 = vrot.slane %v2908, 4
        %v2910 = vadd.f32 %v2908, %v2909
        %v2911 = vrot.slane %v2910, 2
        %v2912 = vadd.f32 %v2910, %v2911
        %v2913 = vrot.slane %v2912, 1
        %v2914 = vadd.f32 %v2912, %v2913
        %v2916 = vsel %vm2163, %v2914, 0
        %2918 = vmatpush.msra.mxu0 0.0
        %2919 = vmatpush.msra.mxu0 0.0
        %2920 = vmatpush.msra.mxu0 0.0
        %2921 = vmatpush.msra.mxu0 0.0
        %2922 = vmatpush.msra.mxu0 0.0
        %2923 = vmatpush.msra.mxu0 0.0
        %2924 = vmatpush.msra.mxu0 0.0
        %2925 = vmatpush.msra.mxu0 0.0
        %2926 = vmatpush.msra.mxu0 %v2845
        %2927 = vmatpush.msra.mxu0 %v2844
        %2928 = vmatpush.msra.mxu0 %v2843
        %2929 = vmatpush.msra.mxu0 %v2842
        %2930 = vmatpush.msra.mxu0 %v2841
        %2931 = vmatpush.msra.mxu0 %v2840
        %2932 = vmatpush.msra.mxu0 %v2839
        %2933 = vmatpush.msra.mxu0 %v2838
        %2934 = vmatmul.f32.gmra.mxu0 %v2916
        %v2935 = vpop.f32.mrf.mxu0
        %v2936 = vadd.f32 0.0, %v2935
        %2937 = vdwg.mxu0
        %v2938 = vrcp.pop 512.0
        %v2939 = vmul.f32 512.0, %v2938
        %v2940 = vsub.f32 1.0, %v2939
        %v2941 = vmul.f32 %v2938, %v2940
        %v2942 = vadd.f32 %v2938, %v2941
        %vm2943 = vweird.f32 %v2938
        %v2944 = vsel %vm2943, %v2938, %v2942
        %v2945 = vmul.f32 %v2936, %v2944
        %v2947 = vsel %vm478, %v2945, 0
        %v2950 = vsel %vm478, %v2838, 0
        %v2953 = vsel %vm478, %v2839, 0
        %v2956 = vsel %vm478, %v2840, 0
        %v2959 = vsel %vm478, %v2841, 0
        %v2962 = vsel %vm478, %v2842, 0
        %v2965 = vsel %vm478, %v2843, 0
        %v2968 = vsel %vm478, %v2844, 0
        %v2971 = vsel %vm478, %v2845, 0
        %2973 = vmatpush.xpose.msra.mxu0 0.0
        %2974 = vmatpush.xpose.msra.mxu0 0.0
        %2975 = vmatpush.xpose.msra.mxu0 0.0
        %2976 = vmatpush.xpose.msra.mxu0 0.0
        %2977 = vmatpush.xpose.msra.mxu0 0.0
        %2978 = vmatpush.xpose.msra.mxu0 0.0
        %2979 = vmatpush.xpose.msra.mxu0 0.0
        %2980 = vmatpush.xpose.msra.mxu0 0.0
        %2981 = vmatpush.xpose.msra.mxu0 %v2971
        %2982 = vmatpush.xpose.msra.mxu0 %v2968
        %2983 = vmatpush.xpose.msra.mxu0 %v2965
        %2984 = vmatpush.xpose.msra.mxu0 %v2962
        %2985 = vmatpush.xpose.msra.mxu0 %v2959
        %2986 = vmatpush.xpose.msra.mxu0 %v2956
        %2987 = vmatpush.xpose.msra.mxu0 %v2953
        %2988 = vmatpush.xpose.msra.mxu0 %v2950
        %2989 = vmatmul.f32.gmra.mxu0 %v2947
        %v2990 = vpop.f32.mrf.mxu0
        %v2991 = vadd.f32 0.0, %v2990
        %2992 = vdwg.mxu0
        %v2993 = vperm.slane %v2991, 0
        %v2994 = vsub.f32 %v2757, %v2993
        %v2995 = vsub.f32 %v2759, %v2993
        %v2996 = vsub.f32 %v2762, %v2993
        %v2997 = vsub.f32 %v2764, %v2993
        %v2998 = vsub.f32 %v2767, %v2993
        %v2999 = vsub.f32 %v2769, %v2993
        %v3000 = vsub.f32 %v2772, %v2993
        %v3001 = vsub.f32 %v2774, %v2993
        %v3002 = vsub.f32 %v2777, %v2993
        %v3003 = vsub.f32 %v2779, %v2993
        %v3004 = vsub.f32 %v2782, %v2993
        %v3005 = vsub.f32 %v2784, %v2993
        %v3006 = vsub.f32 %v2787, %v2993
        %v3007 = vsub.f32 %v2789, %v2993
        %v3008 = vsub.f32 %v2792, %v2993
        %v3009 = vsub.f32 %v2794, %v2993
        %v3010 = vsub.f32 %v2797, %v2993
        %v3011 = vsub.f32 %v2799, %v2993
        %v3012 = vsub.f32 %v2802, %v2993
        %v3013 = vsub.f32 %v2804, %v2993
        %v3014 = vsub.f32 %v2807, %v2993
        %v3015 = vsub.f32 %v2809, %v2993
        %v3016 = vsub.f32 %v2812, %v2993
        %v3017 = vsub.f32 %v2814, %v2993
        %v3018 = vsub.f32 %v2817, %v2993
        %v3019 = vsub.f32 %v2819, %v2993
        %v3020 = vsub.f32 %v2822, %v2993
        %v3021 = vsub.f32 %v2824, %v2993
        %v3022 = vsub.f32 %v2827, %v2993
        %v3023 = vsub.f32 %v2829, %v2993
        %v3024 = vsub.f32 %v2832, %v2993
        %v3025 = vsub.f32 %v2834, %v2993
        %v3026 = vmul.f32 %v2994, %v2994
        %v3027 = vmul.f32 %v2995, %v2995
        %v3028 = vmul.f32 %v2996, %v2996
        %v3029 = vmul.f32 %v2997, %v2997
        %v3030 = vmul.f32 %v2998, %v2998
        %v3031 = vmul.f32 %v2999, %v2999
        %v3032 = vmul.f32 %v3000, %v3000
        %v3033 = vmul.f32 %v3001, %v3001
        %v3034 = vmul.f32 %v3002, %v3002
        %v3035 = vmul.f32 %v3003, %v3003
        %v3036 = vmul.f32 %v3004, %v3004
        %v3037 = vmul.f32 %v3005, %v3005
        %v3038 = vmul.f32 %v3006, %v3006
        %v3039 = vmul.f32 %v3007, %v3007
        %v3040 = vmul.f32 %v3008, %v3008
        %v3041 = vmul.f32 %v3009, %v3009
        %v3042 = vmul.f32 %v3010, %v3010
        %v3043 = vmul.f32 %v3011, %v3011
        %v3044 = vmul.f32 %v3012, %v3012
        %v3045 = vmul.f32 %v3013, %v3013
        %v3046 = vmul.f32 %v3014, %v3014
        %v3047 = vmul.f32 %v3015, %v3015
        %v3048 = vmul.f32 %v3016, %v3016
        %v3049 = vmul.f32 %v3017, %v3017
        %v3050 = vmul.f32 %v3018, %v3018
        %v3051 = vmul.f32 %v3019, %v3019
        %v3052 = vmul.f32 %v3020, %v3020
        %v3053 = vmul.f32 %v3021, %v3021
        %v3054 = vmul.f32 %v3022, %v3022
        %v3055 = vmul.f32 %v3023, %v3023
        %v3056 = vmul.f32 %v3024, %v3024
        %v3057 = vmul.f32 %v3025, %v3025
        %v3058 = vsel %vm2163, %v3026, 0.0
        %v3059 = vsel %vm2163, %v3027, 0.0
        %v3060 = vadd.f32 %v3058, %v3059
        %v3061 = vsel %vm2163, %v3028, 0.0
        %v3062 = vadd.f32 %v3060, %v3061
        %v3063 = vsel %vm2163, %v3029, 0.0
        %v3064 = vadd.f32 %v3062, %v3063
        %v3065 = vsel %vm2163, %v3030, 0.0
        %v3066 = vadd.f32 %v3064, %v3065
        %v3067 = vsel %vm2163, %v3031, 0.0
        %v3068 = vadd.f32 %v3066, %v3067
        %v3069 = vsel %vm2163, %v3032, 0.0
        %v3070 = vadd.f32 %v3068, %v3069
        %v3071 = vsel %vm2163, %v3033, 0.0
        %v3072 = vadd.f32 %v3070, %v3071
        %v3073 = vsel %vm2163, %v3034, 0.0
        %v3074 = vadd.f32 %v3072, %v3073
        %v3075 = vsel %vm2163, %v3035, 0.0
        %v3076 = vadd.f32 %v3074, %v3075
        %v3077 = vsel %vm2163, %v3036, 0.0
        %v3078 = vadd.f32 %v3076, %v3077
        %v3079 = vsel %vm2163, %v3037, 0.0
        %v3080 = vadd.f32 %v3078, %v3079
        %v3081 = vsel %vm2163, %v3038, 0.0
        %v3082 = vadd.f32 %v3080, %v3081
        %v3083 = vsel %vm2163, %v3039, 0.0
        %v3084 = vadd.f32 %v3082, %v3083
        %v3085 = vsel %vm2163, %v3040, 0.0
        %v3086 = vadd.f32 %v3084, %v3085
        %v3087 = vsel %vm2163, %v3041, 0.0
        %v3088 = vadd.f32 %v3086, %v3087
        %v3089 = vsel %vm2163, %v3042, 0.0
        %v3090 = vadd.f32 %v3088, %v3089
        %v3091 = vsel %vm2163, %v3043, 0.0
        %v3092 = vadd.f32 %v3090, %v3091
        %v3093 = vsel %vm2163, %v3044, 0.0
        %v3094 = vadd.f32 %v3092, %v3093
        %v3095 = vsel %vm2163, %v3045, 0.0
        %v3096 = vadd.f32 %v3094, %v3095
        %v3097 = vsel %vm2163, %v3046, 0.0
        %v3098 = vadd.f32 %v3096, %v3097
        %v3099 = vsel %vm2163, %v3047, 0.0
        %v3100 = vadd.f32 %v3098, %v3099
        %v3101 = vsel %vm2163, %v3048, 0.0
        %v3102 = vadd.f32 %v3100, %v3101
        %v3103 = vsel %vm2163, %v3049, 0.0
        %v3104 = vadd.f32 %v3102, %v3103
        %v3105 = vsel %vm2163, %v3050, 0.0
        %v3106 = vadd.f32 %v3104, %v3105
        %v3107 = vsel %vm2163, %v3051, 0.0
        %v3108 = vadd.f32 %v3106, %v3107
        %v3109 = vsel %vm2163, %v3052, 0.0
        %v3110 = vadd.f32 %v3108, %v3109
        %v3111 = vsel %vm2163, %v3053, 0.0
        %v3112 = vadd.f32 %v3110, %v3111
        %v3113 = vsel %vm2163, %v3054, 0.0
        %v3114 = vadd.f32 %v3112, %v3113
        %v3115 = vsel %vm2163, %v3055, 0.0
        %v3116 = vadd.f32 %v3114, %v3115
        %v3117 = vsel %vm2163, %v3056, 0.0
        %v3118 = vadd.f32 %v3116, %v3117
        %v3119 = vsel %vm2163, %v3057, 0.0
        %v3120 = vadd.f32 %v3118, %v3119
        %v3121 = vrot.slane %v3120, 4
        %v3122 = vadd.f32 %v3120, %v3121
        %v3123 = vrot.slane %v3122, 2
        %v3124 = vadd.f32 %v3122, %v3123
        %v3125 = vrot.slane %v3124, 1
        %v3126 = vadd.f32 %v3124, %v3125
        %v3128 = vsel %vm2163, %v3126, 0
        %3130 = vmatpush.msra.mxu0 0.0
        %3131 = vmatpush.msra.mxu0 0.0
        %3132 = vmatpush.msra.mxu0 0.0
        %3133 = vmatpush.msra.mxu0 0.0
        %3134 = vmatpush.msra.mxu0 0.0
        %3135 = vmatpush.msra.mxu0 0.0
        %3136 = vmatpush.msra.mxu0 0.0
        %3137 = vmatpush.msra.mxu0 0.0
        %3138 = vmatpush.msra.mxu0 %v2845
        %3139 = vmatpush.msra.mxu0 %v2844
        %3140 = vmatpush.msra.mxu0 %v2843
        %3141 = vmatpush.msra.mxu0 %v2842
        %3142 = vmatpush.msra.mxu0 %v2841
        %3143 = vmatpush.msra.mxu0 %v2840
        %3144 = vmatpush.msra.mxu0 %v2839
        %3145 = vmatpush.msra.mxu0 %v2838
        %3146 = vmatmul.f32.gmra.mxu0 %v3128
        %v3147 = vpop.f32.mrf.mxu0
        %v3148 = vadd.f32 0.0, %v3147
        %3149 = vdwg.mxu0
        %v3150 = vmul.f32 %v3148, %v2944
        %v3152 = vsel %vm478, %v3150, 0
        %3154 = vmatpush.xpose.msra.mxu0 0.0
        %3155 = vmatpush.xpose.msra.mxu0 0.0
        %3156 = vmatpush.xpose.msra.mxu0 0.0
        %3157 = vmatpush.xpose.msra.mxu0 0.0
        %3158 = vmatpush.xpose.msra.mxu0 0.0
        %3159 = vmatpush.xpose.msra.mxu0 0.0
        %3160 = vmatpush.xpose.msra.mxu0 0.0
        %3161 = vmatpush.xpose.msra.mxu0 0.0
        %3162 = vmatpush.xpose.msra.mxu0 %v2971
        %3163 = vmatpush.xpose.msra.mxu0 %v2968
        %3164 = vmatpush.xpose.msra.mxu0 %v2965
        %3165 = vmatpush.xpose.msra.mxu0 %v2962
        %3166 = vmatpush.xpose.msra.mxu0 %v2959
        %3167 = vmatpush.xpose.msra.mxu0 %v2956
        %3168 = vmatpush.xpose.msra.mxu0 %v2953
        %3169 = vmatpush.xpose.msra.mxu0 %v2950
        %3170 = vmatmul.f32.gmra.mxu0 %v3152
        %v3171 = vpop.f32.mrf.mxu0
        %v3172 = vadd.f32 1e-05, %v3171
        %3173 = vdwg.mxu0
        %v3174 = vrsqrt.pop %v3172
        %v3175 = vmul.f32 %v3174, %v3172
        %v3176 = vmul.f32 %v3175, %v3174
        %v3177 = vmul.f32 0.5, %v3176
        %v3178 = vsub.f32 1.5, %v3177
        %v3179 = vmul.f32 %v3174, %v3178
        %vm3180 = vweird.f32 %v3172
        %vm3181 = vweird.f32 %v3174
        %vm3182 = vmor %vm3180, %vm3181
        %v3183 = vsel %vm3182, %v3174, %v3179
        %v3184 = vperm.slane %v3183, 0
        %v3185 = vmul.f32 %v2994, %v3184
        %v3186 = vmul.f32 %v2995, %v3184
        %v3187 = vmul.f32 %v2996, %v3184
        %v3188 = vmul.f32 %v2997, %v3184
        %v3189 = vmul.f32 %v2998, %v3184
        %v3190 = vmul.f32 %v2999, %v3184
        %v3191 = vmul.f32 %v3000, %v3184
        %v3192 = vmul.f32 %v3001, %v3184
        %v3193 = vmul.f32 %v3002, %v3184
        %v3194 = vmul.f32 %v3003, %v3184
        %v3195 = vmul.f32 %v3004, %v3184
        %v3196 = vmul.f32 %v3005, %v3184
        %v3197 = vmul.f32 %v3006, %v3184
        %v3198 = vmul.f32 %v3007, %v3184
        %v3199 = vmul.f32 %v3008, %v3184
        %v3200 = vmul.f32 %v3009, %v3184
        %v3201 = vmul.f32 %v3010, %v3184
        %v3202 = vmul.f32 %v3011, %v3184
        %v3203 = vmul.f32 %v3012, %v3184
        %v3204 = vmul.f32 %v3013, %v3184
        %v3205 = vmul.f32 %v3014, %v3184
        %v3206 = vmul.f32 %v3015, %v3184
        %v3207 = vmul.f32 %v3016, %v3184
        %v3208 = vmul.f32 %v3017, %v3184
        %v3209 = vmul.f32 %v3018, %v3184
        %v3210 = vmul.f32 %v3019, %v3184
        %v3211 = vmul.f32 %v3020, %v3184
        %v3212 = vmul.f32 %v3021, %v3184
        %v3213 = vmul.f32 %v3022, %v3184
        %v3214 = vmul.f32 %v3023, %v3184
        %v3215 = vmul.f32 %v3024, %v3184
        %v3216 = vmul.f32 %v3025, %v3184
        %v3218 = vperm.slane %v2836, 0
        %v3220 = vmul.f32 %v3185, %v3218
        %v3221 = vmul.f32 %v3186, %v3218
        %v3222 = vmul.f32 %v3187, %v3218
        %v3223 = vmul.f32 %v3188, %v3218
        %v3224 = vmul.f32 %v3189, %v3218
        %v3225 = vmul.f32 %v3190, %v3218
        %v3226 = vmul.f32 %v3191, %v3218
        %v3227 = vmul.f32 %v3192, %v3218
        %v3228 = vmul.f32 %v3193, %v3218
        %v3229 = vmul.f32 %v3194, %v3218
        %v3230 = vmul.f32 %v3195, %v3218
        %v3231 = vmul.f32 %v3196, %v3218
        %v3232 = vmul.f32 %v3197, %v3218
        %v3233 = vmul.f32 %v3198, %v3218
        %v3234 = vmul.f32 %v3199, %v3218
        %v3235 = vmul.f32 %v3200, %v3218
        %v3236 = vmul.f32 %v3201, %v3218
        %v3237 = vmul.f32 %v3202, %v3218
        %v3238 = vmul.f32 %v3203, %v3218
        %v3239 = vmul.f32 %v3204, %v3218
        %v3240 = vmul.f32 %v3205, %v3218
        %v3241 = vmul.f32 %v3206, %v3218
        %v3242 = vmul.f32 %v3207, %v3218
        %v3243 = vmul.f32 %v3208, %v3218
        %v3244 = vmul.f32 %v3209, %v3218
        %v3245 = vmul.f32 %v3210, %v3218
        %v3246 = vmul.f32 %v3211, %v3218
        %v3247 = vmul.f32 %v3212, %v3218
        %v3248 = vmul.f32 %v3213, %v3218
        %v3249 = vmul.f32 %v3214, %v3218
        %v3250 = vmul.f32 %v3215, %v3218
        %v3251 = vmul.f32 %v3216, %v3218
        %v3253 = vperm.slane %v2837, 0
        %v3255 = vadd.f32 %v3220, %v3253
        %v3256 = vadd.f32 %v3221, %v3253
        %v3257 = vadd.f32 %v3222, %v3253
        %v3258 = vadd.f32 %v3223, %v3253
        %v3259 = vadd.f32 %v3224, %v3253
        %v3260 = vadd.f32 %v3225, %v3253
        %v3261 = vadd.f32 %v3226, %v3253
        %v3262 = vadd.f32 %v3227, %v3253
        %v3263 = vadd.f32 %v3228, %v3253
        %v3264 = vadd.f32 %v3229, %v3253
        %v3265 = vadd.f32 %v3230, %v3253
        %v3266 = vadd.f32 %v3231, %v3253
        %v3267 = vadd.f32 %v3232, %v3253
        %v3268 = vadd.f32 %v3233, %v3253
        %v3269 = vadd.f32 %v3234, %v3253
        %v3270 = vadd.f32 %v3235, %v3253
        %v3271 = vadd.f32 %v3236, %v3253
        %v3272 = vadd.f32 %v3237, %v3253
        %v3273 = vadd.f32 %v3238, %v3253
        %v3274 = vadd.f32 %v3239, %v3253
        %v3275 = vadd.f32 %v3240, %v3253
        %v3276 = vadd.f32 %v3241, %v3253
        %v3277 = vadd.f32 %v3242, %v3253
        %v3278 = vadd.f32 %v3243, %v3253
        %v3279 = vadd.f32 %v3244, %v3253
        %v3280 = vadd.f32 %v3245, %v3253
        %v3281 = vadd.f32 %v3246, %v3253
        %v3282 = vadd.f32 %v3247, %v3253
        %v3283 = vadd.f32 %v3248, %v3253
        %v3284 = vadd.f32 %v3249, %v3253
        %v3285 = vadd.f32 %v3250, %v3253
        %v3286 = vadd.f32 %v3251, %v3253
        %v3287 = vmax.f32 %v3255, 0.0
        %v3288 = vmax.f32 %v3256, 0.0
        %v3289 = vmax.f32 %v3257, 0.0
        %v3290 = vmax.f32 %v3258, 0.0
        %v3291 = vmax.f32 %v3259, 0.0
        %v3292 = vmax.f32 %v3260, 0.0
        %v3293 = vmax.f32 %v3261, 0.0
        %v3294 = vmax.f32 %v3262, 0.0
        %v3295 = vmax.f32 %v3263, 0.0
        %v3296 = vmax.f32 %v3264, 0.0
        %v3297 = vmax.f32 %v3265, 0.0
        %v3298 = vmax.f32 %v3266, 0.0
        %v3299 = vmax.f32 %v3267, 0.0
        %v3300 = vmax.f32 %v3268, 0.0
        %v3301 = vmax.f32 %v3269, 0.0
        %v3302 = vmax.f32 %v3270, 0.0
        %v3303 = vmax.f32 %v3271, 0.0
        %v3304 = vmax.f32 %v3272, 0.0
        %v3305 = vmax.f32 %v3273, 0.0
        %v3306 = vmax.f32 %v3274, 0.0
        %v3307 = vmax.f32 %v3275, 0.0
        %v3308 = vmax.f32 %v3276, 0.0
        %v3309 = vmax.f32 %v3277, 0.0
        %v3310 = vmax.f32 %v3278, 0.0
        %v3311 = vmax.f32 %v3279, 0.0
        %v3312 = vmax.f32 %v3280, 0.0
        %v3313 = vmax.f32 %v3281, 0.0
        %v3314 = vmax.f32 %v3282, 0.0
        %v3315 = vmax.f32 %v3283, 0.0
        %v3316 = vmax.f32 %v3284, 0.0
        %v3317 = vmax.f32 %v3285, 0.0
        %v3318 = vmax.f32 %v3286, 0.0
        %vm3319 = vcmask 519168
        %3320 = vst.msk [vmem:[#allocation3] sm:$0xf] %vm3319, 0
        %3321 = vst.msk [vmem:[#allocation3 + $0x4] sm:$0xf] %vm3319, 0
        %vm3322 = vcmask 516096
        %3323 = vst.msk [vmem:[#allocation3 + $0x8] sm:$0x1] %vm3322, 0
        %3324 = vst.msk [vmem:[#allocation3 + $0xc] sm:$0xf] %vm3319, 0
        %3325 = vst.msk [vmem:[#allocation3 + $0x10] sm:$0xf] %vm3319, 0
        %3326 = vst.msk [vmem:[#allocation3 + $0x14] sm:$0x1] %vm3322, 0
        %3327 = vst.msk [vmem:[#allocation3 + $0x18] sm:$0xf] %vm3319, 0
        %3328 = vst.msk [vmem:[#allocation3 + $0x1c] sm:$0xf] %vm3319, 0
        %3329 = vst.msk [vmem:[#allocation3 + $0x20] sm:$0x1] %vm3322, 0
        %3330 = vst.msk [vmem:[#allocation3 + $0x24] sm:$0xf] %vm3319, 0
        %3331 = vst.msk [vmem:[#allocation3 + $0x28] sm:$0xf] %vm3319, 0
        %3332 = vst.msk [vmem:[#allocation3 + $0x2c] sm:$0x1] %vm3322, 0
        %3333 = vst.msk [vmem:[#allocation3 + $0x30] sm:$0xf] %vm3319, 0
        %3334 = vst.msk [vmem:[#allocation3 + $0x34] sm:$0xf] %vm3319, 0
        %3335 = vst.msk [vmem:[#allocation3 + $0x38] sm:$0x1] %vm3322, 0
        %3336 = vst.msk [vmem:[#allocation3 + $0x3c] sm:$0xf] %vm3319, 0
        %3337 = vst.msk [vmem:[#allocation3 + $0x40] sm:$0xf] %vm3319, 0
        %3338 = vst.msk [vmem:[#allocation3 + $0x44] sm:$0x1] %vm3322, 0
        %3339 = vst.msk [vmem:[#allocation3 + $0x48] sm:$0xf] %vm3319, 0
        %3340 = vst.msk [vmem:[#allocation3 + $0x4c] sm:$0xf] %vm3319, 0
        %3341 = vst.msk [vmem:[#allocation3 + $0x50] sm:$0x1] %vm3322, 0
        %3342 = vst.msk [vmem:[#allocation3 + $0x54] sm:$0xf] %vm3319, 0
        %3343 = vst.msk [vmem:[#allocation3 + $0x58] sm:$0xf] %vm3319, 0
        %3344 = vst.msk [vmem:[#allocation3 + $0x5c] sm:$0x1] %vm3322, 0
        %3345 = vst.msk [vmem:[#allocation3 + $0x60] sm:$0xf] %vm3319, 0
        %3346 = vst.msk [vmem:[#allocation3 + $0x64] sm:$0xf] %vm3319, 0
        %3347 = vst.msk [vmem:[#allocation3 + $0x68] sm:$0x1] %vm3322, 0
        %3348 = vst.msk [vmem:[#allocation3 + $0x6c] sm:$0xf] %vm3319, 0
        %3349 = vst.msk [vmem:[#allocation3 + $0x70] sm:$0xf] %vm3319, 0
        %3350 = vst.msk [vmem:[#allocation3 + $0x74] sm:$0x1] %vm3322, 0
        %3351 = vst.msk [vmem:[#allocation3 + $0x78] sm:$0xf] %vm3319, 0
        %3352 = vst.msk [vmem:[#allocation3 + $0x7c] sm:$0xf] %vm3319, 0
        %3353 = vst.msk [vmem:[#allocation3 + $0x80] sm:$0x1] %vm3322, 0
        %3354 = vst.msk [vmem:[#allocation3 + $0x84] sm:$0xf] %vm3319, 0
        %3355 = vst.msk [vmem:[#allocation3 + $0x88] sm:$0xf] %vm3319, 0
        %3356 = vst.msk [vmem:[#allocation3 + $0x8c] sm:$0x1] %vm3322, 0
        %3357 = vst.msk [vmem:[#allocation3 + $0x90] sm:$0xf] %vm3319, 0
        %3358 = vst.msk [vmem:[#allocation3 + $0x94] sm:$0xf] %vm3319, 0
        %3359 = vst.msk [vmem:[#allocation3 + $0x98] sm:$0x1] %vm3322, 0
        %3360 = vst.msk [vmem:[#allocation3 + $0x9c] sm:$0xf] %vm3319, 0
        %3361 = vst.msk [vmem:[#allocation3 + $0xa0] sm:$0xf] %vm3319, 0
        %3362 = vst.msk [vmem:[#allocation3 + $0xa4] sm:$0x1] %vm3322, 0
        %3363 = vst.msk [vmem:[#allocation3 + $0xa8] sm:$0xf] %vm3319, 0
        %3364 = vst.msk [vmem:[#allocation3 + $0xac] sm:$0xf] %vm3319, 0
        %3365 = vst.msk [vmem:[#allocation3 + $0xb0] sm:$0x1] %vm3322, 0
        %3366 = vst.msk [vmem:[#allocation3 + $0xb4] sm:$0xf] %vm3319, 0
        %3367 = vst.msk [vmem:[#allocation3 + $0xb8] sm:$0xf] %vm3319, 0
        %3368 = vst.msk [vmem:[#allocation3 + $0xbc] sm:$0x1] %vm3322, 0
        %3369 = vst.msk [vmem:[#allocation3 + $0xc0] sm:$0xf] %vm3319, 0
        %3370 = vst.msk [vmem:[#allocation3 + $0xc4] sm:$0xf] %vm3319, 0
        %3371 = vst.msk [vmem:[#allocation3 + $0xc8] sm:$0x1] %vm3322, 0
        %3372 = vst.msk [vmem:[#allocation3 + $0xcc] sm:$0xf] %vm3319, 0
        %3373 = vst.msk [vmem:[#allocation3 + $0xd0] sm:$0xf] %vm3319, 0
        %3374 = vst.msk [vmem:[#allocation3 + $0xd4] sm:$0x1] %vm3322, 0
        %v3375 = vpack.c.bf16 %v3287, %v3287
        %v3376 = vpack.c.bf16 %v3288, %v3288
        %v3377 = vpack.c.bf16 %v3289, %v3289
        %v3378 = vpack.c.bf16 %v3290, %v3290
        %v3379 = vpack.c.bf16 %v3291, %v3291
        %v3380 = vpack.c.bf16 %v3292, %v3292
        %v3381 = vpack.c.bf16 %v3293, %v3293
        %v3382 = vpack.c.bf16 %v3294, %v3294
        %v3383 = vpack.c.bf16 %v3295, %v3295
        %v3384 = vpack.c.bf16 %v3296, %v3296
        %v3385 = vpack.c.bf16 %v3297, %v3297
        %v3386 = vpack.c.bf16 %v3298, %v3298
        %v3387 = vpack.c.bf16 %v3299, %v3299
        %v3388 = vpack.c.bf16 %v3300, %v3300
        %v3389 = vpack.c.bf16 %v3301, %v3301
        %v3390 = vpack.c.bf16 %v3302, %v3302
        %v3391 = vpack.c.bf16 %v3303, %v3303
        %v3392 = vpack.c.bf16 %v3304, %v3304
        %v3393 = vpack.c.bf16 %v3305, %v3305
        %v3394 = vpack.c.bf16 %v3306, %v3306
        %v3395 = vpack.c.bf16 %v3307, %v3307
        %v3396 = vpack.c.bf16 %v3308, %v3308
        %v3397 = vpack.c.bf16 %v3309, %v3309
        %v3398 = vpack.c.bf16 %v3310, %v3310
        %v3399 = vpack.c.bf16 %v3311, %v3311
        %v3400 = vpack.c.bf16 %v3312, %v3312
        %v3401 = vpack.c.bf16 %v3313, %v3313
        %v3402 = vpack.c.bf16 %v3314, %v3314
        %v3403 = vpack.c.bf16 %v3315, %v3315
        %v3404 = vpack.c.bf16 %v3316, %v3316
        %v3405 = vpack.c.bf16 %v3317, %v3317
        %v3406 = vpack.c.bf16 %v3318, %v3318
        %v3408 = vshrl.u32 %v3375, 16
        %v3410 = vrot.slane %v3408, 7
        %v3411 = vshll.u32 %v3375, 16
        %v3413 = vor.u32 %v3410, %v3411
        %v3414 = vrot.slane %v3410, 4
        %v3416 = vshrl.u32 %v3376, 16
        %v3418 = vrot.slane %v3416, 7
        %v3419 = vshll.u32 %v3376, 16
        %v3421 = vor.u32 %v3418, %v3419
        %v3422 = vsel %vm1030, %v3414, %v3421
        %v3423 = vrot.slane %v3418, 4
        %v3425 = vshrl.u32 %v3377, 16
        %v3427 = vrot.slane %v3425, 7
        %v3428 = vshll.u32 %v3377, 16
        %v3430 = vor.u32 %v3427, %v3428
        %v3431 = vrot.slane %v3427, 4
        %v3433 = vshrl.u32 %v3378, 16
        %v3435 = vrot.slane %v3433, 7
        %v3436 = vshll.u32 %v3378, 16
        %v3438 = vor.u32 %v3435, %v3436
        %v3439 = vsel %vm1030, %v3431, %v3438
        %v3440 = vrot.slane %v3435, 4
        %v3442 = vshrl.u32 %v3379, 16
        %v3444 = vrot.slane %v3442, 7
        %v3445 = vshll.u32 %v3379, 16
        %v3447 = vor.u32 %v3444, %v3445
        %v3448 = vrot.slane %v3444, 4
        %v3450 = vshrl.u32 %v3380, 16
        %v3452 = vrot.slane %v3450, 7
        %v3453 = vshll.u32 %v3380, 16
        %v3455 = vor.u32 %v3452, %v3453
        %v3456 = vsel %vm1030, %v3448, %v3455
        %v3457 = vrot.slane %v3452, 4
        %v3459 = vshrl.u32 %v3381, 16
        %v3461 = vrot.slane %v3459, 7
        %v3462 = vshll.u32 %v3381, 16
        %v3464 = vor.u32 %v3461, %v3462
        %v3465 = vrot.slane %v3461, 4
        %v3467 = vshrl.u32 %v3382, 16
        %v3469 = vrot.slane %v3467, 7
        %v3470 = vshll.u32 %v3382, 16
        %v3472 = vor.u32 %v3469, %v3470
        %v3473 = vsel %vm1030, %v3465, %v3472
        %v3474 = vrot.slane %v3469, 4
        %v3476 = vshrl.u32 %v3383, 16
        %v3478 = vrot.slane %v3476, 7
        %v3479 = vshll.u32 %v3383, 16
        %v3481 = vor.u32 %v3478, %v3479
        %v3482 = vrot.slane %v3478, 4
        %v3484 = vshrl.u32 %v3384, 16
        %v3486 = vrot.slane %v3484, 7
        %v3487 = vshll.u32 %v3384, 16
        %v3489 = vor.u32 %v3486, %v3487
        %v3490 = vsel %vm1030, %v3482, %v3489
        %v3491 = vrot.slane %v3486, 4
        %v3493 = vshrl.u32 %v3385, 16
        %v3495 = vrot.slane %v3493, 7
        %v3496 = vshll.u32 %v3385, 16
        %v3498 = vor.u32 %v3495, %v3496
        %v3499 = vrot.slane %v3495, 4
        %v3501 = vshrl.u32 %v3386, 16
        %v3503 = vrot.slane %v3501, 7
        %v3504 = vshll.u32 %v3386, 16
        %v3506 = vor.u32 %v3503, %v3504
        %v3507 = vsel %vm1030, %v3499, %v3506
        %v3508 = vrot.slane %v3503, 4
        %v3510 = vshrl.u32 %v3387, 16
        %v3512 = vrot.slane %v3510, 7
        %v3513 = vshll.u32 %v3387, 16
        %v3515 = vor.u32 %v3512, %v3513
        %v3516 = vrot.slane %v3512, 4
        %v3518 = vshrl.u32 %v3388, 16
        %v3520 = vrot.slane %v3518, 7
        %v3521 = vshll.u32 %v3388, 16
        %v3523 = vor.u32 %v3520, %v3521
        %v3524 = vsel %vm1030, %v3516, %v3523
        %v3525 = vrot.slane %v3520, 4
        %v3527 = vshrl.u32 %v3389, 16
        %v3529 = vrot.slane %v3527, 7
        %v3530 = vshll.u32 %v3389, 16
        %v3532 = vor.u32 %v3529, %v3530
        %v3533 = vrot.slane %v3529, 4
        %v3535 = vshrl.u32 %v3390, 16
        %v3537 = vrot.slane %v3535, 7
        %v3538 = vshll.u32 %v3390, 16
        %v3540 = vor.u32 %v3537, %v3538
        %v3541 = vsel %vm1030, %v3533, %v3540
        %v3542 = vrot.slane %v3537, 4
        %v3544 = vshrl.u32 %v3391, 16
        %v3546 = vrot.slane %v3544, 7
        %v3547 = vshll.u32 %v3391, 16
        %v3549 = vor.u32 %v3546, %v3547
        %v3550 = vrot.slane %v3546, 4
        %v3552 = vshrl.u32 %v3392, 16
        %v3554 = vrot.slane %v3552, 7
        %v3555 = vshll.u32 %v3392, 16
        %v3557 = vor.u32 %v3554, %v3555
        %v3558 = vsel %vm1030, %v3550, %v3557
        %v3559 = vrot.slane %v3554, 4
        %v3561 = vshrl.u32 %v3393, 16
        %v3563 = vrot.slane %v3561, 7
        %v3564 = vshll.u32 %v3393, 16
        %v3566 = vor.u32 %v3563, %v3564
        %v3567 = vrot.slane %v3563, 4
        %v3569 = vshrl.u32 %v3394, 16
        %v3571 = vrot.slane %v3569, 7
        %v3572 = vshll.u32 %v3394, 16
        %v3574 = vor.u32 %v3571, %v3572
        %v3575 = vsel %vm1030, %v3567, %v3574
        %v3576 = vrot.slane %v3571, 4
        %v3578 = vshrl.u32 %v3395, 16
        %v3580 = vrot.slane %v3578, 7
        %v3581 = vshll.u32 %v3395, 16
        %v3583 = vor.u32 %v3580, %v3581
        %v3584 = vrot.slane %v3580, 4
        %v3586 = vshrl.u32 %v3396, 16
        %v3588 = vrot.slane %v3586, 7
        %v3589 = vshll.u32 %v3396, 16
        %v3591 = vor.u32 %v3588, %v3589
        %v3592 = vsel %vm1030, %v3584, %v3591
        %v3593 = vrot.slane %v3588, 4
        %v3595 = vshrl.u32 %v3397, 16
        %v3597 = vrot.slane %v3595, 7
        %v3598 = vshll.u32 %v3397, 16
        %v3600 = vor.u32 %v3597, %v3598
        %v3601 = vrot.slane %v3597, 4
        %v3603 = vshrl.u32 %v3398, 16
        %v3605 = vrot.slane %v3603, 7
        %v3606 = vshll.u32 %v3398, 16
        %v3608 = vor.u32 %v3605, %v3606
        %v3609 = vsel %vm1030, %v3601, %v3608
        %v3610 = vrot.slane %v3605, 4
        %v3612 = vshrl.u32 %v3399, 16
        %v3614 = vrot.slane %v3612, 7
        %v3615 = vshll.u32 %v3399, 16
        %v3617 = vor.u32 %v3614, %v3615
        %v3618 = vrot.slane %v3614, 4
        %v3620 = vshrl.u32 %v3400, 16
        %v3622 = vrot.slane %v3620, 7
        %v3623 = vshll.u32 %v3400, 16
        %v3625 = vor.u32 %v3622, %v3623
        %v3626 = vsel %vm1030, %v3618, %v3625
        %v3627 = vrot.slane %v3622, 4
        %v3629 = vshrl.u32 %v3401, 16
        %v3631 = vrot.slane %v3629, 7
        %v3632 = vshll.u32 %v3401, 16
        %v3634 = vor.u32 %v3631, %v3632
        %v3635 = vrot.slane %v3631, 4
        %v3637 = vshrl.u32 %v3402, 16
        %v3639 = vrot.slane %v3637, 7
        %v3640 = vshll.u32 %v3402, 16
        %v3642 = vor.u32 %v3639, %v3640
        %v3643 = vsel %vm1030, %v3635, %v3642
        %v3644 = vrot.slane %v3639, 4
        %v3646 = vshrl.u32 %v3403, 16
        %v3648 = vrot.slane %v3646, 7
        %v3649 = vshll.u32 %v3403, 16
        %v3651 = vor.u32 %v3648, %v3649
        %v3652 = vrot.slane %v3648, 4
        %v3654 = vshrl.u32 %v3404, 16
        %v3656 = vrot.slane %v3654, 7
        %v3657 = vshll.u32 %v3404, 16
        %v3659 = vor.u32 %v3656, %v3657
        %v3660 = vsel %vm1030, %v3652, %v3659
        %v3661 = vrot.slane %v3656, 4
        %v3663 = vshrl.u32 %v3405, 16
        %v3665 = vrot.slane %v3663, 7
        %v3666 = vshll.u32 %v3405, 16
        %v3668 = vor.u32 %v3665, %v3666
        %v3669 = vrot.slane %v3665, 4
        %v3671 = vshrl.u32 %v3406, 16
        %v3673 = vrot.slane %v3671, 7
        %v3674 = vshll.u32 %v3406, 16
        %v3676 = vor.u32 %v3673, %v3674
        %v3677 = vsel %vm1030, %v3669, %v3676
        %v3678 = vrot.slane %v3673, 4
        %s3727 = scalar_lea.vmem [#allocation3], 12
        %vm3728 = vcmask 519168
        %vm3729 = vmand %vm3728, %vm1353
        %v3730 = vld [vmem:[%s3727] sm:$0xf]
        %v3731 = vsel %vm3729, %v3413, %v3730
        %3732 = vst [vmem:[%s3727] sm:$0xf] %v3731
        %3733 = vst.msk [vmem:[%s3727 + $0x4] sm:$0xf] %vm3319, %v3422
        %vm3734 = vcmask 516096
        %vm3735 = vmand %vm3734, %vm1028
        %v3736 = vld [vmem:[%s3727 + $0x8] sm:$0x1]
        %v3737 = vsel %vm3735, %v3423, %v3736
        %3738 = vst [vmem:[%s3727 + $0x8] sm:$0x1] %v3737
        %v3739 = vld [vmem:[%s3727 + $0xc] sm:$0xf]
        %v3740 = vsel %vm3729, %v3430, %v3739
        %3741 = vst [vmem:[%s3727 + $0xc] sm:$0xf] %v3740
        %3742 = vst.msk [vmem:[%s3727 + $0x10] sm:$0xf] %vm3319, %v3439
        %v3743 = vld [vmem:[%s3727 + $0x14] sm:$0x1]
        %v3744 = vsel %vm3735, %v3440, %v3743
        %3745 = vst [vmem:[%s3727 + $0x14] sm:$0x1] %v3744
        %v3746 = vld [vmem:[%s3727 + $0x18] sm:$0xf]
        %v3747 = vsel %vm3729, %v3447, %v3746
        %3748 = vst [vmem:[%s3727 + $0x18] sm:$0xf] %v3747
        %3749 = vst.msk [vmem:[%s3727 + $0x1c] sm:$0xf] %vm3319, %v3456
        %v3750 = vld [vmem:[%s3727 + $0x20] sm:$0x1]
        %v3751 = vsel %vm3735, %v3457, %v3750
        %3752 = vst [vmem:[%s3727 + $0x20] sm:$0x1] %v3751
        %v3753 = vld [vmem:[%s3727 + $0x24] sm:$0xf]
        %v3754 = vsel %vm3729, %v3464, %v3753
        %3755 = vst [vmem:[%s3727 + $0x24] sm:$0xf] %v3754
        %3756 = vst.msk [vmem:[%s3727 + $0x28] sm:$0xf] %vm3319, %v3473
        %v3757 = vld [vmem:[%s3727 + $0x2c] sm:$0x1]
        %v3758 = vsel %vm3735, %v3474, %v3757
        %3759 = vst [vmem:[%s3727 + $0x2c] sm:$0x1] %v3758
        %v3760 = vld [vmem:[%s3727 + $0x30] sm:$0xf]
        %v3761 = vsel %vm3729, %v3481, %v3760
        %3762 = vst [vmem:[%s3727 + $0x30] sm:$0xf] %v3761
        %3763 = vst.msk [vmem:[%s3727 + $0x34] sm:$0xf] %vm3319, %v3490
        %v3764 = vld [vmem:[%s3727 + $0x38] sm:$0x1]
        %v3765 = vsel %vm3735, %v3491, %v3764
        %3766 = vst [vmem:[%s3727 + $0x38] sm:$0x1] %v3765
        %v3767 = vld [vmem:[%s3727 + $0x3c] sm:$0xf]
        %v3768 = vsel %vm3729, %v3498, %v3767
        %3769 = vst [vmem:[%s3727 + $0x3c] sm:$0xf] %v3768
        %3770 = vst.msk [vmem:[%s3727 + $0x40] sm:$0xf] %vm3319, %v3507
        %v3771 = vld [vmem:[%s3727 + $0x44] sm:$0x1]
        %v3772 = vsel %vm3735, %v3508, %v3771
        %3773 = vst [vmem:[%s3727 + $0x44] sm:$0x1] %v3772
        %v3774 = vld [vmem:[%s3727 + $0x48] sm:$0xf]
        %v3775 = vsel %vm3729, %v3515, %v3774
        %3776 = vst [vmem:[%s3727 + $0x48] sm:$0xf] %v3775
        %3777 = vst.msk [vmem:[%s3727 + $0x4c] sm:$0xf] %vm3319, %v3524
        %v3778 = vld [vmem:[%s3727 + $0x50] sm:$0x1]
        %v3779 = vsel %vm3735, %v3525, %v3778
        %3780 = vst [vmem:[%s3727 + $0x50] sm:$0x1] %v3779
        %v3781 = vld [vmem:[%s3727 + $0x54] sm:$0xf]
        %v3782 = vsel %vm3729, %v3532, %v3781
        %3783 = vst [vmem:[%s3727 + $0x54] sm:$0xf] %v3782
        %3784 = vst.msk [vmem:[%s3727 + $0x58] sm:$0xf] %vm3319, %v3541
        %v3785 = vld [vmem:[%s3727 + $0x5c] sm:$0x1]
        %v3786 = vsel %vm3735, %v3542, %v3785
        %3787 = vst [vmem:[%s3727 + $0x5c] sm:$0x1] %v3786
        %v3788 = vld [vmem:[%s3727 + $0x60] sm:$0xf]
        %v3789 = vsel %vm3729, %v3549, %v3788
        %3790 = vst [vmem:[%s3727 + $0x60] sm:$0xf] %v3789
        %3791 = vst.msk [vmem:[%s3727 + $0x64] sm:$0xf] %vm3319, %v3558
        %v3792 = vld [vmem:[%s3727 + $0x68] sm:$0x1]
        %v3793 = vsel %vm3735, %v3559, %v3792
        %3794 = vst [vmem:[%s3727 + $0x68] sm:$0x1] %v3793
        %v3795 = vld [vmem:[%s3727 + $0x6c] sm:$0xf]
        %v3796 = vsel %vm3729, %v3566, %v3795
        %3797 = vst [vmem:[%s3727 + $0x6c] sm:$0xf] %v3796
        %3798 = vst.msk [vmem:[%s3727 + $0x70] sm:$0xf] %vm3319, %v3575
        %v3799 = vld [vmem:[%s3727 + $0x74] sm:$0x1]
        %v3800 = vsel %vm3735, %v3576, %v3799
        %3801 = vst [vmem:[%s3727 + $0x74] sm:$0x1] %v3800
        %v3802 = vld [vmem:[%s3727 + $0x78] sm:$0xf]
        %v3803 = vsel %vm3729, %v3583, %v3802
        %3804 = vst [vmem:[%s3727 + $0x78] sm:$0xf] %v3803
        %3805 = vst.msk [vmem:[%s3727 + $0x7c] sm:$0xf] %vm3319, %v3592
        %v3806 = vld [vmem:[%s3727 + $0x80] sm:$0x1]
        %v3807 = vsel %vm3735, %v3593, %v3806
        %3808 = vst [vmem:[%s3727 + $0x80] sm:$0x1] %v3807
        %v3809 = vld [vmem:[%s3727 + $0x84] sm:$0xf]
        %v3810 = vsel %vm3729, %v3600, %v3809
        %3811 = vst [vmem:[%s3727 + $0x84] sm:$0xf] %v3810
        %3812 = vst.msk [vmem:[%s3727 + $0x88] sm:$0xf] %vm3319, %v3609
        %v3813 = vld [vmem:[%s3727 + $0x8c] sm:$0x1]
        %v3814 = vsel %vm3735, %v3610, %v3813
        %3815 = vst [vmem:[%s3727 + $0x8c] sm:$0x1] %v3814
        %v3816 = vld [vmem:[%s3727 + $0x90] sm:$0xf]
        %v3817 = vsel %vm3729, %v3617, %v3816
        %3818 = vst [vmem:[%s3727 + $0x90] sm:$0xf] %v3817
        %3819 = vst.msk [vmem:[%s3727 + $0x94] sm:$0xf] %vm3319, %v3626
        %v3820 = vld [vmem:[%s3727 + $0x98] sm:$0x1]
        %v3821 = vsel %vm3735, %v3627, %v3820
        %3822 = vst [vmem:[%s3727 + $0x98] sm:$0x1] %v3821
        %v3823 = vld [vmem:[%s3727 + $0x9c] sm:$0xf]
        %v3824 = vsel %vm3729, %v3634, %v3823
        %3825 = vst [vmem:[%s3727 + $0x9c] sm:$0xf] %v3824
        %3826 = vst.msk [vmem:[%s3727 + $0xa0] sm:$0xf] %vm3319, %v3643
        %v3827 = vld [vmem:[%s3727 + $0xa4] sm:$0x1]
        %v3828 = vsel %vm3735, %v3644, %v3827
        %3829 = vst [vmem:[%s3727 + $0xa4] sm:$0x1] %v3828
        %v3830 = vld [vmem:[%s3727 + $0xa8] sm:$0xf]
        %v3831 = vsel %vm3729, %v3651, %v3830
        %3832 = vst [vmem:[%s3727 + $0xa8] sm:$0xf] %v3831
        %3833 = vst.msk [vmem:[%s3727 + $0xac] sm:$0xf] %vm3319, %v3660
        %v3834 = vld [vmem:[%s3727 + $0xb0] sm:$0x1]
        %v3835 = vsel %vm3735, %v3661, %v3834
        %3836 = vst [vmem:[%s3727 + $0xb0] sm:$0x1] %v3835
        %v3837 = vld [vmem:[%s3727 + $0xb4] sm:$0xf]
        %v3838 = vsel %vm3729, %v3668, %v3837
        %3839 = vst [vmem:[%s3727 + $0xb4] sm:$0xf] %v3838
        %3840 = vst.msk [vmem:[%s3727 + $0xb8] sm:$0xf] %vm3319, %v3677
        %v3841 = vld [vmem:[%s3727 + $0xbc] sm:$0x1]
        %v3842 = vsel %vm3735, %v3678, %v3841
        %3843 = vst [vmem:[%s3727 + $0xbc] sm:$0x1] %v3842
        %v3844 = vld [vmem:[#allocation3] sm:$0xf]
        %v3845 = vld [vmem:[#allocation3 + $0x4] sm:$0xf]
        %v3846 = vld [vmem:[#allocation3 + $0x8] sm:$0x1]
        %v3847 = vld [vmem:[#allocation3 + $0xc] sm:$0xf]
        %v3848 = vld [vmem:[#allocation3 + $0x10] sm:$0xf]
        %v3849 = vld [vmem:[#allocation3 + $0x14] sm:$0x1]
        %v3850 = vld [vmem:[#allocation3 + $0x18] sm:$0xf]
        %v3851 = vld [vmem:[#allocation3 + $0x1c] sm:$0xf]
        %v3852 = vld [vmem:[#allocation3 + $0x20] sm:$0x1]
        %v3853 = vld [vmem:[#allocation3 + $0x24] sm:$0xf]
        %v3854 = vld [vmem:[#allocation3 + $0x28] sm:$0xf]
        %v3855 = vld [vmem:[#allocation3 + $0x2c] sm:$0x1]
        %v3856 = vld [vmem:[#allocation3 + $0x30] sm:$0xf]
        %v3857 = vld [vmem:[#allocation3 + $0x34] sm:$0xf]
        %v3858 = vld [vmem:[#allocation3 + $0x38] sm:$0x1]
        %v3859 = vld [vmem:[#allocation3 + $0x3c] sm:$0xf]
        %v3860 = vld [vmem:[#allocation3 + $0x40] sm:$0xf]
        %v3861 = vld [vmem:[#allocation3 + $0x44] sm:$0x1]
        %v3862 = vld [vmem:[#allocation3 + $0x48] sm:$0xf]
        %v3863 = vld [vmem:[#allocation3 + $0x4c] sm:$0xf]
        %v3864 = vld [vmem:[#allocation3 + $0x50] sm:$0x1]
        %v3865 = vld [vmem:[#allocation3 + $0x54] sm:$0xf]
        %v3866 = vld [vmem:[#allocation3 + $0x58] sm:$0xf]
        %v3867 = vld [vmem:[#allocation3 + $0x5c] sm:$0x1]
        %v3868 = vld [vmem:[#allocation3 + $0x60] sm:$0xf]
        %v3869 = vld [vmem:[#allocation3 + $0x64] sm:$0xf]
        %v3870 = vld [vmem:[#allocation3 + $0x68] sm:$0x1]
        %v3871 = vld [vmem:[#allocation3 + $0x6c] sm:$0xf]
        %v3872 = vld [vmem:[#allocation3 + $0x70] sm:$0xf]
        %v3873 = vld [vmem:[#allocation3 + $0x74] sm:$0x1]
        %v3874 = vld [vmem:[#allocation3 + $0x78] sm:$0xf]
        %v3875 = vld [vmem:[#allocation3 + $0x7c] sm:$0xf]
        %v3876 = vld [vmem:[#allocation3 + $0x80] sm:$0x1]
        %v3877 = vld [vmem:[#allocation3 + $0x84] sm:$0xf]
        %v3878 = vld [vmem:[#allocation3 + $0x88] sm:$0xf]
        %v3879 = vld [vmem:[#allocation3 + $0x8c] sm:$0x1]
        %v3880 = vld [vmem:[#allocation3 + $0x90] sm:$0xf]
        %v3881 = vld [vmem:[#allocation3 + $0x94] sm:$0xf]
        %v3882 = vld [vmem:[#allocation3 + $0x98] sm:$0x1]
        %v3883 = vld [vmem:[#allocation3 + $0x9c] sm:$0xf]
        %v3884 = vld [vmem:[#allocation3 + $0xa0] sm:$0xf]
        %v3885 = vld [vmem:[#allocation3 + $0xa4] sm:$0x1]
        %v3886 = vld [vmem:[#allocation3 + $0xa8] sm:$0xf]
        %v3887 = vld [vmem:[#allocation3 + $0xac] sm:$0xf]
        %v3888 = vld [vmem:[#allocation3 + $0xb0] sm:$0x1]
        %v3889 = vld [vmem:[#allocation3 + $0xb4] sm:$0xf]
        %v3890 = vld [vmem:[#allocation3 + $0xb8] sm:$0xf]
        %v3891 = vld [vmem:[#allocation3 + $0xbc] sm:$0x1]
        %v3892 = vld [vmem:[#allocation3 + $0xc0] sm:$0xf]
        %v3893 = vld [vmem:[#allocation3 + $0xc4] sm:$0xf]
        %v3894 = vld [vmem:[#allocation3 + $0xc8] sm:$0x1]
        %v3895 = vld [vmem:[#allocation3 + $0xcc] sm:$0xf]
        %v3896 = vld [vmem:[#allocation3 + $0xd0] sm:$0xf]
        %v3897 = vld [vmem:[#allocation3 + $0xd4] sm:$0x1]
        %v3930 = vunpack.c.l.b16 %v3844
        %v3931 = vunpack.c.l.b16 %v3845
        %v3932 = vunpack.c.l.b16 %v3847
        %v3933 = vunpack.c.l.b16 %v3848
        %v3934 = vunpack.c.l.b16 %v3850
        %v3935 = vunpack.c.l.b16 %v3851
        %v3936 = vunpack.c.l.b16 %v3853
        %v3937 = vunpack.c.l.b16 %v3854
        %v3938 = vunpack.c.l.b16 %v3856
        %v3939 = vunpack.c.l.b16 %v3857
        %v3940 = vunpack.c.l.b16 %v3859
        %v3941 = vunpack.c.l.b16 %v3860
        %v3942 = vunpack.c.l.b16 %v3862
        %v3943 = vunpack.c.l.b16 %v3863
        %v3944 = vunpack.c.l.b16 %v3865
        %v3945 = vunpack.c.l.b16 %v3866
        %v3946 = vunpack.c.l.b16 %v3868
        %v3947 = vunpack.c.l.b16 %v3869
        %v3948 = vunpack.c.l.b16 %v3871
        %v3949 = vunpack.c.l.b16 %v3872
        %v3950 = vunpack.c.l.b16 %v3874
        %v3951 = vunpack.c.l.b16 %v3875
        %v3952 = vunpack.c.l.b16 %v3877
        %v3953 = vunpack.c.l.b16 %v3878
        %v3954 = vunpack.c.l.b16 %v3880
        %v3955 = vunpack.c.l.b16 %v3881
        %v3956 = vunpack.c.l.b16 %v3883
        %v3957 = vunpack.c.l.b16 %v3884
        %v3958 = vunpack.c.l.b16 %v3886
        %v3959 = vunpack.c.l.b16 %v3887
        %v3960 = vunpack.c.l.b16 %v3889
        %v3961 = vunpack.c.l.b16 %v3890
        %v3962 = vpack.c.b16 %v3931, %v3930
        %v3963 = vpack.c.b16 %v3933, %v3932
        %v3964 = vpack.c.b16 %v3935, %v3934
        %v3965 = vpack.c.b16 %v3937, %v3936
        %v3966 = vpack.c.b16 %v3939, %v3938
        %v3967 = vpack.c.b16 %v3941, %v3940
        %v3968 = vpack.c.b16 %v3943, %v3942
        %v3969 = vpack.c.b16 %v3945, %v3944
        %v3970 = vpack.c.b16 %v3947, %v3946
        %v3971 = vpack.c.b16 %v3949, %v3948
        %v3972 = vpack.c.b16 %v3951, %v3950
        %v3973 = vpack.c.b16 %v3953, %v3952
        %v3974 = vpack.c.b16 %v3955, %v3954
        %v3975 = vpack.c.b16 %v3957, %v3956
        %v3976 = vpack.c.b16 %v3959, %v3958
        %v3977 = vpack.c.b16 %v3961, %v3960
        %v3994 = vunpack.c.l.b16 %v3846
        %v3995 = vunpack.c.l.b16 %v3849
        %v3996 = vunpack.c.l.b16 %v3852
        %v3997 = vunpack.c.l.b16 %v3855
        %v3998 = vunpack.c.l.b16 %v3858
        %v3999 = vunpack.c.l.b16 %v3861
        %v4000 = vunpack.c.l.b16 %v3864
        %v4001 = vunpack.c.l.b16 %v3867
        %v4002 = vunpack.c.l.b16 %v3870
        %v4003 = vunpack.c.l.b16 %v3873
        %v4004 = vunpack.c.l.b16 %v3876
        %v4005 = vunpack.c.l.b16 %v3879
        %v4006 = vunpack.c.l.b16 %v3882
        %v4007 = vunpack.c.l.b16 %v3885
        %v4008 = vunpack.c.l.b16 %v3888
        %v4009 = vunpack.c.l.b16 %v3891
        %v4010 = vpack.c.b16 %v3994, %v3994
        %v4011 = vpack.c.b16 %v3995, %v3995
        %v4012 = vpack.c.b16 %v3996, %v3996
        %v4013 = vpack.c.b16 %v3997, %v3997
        %v4014 = vpack.c.b16 %v3998, %v3998
        %v4015 = vpack.c.b16 %v3999, %v3999
        %v4016 = vpack.c.b16 %v4000, %v4000
        %v4017 = vpack.c.b16 %v4001, %v4001
        %v4018 = vpack.c.b16 %v4002, %v4002
        %v4019 = vpack.c.b16 %v4003, %v4003
        %v4020 = vpack.c.b16 %v4004, %v4004
        %v4021 = vpack.c.b16 %v4005, %v4005
        %v4022 = vpack.c.b16 %v4006, %v4006
        %v4023 = vpack.c.b16 %v4007, %v4007
        %v4024 = vpack.c.b16 %v4008, %v4008
        %v4025 = vpack.c.b16 %v4009, %v4009
        %v4027 = vshrl.u32 %v3962, 16
        %v4029 = vshll.u32 %v3962, 16
        %v4031 = vrot.slane %v4029, 1
        %v4032 = vor.u32 %v4027, %v4031
        %v4034 = vshll.u32 %v4010, 16
        %v4036 = vrot.slane %v4034, 1
        %v4037 = vsel %vm1651, %v4032, %v4036
        %v4039 = vshrl.u32 %v3963, 16
        %v4041 = vshll.u32 %v3963, 16
        %v4043 = vrot.slane %v4041, 1
        %v4044 = vor.u32 %v4039, %v4043
        %v4046 = vshll.u32 %v4011, 16
        %v4048 = vrot.slane %v4046, 1
        %v4049 = vsel %vm1651, %v4044, %v4048
        %v4051 = vshrl.u32 %v3964, 16
        %v4053 = vshll.u32 %v3964, 16
        %v4055 = vrot.slane %v4053, 1
        %v4056 = vor.u32 %v4051, %v4055
        %v4058 = vshll.u32 %v4012, 16
        %v4060 = vrot.slane %v4058, 1
        %v4061 = vsel %vm1651, %v4056, %v4060
        %v4063 = vshrl.u32 %v3965, 16
        %v4065 = vshll.u32 %v3965, 16
        %v4067 = vrot.slane %v4065, 1
        %v4068 = vor.u32 %v4063, %v4067
        %v4070 = vshll.u32 %v4013, 16
        %v4072 = vrot.slane %v4070, 1
        %v4073 = vsel %vm1651, %v4068, %v4072
        %v4075 = vshrl.u32 %v3966, 16
        %v4077 = vshll.u32 %v3966, 16
        %v4079 = vrot.slane %v4077, 1
        %v4080 = vor.u32 %v4075, %v4079
        %v4082 = vshll.u32 %v4014, 16
        %v4084 = vrot.slane %v4082, 1
        %v4085 = vsel %vm1651, %v4080, %v4084
        %v4087 = vshrl.u32 %v3967, 16
        %v4089 = vshll.u32 %v3967, 16
        %v4091 = vrot.slane %v4089, 1
        %v4092 = vor.u32 %v4087, %v4091
        %v4094 = vshll.u32 %v4015, 16
        %v4096 = vrot.slane %v4094, 1
        %v4097 = vsel %vm1651, %v4092, %v4096
        %v4099 = vshrl.u32 %v3968, 16
        %v4101 = vshll.u32 %v3968, 16
        %v4103 = vrot.slane %v4101, 1
        %v4104 = vor.u32 %v4099, %v4103
        %v4106 = vshll.u32 %v4016, 16
        %v4108 = vrot.slane %v4106, 1
        %v4109 = vsel %vm1651, %v4104, %v4108
        %v4111 = vshrl.u32 %v3969, 16
        %v4113 = vshll.u32 %v3969, 16
        %v4115 = vrot.slane %v4113, 1
        %v4116 = vor.u32 %v4111, %v4115
        %v4118 = vshll.u32 %v4017, 16
        %v4120 = vrot.slane %v4118, 1
        %v4121 = vsel %vm1651, %v4116, %v4120
        %v4123 = vshrl.u32 %v3970, 16
        %v4125 = vshll.u32 %v3970, 16
        %v4127 = vrot.slane %v4125, 1
        %v4128 = vor.u32 %v4123, %v4127
        %v4130 = vshll.u32 %v4018, 16
        %v4132 = vrot.slane %v4130, 1
        %v4133 = vsel %vm1651, %v4128, %v4132
        %v4135 = vshrl.u32 %v3971, 16
        %v4137 = vshll.u32 %v3971, 16
        %v4139 = vrot.slane %v4137, 1
        %v4140 = vor.u32 %v4135, %v4139
        %v4142 = vshll.u32 %v4019, 16
        %v4144 = vrot.slane %v4142, 1
        %v4145 = vsel %vm1651, %v4140, %v4144
        %v4147 = vshrl.u32 %v3972, 16
        %v4149 = vshll.u32 %v3972, 16
        %v4151 = vrot.slane %v4149, 1
        %v4152 = vor.u32 %v4147, %v4151
        %v4154 = vshll.u32 %v4020, 16
        %v4156 = vrot.slane %v4154, 1
        %v4157 = vsel %vm1651, %v4152, %v4156
        %v4159 = vshrl.u32 %v3973, 16
        %v4161 = vshll.u32 %v3973, 16
        %v4163 = vrot.slane %v4161, 1
        %v4164 = vor.u32 %v4159, %v4163
        %v4166 = vshll.u32 %v4021, 16
        %v4168 = vrot.slane %v4166, 1
        %v4169 = vsel %vm1651, %v4164, %v4168
        %v4171 = vshrl.u32 %v3974, 16
        %v4173 = vshll.u32 %v3974, 16
        %v4175 = vrot.slane %v4173, 1
        %v4176 = vor.u32 %v4171, %v4175
        %v4178 = vshll.u32 %v4022, 16
        %v4180 = vrot.slane %v4178, 1
        %v4181 = vsel %vm1651, %v4176, %v4180
        %v4183 = vshrl.u32 %v3975, 16
        %v4185 = vshll.u32 %v3975, 16
        %v4187 = vrot.slane %v4185, 1
        %v4188 = vor.u32 %v4183, %v4187
        %v4190 = vshll.u32 %v4023, 16
        %v4192 = vrot.slane %v4190, 1
        %v4193 = vsel %vm1651, %v4188, %v4192
        %v4195 = vshrl.u32 %v3976, 16
        %v4197 = vshll.u32 %v3976, 16
        %v4199 = vrot.slane %v4197, 1
        %v4200 = vor.u32 %v4195, %v4199
        %v4202 = vshll.u32 %v4024, 16
        %v4204 = vrot.slane %v4202, 1
        %v4205 = vsel %vm1651, %v4200, %v4204
        %v4207 = vshrl.u32 %v3977, 16
        %v4209 = vshll.u32 %v3977, 16
        %v4211 = vrot.slane %v4209, 1
        %v4212 = vor.u32 %v4207, %v4211
        %v4214 = vshll.u32 %v4025, 16
        %v4216 = vrot.slane %v4214, 1
        %v4217 = vsel %vm1651, %v4212, %v4216
        %4218 = vrot.lane.b32.xlu0 %v4037, 64
        %v4219 = vpop.permute.xlu0 %4218
        %4220 = vrot.lane.b32.xlu0 %v4049, 64
        %v4221 = vpop.permute.xlu0 %4220
        %4222 = vrot.lane.b32.xlu0 %v4061, 64
        %v4223 = vpop.permute.xlu0 %4222
        %4224 = vrot.lane.b32.xlu0 %v4073, 64
        %v4225 = vpop.permute.xlu0 %4224
        %4226 = vrot.lane.b32.xlu0 %v4085, 64
        %v4227 = vpop.permute.xlu0 %4226
        %4228 = vrot.lane.b32.xlu0 %v4097, 64
        %v4229 = vpop.permute.xlu0 %4228
        %4230 = vrot.lane.b32.xlu0 %v4109, 64
        %v4231 = vpop.permute.xlu0 %4230
        %4232 = vrot.lane.b32.xlu0 %v4121, 64
        %v4233 = vpop.permute.xlu0 %4232
        %4234 = vrot.lane.b32.xlu0 %v4133, 64
        %v4235 = vpop.permute.xlu0 %4234
        %4236 = vrot.lane.b32.xlu0 %v4145, 64
        %v4237 = vpop.permute.xlu0 %4236
        %4238 = vrot.lane.b32.xlu0 %v4157, 64
        %v4239 = vpop.permute.xlu0 %4238
        %4240 = vrot.lane.b32.xlu0 %v4169, 64
        %v4241 = vpop.permute.xlu0 %4240
        %4242 = vrot.lane.b32.xlu0 %v4181, 64
        %v4243 = vpop.permute.xlu0 %4242
        %4244 = vrot.lane.b32.xlu0 %v4193, 64
        %v4245 = vpop.permute.xlu0 %4244
        %4246 = vrot.lane.b32.xlu0 %v4205, 64
        %v4247 = vpop.permute.xlu0 %4246
        %4248 = vrot.lane.b32.xlu0 %v4217, 64
        %v4249 = vpop.permute.xlu0 %4248
        %v4250 = vrot.slane %v3962, 1
        %v4251 = vrot.slane %v4010, 1
        %v4252 = vsel %vm1876, %v4250, %v4251
        %v4253 = vrot.slane %v3963, 1
        %v4254 = vrot.slane %v4011, 1
        %v4255 = vsel %vm1876, %v4253, %v4254
        %v4256 = vrot.slane %v3964, 1
        %v4257 = vrot.slane %v4012, 1
        %v4258 = vsel %vm1876, %v4256, %v4257
        %v4259 = vrot.slane %v3965, 1
        %v4260 = vrot.slane %v4013, 1
        %v4261 = vsel %vm1876, %v4259, %v4260
        %v4262 = vrot.slane %v3966, 1
        %v4263 = vrot.slane %v4014, 1
        %v4264 = vsel %vm1876, %v4262, %v4263
        %v4265 = vrot.slane %v3967, 1
        %v4266 = vrot.slane %v4015, 1
        %v4267 = vsel %vm1876, %v4265, %v4266
        %v4268 = vrot.slane %v3968, 1
        %v4269 = vrot.slane %v4016, 1
        %v4270 = vsel %vm1876, %v4268, %v4269
        %v4271 = vrot.slane %v3969, 1
        %v4272 = vrot.slane %v4017, 1
        %v4273 = vsel %vm1876, %v4271, %v4272
        %v4274 = vrot.slane %v3970, 1
        %v4275 = vrot.slane %v4018, 1
        %v4276 = vsel %vm1876, %v4274, %v4275
        %v4277 = vrot.slane %v3971, 1
        %v4278 = vrot.slane %v4019, 1
        %v4279 = vsel %vm1876, %v4277, %v4278
        %v4280 = vrot.slane %v3972, 1
        %v4281 = vrot.slane %v4020, 1
        %v4282 = vsel %vm1876, %v4280, %v4281
        %v4283 = vrot.slane %v3973, 1
        %v4284 = vrot.slane %v4021, 1
        %v4285 = vsel %vm1876, %v4283, %v4284
        %v4286 = vrot.slane %v3974, 1
        %v4287 = vrot.slane %v4022, 1
        %v4288 = vsel %vm1876, %v4286, %v4287
        %v4289 = vrot.slane %v3975, 1
        %v4290 = vrot.slane %v4023, 1
        %v4291 = vsel %vm1876, %v4289, %v4290
        %v4292 = vrot.slane %v3976, 1
        %v4293 = vrot.slane %v4024, 1
        %v4294 = vsel %vm1876, %v4292, %v4293
        %v4295 = vrot.slane %v3977, 1
        %v4296 = vrot.slane %v4025, 1
        %v4297 = vsel %vm1876, %v4295, %v4296
        %v4300 = vunpack.c.l.b16 %v3892
        %v4301 = vunpack.c.l.b16 %v3893
        %v4302 = vpack.c.b16 %v4301, %v4300
        %4303 = vrot.lane.b32.xlu0 %v3963, 64
        %v4304 = vpop.permute.xlu0 %4303
        %4305 = vrot.lane.b32.xlu0 %v3964, 64
        %v4306 = vpop.permute.xlu0 %4305
        %4307 = vrot.lane.b32.xlu0 %v3965, 64
        %v4308 = vpop.permute.xlu0 %4307
        %4309 = vrot.lane.b32.xlu0 %v3966, 64
        %v4310 = vpop.permute.xlu0 %4309
        %4311 = vrot.lane.b32.xlu0 %v3967, 64
        %v4312 = vpop.permute.xlu0 %4311
        %4313 = vrot.lane.b32.xlu0 %v3968, 64
        %v4314 = vpop.permute.xlu0 %4313
        %4315 = vrot.lane.b32.xlu0 %v3969, 64
        %v4316 = vpop.permute.xlu0 %4315
        %4317 = vrot.lane.b32.xlu0 %v3970, 64
        %v4318 = vpop.permute.xlu0 %4317
        %4319 = vrot.lane.b32.xlu0 %v3971, 64
        %v4320 = vpop.permute.xlu0 %4319
        %4321 = vrot.lane.b32.xlu0 %v3972, 64
        %v4322 = vpop.permute.xlu0 %4321
        %4323 = vrot.lane.b32.xlu0 %v3973, 64
        %v4324 = vpop.permute.xlu0 %4323
        %4325 = vrot.lane.b32.xlu0 %v3974, 64
        %v4326 = vpop.permute.xlu0 %4325
        %4327 = vrot.lane.b32.xlu0 %v3975, 64
        %v4328 = vpop.permute.xlu0 %4327
        %4329 = vrot.lane.b32.xlu0 %v3976, 64
        %v4330 = vpop.permute.xlu0 %4329
        %4331 = vrot.lane.b32.xlu0 %v3977, 64
        %v4332 = vpop.permute.xlu0 %4331
        %4333 = vrot.lane.b32.xlu0 %v4302, 64
        %v4334 = vpop.permute.xlu0 %4333
        %v4336 = vunpack.c.l.b16 %v3894
        %v4337 = vpack.c.b16 %v4336, %v4336
        %v4339 = vshrl.u32 %v4302, 16
        %v4341 = vshll.u32 %v4302, 16
        %v4343 = vrot.slane %v4341, 1
        %v4344 = vor.u32 %v4339, %v4343
        %v4346 = vshll.u32 %v4337, 16
        %v4348 = vrot.slane %v4346, 1
        %v4349 = vsel %vm1651, %v4344, %v4348
        %v4350 = vrot.slane %v4302, 1
        %v4351 = vrot.slane %v4337, 1
        %v4352 = vsel %vm1876, %v4350, %v4351
        %4353 = vrot.lane.b32.xlu0 %v4255, 64
        %v4354 = vpop.permute.xlu0 %4353
        %4355 = vrot.lane.b32.xlu0 %v4258, 64
        %v4356 = vpop.permute.xlu0 %4355
        %4357 = vrot.lane.b32.xlu0 %v4261, 64
        %v4358 = vpop.permute.xlu0 %4357
        %4359 = vrot.lane.b32.xlu0 %v4264, 64
        %v4360 = vpop.permute.xlu0 %4359
        %4361 = vrot.lane.b32.xlu0 %v4267, 64
        %v4362 = vpop.permute.xlu0 %4361
        %4363 = vrot.lane.b32.xlu0 %v4270, 64
        %v4364 = vpop.permute.xlu0 %4363
        %4365 = vrot.lane.b32.xlu0 %v4273, 64
        %v4366 = vpop.permute.xlu0 %4365
        %4367 = vrot.lane.b32.xlu0 %v4276, 64
        %v4368 = vpop.permute.xlu0 %4367
        %4369 = vrot.lane.b32.xlu0 %v4279, 64
        %v4370 = vpop.permute.xlu0 %4369
        %4371 = vrot.lane.b32.xlu0 %v4282, 64
        %v4372 = vpop.permute.xlu0 %4371
        %4373 = vrot.lane.b32.xlu0 %v4285, 64
        %v4374 = vpop.permute.xlu0 %4373
        %4375 = vrot.lane.b32.xlu0 %v4288, 64
        %v4376 = vpop.permute.xlu0 %4375
        %4377 = vrot.lane.b32.xlu0 %v4291, 64
        %v4378 = vpop.permute.xlu0 %4377
        %4379 = vrot.lane.b32.xlu0 %v4294, 64
        %v4380 = vpop.permute.xlu0 %4379
        %4381 = vrot.lane.b32.xlu0 %v4297, 64
        %v4382 = vpop.permute.xlu0 %4381
        %4383 = vrot.lane.b32.xlu0 %v4352, 64
        %v4384 = vpop.permute.xlu0 %4383
        %v4387 = vunpack.c.l.b16 %v3895
        %v4388 = vunpack.c.l.b16 %v3896
        %v4389 = vpack.c.b16 %v4388, %v4387
        %v4391 = vunpack.c.l.b16 %v3897
        %v4392 = vpack.c.b16 %v4391, %v4391
        %v4394 = vshrl.u32 %v4389, 16
        %v4396 = vshll.u32 %v4389, 16
        %v4398 = vrot.slane %v4396, 1
        %v4399 = vor.u32 %v4394, %v4398
        %v4401 = vshll.u32 %v4392, 16
        %v4403 = vrot.slane %v4401, 1
        %v4404 = vsel %vm1651, %v4399, %v4403
        %4405 = vrot.lane.b32.xlu0 %v4349, 64
        %v4406 = vpop.permute.xlu0 %4405
        %4407 = vrot.lane.b32.xlu0 %v4404, 64
        %v4408 = vpop.permute.xlu0 %4407
        %v4409 = vrot.slane %v4389, 1
        %v4410 = vrot.slane %v4392, 1
        %v4411 = vsel %vm1876, %v4409, %v4410
        %v4413 = vsel %vm2163, %v3962, %v4219
        %v4416 = vsel %vm2163, %v3963, %v4221
        %v4419 = vsel %vm2163, %v3964, %v4223
        %v4422 = vsel %vm2163, %v3965, %v4225
        %v4425 = vsel %vm2163, %v3966, %v4227
        %v4428 = vsel %vm2163, %v3967, %v4229
        %v4431 = vsel %vm2163, %v3968, %v4231
        %v4434 = vsel %vm2163, %v3969, %v4233
        %v4437 = vsel %vm2163, %v3970, %v4235
        %v4440 = vsel %vm2163, %v3971, %v4237
        %v4443 = vsel %vm2163, %v3972, %v4239
        %v4446 = vsel %vm2163, %v3973, %v4241
        %v4449 = vsel %vm2163, %v3974, %v4243
        %v4452 = vsel %vm2163, %v3975, %v4245
        %v4455 = vsel %vm2163, %v3976, %v4247
        %v4458 = vsel %vm2163, %v3977, %v4249
        %v4462 = vsel %vm2163, %v4252, %v4304
        %v4466 = vsel %vm2163, %v4255, %v4306
        %v4470 = vsel %vm2163, %v4258, %v4308
        %v4474 = vsel %vm2163, %v4261, %v4310
        %v4478 = vsel %vm2163, %v4264, %v4312
        %v4482 = vsel %vm2163, %v4267, %v4314
        %v4486 = vsel %vm2163, %v4270, %v4316
        %v4490 = vsel %vm2163, %v4273, %v4318
        %v4494 = vsel %vm2163, %v4276, %v4320
        %v4498 = vsel %vm2163, %v4279, %v4322
        %v4502 = vsel %vm2163, %v4282, %v4324
        %v4506 = vsel %vm2163, %v4285, %v4326
        %v4510 = vsel %vm2163, %v4288, %v4328
        %v4514 = vsel %vm2163, %v4291, %v4330
        %v4518 = vsel %vm2163, %v4294, %v4332
        %v4522 = vsel %vm2163, %v4297, %v4334
        %v4526 = vsel %vm2163, %v4049, %v4354
        %v4530 = vsel %vm2163, %v4061, %v4356
        %v4534 = vsel %vm2163, %v4073, %v4358
        %v4538 = vsel %vm2163, %v4085, %v4360
        %v4542 = vsel %vm2163, %v4097, %v4362
        %v4546 = vsel %vm2163, %v4109, %v4364
        %v4550 = vsel %vm2163, %v4121, %v4366
        %v4554 = vsel %vm2163, %v4133, %v4368
        %v4558 = vsel %vm2163, %v4145, %v4370
        %v4562 = vsel %vm2163, %v4157, %v4372
        %v4566 = vsel %vm2163, %v4169, %v4374
        %v4570 = vsel %vm2163, %v4181, %v4376
        %v4574 = vsel %vm2163, %v4193, %v4378
        %v4578 = vsel %vm2163, %v4205, %v4380
        %v4582 = vsel %vm2163, %v4217, %v4382
        %v4586 = vsel %vm2163, %v4349, %v4384
        %v4589 = vsel %vm2163, %v4302, %v4406
        %v4592 = vsel %vm2163, %v4389, %v4408
        %v4594 = vld [vmem:[%s9] sm:$0xf]
        %v4595 = vld [vmem:[%s9 + $0x4] sm:$0xf]
        %v4596 = vld [vmem:[%s9 + $0x8] sm:$0xf]
        %v4597 = vld [vmem:[%s9 + $0xc] sm:$0xf]
        %v4598 = vld [vmem:[%s9 + $0x10] sm:$0xf]
        %v4599 = vld [vmem:[%s9 + $0x14] sm:$0xf]
        %v4600 = vld [vmem:[%s9 + $0x18] sm:$0xf]
        %v4601 = vld [vmem:[%s9 + $0x1c] sm:$0xf]
        %v4602 = vld [vmem:[%s9 + $0x20] sm:$0xf]
        %v4603 = vld [vmem:[%s9 + $0x24] sm:$0xf]
        %v4604 = vld [vmem:[%s9 + $0x28] sm:$0xf]
        %v4605 = vld [vmem:[%s9 + $0x2c] sm:$0xf]
        %v4606 = vld [vmem:[%s9 + $0x30] sm:$0xf]
        %v4607 = vld [vmem:[%s9 + $0x34] sm:$0xf]
        %v4608 = vld [vmem:[%s9 + $0x38] sm:$0xf]
        %v4609 = vld [vmem:[%s9 + $0x3c] sm:$0xf]
        %v4610 = vld [vmem:[%s9 + $0x40] sm:$0xf]
        %v4611 = vld [vmem:[%s9 + $0x44] sm:$0xf]
        %v4612 = vld [vmem:[%s9 + $0x48] sm:$0xf]
        %v4613 = vld [vmem:[%s9 + $0x4c] sm:$0xf]
        %v4614 = vld [vmem:[%s9 + $0x50] sm:$0xf]
        %v4615 = vld [vmem:[%s9 + $0x54] sm:$0xf]
        %v4616 = vld [vmem:[%s9 + $0x58] sm:$0xf]
        %v4617 = vld [vmem:[%s9 + $0x5c] sm:$0xf]
        %v4618 = vld [vmem:[%s9 + $0x60] sm:$0xf]
        %v4619 = vld [vmem:[%s9 + $0x64] sm:$0xf]
        %v4620 = vld [vmem:[%s9 + $0x68] sm:$0xf]
        %v4621 = vld [vmem:[%s9 + $0x6c] sm:$0xf]
        %v4622 = vld [vmem:[%s9 + $0x70] sm:$0xf]
        %v4623 = vld [vmem:[%s9 + $0x74] sm:$0xf]
        %v4624 = vld [vmem:[%s9 + $0x78] sm:$0xf]
        %v4625 = vld [vmem:[%s9 + $0x7c] sm:$0xf]
        %v4626 = vld [vmem:[%s9 + $0x80] sm:$0xf]
        %v4627 = vld [vmem:[%s9 + $0x84] sm:$0xf]
        %v4628 = vld [vmem:[%s9 + $0x88] sm:$0xf]
        %v4629 = vld [vmem:[%s9 + $0x8c] sm:$0xf]
        %v4630 = vld [vmem:[%s9 + $0x90] sm:$0xf]
        %v4631 = vld [vmem:[%s9 + $0x94] sm:$0xf]
        %v4632 = vld [vmem:[%s9 + $0x98] sm:$0xf]
        %v4633 = vld [vmem:[%s9 + $0x9c] sm:$0xf]
        %v4634 = vld [vmem:[%s9 + $0xa0] sm:$0xf]
        %v4635 = vld [vmem:[%s9 + $0xa4] sm:$0xf]
        %v4636 = vld [vmem:[%s9 + $0xa8] sm:$0xf]
        %v4637 = vld [vmem:[%s9 + $0xac] sm:$0xf]
        %v4638 = vld [vmem:[%s9 + $0xb0] sm:$0xf]
        %v4639 = vld [vmem:[%s9 + $0xb4] sm:$0xf]
        %v4640 = vld [vmem:[%s9 + $0xb8] sm:$0xf]
        %v4641 = vld [vmem:[%s9 + $0xbc] sm:$0xf]
        %v4642 = vld [vmem:[%s9 + $0xc0] sm:$0xf]
        %v4643 = vld [vmem:[%s9 + $0xc4] sm:$0xf]
        %v4644 = vld [vmem:[%s9 + $0xc8] sm:$0xf]
        %v4645 = vld [vmem:[%s9 + $0xcc] sm:$0xf]
        %v4646 = vld [vmem:[%s9 + $0xd0] sm:$0xf]
        %v4647 = vld [vmem:[%s9 + $0xd4] sm:$0xf]
        %v4648 = vld [vmem:[%s9 + $0xd8] sm:$0xf]
        %v4649 = vld [vmem:[%s9 + $0xdc] sm:$0xf]
        %v4650 = vld [vmem:[%s9 + $0xe0] sm:$0xf]
        %v4651 = vld [vmem:[%s9 + $0xe4] sm:$0xf]
        %v4652 = vld [vmem:[%s9 + $0xe8] sm:$0xf]
        %v4653 = vld [vmem:[%s9 + $0xec] sm:$0xf]
        %v4654 = vld [vmem:[%s9 + $0xf0] sm:$0xf]
        %v4655 = vld [vmem:[%s9 + $0xf4] sm:$0xf]
        %v4656 = vld [vmem:[%s9 + $0xf8] sm:$0xf]
        %v4657 = vld [vmem:[%s9 + $0xfc] sm:$0xf]
        %v4658 = vld [vmem:[%s9 + $0x100] sm:$0xf]
        %v4659 = vld [vmem:[%s9 + $0x104] sm:$0xf]
        %v4660 = vld [vmem:[%s9 + $0x108] sm:$0xf]
        %v4661 = vld [vmem:[%s9 + $0x10c] sm:$0xf]
        %v4662 = vld [vmem:[%s9 + $0x110] sm:$0xf]
        %v4663 = vld [vmem:[%s9 + $0x114] sm:$0xf]
        %v4664 = vld [vmem:[%s9 + $0x118] sm:$0xf]
        %v4665 = vld [vmem:[%s9 + $0x11c] sm:$0xf]
        %v4666 = vld [vmem:[%s10] sm:$0x1]
        %v4668 = vperm.slane %v4666, 0
        %v4742 = vunpack.c.l.b16 %v4594
        %v4743 = vunpack.c.l.b16 %v4595
        %v4744 = vunpack.c.l.b16 %v4596
        %v4745 = vunpack.c.l.b16 %v4597
        %v4746 = vunpack.c.l.b16 %v4598
        %v4747 = vunpack.c.l.b16 %v4599
        %v4748 = vunpack.c.l.b16 %v4600
        %v4749 = vunpack.c.l.b16 %v4601
        %v4750 = vunpack.c.l.b16 %v4602
        %v4751 = vunpack.c.l.b16 %v4603
        %v4752 = vunpack.c.l.b16 %v4604
        %v4753 = vunpack.c.l.b16 %v4605
        %v4754 = vunpack.c.l.b16 %v4606
        %v4755 = vunpack.c.l.b16 %v4607
        %v4756 = vunpack.c.l.b16 %v4608
        %v4757 = vunpack.c.l.b16 %v4609
        %v4758 = vunpack.c.l.b16 %v4610
        %v4759 = vunpack.c.l.b16 %v4611
        %v4760 = vunpack.c.l.b16 %v4612
        %v4761 = vunpack.c.l.b16 %v4613
        %v4762 = vunpack.c.l.b16 %v4614
        %v4763 = vunpack.c.l.b16 %v4615
        %v4764 = vunpack.c.l.b16 %v4616
        %v4765 = vunpack.c.l.b16 %v4617
        %v4766 = vunpack.c.l.b16 %v4618
        %v4767 = vunpack.c.l.b16 %v4619
        %v4768 = vunpack.c.l.b16 %v4620
        %v4769 = vunpack.c.l.b16 %v4621
        %v4770 = vunpack.c.l.b16 %v4622
        %v4771 = vunpack.c.l.b16 %v4623
        %v4772 = vunpack.c.l.b16 %v4624
        %v4773 = vunpack.c.l.b16 %v4625
        %v4774 = vunpack.c.l.b16 %v4626
        %v4775 = vunpack.c.l.b16 %v4627
        %v4776 = vunpack.c.l.b16 %v4628
        %v4777 = vunpack.c.l.b16 %v4629
        %v4778 = vunpack.c.l.b16 %v4630
        %v4779 = vunpack.c.l.b16 %v4631
        %v4780 = vunpack.c.l.b16 %v4632
        %v4781 = vunpack.c.l.b16 %v4633
        %v4782 = vunpack.c.l.b16 %v4634
        %v4783 = vunpack.c.l.b16 %v4635
        %v4784 = vunpack.c.l.b16 %v4636
        %v4785 = vunpack.c.l.b16 %v4637
        %v4786 = vunpack.c.l.b16 %v4638
        %v4787 = vunpack.c.l.b16 %v4639
        %v4788 = vunpack.c.l.b16 %v4640
        %v4789 = vunpack.c.l.b16 %v4641
        %v4790 = vunpack.c.l.b16 %v4642
        %v4791 = vunpack.c.l.b16 %v4643
        %v4792 = vunpack.c.l.b16 %v4644
        %v4793 = vunpack.c.l.b16 %v4645
        %v4794 = vunpack.c.l.b16 %v4646
        %v4795 = vunpack.c.l.b16 %v4647
        %v4796 = vunpack.c.l.b16 %v4648
        %v4797 = vunpack.c.l.b16 %v4649
        %v4798 = vunpack.c.l.b16 %v4650
        %v4799 = vunpack.c.l.b16 %v4651
        %v4800 = vunpack.c.l.b16 %v4652
        %v4801 = vunpack.c.l.b16 %v4653
        %v4802 = vunpack.c.l.b16 %v4654
        %v4803 = vunpack.c.l.b16 %v4655
        %v4804 = vunpack.c.l.b16 %v4656
        %v4805 = vunpack.c.l.b16 %v4657
        %v4806 = vunpack.c.l.b16 %v4658
        %v4807 = vunpack.c.l.b16 %v4659
        %v4808 = vunpack.c.l.b16 %v4660
        %v4809 = vunpack.c.l.b16 %v4661
        %v4810 = vunpack.c.l.b16 %v4662
        %v4811 = vunpack.c.l.b16 %v4663
        %v4812 = vunpack.c.l.b16 %v4664
        %v4813 = vunpack.c.l.b16 %v4665
        %v4814 = vpack.c.b16 %v4743, %v4742
        %v4815 = vpack.c.b16 %v4745, %v4744
        %v4816 = vpack.c.b16 %v4747, %v4746
        %v4817 = vpack.c.b16 %v4749, %v4748
        %v4818 = vpack.c.b16 %v4751, %v4750
        %v4819 = vpack.c.b16 %v4753, %v4752
        %v4820 = vpack.c.b16 %v4755, %v4754
        %v4821 = vpack.c.b16 %v4757, %v4756
        %v4822 = vpack.c.b16 %v4759, %v4758
        %v4823 = vpack.c.b16 %v4761, %v4760
        %v4824 = vpack.c.b16 %v4763, %v4762
        %v4825 = vpack.c.b16 %v4765, %v4764
        %v4826 = vpack.c.b16 %v4767, %v4766
        %v4827 = vpack.c.b16 %v4769, %v4768
        %v4828 = vpack.c.b16 %v4771, %v4770
        %v4829 = vpack.c.b16 %v4773, %v4772
        %v4830 = vpack.c.b16 %v4775, %v4774
        %v4831 = vpack.c.b16 %v4777, %v4776
        %v4832 = vpack.c.b16 %v4779, %v4778
        %v4833 = vpack.c.b16 %v4781, %v4780
        %v4834 = vpack.c.b16 %v4783, %v4782
        %v4835 = vpack.c.b16 %v4785, %v4784
        %v4836 = vpack.c.b16 %v4787, %v4786
        %v4837 = vpack.c.b16 %v4789, %v4788
        %v4838 = vpack.c.b16 %v4791, %v4790
        %v4839 = vpack.c.b16 %v4793, %v4792
        %v4840 = vpack.c.b16 %v4795, %v4794
        %v4841 = vpack.c.b16 %v4797, %v4796
        %v4842 = vpack.c.b16 %v4799, %v4798
        %v4843 = vpack.c.b16 %v4801, %v4800
        %v4844 = vpack.c.b16 %v4803, %v4802
        %v4845 = vpack.c.b16 %v4805, %v4804
        %v4846 = vpack.c.b16 %v4807, %v4806
        %v4847 = vpack.c.b16 %v4809, %v4808
        %v4848 = vpack.c.b16 %v4811, %v4810
        %v4849 = vpack.c.b16 %v4813, %v4812
        %v4886 = vsel %vm2163, %v4258, 0
        %v4888 = vsel %vm2163, %v4261, 0
        %v4890 = vsel %vm2163, %v4264, 0
        %v4892 = vsel %vm2163, %v4267, 0
        %v4894 = vsel %vm2163, %v4270, 0
        %v4896 = vsel %vm2163, %v4273, 0
        %v4898 = vsel %vm2163, %v4276, 0
        %v4900 = vsel %vm2163, %v4279, 0
        %v4902 = vsel %vm2163, %v4282, 0
        %v4904 = vsel %vm2163, %v4285, 0
        %v4906 = vsel %vm2163, %v4288, 0
        %v4908 = vsel %vm2163, %v4291, 0
        %v4910 = vsel %vm2163, %v4294, 0
        %v4912 = vsel %vm2163, %v4297, 0
        %v4915 = vsel %vm2163, %v4352, 0
        %v4918 = vsel %vm2163, %v4411, 0
        %4920 = vmatpush.bf16.msra.mxu0 %v4821
        %4921 = vmatpush.bf16.msra.mxu0 %v4820
        %4922 = vmatpush.bf16.msra.mxu0 %v4819
        %4923 = vmatpush.bf16.msra.mxu0 %v4818
        %4924 = vmatpush.bf16.msra.mxu0 %v4817
        %4925 = vmatpush.bf16.msra.mxu0 %v4816
        %4926 = vmatpush.bf16.msra.mxu0 %v4815
        %4927 = vmatpush.bf16.msra.mxu0 %v4814
        %4928 = vmatmul.bf16.gmra.mxu0 %v4413
        %v4929 = vpop.f32.mrf.mxu0
        %v4930 = vadd.f32 %v4668, %v4929
        %v4931 = vpop.f32.mrf.mxu0
        %v4932 = vadd.f32 %v4668, %v4931
        %4933 = vmatmul.bf16.gmra.mxu0 %v4416
        %v4934 = vpop.f32.mrf.mxu0
        %v4935 = vadd.f32 %v4668, %v4934
        %v4936 = vpop.f32.mrf.mxu0
        %v4937 = vadd.f32 %v4668, %v4936
        %4938 = vmatmul.bf16.gmra.mxu0 %v4419
        %v4939 = vpop.f32.mrf.mxu0
        %v4940 = vadd.f32 %v4668, %v4939
        %v4941 = vpop.f32.mrf.mxu0
        %v4942 = vadd.f32 %v4668, %v4941
        %4943 = vmatmul.bf16.gmra.mxu0 %v4422
        %v4944 = vpop.f32.mrf.mxu0
        %v4945 = vadd.f32 %v4668, %v4944
        %v4946 = vpop.f32.mrf.mxu0
        %v4947 = vadd.f32 %v4668, %v4946
        %4948 = vmatmul.bf16.gmra.mxu0 %v4425
        %v4949 = vpop.f32.mrf.mxu0
        %v4950 = vadd.f32 %v4668, %v4949
        %v4951 = vpop.f32.mrf.mxu0
        %v4952 = vadd.f32 %v4668, %v4951
        %4953 = vmatmul.bf16.gmra.mxu0 %v4428
        %v4954 = vpop.f32.mrf.mxu0
        %v4955 = vadd.f32 %v4668, %v4954
        %v4956 = vpop.f32.mrf.mxu0
        %v4957 = vadd.f32 %v4668, %v4956
        %4958 = vmatmul.bf16.gmra.mxu0 %v4431
        %v4959 = vpop.f32.mrf.mxu0
        %v4960 = vadd.f32 %v4668, %v4959
        %v4961 = vpop.f32.mrf.mxu0
        %v4962 = vadd.f32 %v4668, %v4961
        %4963 = vmatmul.bf16.gmra.mxu0 %v4434
        %v4964 = vpop.f32.mrf.mxu0
        %v4965 = vadd.f32 %v4668, %v4964
        %v4966 = vpop.f32.mrf.mxu0
        %v4967 = vadd.f32 %v4668, %v4966
        %4968 = vmatmul.bf16.gmra.mxu0 %v4437
        %v4969 = vpop.f32.mrf.mxu0
        %v4970 = vadd.f32 %v4668, %v4969
        %v4971 = vpop.f32.mrf.mxu0
        %v4972 = vadd.f32 %v4668, %v4971
        %4973 = vmatmul.bf16.gmra.mxu0 %v4440
        %v4974 = vpop.f32.mrf.mxu0
        %v4975 = vadd.f32 %v4668, %v4974
        %v4976 = vpop.f32.mrf.mxu0
        %v4977 = vadd.f32 %v4668, %v4976
        %4978 = vmatmul.bf16.gmra.mxu0 %v4443
        %v4979 = vpop.f32.mrf.mxu0
        %v4980 = vadd.f32 %v4668, %v4979
        %v4981 = vpop.f32.mrf.mxu0
        %v4982 = vadd.f32 %v4668, %v4981
        %4983 = vmatmul.bf16.gmra.mxu0 %v4446
        %v4984 = vpop.f32.mrf.mxu0
        %v4985 = vadd.f32 %v4668, %v4984
        %v4986 = vpop.f32.mrf.mxu0
        %v4987 = vadd.f32 %v4668, %v4986
        %4988 = vmatmul.bf16.gmra.mxu0 %v4449
        %v4989 = vpop.f32.mrf.mxu0
        %v4990 = vadd.f32 %v4668, %v4989
        %v4991 = vpop.f32.mrf.mxu0
        %v4992 = vadd.f32 %v4668, %v4991
        %4993 = vmatmul.bf16.gmra.mxu0 %v4452
        %v4994 = vpop.f32.mrf.mxu0
        %v4995 = vadd.f32 %v4668, %v4994
        %v4996 = vpop.f32.mrf.mxu0
        %v4997 = vadd.f32 %v4668, %v4996
        %4998 = vmatmul.bf16.gmra.mxu0 %v4455
        %v4999 = vpop.f32.mrf.mxu0
        %v5000 = vadd.f32 %v4668, %v4999
        %v5001 = vpop.f32.mrf.mxu0
        %v5002 = vadd.f32 %v4668, %v5001
        %5003 = vmatmul.bf16.gmra.mxu0 %v4458
        %v5004 = vpop.f32.mrf.mxu0
        %v5005 = vadd.f32 %v4668, %v5004
        %v5006 = vpop.f32.mrf.mxu0
        %v5007 = vadd.f32 %v4668, %v5006
        %5008 = vdwg.mxu0
        %5009 = vmatpush.bf16.msra.mxu0 %v4829
        %5010 = vmatpush.bf16.msra.mxu0 %v4828
        %5011 = vmatpush.bf16.msra.mxu0 %v4827
        %5012 = vmatpush.bf16.msra.mxu0 %v4826
        %5013 = vmatpush.bf16.msra.mxu0 %v4825
        %5014 = vmatpush.bf16.msra.mxu0 %v4824
        %5015 = vmatpush.bf16.msra.mxu0 %v4823
        %5016 = vmatpush.bf16.msra.mxu0 %v4822
        %5017 = vmatmul.bf16.gmra.mxu0 %v4462
        %v5018 = vpop.f32.mrf.mxu0
        %v5019 = vadd.f32 %v4930, %v5018
        %v5020 = vpop.f32.mrf.mxu0
        %v5021 = vadd.f32 %v4932, %v5020
        %5022 = vmatmul.bf16.gmra.mxu0 %v4466
        %v5023 = vpop.f32.mrf.mxu0
        %v5024 = vadd.f32 %v4935, %v5023
        %v5025 = vpop.f32.mrf.mxu0
        %v5026 = vadd.f32 %v4937, %v5025
        %5027 = vmatmul.bf16.gmra.mxu0 %v4470
        %v5028 = vpop.f32.mrf.mxu0
        %v5029 = vadd.f32 %v4940, %v5028
        %v5030 = vpop.f32.mrf.mxu0
        %v5031 = vadd.f32 %v4942, %v5030
        %5032 = vmatmul.bf16.gmra.mxu0 %v4474
        %v5033 = vpop.f32.mrf.mxu0
        %v5034 = vadd.f32 %v4945, %v5033
        %v5035 = vpop.f32.mrf.mxu0
        %v5036 = vadd.f32 %v4947, %v5035
        %5037 = vmatmul.bf16.gmra.mxu0 %v4478
        %v5038 = vpop.f32.mrf.mxu0
        %v5039 = vadd.f32 %v4950, %v5038
        %v5040 = vpop.f32.mrf.mxu0
        %v5041 = vadd.f32 %v4952, %v5040
        %5042 = vmatmul.bf16.gmra.mxu0 %v4482
        %v5043 = vpop.f32.mrf.mxu0
        %v5044 = vadd.f32 %v4955, %v5043
        %v5045 = vpop.f32.mrf.mxu0
        %v5046 = vadd.f32 %v4957, %v5045
        %5047 = vmatmul.bf16.gmra.mxu0 %v4486
        %v5048 = vpop.f32.mrf.mxu0
        %v5049 = vadd.f32 %v4960, %v5048
        %v5050 = vpop.f32.mrf.mxu0
        %v5051 = vadd.f32 %v4962, %v5050
        %5052 = vmatmul.bf16.gmra.mxu0 %v4490
        %v5053 = vpop.f32.mrf.mxu0
        %v5054 = vadd.f32 %v4965, %v5053
        %v5055 = vpop.f32.mrf.mxu0
        %v5056 = vadd.f32 %v4967, %v5055
        %5057 = vmatmul.bf16.gmra.mxu0 %v4494
        %v5058 = vpop.f32.mrf.mxu0
        %v5059 = vadd.f32 %v4970, %v5058
        %v5060 = vpop.f32.mrf.mxu0
        %v5061 = vadd.f32 %v4972, %v5060
        %5062 = vmatmul.bf16.gmra.mxu0 %v4498
        %v5063 = vpop.f32.mrf.mxu0
        %v5064 = vadd.f32 %v4975, %v5063
        %v5065 = vpop.f32.mrf.mxu0
        %v5066 = vadd.f32 %v4977, %v5065
        %5067 = vmatmul.bf16.gmra.mxu0 %v4502
        %v5068 = vpop.f32.mrf.mxu0
        %v5069 = vadd.f32 %v4980, %v5068
        %v5070 = vpop.f32.mrf.mxu0
        %v5071 = vadd.f32 %v4982, %v5070
        %5072 = vmatmul.bf16.gmra.mxu0 %v4506
        %v5073 = vpop.f32.mrf.mxu0
        %v5074 = vadd.f32 %v4985, %v5073
        %v5075 = vpop.f32.mrf.mxu0
        %v5076 = vadd.f32 %v4987, %v5075
        %5077 = vmatmul.bf16.gmra.mxu0 %v4510
        %v5078 = vpop.f32.mrf.mxu0
        %v5079 = vadd.f32 %v4990, %v5078
        %v5080 = vpop.f32.mrf.mxu0
        %v5081 = vadd.f32 %v4992, %v5080
        %5082 = vmatmul.bf16.gmra.mxu0 %v4514
        %v5083 = vpop.f32.mrf.mxu0
        %v5084 = vadd.f32 %v4995, %v5083
        %v5085 = vpop.f32.mrf.mxu0
        %v5086 = vadd.f32 %v4997, %v5085
        %5087 = vmatmul.bf16.gmra.mxu0 %v4518
        %v5088 = vpop.f32.mrf.mxu0
        %v5089 = vadd.f32 %v5000, %v5088
        %v5090 = vpop.f32.mrf.mxu0
        %v5091 = vadd.f32 %v5002, %v5090
        %5092 = vmatmul.bf16.gmra.mxu0 %v4522
        %v5093 = vpop.f32.mrf.mxu0
        %v5094 = vadd.f32 %v5005, %v5093
        %v5095 = vpop.f32.mrf.mxu0
        %v5096 = vadd.f32 %v5007, %v5095
        %5097 = vdwg.mxu0
        %5098 = vmatpush.bf16.msra.mxu0 %v4837
        %5099 = vmatpush.bf16.msra.mxu0 %v4836
        %5100 = vmatpush.bf16.msra.mxu0 %v4835
        %5101 = vmatpush.bf16.msra.mxu0 %v4834
        %5102 = vmatpush.bf16.msra.mxu0 %v4833
        %5103 = vmatpush.bf16.msra.mxu0 %v4832
        %5104 = vmatpush.bf16.msra.mxu0 %v4831
        %5105 = vmatpush.bf16.msra.mxu0 %v4830
        %5106 = vmatmul.bf16.gmra.mxu0 %v4526
        %v5107 = vpop.f32.mrf.mxu0
        %v5108 = vadd.f32 %v5019, %v5107
        %v5109 = vpop.f32.mrf.mxu0
        %v5110 = vadd.f32 %v5021, %v5109
        %5111 = vmatmul.bf16.gmra.mxu0 %v4530
        %v5112 = vpop.f32.mrf.mxu0
        %v5113 = vadd.f32 %v5024, %v5112
        %v5114 = vpop.f32.mrf.mxu0
        %v5115 = vadd.f32 %v5026, %v5114
        %5116 = vmatmul.bf16.gmra.mxu0 %v4534
        %v5117 = vpop.f32.mrf.mxu0
        %v5118 = vadd.f32 %v5029, %v5117
        %v5119 = vpop.f32.mrf.mxu0
        %v5120 = vadd.f32 %v5031, %v5119
        %5121 = vmatmul.bf16.gmra.mxu0 %v4538
        %v5122 = vpop.f32.mrf.mxu0
        %v5123 = vadd.f32 %v5034, %v5122
        %v5124 = vpop.f32.mrf.mxu0
        %v5125 = vadd.f32 %v5036, %v5124
        %5126 = vmatmul.bf16.gmra.mxu0 %v4542
        %v5127 = vpop.f32.mrf.mxu0
        %v5128 = vadd.f32 %v5039, %v5127
        %v5129 = vpop.f32.mrf.mxu0
        %v5130 = vadd.f32 %v5041, %v5129
        %5131 = vmatmul.bf16.gmra.mxu0 %v4546
        %v5132 = vpop.f32.mrf.mxu0
        %v5133 = vadd.f32 %v5044, %v5132
        %v5134 = vpop.f32.mrf.mxu0
        %v5135 = vadd.f32 %v5046, %v5134
        %5136 = vmatmul.bf16.gmra.mxu0 %v4550
        %v5137 = vpop.f32.mrf.mxu0
        %v5138 = vadd.f32 %v5049, %v5137
        %v5139 = vpop.f32.mrf.mxu0
        %v5140 = vadd.f32 %v5051, %v5139
        %5141 = vmatmul.bf16.gmra.mxu0 %v4554
        %v5142 = vpop.f32.mrf.mxu0
        %v5143 = vadd.f32 %v5054, %v5142
        %v5144 = vpop.f32.mrf.mxu0
        %v5145 = vadd.f32 %v5056, %v5144
        %5146 = vmatmul.bf16.gmra.mxu0 %v4558
        %v5147 = vpop.f32.mrf.mxu0
        %v5148 = vadd.f32 %v5059, %v5147
        %v5149 = vpop.f32.mrf.mxu0
        %v5150 = vadd.f32 %v5061, %v5149
        %5151 = vmatmul.bf16.gmra.mxu0 %v4562
        %v5152 = vpop.f32.mrf.mxu0
        %v5153 = vadd.f32 %v5064, %v5152
        %v5154 = vpop.f32.mrf.mxu0
        %v5155 = vadd.f32 %v5066, %v5154
        %5156 = vmatmul.bf16.gmra.mxu0 %v4566
        %v5157 = vpop.f32.mrf.mxu0
        %v5158 = vadd.f32 %v5069, %v5157
        %v5159 = vpop.f32.mrf.mxu0
        %v5160 = vadd.f32 %v5071, %v5159
        %5161 = vmatmul.bf16.gmra.mxu0 %v4570
        %v5162 = vpop.f32.mrf.mxu0
        %v5163 = vadd.f32 %v5074, %v5162
        %v5164 = vpop.f32.mrf.mxu0
        %v5165 = vadd.f32 %v5076, %v5164
        %5166 = vmatmul.bf16.gmra.mxu0 %v4574
        %v5167 = vpop.f32.mrf.mxu0
        %v5168 = vadd.f32 %v5079, %v5167
        %v5169 = vpop.f32.mrf.mxu0
        %v5170 = vadd.f32 %v5081, %v5169
        %5171 = vmatmul.bf16.gmra.mxu0 %v4578
        %v5172 = vpop.f32.mrf.mxu0
        %v5173 = vadd.f32 %v5084, %v5172
        %v5174 = vpop.f32.mrf.mxu0
        %v5175 = vadd.f32 %v5086, %v5174
        %5176 = vmatmul.bf16.gmra.mxu0 %v4582
        %v5177 = vpop.f32.mrf.mxu0
        %v5178 = vadd.f32 %v5089, %v5177
        %v5179 = vpop.f32.mrf.mxu0
        %v5180 = vadd.f32 %v5091, %v5179
        %5181 = vmatmul.bf16.gmra.mxu0 %v4586
        %v5182 = vpop.f32.mrf.mxu0
        %v5183 = vadd.f32 %v5094, %v5182
        %v5184 = vpop.f32.mrf.mxu0
        %v5185 = vadd.f32 %v5096, %v5184
        %5186 = vdwg.mxu0
        %5187 = vmatpush.bf16.msra.mxu0 %v4845
        %5188 = vmatpush.bf16.msra.mxu0 %v4844
        %5189 = vmatpush.bf16.msra.mxu0 %v4843
        %5190 = vmatpush.bf16.msra.mxu0 %v4842
        %5191 = vmatpush.bf16.msra.mxu0 %v4841
        %5192 = vmatpush.bf16.msra.mxu0 %v4840
        %5193 = vmatpush.bf16.msra.mxu0 %v4839
        %5194 = vmatpush.bf16.msra.mxu0 %v4838
        %5195 = vmatmul.bf16.gmra.mxu0 %v4419
        %v5196 = vpop.f32.mrf.mxu0
        %v5197 = vadd.f32 %v5108, %v5196
        %v5198 = vpop.f32.mrf.mxu0
        %v5199 = vadd.f32 %v5110, %v5198
        %5200 = vmatmul.bf16.gmra.mxu0 %v4422
        %v5201 = vpop.f32.mrf.mxu0
        %v5202 = vadd.f32 %v5113, %v5201
        %v5203 = vpop.f32.mrf.mxu0
        %v5204 = vadd.f32 %v5115, %v5203
        %5205 = vmatmul.bf16.gmra.mxu0 %v4425
        %v5206 = vpop.f32.mrf.mxu0
        %v5207 = vadd.f32 %v5118, %v5206
        %v5208 = vpop.f32.mrf.mxu0
        %v5209 = vadd.f32 %v5120, %v5208
        %5210 = vmatmul.bf16.gmra.mxu0 %v4428
        %v5211 = vpop.f32.mrf.mxu0
        %v5212 = vadd.f32 %v5123, %v5211
        %v5213 = vpop.f32.mrf.mxu0
        %v5214 = vadd.f32 %v5125, %v5213
        %5215 = vmatmul.bf16.gmra.mxu0 %v4431
        %v5216 = vpop.f32.mrf.mxu0
        %v5217 = vadd.f32 %v5128, %v5216
        %v5218 = vpop.f32.mrf.mxu0
        %v5219 = vadd.f32 %v5130, %v5218
        %5220 = vmatmul.bf16.gmra.mxu0 %v4434
        %v5221 = vpop.f32.mrf.mxu0
        %v5222 = vadd.f32 %v5133, %v5221
        %v5223 = vpop.f32.mrf.mxu0
        %v5224 = vadd.f32 %v5135, %v5223
        %5225 = vmatmul.bf16.gmra.mxu0 %v4437
        %v5226 = vpop.f32.mrf.mxu0
        %v5227 = vadd.f32 %v5138, %v5226
        %v5228 = vpop.f32.mrf.mxu0
        %v5229 = vadd.f32 %v5140, %v5228
        %5230 = vmatmul.bf16.gmra.mxu0 %v4440
        %v5231 = vpop.f32.mrf.mxu0
        %v5232 = vadd.f32 %v5143, %v5231
        %v5233 = vpop.f32.mrf.mxu0
        %v5234 = vadd.f32 %v5145, %v5233
        %5235 = vmatmul.bf16.gmra.mxu0 %v4443
        %v5236 = vpop.f32.mrf.mxu0
        %v5237 = vadd.f32 %v5148, %v5236
        %v5238 = vpop.f32.mrf.mxu0
        %v5239 = vadd.f32 %v5150, %v5238
        %5240 = vmatmul.bf16.gmra.mxu0 %v4446
        %v5241 = vpop.f32.mrf.mxu0
        %v5242 = vadd.f32 %v5153, %v5241
        %v5243 = vpop.f32.mrf.mxu0
        %v5244 = vadd.f32 %v5155, %v5243
        %5245 = vmatmul.bf16.gmra.mxu0 %v4449
        %v5246 = vpop.f32.mrf.mxu0
        %v5247 = vadd.f32 %v5158, %v5246
        %v5248 = vpop.f32.mrf.mxu0
        %v5249 = vadd.f32 %v5160, %v5248
        %5250 = vmatmul.bf16.gmra.mxu0 %v4452
        %v5251 = vpop.f32.mrf.mxu0
        %v5252 = vadd.f32 %v5163, %v5251
        %v5253 = vpop.f32.mrf.mxu0
        %v5254 = vadd.f32 %v5165, %v5253
        %5255 = vmatmul.bf16.gmra.mxu0 %v4455
        %v5256 = vpop.f32.mrf.mxu0
        %v5257 = vadd.f32 %v5168, %v5256
        %v5258 = vpop.f32.mrf.mxu0
        %v5259 = vadd.f32 %v5170, %v5258
        %5260 = vmatmul.bf16.gmra.mxu0 %v4458
        %v5261 = vpop.f32.mrf.mxu0
        %v5262 = vadd.f32 %v5173, %v5261
        %v5263 = vpop.f32.mrf.mxu0
        %v5264 = vadd.f32 %v5175, %v5263
        %5265 = vmatmul.bf16.gmra.mxu0 %v4589
        %v5266 = vpop.f32.mrf.mxu0
        %v5267 = vadd.f32 %v5178, %v5266
        %v5268 = vpop.f32.mrf.mxu0
        %v5269 = vadd.f32 %v5180, %v5268
        %5270 = vmatmul.bf16.gmra.mxu0 %v4592
        %v5271 = vpop.f32.mrf.mxu0
        %v5272 = vadd.f32 %v5183, %v5271
        %v5273 = vpop.f32.mrf.mxu0
        %v5274 = vadd.f32 %v5185, %v5273
        %5275 = vdwg.mxu0
        %5276 = vmatpush.bf16.msra.mxu0 0
        %5277 = vmatpush.bf16.msra.mxu0 0
        %5278 = vmatpush.bf16.msra.mxu0 0
        %5279 = vmatpush.bf16.msra.mxu0 0
        %5280 = vmatpush.bf16.msra.mxu0 %v4849
        %5281 = vmatpush.bf16.msra.mxu0 %v4848
        %5282 = vmatpush.bf16.msra.mxu0 %v4847
        %5283 = vmatpush.bf16.msra.mxu0 %v4846
        %5284 = vmatmul.bf16.gmra.mxu0 %v4886
        %v5285 = vpop.f32.mrf.mxu0
        %v5286 = vadd.f32 %v5197, %v5285
        %v5287 = vpop.f32.mrf.mxu0
        %v5288 = vadd.f32 %v5199, %v5287
        %5289 = vmatmul.bf16.gmra.mxu0 %v4888
        %v5290 = vpop.f32.mrf.mxu0
        %v5291 = vadd.f32 %v5202, %v5290
        %v5292 = vpop.f32.mrf.mxu0
        %v5293 = vadd.f32 %v5204, %v5292
        %5294 = vmatmul.bf16.gmra.mxu0 %v4890
        %v5295 = vpop.f32.mrf.mxu0
        %v5296 = vadd.f32 %v5207, %v5295
        %v5297 = vpop.f32.mrf.mxu0
        %v5298 = vadd.f32 %v5209, %v5297
        %5299 = vmatmul.bf16.gmra.mxu0 %v4892
        %v5300 = vpop.f32.mrf.mxu0
        %v5301 = vadd.f32 %v5212, %v5300
        %v5302 = vpop.f32.mrf.mxu0
        %v5303 = vadd.f32 %v5214, %v5302
        %5304 = vmatmul.bf16.gmra.mxu0 %v4894
        %v5305 = vpop.f32.mrf.mxu0
        %v5306 = vadd.f32 %v5217, %v5305
        %v5307 = vpop.f32.mrf.mxu0
        %v5308 = vadd.f32 %v5219, %v5307
        %5309 = vmatmul.bf16.gmra.mxu0 %v4896
        %v5310 = vpop.f32.mrf.mxu0
        %v5311 = vadd.f32 %v5222, %v5310
        %v5312 = vpop.f32.mrf.mxu0
        %v5313 = vadd.f32 %v5224, %v5312
        %5314 = vmatmul.bf16.gmra.mxu0 %v4898
        %v5315 = vpop.f32.mrf.mxu0
        %v5316 = vadd.f32 %v5227, %v5315
        %v5317 = vpop.f32.mrf.mxu0
        %v5318 = vadd.f32 %v5229, %v5317
        %5319 = vmatmul.bf16.gmra.mxu0 %v4900
        %v5320 = vpop.f32.mrf.mxu0
        %v5321 = vadd.f32 %v5232, %v5320
        %v5322 = vpop.f32.mrf.mxu0
        %v5323 = vadd.f32 %v5234, %v5322
        %5324 = vmatmul.bf16.gmra.mxu0 %v4902
        %v5325 = vpop.f32.mrf.mxu0
        %v5326 = vadd.f32 %v5237, %v5325
        %v5327 = vpop.f32.mrf.mxu0
        %v5328 = vadd.f32 %v5239, %v5327
        %5329 = vmatmul.bf16.gmra.mxu0 %v4904
        %v5330 = vpop.f32.mrf.mxu0
        %v5331 = vadd.f32 %v5242, %v5330
        %v5332 = vpop.f32.mrf.mxu0
        %v5333 = vadd.f32 %v5244, %v5332
        %5334 = vmatmul.bf16.gmra.mxu0 %v4906
        %v5335 = vpop.f32.mrf.mxu0
        %v5336 = vadd.f32 %v5247, %v5335
        %v5337 = vpop.f32.mrf.mxu0
        %v5338 = vadd.f32 %v5249, %v5337
        %5339 = vmatmul.bf16.gmra.mxu0 %v4908
        %v5340 = vpop.f32.mrf.mxu0
        %v5341 = vadd.f32 %v5252, %v5340
        %v5342 = vpop.f32.mrf.mxu0
        %v5343 = vadd.f32 %v5254, %v5342
        %5344 = vmatmul.bf16.gmra.mxu0 %v4910
        %v5345 = vpop.f32.mrf.mxu0
        %v5346 = vadd.f32 %v5257, %v5345
        %v5347 = vpop.f32.mrf.mxu0
        %v5348 = vadd.f32 %v5259, %v5347
        %5349 = vmatmul.bf16.gmra.mxu0 %v4912
        %v5350 = vpop.f32.mrf.mxu0
        %v5351 = vadd.f32 %v5262, %v5350
        %v5352 = vpop.f32.mrf.mxu0
        %v5353 = vadd.f32 %v5264, %v5352
        %5354 = vmatmul.bf16.gmra.mxu0 %v4915
        %v5355 = vpop.f32.mrf.mxu0
        %v5356 = vadd.f32 %v5267, %v5355
        %v5357 = vpop.f32.mrf.mxu0
        %v5358 = vadd.f32 %v5269, %v5357
        %5359 = vmatmul.bf16.gmra.mxu0 %v4918
        %v5360 = vpop.f32.mrf.mxu0
        %v5361 = vadd.f32 %v5272, %v5360
        %v5362 = vpop.f32.mrf.mxu0
        %v5363 = vadd.f32 %v5274, %v5362
        %5364 = vdwg.mxu0
        %5365 = vst.msk [vmem:[#allocation4] sm:$0xf] %vm940, 0
        %5366 = vst.msk [vmem:[#allocation4 + $0x4] sm:$0xf] %vm940, 0
        %5367 = vst.msk [vmem:[#allocation4 + $0x8] sm:$0x1] %vm943, 0
        %5368 = vst.msk [vmem:[#allocation4 + $0xc] sm:$0xf] %vm940, 0
        %5369 = vst.msk [vmem:[#allocation4 + $0x10] sm:$0xf] %vm940, 0
        %5370 = vst.msk [vmem:[#allocation4 + $0x14] sm:$0x1] %vm943, 0
        %5371 = vst.msk [vmem:[#allocation4 + $0x18] sm:$0xf] %vm940, 0
        %5372 = vst.msk [vmem:[#allocation4 + $0x1c] sm:$0xf] %vm940, 0
        %5373 = vst.msk [vmem:[#allocation4 + $0x20] sm:$0x1] %vm943, 0
        %5374 = vst.msk [vmem:[#allocation4 + $0x24] sm:$0xf] %vm940, 0
        %5375 = vst.msk [vmem:[#allocation4 + $0x28] sm:$0xf] %vm940, 0
        %5376 = vst.msk [vmem:[#allocation4 + $0x2c] sm:$0x1] %vm943, 0
        %5377 = vst.msk [vmem:[#allocation4 + $0x30] sm:$0xf] %vm940, 0
        %5378 = vst.msk [vmem:[#allocation4 + $0x34] sm:$0xf] %vm940, 0
        %5379 = vst.msk [vmem:[#allocation4 + $0x38] sm:$0x1] %vm943, 0
        %5380 = vst.msk [vmem:[#allocation4 + $0x3c] sm:$0xf] %vm940, 0
        %5381 = vst.msk [vmem:[#allocation4 + $0x40] sm:$0xf] %vm940, 0
        %5382 = vst.msk [vmem:[#allocation4 + $0x44] sm:$0x1] %vm943, 0
        %5383 = vst.msk [vmem:[#allocation4 + $0x48] sm:$0xf] %vm940, 0
        %5384 = vst.msk [vmem:[#allocation4 + $0x4c] sm:$0xf] %vm940, 0
        %5385 = vst.msk [vmem:[#allocation4 + $0x50] sm:$0x1] %vm943, 0
        %5386 = vst.msk [vmem:[#allocation4 + $0x54] sm:$0xf] %vm940, 0
        %5387 = vst.msk [vmem:[#allocation4 + $0x58] sm:$0xf] %vm940, 0
        %5388 = vst.msk [vmem:[#allocation4 + $0x5c] sm:$0x1] %vm943, 0
        %5389 = vst.msk [vmem:[#allocation4 + $0x60] sm:$0xf] %vm940, 0
        %5390 = vst.msk [vmem:[#allocation4 + $0x64] sm:$0xf] %vm940, 0
        %5391 = vst.msk [vmem:[#allocation4 + $0x68] sm:$0x1] %vm943, 0
        %5392 = vst.msk [vmem:[#allocation4 + $0x6c] sm:$0xf] %vm940, 0
        %5393 = vst.msk [vmem:[#allocation4 + $0x70] sm:$0xf] %vm940, 0
        %5394 = vst.msk [vmem:[#allocation4 + $0x74] sm:$0x1] %vm943, 0
        %5395 = vst.msk [vmem:[#allocation4 + $0x78] sm:$0xf] %vm940, 0
        %5396 = vst.msk [vmem:[#allocation4 + $0x7c] sm:$0xf] %vm940, 0
        %5397 = vst.msk [vmem:[#allocation4 + $0x80] sm:$0x1] %vm943, 0
        %5398 = vst.msk [vmem:[#allocation4 + $0x84] sm:$0xf] %vm940, 0
        %5399 = vst.msk [vmem:[#allocation4 + $0x88] sm:$0xf] %vm940, 0
        %5400 = vst.msk [vmem:[#allocation4 + $0x8c] sm:$0x1] %vm943, 0
        %5401 = vst.msk [vmem:[#allocation4 + $0x90] sm:$0xf] %vm940, 0
        %5402 = vst.msk [vmem:[#allocation4 + $0x94] sm:$0xf] %vm940, 0
        %5403 = vst.msk [vmem:[#allocation4 + $0x98] sm:$0x1] %vm943, 0
        %5404 = vst.msk [vmem:[#allocation4 + $0x9c] sm:$0xf] %vm940, 0
        %5405 = vst.msk [vmem:[#allocation4 + $0xa0] sm:$0xf] %vm940, 0
        %5406 = vst.msk [vmem:[#allocation4 + $0xa4] sm:$0x1] %vm943, 0
        %5407 = vst.msk [vmem:[#allocation4 + $0xa8] sm:$0xf] %vm940, 0
        %5408 = vst.msk [vmem:[#allocation4 + $0xac] sm:$0xf] %vm940, 0
        %5409 = vst.msk [vmem:[#allocation4 + $0xb0] sm:$0x1] %vm943, 0
        %5410 = vst.msk [vmem:[#allocation4 + $0xb4] sm:$0xf] %vm940, 0
        %5411 = vst.msk [vmem:[#allocation4 + $0xb8] sm:$0xf] %vm940, 0
        %5412 = vst.msk [vmem:[#allocation4 + $0xbc] sm:$0x1] %vm943, 0
        %5413 = vst.msk [vmem:[#allocation4 + $0xc0] sm:$0xf] %vm940, 0
        %5414 = vst.msk [vmem:[#allocation4 + $0xc4] sm:$0xf] %vm940, 0
        %5415 = vst.msk [vmem:[#allocation4 + $0xc8] sm:$0x1] %vm943, 0
        %5416 = vst.msk [vmem:[#allocation4 + $0xcc] sm:$0xf] %vm940, 0
        %5417 = vst.msk [vmem:[#allocation4 + $0xd0] sm:$0xf] %vm940, 0
        %5418 = vst.msk [vmem:[#allocation4 + $0xd4] sm:$0x1] %vm943, 0
        %v5419 = vpack.c.bf16 %v440, %v440
        %v5420 = vpack.c.bf16 %v441, %v441
        %v5421 = vpack.c.bf16 %v442, %v442
        %v5422 = vpack.c.bf16 %v443, %v443
        %v5423 = vpack.c.bf16 %v444, %v444
        %v5424 = vpack.c.bf16 %v445, %v445
        %v5425 = vpack.c.bf16 %v446, %v446
        %v5426 = vpack.c.bf16 %v447, %v447
        %v5427 = vpack.c.bf16 %v448, %v448
        %v5428 = vpack.c.bf16 %v449, %v449
        %v5429 = vpack.c.bf16 %v450, %v450
        %v5430 = vpack.c.bf16 %v451, %v451
        %v5431 = vpack.c.bf16 %v452, %v452
        %v5432 = vpack.c.bf16 %v453, %v453
        %v5433 = vpack.c.bf16 %v454, %v454
        %v5434 = vpack.c.bf16 %v455, %v455
        %v5435 = vpack.c.bf16 %v456, %v456
        %v5436 = vpack.c.bf16 %v457, %v457
        %v5437 = vpack.c.bf16 %v458, %v458
        %v5438 = vpack.c.bf16 %v459, %v459
        %v5439 = vpack.c.bf16 %v460, %v460
        %v5440 = vpack.c.bf16 %v461, %v461
        %v5441 = vpack.c.bf16 %v462, %v462
        %v5442 = vpack.c.bf16 %v463, %v463
        %v5443 = vpack.c.bf16 %v464, %v464
        %v5444 = vpack.c.bf16 %v465, %v465
        %v5445 = vpack.c.bf16 %v466, %v466
        %v5446 = vpack.c.bf16 %v467, %v467
        %v5447 = vpack.c.bf16 %v468, %v468
        %v5448 = vpack.c.bf16 %v469, %v469
        %v5449 = vpack.c.bf16 %v470, %v470
        %v5450 = vpack.c.bf16 %v471, %v471
        %v5452 = vshrl.u32 %v5419, 16
        %v5454 = vrot.slane %v5452, 7
        %v5455 = vshll.u32 %v5419, 16
        %v5457 = vor.u32 %v5454, %v5455
        %v5458 = vrot.slane %v5454, 4
        %v5460 = vshrl.u32 %v5420, 16
        %v5462 = vrot.slane %v5460, 7
        %v5463 = vshll.u32 %v5420, 16
        %v5465 = vor.u32 %v5462, %v5463
        %v5466 = vsel %vm1030, %v5458, %v5465
        %v5467 = vrot.slane %v5462, 4
        %v5469 = vshrl.u32 %v5421, 16
        %v5471 = vrot.slane %v5469, 7
        %v5472 = vshll.u32 %v5421, 16
        %v5474 = vor.u32 %v5471, %v5472
        %v5475 = vrot.slane %v5471, 4
        %v5477 = vshrl.u32 %v5422, 16
        %v5479 = vrot.slane %v5477, 7
        %v5480 = vshll.u32 %v5422, 16
        %v5482 = vor.u32 %v5479, %v5480
        %v5483 = vsel %vm1030, %v5475, %v5482
        %v5484 = vrot.slane %v5479, 4
        %v5486 = vshrl.u32 %v5423, 16
        %v5488 = vrot.slane %v5486, 7
        %v5489 = vshll.u32 %v5423, 16
        %v5491 = vor.u32 %v5488, %v5489
        %v5492 = vrot.slane %v5488, 4
        %v5494 = vshrl.u32 %v5424, 16
        %v5496 = vrot.slane %v5494, 7
        %v5497 = vshll.u32 %v5424, 16
        %v5499 = vor.u32 %v5496, %v5497
        %v5500 = vsel %vm1030, %v5492, %v5499
        %v5501 = vrot.slane %v5496, 4
        %v5503 = vshrl.u32 %v5425, 16
        %v5505 = vrot.slane %v5503, 7
        %v5506 = vshll.u32 %v5425, 16
        %v5508 = vor.u32 %v5505, %v5506
        %v5509 = vrot.slane %v5505, 4
        %v5511 = vshrl.u32 %v5426, 16
        %v5513 = vrot.slane %v5511, 7
        %v5514 = vshll.u32 %v5426, 16
        %v5516 = vor.u32 %v5513, %v5514
        %v5517 = vsel %vm1030, %v5509, %v5516
        %v5518 = vrot.slane %v5513, 4
        %v5520 = vshrl.u32 %v5427, 16
        %v5522 = vrot.slane %v5520, 7
        %v5523 = vshll.u32 %v5427, 16
        %v5525 = vor.u32 %v5522, %v5523
        %v5526 = vrot.slane %v5522, 4
        %v5528 = vshrl.u32 %v5428, 16
        %v5530 = vrot.slane %v5528, 7
        %v5531 = vshll.u32 %v5428, 16
        %v5533 = vor.u32 %v5530, %v5531
        %v5534 = vsel %vm1030, %v5526, %v5533
        %v5535 = vrot.slane %v5530, 4
        %v5537 = vshrl.u32 %v5429, 16
        %v5539 = vrot.slane %v5537, 7
        %v5540 = vshll.u32 %v5429, 16
        %v5542 = vor.u32 %v5539, %v5540
        %v5543 = vrot.slane %v5539, 4
        %v5545 = vshrl.u32 %v5430, 16
        %v5547 = vrot.slane %v5545, 7
        %v5548 = vshll.u32 %v5430, 16
        %v5550 = vor.u32 %v5547, %v5548
        %v5551 = vsel %vm1030, %v5543, %v5550
        %v5552 = vrot.slane %v5547, 4
        %v5554 = vshrl.u32 %v5431, 16
        %v5556 = vrot.slane %v5554, 7
        %v5557 = vshll.u32 %v5431, 16
        %v5559 = vor.u32 %v5556, %v5557
        %v5560 = vrot.slane %v5556, 4
        %v5562 = vshrl.u32 %v5432, 16
        %v5564 = vrot.slane %v5562, 7
        %v5565 = vshll.u32 %v5432, 16
        %v5567 = vor.u32 %v5564, %v5565
        %v5568 = vsel %vm1030, %v5560, %v5567
        %v5569 = vrot.slane %v5564, 4
        %v5571 = vshrl.u32 %v5433, 16
        %v5573 = vrot.slane %v5571, 7
        %v5574 = vshll.u32 %v5433, 16
        %v5576 = vor.u32 %v5573, %v5574
        %v5577 = vrot.slane %v5573, 4
        %v5579 = vshrl.u32 %v5434, 16
        %v5581 = vrot.slane %v5579, 7
        %v5582 = vshll.u32 %v5434, 16
        %v5584 = vor.u32 %v5581, %v5582
        %v5585 = vsel %vm1030, %v5577, %v5584
        %v5586 = vrot.slane %v5581, 4
        %v5588 = vshrl.u32 %v5435, 16
        %v5590 = vrot.slane %v5588, 7
        %v5591 = vshll.u32 %v5435, 16
        %v5593 = vor.u32 %v5590, %v5591
        %v5594 = vrot.slane %v5590, 4
        %v5596 = vshrl.u32 %v5436, 16
        %v5598 = vrot.slane %v5596, 7
        %v5599 = vshll.u32 %v5436, 16
        %v5601 = vor.u32 %v5598, %v5599
        %v5602 = vsel %vm1030, %v5594, %v5601
        %v5603 = vrot.slane %v5598, 4
        %v5605 = vshrl.u32 %v5437, 16
        %v5607 = vrot.slane %v5605, 7
        %v5608 = vshll.u32 %v5437, 16
        %v5610 = vor.u32 %v5607, %v5608
        %v5611 = vrot.slane %v5607, 4
        %v5613 = vshrl.u32 %v5438, 16
        %v5615 = vrot.slane %v5613, 7
        %v5616 = vshll.u32 %v5438, 16
        %v5618 = vor.u32 %v5615, %v5616
        %v5619 = vsel %vm1030, %v5611, %v5618
        %v5620 = vrot.slane %v5615, 4
        %v5622 = vshrl.u32 %v5439, 16
        %v5624 = vrot.slane %v5622, 7
        %v5625 = vshll.u32 %v5439, 16
        %v5627 = vor.u32 %v5624, %v5625
        %v5628 = vrot.slane %v5624, 4
        %v5630 = vshrl.u32 %v5440, 16
        %v5632 = vrot.slane %v5630, 7
        %v5633 = vshll.u32 %v5440, 16
        %v5635 = vor.u32 %v5632, %v5633
        %v5636 = vsel %vm1030, %v5628, %v5635
        %v5637 = vrot.slane %v5632, 4
        %v5639 = vshrl.u32 %v5441, 16
        %v5641 = vrot.slane %v5639, 7
        %v5642 = vshll.u32 %v5441, 16
        %v5644 = vor.u32 %v5641, %v5642
        %v5645 = vrot.slane %v5641, 4
        %v5647 = vshrl.u32 %v5442, 16
        %v5649 = vrot.slane %v5647, 7
        %v5650 = vshll.u32 %v5442, 16
        %v5652 = vor.u32 %v5649, %v5650
        %v5653 = vsel %vm1030, %v5645, %v5652
        %v5654 = vrot.slane %v5649, 4
        %v5656 = vshrl.u32 %v5443, 16
        %v5658 = vrot.slane %v5656, 7
        %v5659 = vshll.u32 %v5443, 16
        %v5661 = vor.u32 %v5658, %v5659
        %v5662 = vrot.slane %v5658, 4
        %v5664 = vshrl.u32 %v5444, 16
        %v5666 = vrot.slane %v5664, 7
        %v5667 = vshll.u32 %v5444, 16
        %v5669 = vor.u32 %v5666, %v5667
        %v5670 = vsel %vm1030, %v5662, %v5669
        %v5671 = vrot.slane %v5666, 4
        %v5673 = vshrl.u32 %v5445, 16
        %v5675 = vrot.slane %v5673, 7
        %v5676 = vshll.u32 %v5445, 16
        %v5678 = vor.u32 %v5675, %v5676
        %v5679 = vrot.slane %v5675, 4
        %v5681 = vshrl.u32 %v5446, 16
        %v5683 = vrot.slane %v5681, 7
        %v5684 = vshll.u32 %v5446, 16
        %v5686 = vor.u32 %v5683, %v5684
        %v5687 = vsel %vm1030, %v5679, %v5686
        %v5688 = vrot.slane %v5683, 4
        %v5690 = vshrl.u32 %v5447, 16
        %v5692 = vrot.slane %v5690, 7
        %v5693 = vshll.u32 %v5447, 16
        %v5695 = vor.u32 %v5692, %v5693
        %v5696 = vrot.slane %v5692, 4
        %v5698 = vshrl.u32 %v5448, 16
        %v5700 = vrot.slane %v5698, 7
        %v5701 = vshll.u32 %v5448, 16
        %v5703 = vor.u32 %v5700, %v5701
        %v5704 = vsel %vm1030, %v5696, %v5703
        %v5705 = vrot.slane %v5700, 4
        %v5707 = vshrl.u32 %v5449, 16
        %v5709 = vrot.slane %v5707, 7
        %v5710 = vshll.u32 %v5449, 16
        %v5712 = vor.u32 %v5709, %v5710
        %v5713 = vrot.slane %v5709, 4
        %v5715 = vshrl.u32 %v5450, 16
        %v5717 = vrot.slane %v5715, 7
        %v5718 = vshll.u32 %v5450, 16
        %v5720 = vor.u32 %v5717, %v5718
        %v5721 = vsel %vm1030, %v5713, %v5720
        %v5722 = vrot.slane %v5717, 4
        %s5771 = scalar_lea.vmem [#allocation4], 12
        %v5772 = vld [vmem:[%s5771] sm:$0xf]
        %v5773 = vsel %vm1354, %v5457, %v5772
        %5774 = vst [vmem:[%s5771] sm:$0xf] %v5773
        %5775 = vst.msk [vmem:[%s5771 + $0x4] sm:$0xf] %vm940, %v5466
        %v5776 = vld [vmem:[%s5771 + $0x8] sm:$0x1]
        %v5777 = vsel %vm1360, %v5467, %v5776
        %5778 = vst [vmem:[%s5771 + $0x8] sm:$0x1] %v5777
        %v5779 = vld [vmem:[%s5771 + $0xc] sm:$0xf]
        %v5780 = vsel %vm1354, %v5474, %v5779
        %5781 = vst [vmem:[%s5771 + $0xc] sm:$0xf] %v5780
        %5782 = vst.msk [vmem:[%s5771 + $0x10] sm:$0xf] %vm940, %v5483
        %v5783 = vld [vmem:[%s5771 + $0x14] sm:$0x1]
        %v5784 = vsel %vm1360, %v5484, %v5783
        %5785 = vst [vmem:[%s5771 + $0x14] sm:$0x1] %v5784
        %v5786 = vld [vmem:[%s5771 + $0x18] sm:$0xf]
        %v5787 = vsel %vm1354, %v5491, %v5786
        %5788 = vst [vmem:[%s5771 + $0x18] sm:$0xf] %v5787
        %5789 = vst.msk [vmem:[%s5771 + $0x1c] sm:$0xf] %vm940, %v5500
        %v5790 = vld [vmem:[%s5771 + $0x20] sm:$0x1]
        %v5791 = vsel %vm1360, %v5501, %v5790
        %5792 = vst [vmem:[%s5771 + $0x20] sm:$0x1] %v5791
        %v5793 = vld [vmem:[%s5771 + $0x24] sm:$0xf]
        %v5794 = vsel %vm1354, %v5508, %v5793
        %5795 = vst [vmem:[%s5771 + $0x24] sm:$0xf] %v5794
        %5796 = vst.msk [vmem:[%s5771 + $0x28] sm:$0xf] %vm940, %v5517
        %v5797 = vld [vmem:[%s5771 + $0x2c] sm:$0x1]
        %v5798 = vsel %vm1360, %v5518, %v5797
        %5799 = vst [vmem:[%s5771 + $0x2c] sm:$0x1] %v5798
        %v5800 = vld [vmem:[%s5771 + $0x30] sm:$0xf]
        %v5801 = vsel %vm1354, %v5525, %v5800
        %5802 = vst [vmem:[%s5771 + $0x30] sm:$0xf] %v5801
        %5803 = vst.msk [vmem:[%s5771 + $0x34] sm:$0xf] %vm940, %v5534
        %v5804 = vld [vmem:[%s5771 + $0x38] sm:$0x1]
        %v5805 = vsel %vm1360, %v5535, %v5804
        %5806 = vst [vmem:[%s5771 + $0x38] sm:$0x1] %v5805
        %v5807 = vld [vmem:[%s5771 + $0x3c] sm:$0xf]
        %v5808 = vsel %vm1354, %v5542, %v5807
        %5809 = vst [vmem:[%s5771 + $0x3c] sm:$0xf] %v5808
        %5810 = vst.msk [vmem:[%s5771 + $0x40] sm:$0xf] %vm940, %v5551
        %v5811 = vld [vmem:[%s5771 + $0x44] sm:$0x1]
        %v5812 = vsel %vm1360, %v5552, %v5811
        %5813 = vst [vmem:[%s5771 + $0x44] sm:$0x1] %v5812
        %v5814 = vld [vmem:[%s5771 + $0x48] sm:$0xf]
        %v5815 = vsel %vm1354, %v5559, %v5814
        %5816 = vst [vmem:[%s5771 + $0x48] sm:$0xf] %v5815
        %5817 = vst.msk [vmem:[%s5771 + $0x4c] sm:$0xf] %vm940, %v5568
        %v5818 = vld [vmem:[%s5771 + $0x50] sm:$0x1]
        %v5819 = vsel %vm1360, %v5569, %v5818
        %5820 = vst [vmem:[%s5771 + $0x50] sm:$0x1] %v5819
        %v5821 = vld [vmem:[%s5771 + $0x54] sm:$0xf]
        %v5822 = vsel %vm1354, %v5576, %v5821
        %5823 = vst [vmem:[%s5771 + $0x54] sm:$0xf] %v5822
        %5824 = vst.msk [vmem:[%s5771 + $0x58] sm:$0xf] %vm940, %v5585
        %v5825 = vld [vmem:[%s5771 + $0x5c] sm:$0x1]
        %v5826 = vsel %vm1360, %v5586, %v5825
        %5827 = vst [vmem:[%s5771 + $0x5c] sm:$0x1] %v5826
        %v5828 = vld [vmem:[%s5771 + $0x60] sm:$0xf]
        %v5829 = vsel %vm1354, %v5593, %v5828
        %5830 = vst [vmem:[%s5771 + $0x60] sm:$0xf] %v5829
        %5831 = vst.msk [vmem:[%s5771 + $0x64] sm:$0xf] %vm940, %v5602
        %v5832 = vld [vmem:[%s5771 + $0x68] sm:$0x1]
        %v5833 = vsel %vm1360, %v5603, %v5832
        %5834 = vst [vmem:[%s5771 + $0x68] sm:$0x1] %v5833
        %v5835 = vld [vmem:[%s5771 + $0x6c] sm:$0xf]
        %v5836 = vsel %vm1354, %v5610, %v5835
        %5837 = vst [vmem:[%s5771 + $0x6c] sm:$0xf] %v5836
        %5838 = vst.msk [vmem:[%s5771 + $0x70] sm:$0xf] %vm940, %v5619
        %v5839 = vld [vmem:[%s5771 + $0x74] sm:$0x1]
        %v5840 = vsel %vm1360, %v5620, %v5839
        %5841 = vst [vmem:[%s5771 + $0x74] sm:$0x1] %v5840
        %v5842 = vld [vmem:[%s5771 + $0x78] sm:$0xf]
        %v5843 = vsel %vm1354, %v5627, %v5842
        %5844 = vst [vmem:[%s5771 + $0x78] sm:$0xf] %v5843
        %5845 = vst.msk [vmem:[%s5771 + $0x7c] sm:$0xf] %vm940, %v5636
        %v5846 = vld [vmem:[%s5771 + $0x80] sm:$0x1]
        %v5847 = vsel %vm1360, %v5637, %v5846
        %5848 = vst [vmem:[%s5771 + $0x80] sm:$0x1] %v5847
        %v5849 = vld [vmem:[%s5771 + $0x84] sm:$0xf]
        %v5850 = vsel %vm1354, %v5644, %v5849
        %5851 = vst [vmem:[%s5771 + $0x84] sm:$0xf] %v5850
        %5852 = vst.msk [vmem:[%s5771 + $0x88] sm:$0xf] %vm940, %v5653
        %v5853 = vld [vmem:[%s5771 + $0x8c] sm:$0x1]
        %v5854 = vsel %vm1360, %v5654, %v5853
        %5855 = vst [vmem:[%s5771 + $0x8c] sm:$0x1] %v5854
        %v5856 = vld [vmem:[%s5771 + $0x90] sm:$0xf]
        %v5857 = vsel %vm1354, %v5661, %v5856
        %5858 = vst [vmem:[%s5771 + $0x90] sm:$0xf] %v5857
        %5859 = vst.msk [vmem:[%s5771 + $0x94] sm:$0xf] %vm940, %v5670
        %v5860 = vld [vmem:[%s5771 + $0x98] sm:$0x1]
        %v5861 = vsel %vm1360, %v5671, %v5860
        %5862 = vst [vmem:[%s5771 + $0x98] sm:$0x1] %v5861
        %v5863 = vld [vmem:[%s5771 + $0x9c] sm:$0xf]
        %v5864 = vsel %vm1354, %v5678, %v5863
        %5865 = vst [vmem:[%s5771 + $0x9c] sm:$0xf] %v5864
        %5866 = vst.msk [vmem:[%s5771 + $0xa0] sm:$0xf] %vm940, %v5687
        %v5867 = vld [vmem:[%s5771 + $0xa4] sm:$0x1]
        %v5868 = vsel %vm1360, %v5688, %v5867
        %5869 = vst [vmem:[%s5771 + $0xa4] sm:$0x1] %v5868
        %v5870 = vld [vmem:[%s5771 + $0xa8] sm:$0xf]
        %v5871 = vsel %vm1354, %v5695, %v5870
        %5872 = vst [vmem:[%s5771 + $0xa8] sm:$0xf] %v5871
        %5873 = vst.msk [vmem:[%s5771 + $0xac] sm:$0xf] %vm940, %v5704
        %v5874 = vld [vmem:[%s5771 + $0xb0] sm:$0x1]
        %v5875 = vsel %vm1360, %v5705, %v5874
        %5876 = vst [vmem:[%s5771 + $0xb0] sm:$0x1] %v5875
        %v5877 = vld [vmem:[%s5771 + $0xb4] sm:$0xf]
        %v5878 = vsel %vm1354, %v5712, %v5877
        %5879 = vst [vmem:[%s5771 + $0xb4] sm:$0xf] %v5878
        %5880 = vst.msk [vmem:[%s5771 + $0xb8] sm:$0xf] %vm940, %v5721
        %v5881 = vld [vmem:[%s5771 + $0xbc] sm:$0x1]
        %v5882 = vsel %vm1360, %v5722, %v5881
        %5883 = vst [vmem:[%s5771 + $0xbc] sm:$0x1] %v5882
        %v5884 = vld [vmem:[#allocation4] sm:$0xf]
        %v5885 = vld [vmem:[#allocation4 + $0x4] sm:$0xf]
        %v5886 = vld [vmem:[#allocation4 + $0x8] sm:$0x1]
        %v5887 = vld [vmem:[#allocation4 + $0xc] sm:$0xf]
        %v5888 = vld [vmem:[#allocation4 + $0x10] sm:$0xf]
        %v5889 = vld [vmem:[#allocation4 + $0x14] sm:$0x1]
        %v5890 = vld [vmem:[#allocation4 + $0x18] sm:$0xf]
        %v5891 = vld [vmem:[#allocation4 + $0x1c] sm:$0xf]
        %v5892 = vld [vmem:[#allocation4 + $0x20] sm:$0x1]
        %v5893 = vld [vmem:[#allocation4 + $0x24] sm:$0xf]
        %v5894 = vld [vmem:[#allocation4 + $0x28] sm:$0xf]
        %v5895 = vld [vmem:[#allocation4 + $0x2c] sm:$0x1]
        %v5896 = vld [vmem:[#allocation4 + $0x30] sm:$0xf]
        %v5897 = vld [vmem:[#allocation4 + $0x34] sm:$0xf]
        %v5898 = vld [vmem:[#allocation4 + $0x38] sm:$0x1]
        %v5899 = vld [vmem:[#allocation4 + $0x3c] sm:$0xf]
        %v5900 = vld [vmem:[#allocation4 + $0x40] sm:$0xf]
        %v5901 = vld [vmem:[#allocation4 + $0x44] sm:$0x1]
        %v5902 = vld [vmem:[#allocation4 + $0x48] sm:$0xf]
        %v5903 = vld [vmem:[#allocation4 + $0x4c] sm:$0xf]
        %v5904 = vld [vmem:[#allocation4 + $0x50] sm:$0x1]
        %v5905 = vld [vmem:[#allocation4 + $0x54] sm:$0xf]
        %v5906 = vld [vmem:[#allocation4 + $0x58] sm:$0xf]
        %v5907 = vld [vmem:[#allocation4 + $0x5c] sm:$0x1]
        %v5908 = vld [vmem:[#allocation4 + $0x60] sm:$0xf]
        %v5909 = vld [vmem:[#allocation4 + $0x64] sm:$0xf]
        %v5910 = vld [vmem:[#allocation4 + $0x68] sm:$0x1]
        %v5911 = vld [vmem:[#allocation4 + $0x6c] sm:$0xf]
        %v5912 = vld [vmem:[#allocation4 + $0x70] sm:$0xf]
        %v5913 = vld [vmem:[#allocation4 + $0x74] sm:$0x1]
        %v5914 = vld [vmem:[#allocation4 + $0x78] sm:$0xf]
        %v5915 = vld [vmem:[#allocation4 + $0x7c] sm:$0xf]
        %v5916 = vld [vmem:[#allocation4 + $0x80] sm:$0x1]
        %v5917 = vld [vmem:[#allocation4 + $0x84] sm:$0xf]
        %v5918 = vld [vmem:[#allocation4 + $0x88] sm:$0xf]
        %v5919 = vld [vmem:[#allocation4 + $0x8c] sm:$0x1]
        %v5920 = vld [vmem:[#allocation4 + $0x90] sm:$0xf]
        %v5921 = vld [vmem:[#allocation4 + $0x94] sm:$0xf]
        %v5922 = vld [vmem:[#allocation4 + $0x98] sm:$0x1]
        %v5923 = vld [vmem:[#allocation4 + $0x9c] sm:$0xf]
        %v5924 = vld [vmem:[#allocation4 + $0xa0] sm:$0xf]
        %v5925 = vld [vmem:[#allocation4 + $0xa4] sm:$0x1]
        %v5926 = vld [vmem:[#allocation4 + $0xa8] sm:$0xf]
        %v5927 = vld [vmem:[#allocation4 + $0xac] sm:$0xf]
        %v5928 = vld [vmem:[#allocation4 + $0xb0] sm:$0x1]
        %v5929 = vld [vmem:[#allocation4 + $0xb4] sm:$0xf]
        %v5930 = vld [vmem:[#allocation4 + $0xb8] sm:$0xf]
        %v5931 = vld [vmem:[#allocation4 + $0xbc] sm:$0x1]
        %v5932 = vld [vmem:[#allocation4 + $0xc0] sm:$0xf]
        %v5933 = vld [vmem:[#allocation4 + $0xc4] sm:$0xf]
        %v5934 = vld [vmem:[#allocation4 + $0xc8] sm:$0x1]
        %v5935 = vld [vmem:[#allocation4 + $0xcc] sm:$0xf]
        %v5936 = vld [vmem:[#allocation4 + $0xd0] sm:$0xf]
        %v5937 = vld [vmem:[#allocation4 + $0xd4] sm:$0x1]
        %v5970 = vunpack.c.l.b16 %v5884
        %v5971 = vunpack.c.l.b16 %v5885
        %v5972 = vunpack.c.l.b16 %v5887
        %v5973 = vunpack.c.l.b16 %v5888
        %v5974 = vunpack.c.l.b16 %v5890
        %v5975 = vunpack.c.l.b16 %v5891
        %v5976 = vunpack.c.l.b16 %v5893
        %v5977 = vunpack.c.l.b16 %v5894
        %v5978 = vunpack.c.l.b16 %v5896
        %v5979 = vunpack.c.l.b16 %v5897
        %v5980 = vunpack.c.l.b16 %v5899
        %v5981 = vunpack.c.l.b16 %v5900
        %v5982 = vunpack.c.l.b16 %v5902
        %v5983 = vunpack.c.l.b16 %v5903
        %v5984 = vunpack.c.l.b16 %v5905
        %v5985 = vunpack.c.l.b16 %v5906
        %v5986 = vunpack.c.l.b16 %v5908
        %v5987 = vunpack.c.l.b16 %v5909
        %v5988 = vunpack.c.l.b16 %v5911
        %v5989 = vunpack.c.l.b16 %v5912
        %v5990 = vunpack.c.l.b16 %v5914
        %v5991 = vunpack.c.l.b16 %v5915
        %v5992 = vunpack.c.l.b16 %v5917
        %v5993 = vunpack.c.l.b16 %v5918
        %v5994 = vunpack.c.l.b16 %v5920
        %v5995 = vunpack.c.l.b16 %v5921
        %v5996 = vunpack.c.l.b16 %v5923
        %v5997 = vunpack.c.l.b16 %v5924
        %v5998 = vunpack.c.l.b16 %v5926
        %v5999 = vunpack.c.l.b16 %v5927
        %v6000 = vunpack.c.l.b16 %v5929
        %v6001 = vunpack.c.l.b16 %v5930
        %v6002 = vpack.c.b16 %v5971, %v5970
        %v6003 = vpack.c.b16 %v5973, %v5972
        %v6004 = vpack.c.b16 %v5975, %v5974
        %v6005 = vpack.c.b16 %v5977, %v5976
        %v6006 = vpack.c.b16 %v5979, %v5978
        %v6007 = vpack.c.b16 %v5981, %v5980
        %v6008 = vpack.c.b16 %v5983, %v5982
        %v6009 = vpack.c.b16 %v5985, %v5984
        %v6010 = vpack.c.b16 %v5987, %v5986
        %v6011 = vpack.c.b16 %v5989, %v5988
        %v6012 = vpack.c.b16 %v5991, %v5990
        %v6013 = vpack.c.b16 %v5993, %v5992
        %v6014 = vpack.c.b16 %v5995, %v5994
        %v6015 = vpack.c.b16 %v5997, %v5996
        %v6016 = vpack.c.b16 %v5999, %v5998
        %v6017 = vpack.c.b16 %v6001, %v6000
        %v6034 = vunpack.c.l.b16 %v5886
        %v6035 = vunpack.c.l.b16 %v5889
        %v6036 = vunpack.c.l.b16 %v5892
        %v6037 = vunpack.c.l.b16 %v5895
        %v6038 = vunpack.c.l.b16 %v5898
        %v6039 = vunpack.c.l.b16 %v5901
        %v6040 = vunpack.c.l.b16 %v5904
        %v6041 = vunpack.c.l.b16 %v5907
        %v6042 = vunpack.c.l.b16 %v5910
        %v6043 = vunpack.c.l.b16 %v5913
        %v6044 = vunpack.c.l.b16 %v5916
        %v6045 = vunpack.c.l.b16 %v5919
        %v6046 = vunpack.c.l.b16 %v5922
        %v6047 = vunpack.c.l.b16 %v5925
        %v6048 = vunpack.c.l.b16 %v5928
        %v6049 = vunpack.c.l.b16 %v5931
        %v6050 = vpack.c.b16 %v6034, %v6034
        %v6051 = vpack.c.b16 %v6035, %v6035
        %v6052 = vpack.c.b16 %v6036, %v6036
        %v6053 = vpack.c.b16 %v6037, %v6037
        %v6054 = vpack.c.b16 %v6038, %v6038
        %v6055 = vpack.c.b16 %v6039, %v6039
        %v6056 = vpack.c.b16 %v6040, %v6040
        %v6057 = vpack.c.b16 %v6041, %v6041
        %v6058 = vpack.c.b16 %v6042, %v6042
        %v6059 = vpack.c.b16 %v6043, %v6043
        %v6060 = vpack.c.b16 %v6044, %v6044
        %v6061 = vpack.c.b16 %v6045, %v6045
        %v6062 = vpack.c.b16 %v6046, %v6046
        %v6063 = vpack.c.b16 %v6047, %v6047
        %v6064 = vpack.c.b16 %v6048, %v6048
        %v6065 = vpack.c.b16 %v6049, %v6049
        %v6067 = vshrl.u32 %v6002, 16
        %v6069 = vshll.u32 %v6002, 16
        %v6071 = vrot.slane %v6069, 1
        %v6072 = vor.u32 %v6067, %v6071
        %v6074 = vshll.u32 %v6050, 16
        %v6076 = vrot.slane %v6074, 1
        %v6077 = vsel %vm1651, %v6072, %v6076
        %v6079 = vshrl.u32 %v6003, 16
        %v6081 = vshll.u32 %v6003, 16
        %v6083 = vrot.slane %v6081, 1
        %v6084 = vor.u32 %v6079, %v6083
        %v6086 = vshll.u32 %v6051, 16
        %v6088 = vrot.slane %v6086, 1
        %v6089 = vsel %vm1651, %v6084, %v6088
        %v6091 = vshrl.u32 %v6004, 16
        %v6093 = vshll.u32 %v6004, 16
        %v6095 = vrot.slane %v6093, 1
        %v6096 = vor.u32 %v6091, %v6095
        %v6098 = vshll.u32 %v6052, 16
        %v6100 = vrot.slane %v6098, 1
        %v6101 = vsel %vm1651, %v6096, %v6100
        %v6103 = vshrl.u32 %v6005, 16
        %v6105 = vshll.u32 %v6005, 16
        %v6107 = vrot.slane %v6105, 1
        %v6108 = vor.u32 %v6103, %v6107
        %v6110 = vshll.u32 %v6053, 16
        %v6112 = vrot.slane %v6110, 1
        %v6113 = vsel %vm1651, %v6108, %v6112
        %v6115 = vshrl.u32 %v6006, 16
        %v6117 = vshll.u32 %v6006, 16
        %v6119 = vrot.slane %v6117, 1
        %v6120 = vor.u32 %v6115, %v6119
        %v6122 = vshll.u32 %v6054, 16
        %v6124 = vrot.slane %v6122, 1
        %v6125 = vsel %vm1651, %v6120, %v6124
        %v6127 = vshrl.u32 %v6007, 16
        %v6129 = vshll.u32 %v6007, 16
        %v6131 = vrot.slane %v6129, 1
        %v6132 = vor.u32 %v6127, %v6131
        %v6134 = vshll.u32 %v6055, 16
        %v6136 = vrot.slane %v6134, 1
        %v6137 = vsel %vm1651, %v6132, %v6136
        %v6139 = vshrl.u32 %v6008, 16
        %v6141 = vshll.u32 %v6008, 16
        %v6143 = vrot.slane %v6141, 1
        %v6144 = vor.u32 %v6139, %v6143
        %v6146 = vshll.u32 %v6056, 16
        %v6148 = vrot.slane %v6146, 1
        %v6149 = vsel %vm1651, %v6144, %v6148
        %v6151 = vshrl.u32 %v6009, 16
        %v6153 = vshll.u32 %v6009, 16
        %v6155 = vrot.slane %v6153, 1
        %v6156 = vor.u32 %v6151, %v6155
        %v6158 = vshll.u32 %v6057, 16
        %v6160 = vrot.slane %v6158, 1
        %v6161 = vsel %vm1651, %v6156, %v6160
        %v6163 = vshrl.u32 %v6010, 16
        %v6165 = vshll.u32 %v6010, 16
        %v6167 = vrot.slane %v6165, 1
        %v6168 = vor.u32 %v6163, %v6167
        %v6170 = vshll.u32 %v6058, 16
        %v6172 = vrot.slane %v6170, 1
        %v6173 = vsel %vm1651, %v6168, %v6172
        %v6175 = vshrl.u32 %v6011, 16
        %v6177 = vshll.u32 %v6011, 16
        %v6179 = vrot.slane %v6177, 1
        %v6180 = vor.u32 %v6175, %v6179
        %v6182 = vshll.u32 %v6059, 16
        %v6184 = vrot.slane %v6182, 1
        %v6185 = vsel %vm1651, %v6180, %v6184
        %v6187 = vshrl.u32 %v6012, 16
        %v6189 = vshll.u32 %v6012, 16
        %v6191 = vrot.slane %v6189, 1
        %v6192 = vor.u32 %v6187, %v6191
        %v6194 = vshll.u32 %v6060, 16
        %v6196 = vrot.slane %v6194, 1
        %v6197 = vsel %vm1651, %v6192, %v6196
        %v6199 = vshrl.u32 %v6013, 16
        %v6201 = vshll.u32 %v6013, 16
        %v6203 = vrot.slane %v6201, 1
        %v6204 = vor.u32 %v6199, %v6203
        %v6206 = vshll.u32 %v6061, 16
        %v6208 = vrot.slane %v6206, 1
        %v6209 = vsel %vm1651, %v6204, %v6208
        %v6211 = vshrl.u32 %v6014, 16
        %v6213 = vshll.u32 %v6014, 16
        %v6215 = vrot.slane %v6213, 1
        %v6216 = vor.u32 %v6211, %v6215
        %v6218 = vshll.u32 %v6062, 16
        %v6220 = vrot.slane %v6218, 1
        %v6221 = vsel %vm1651, %v6216, %v6220
        %v6223 = vshrl.u32 %v6015, 16
        %v6225 = vshll.u32 %v6015, 16
        %v6227 = vrot.slane %v6225, 1
        %v6228 = vor.u32 %v6223, %v6227
        %v6230 = vshll.u32 %v6063, 16
        %v6232 = vrot.slane %v6230, 1
        %v6233 = vsel %vm1651, %v6228, %v6232
        %v6235 = vshrl.u32 %v6016, 16
        %v6237 = vshll.u32 %v6016, 16
        %v6239 = vrot.slane %v6237, 1
        %v6240 = vor.u32 %v6235, %v6239
        %v6242 = vshll.u32 %v6064, 16
        %v6244 = vrot.slane %v6242, 1
        %v6245 = vsel %vm1651, %v6240, %v6244
        %v6247 = vshrl.u32 %v6017, 16
        %v6249 = vshll.u32 %v6017, 16
        %v6251 = vrot.slane %v6249, 1
        %v6252 = vor.u32 %v6247, %v6251
        %v6254 = vshll.u32 %v6065, 16
        %v6256 = vrot.slane %v6254, 1
        %v6257 = vsel %vm1651, %v6252, %v6256
        %6258 = vrot.lane.b32.xlu0 %v6077, 32
        %v6259 = vpop.permute.xlu0 %6258
        %6260 = vrot.lane.b32.xlu0 %v6089, 32
        %v6261 = vpop.permute.xlu0 %6260
        %6262 = vrot.lane.b32.xlu0 %v6101, 32
        %v6263 = vpop.permute.xlu0 %6262
        %6264 = vrot.lane.b32.xlu0 %v6113, 32
        %v6265 = vpop.permute.xlu0 %6264
        %6266 = vrot.lane.b32.xlu0 %v6125, 32
        %v6267 = vpop.permute.xlu0 %6266
        %6268 = vrot.lane.b32.xlu0 %v6137, 32
        %v6269 = vpop.permute.xlu0 %6268
        %6270 = vrot.lane.b32.xlu0 %v6149, 32
        %v6271 = vpop.permute.xlu0 %6270
        %6272 = vrot.lane.b32.xlu0 %v6161, 32
        %v6273 = vpop.permute.xlu0 %6272
        %6274 = vrot.lane.b32.xlu0 %v6173, 32
        %v6275 = vpop.permute.xlu0 %6274
        %6276 = vrot.lane.b32.xlu0 %v6185, 32
        %v6277 = vpop.permute.xlu0 %6276
        %6278 = vrot.lane.b32.xlu0 %v6197, 32
        %v6279 = vpop.permute.xlu0 %6278
        %6280 = vrot.lane.b32.xlu0 %v6209, 32
        %v6281 = vpop.permute.xlu0 %6280
        %6282 = vrot.lane.b32.xlu0 %v6221, 32
        %v6283 = vpop.permute.xlu0 %6282
        %6284 = vrot.lane.b32.xlu0 %v6233, 32
        %v6285 = vpop.permute.xlu0 %6284
        %6286 = vrot.lane.b32.xlu0 %v6245, 32
        %v6287 = vpop.permute.xlu0 %6286
        %6288 = vrot.lane.b32.xlu0 %v6257, 32
        %v6289 = vpop.permute.xlu0 %6288
        %v6290 = vrot.slane %v6002, 1
        %v6291 = vrot.slane %v6050, 1
        %v6292 = vsel %vm1876, %v6290, %v6291
        %v6293 = vrot.slane %v6003, 1
        %v6294 = vrot.slane %v6051, 1
        %v6295 = vsel %vm1876, %v6293, %v6294
        %v6296 = vrot.slane %v6004, 1
        %v6297 = vrot.slane %v6052, 1
        %v6298 = vsel %vm1876, %v6296, %v6297
        %v6299 = vrot.slane %v6005, 1
        %v6300 = vrot.slane %v6053, 1
        %v6301 = vsel %vm1876, %v6299, %v6300
        %v6302 = vrot.slane %v6006, 1
        %v6303 = vrot.slane %v6054, 1
        %v6304 = vsel %vm1876, %v6302, %v6303
        %v6305 = vrot.slane %v6007, 1
        %v6306 = vrot.slane %v6055, 1
        %v6307 = vsel %vm1876, %v6305, %v6306
        %v6308 = vrot.slane %v6008, 1
        %v6309 = vrot.slane %v6056, 1
        %v6310 = vsel %vm1876, %v6308, %v6309
        %v6311 = vrot.slane %v6009, 1
        %v6312 = vrot.slane %v6057, 1
        %v6313 = vsel %vm1876, %v6311, %v6312
        %v6314 = vrot.slane %v6010, 1
        %v6315 = vrot.slane %v6058, 1
        %v6316 = vsel %vm1876, %v6314, %v6315
        %v6317 = vrot.slane %v6011, 1
        %v6318 = vrot.slane %v6059, 1
        %v6319 = vsel %vm1876, %v6317, %v6318
        %v6320 = vrot.slane %v6012, 1
        %v6321 = vrot.slane %v6060, 1
        %v6322 = vsel %vm1876, %v6320, %v6321
        %v6323 = vrot.slane %v6013, 1
        %v6324 = vrot.slane %v6061, 1
        %v6325 = vsel %vm1876, %v6323, %v6324
        %v6326 = vrot.slane %v6014, 1
        %v6327 = vrot.slane %v6062, 1
        %v6328 = vsel %vm1876, %v6326, %v6327
        %v6329 = vrot.slane %v6015, 1
        %v6330 = vrot.slane %v6063, 1
        %v6331 = vsel %vm1876, %v6329, %v6330
        %v6332 = vrot.slane %v6016, 1
        %v6333 = vrot.slane %v6064, 1
        %v6334 = vsel %vm1876, %v6332, %v6333
        %v6335 = vrot.slane %v6017, 1
        %v6336 = vrot.slane %v6065, 1
        %v6337 = vsel %vm1876, %v6335, %v6336
        %6338 = vrot.lane.b32.xlu0 %v6292, 64
        %v6339 = vpop.permute.xlu0 %6338
        %6340 = vrot.lane.b32.xlu0 %v6295, 64
        %v6341 = vpop.permute.xlu0 %6340
        %6342 = vrot.lane.b32.xlu0 %v6298, 64
        %v6343 = vpop.permute.xlu0 %6342
        %6344 = vrot.lane.b32.xlu0 %v6301, 64
        %v6345 = vpop.permute.xlu0 %6344
        %6346 = vrot.lane.b32.xlu0 %v6304, 64
        %v6347 = vpop.permute.xlu0 %6346
        %6348 = vrot.lane.b32.xlu0 %v6307, 64
        %v6349 = vpop.permute.xlu0 %6348
        %6350 = vrot.lane.b32.xlu0 %v6310, 64
        %v6351 = vpop.permute.xlu0 %6350
        %6352 = vrot.lane.b32.xlu0 %v6313, 64
        %v6353 = vpop.permute.xlu0 %6352
        %6354 = vrot.lane.b32.xlu0 %v6316, 64
        %v6355 = vpop.permute.xlu0 %6354
        %6356 = vrot.lane.b32.xlu0 %v6319, 64
        %v6357 = vpop.permute.xlu0 %6356
        %6358 = vrot.lane.b32.xlu0 %v6322, 64
        %v6359 = vpop.permute.xlu0 %6358
        %6360 = vrot.lane.b32.xlu0 %v6325, 64
        %v6361 = vpop.permute.xlu0 %6360
        %6362 = vrot.lane.b32.xlu0 %v6328, 64
        %v6363 = vpop.permute.xlu0 %6362
        %6364 = vrot.lane.b32.xlu0 %v6331, 64
        %v6365 = vpop.permute.xlu0 %6364
        %6366 = vrot.lane.b32.xlu0 %v6334, 64
        %v6367 = vpop.permute.xlu0 %6366
        %6368 = vrot.lane.b32.xlu0 %v6337, 64
        %v6369 = vpop.permute.xlu0 %6368
        %v6372 = vunpack.c.l.b16 %v5932
        %v6373 = vunpack.c.l.b16 %v5933
        %v6374 = vpack.c.b16 %v6373, %v6372
        %6375 = vrot.lane.b32.xlu0 %v6003, 96
        %v6376 = vpop.permute.xlu0 %6375
        %6377 = vrot.lane.b32.xlu0 %v6004, 96
        %v6378 = vpop.permute.xlu0 %6377
        %6379 = vrot.lane.b32.xlu0 %v6005, 96
        %v6380 = vpop.permute.xlu0 %6379
        %6381 = vrot.lane.b32.xlu0 %v6006, 96
        %v6382 = vpop.permute.xlu0 %6381
        %6383 = vrot.lane.b32.xlu0 %v6007, 96
        %v6384 = vpop.permute.xlu0 %6383
        %6385 = vrot.lane.b32.xlu0 %v6008, 96
        %v6386 = vpop.permute.xlu0 %6385
        %6387 = vrot.lane.b32.xlu0 %v6009, 96
        %v6388 = vpop.permute.xlu0 %6387
        %6389 = vrot.lane.b32.xlu0 %v6010, 96
        %v6390 = vpop.permute.xlu0 %6389
        %6391 = vrot.lane.b32.xlu0 %v6011, 96
        %v6392 = vpop.permute.xlu0 %6391
        %6393 = vrot.lane.b32.xlu0 %v6012, 96
        %v6394 = vpop.permute.xlu0 %6393
        %6395 = vrot.lane.b32.xlu0 %v6013, 96
        %v6396 = vpop.permute.xlu0 %6395
        %6397 = vrot.lane.b32.xlu0 %v6014, 96
        %v6398 = vpop.permute.xlu0 %6397
        %6399 = vrot.lane.b32.xlu0 %v6015, 96
        %v6400 = vpop.permute.xlu0 %6399
        %6401 = vrot.lane.b32.xlu0 %v6016, 96
        %v6402 = vpop.permute.xlu0 %6401
        %6403 = vrot.lane.b32.xlu0 %v6017, 96
        %v6404 = vpop.permute.xlu0 %6403
        %6405 = vrot.lane.b32.xlu0 %v6374, 96
        %v6406 = vpop.permute.xlu0 %6405
        %v6408 = vunpack.c.l.b16 %v5934
        %v6409 = vpack.c.b16 %v6408, %v6408
        %v6411 = vshrl.u32 %v6374, 16
        %v6413 = vshll.u32 %v6374, 16
        %v6415 = vrot.slane %v6413, 1
        %v6416 = vor.u32 %v6411, %v6415
        %v6418 = vshll.u32 %v6409, 16
        %v6420 = vrot.slane %v6418, 1
        %v6421 = vsel %vm1651, %v6416, %v6420
        %v6422 = vrot.slane %v6374, 1
        %v6423 = vrot.slane %v6409, 1
        %v6424 = vsel %vm1876, %v6422, %v6423
        %6425 = vrot.lane.b32.xlu0 %v6295, 32
        %v6426 = vpop.permute.xlu0 %6425
        %6427 = vrot.lane.b32.xlu0 %v6298, 32
        %v6428 = vpop.permute.xlu0 %6427
        %6429 = vrot.lane.b32.xlu0 %v6301, 32
        %v6430 = vpop.permute.xlu0 %6429
        %6431 = vrot.lane.b32.xlu0 %v6304, 32
        %v6432 = vpop.permute.xlu0 %6431
        %6433 = vrot.lane.b32.xlu0 %v6307, 32
        %v6434 = vpop.permute.xlu0 %6433
        %6435 = vrot.lane.b32.xlu0 %v6310, 32
        %v6436 = vpop.permute.xlu0 %6435
        %6437 = vrot.lane.b32.xlu0 %v6313, 32
        %v6438 = vpop.permute.xlu0 %6437
        %6439 = vrot.lane.b32.xlu0 %v6316, 32
        %v6440 = vpop.permute.xlu0 %6439
        %6441 = vrot.lane.b32.xlu0 %v6319, 32
        %v6442 = vpop.permute.xlu0 %6441
        %6443 = vrot.lane.b32.xlu0 %v6322, 32
        %v6444 = vpop.permute.xlu0 %6443
        %6445 = vrot.lane.b32.xlu0 %v6325, 32
        %v6446 = vpop.permute.xlu0 %6445
        %6447 = vrot.lane.b32.xlu0 %v6328, 32
        %v6448 = vpop.permute.xlu0 %6447
        %6449 = vrot.lane.b32.xlu0 %v6331, 32
        %v6450 = vpop.permute.xlu0 %6449
        %6451 = vrot.lane.b32.xlu0 %v6334, 32
        %v6452 = vpop.permute.xlu0 %6451
        %6453 = vrot.lane.b32.xlu0 %v6337, 32
        %v6454 = vpop.permute.xlu0 %6453
        %6455 = vrot.lane.b32.xlu0 %v6424, 32
        %v6456 = vpop.permute.xlu0 %6455
        %v6459 = vunpack.c.l.b16 %v5935
        %v6460 = vunpack.c.l.b16 %v5936
        %v6461 = vpack.c.b16 %v6460, %v6459
        %6462 = vrot.lane.b32.xlu0 %v6004, 64
        %v6463 = vpop.permute.xlu0 %6462
        %6464 = vrot.lane.b32.xlu0 %v6005, 64
        %v6465 = vpop.permute.xlu0 %6464
        %6466 = vrot.lane.b32.xlu0 %v6006, 64
        %v6467 = vpop.permute.xlu0 %6466
        %6468 = vrot.lane.b32.xlu0 %v6007, 64
        %v6469 = vpop.permute.xlu0 %6468
        %6470 = vrot.lane.b32.xlu0 %v6008, 64
        %v6471 = vpop.permute.xlu0 %6470
        %6472 = vrot.lane.b32.xlu0 %v6009, 64
        %v6473 = vpop.permute.xlu0 %6472
        %6474 = vrot.lane.b32.xlu0 %v6010, 64
        %v6475 = vpop.permute.xlu0 %6474
        %6476 = vrot.lane.b32.xlu0 %v6011, 64
        %v6477 = vpop.permute.xlu0 %6476
        %6478 = vrot.lane.b32.xlu0 %v6012, 64
        %v6479 = vpop.permute.xlu0 %6478
        %6480 = vrot.lane.b32.xlu0 %v6013, 64
        %v6481 = vpop.permute.xlu0 %6480
        %6482 = vrot.lane.b32.xlu0 %v6014, 64
        %v6483 = vpop.permute.xlu0 %6482
        %6484 = vrot.lane.b32.xlu0 %v6015, 64
        %v6485 = vpop.permute.xlu0 %6484
        %6486 = vrot.lane.b32.xlu0 %v6016, 64
        %v6487 = vpop.permute.xlu0 %6486
        %6488 = vrot.lane.b32.xlu0 %v6017, 64
        %v6489 = vpop.permute.xlu0 %6488
        %6490 = vrot.lane.b32.xlu0 %v6374, 64
        %v6491 = vpop.permute.xlu0 %6490
        %6492 = vrot.lane.b32.xlu0 %v6461, 64
        %v6493 = vpop.permute.xlu0 %6492
        %v6495 = vunpack.c.l.b16 %v5937
        %v6496 = vpack.c.b16 %v6495, %v6495
        %v6498 = vshrl.u32 %v6461, 16
        %v6500 = vshll.u32 %v6461, 16
        %v6502 = vrot.slane %v6500, 1
        %v6503 = vor.u32 %v6498, %v6502
        %v6505 = vshll.u32 %v6496, 16
        %v6507 = vrot.slane %v6505, 1
        %v6508 = vsel %vm1651, %v6503, %v6507
        %6509 = vrot.lane.b32.xlu0 %v6101, 96
        %v6510 = vpop.permute.xlu0 %6509
        %6511 = vrot.lane.b32.xlu0 %v6113, 96
        %v6512 = vpop.permute.xlu0 %6511
        %6513 = vrot.lane.b32.xlu0 %v6125, 96
        %v6514 = vpop.permute.xlu0 %6513
        %6515 = vrot.lane.b32.xlu0 %v6137, 96
        %v6516 = vpop.permute.xlu0 %6515
        %6517 = vrot.lane.b32.xlu0 %v6149, 96
        %v6518 = vpop.permute.xlu0 %6517
        %6519 = vrot.lane.b32.xlu0 %v6161, 96
        %v6520 = vpop.permute.xlu0 %6519
        %6521 = vrot.lane.b32.xlu0 %v6173, 96
        %v6522 = vpop.permute.xlu0 %6521
        %6523 = vrot.lane.b32.xlu0 %v6185, 96
        %v6524 = vpop.permute.xlu0 %6523
        %6525 = vrot.lane.b32.xlu0 %v6197, 96
        %v6526 = vpop.permute.xlu0 %6525
        %6527 = vrot.lane.b32.xlu0 %v6209, 96
        %v6528 = vpop.permute.xlu0 %6527
        %6529 = vrot.lane.b32.xlu0 %v6221, 96
        %v6530 = vpop.permute.xlu0 %6529
        %6531 = vrot.lane.b32.xlu0 %v6233, 96
        %v6532 = vpop.permute.xlu0 %6531
        %6533 = vrot.lane.b32.xlu0 %v6245, 96
        %v6534 = vpop.permute.xlu0 %6533
        %6535 = vrot.lane.b32.xlu0 %v6257, 96
        %v6536 = vpop.permute.xlu0 %6535
        %6537 = vrot.lane.b32.xlu0 %v6421, 96
        %v6538 = vpop.permute.xlu0 %6537
        %6539 = vrot.lane.b32.xlu0 %v6508, 96
        %v6540 = vpop.permute.xlu0 %6539
        %v6541 = vrot.slane %v6461, 1
        %v6542 = vrot.slane %v6496, 1
        %v6543 = vsel %vm1876, %v6541, %v6542
        %v6545 = vsel %vm478, %v6002, %v6259
        %v6547 = vsel %vm478, %v6003, %v6261
        %v6549 = vsel %vm478, %v6004, %v6263
        %v6551 = vsel %vm478, %v6005, %v6265
        %v6553 = vsel %vm478, %v6006, %v6267
        %v6555 = vsel %vm478, %v6007, %v6269
        %v6557 = vsel %vm478, %v6008, %v6271
        %v6559 = vsel %vm478, %v6009, %v6273
        %v6561 = vsel %vm478, %v6010, %v6275
        %v6563 = vsel %vm478, %v6011, %v6277
        %v6565 = vsel %vm478, %v6012, %v6279
        %v6567 = vsel %vm478, %v6013, %v6281
        %v6569 = vsel %vm478, %v6014, %v6283
        %v6571 = vsel %vm478, %v6015, %v6285
        %v6573 = vsel %vm478, %v6016, %v6287
        %v6575 = vsel %vm478, %v6017, %v6289
        %v6577 = vsel %vm2163, %v6545, %v6339
        %v6579 = vsel %vm2163, %v6547, %v6341
        %v6581 = vsel %vm2163, %v6549, %v6343
        %v6583 = vsel %vm2163, %v6551, %v6345
        %v6585 = vsel %vm2163, %v6553, %v6347
        %v6587 = vsel %vm2163, %v6555, %v6349
        %v6589 = vsel %vm2163, %v6557, %v6351
        %v6591 = vsel %vm2163, %v6559, %v6353
        %v6593 = vsel %vm2163, %v6561, %v6355
        %v6595 = vsel %vm2163, %v6563, %v6357
        %v6597 = vsel %vm2163, %v6565, %v6359
        %v6599 = vsel %vm2163, %v6567, %v6361
        %v6601 = vsel %vm2163, %v6569, %v6363
        %v6603 = vsel %vm2163, %v6571, %v6365
        %v6605 = vsel %vm2163, %v6573, %v6367
        %v6607 = vsel %vm2163, %v6575, %v6369
        %v6609 = vsel %vm2196, %v6577, %v6376
        %v6612 = vsel %vm2196, %v6579, %v6378
        %v6615 = vsel %vm2196, %v6581, %v6380
        %v6618 = vsel %vm2196, %v6583, %v6382
        %v6621 = vsel %vm2196, %v6585, %v6384
        %v6624 = vsel %vm2196, %v6587, %v6386
        %v6627 = vsel %vm2196, %v6589, %v6388
        %v6630 = vsel %vm2196, %v6591, %v6390
        %v6633 = vsel %vm2196, %v6593, %v6392
        %v6636 = vsel %vm2196, %v6595, %v6394
        %v6639 = vsel %vm2196, %v6597, %v6396
        %v6642 = vsel %vm2196, %v6599, %v6398
        %v6645 = vsel %vm2196, %v6601, %v6400
        %v6648 = vsel %vm2196, %v6603, %v6402
        %v6651 = vsel %vm2196, %v6605, %v6404
        %v6654 = vsel %vm2196, %v6607, %v6406
        %v6658 = vsel %vm478, %v6089, %v6426
        %v6661 = vsel %vm478, %v6101, %v6428
        %v6664 = vsel %vm478, %v6113, %v6430
        %v6667 = vsel %vm478, %v6125, %v6432
        %v6670 = vsel %vm478, %v6137, %v6434
        %v6673 = vsel %vm478, %v6149, %v6436
        %v6676 = vsel %vm478, %v6161, %v6438
        %v6679 = vsel %vm478, %v6173, %v6440
        %v6682 = vsel %vm478, %v6185, %v6442
        %v6685 = vsel %vm478, %v6197, %v6444
        %v6688 = vsel %vm478, %v6209, %v6446
        %v6691 = vsel %vm478, %v6221, %v6448
        %v6694 = vsel %vm478, %v6233, %v6450
        %v6697 = vsel %vm478, %v6245, %v6452
        %v6700 = vsel %vm478, %v6257, %v6454
        %v6703 = vsel %vm478, %v6421, %v6456
        %v6705 = vsel %vm2163, %v6658, %v6463
        %v6707 = vsel %vm2163, %v6661, %v6465
        %v6709 = vsel %vm2163, %v6664, %v6467
        %v6711 = vsel %vm2163, %v6667, %v6469
        %v6713 = vsel %vm2163, %v6670, %v6471
        %v6715 = vsel %vm2163, %v6673, %v6473
        %v6717 = vsel %vm2163, %v6676, %v6475
        %v6719 = vsel %vm2163, %v6679, %v6477
        %v6721 = vsel %vm2163, %v6682, %v6479
        %v6723 = vsel %vm2163, %v6685, %v6481
        %v6725 = vsel %vm2163, %v6688, %v6483
        %v6727 = vsel %vm2163, %v6691, %v6485
        %v6729 = vsel %vm2163, %v6694, %v6487
        %v6731 = vsel %vm2163, %v6697, %v6489
        %v6733 = vsel %vm2163, %v6700, %v6491
        %v6735 = vsel %vm2163, %v6703, %v6493
        %v6737 = vsel %vm2196, %v6705, %v6510
        %v6740 = vsel %vm2196, %v6707, %v6512
        %v6743 = vsel %vm2196, %v6709, %v6514
        %v6746 = vsel %vm2196, %v6711, %v6516
        %v6749 = vsel %vm2196, %v6713, %v6518
        %v6752 = vsel %vm2196, %v6715, %v6520
        %v6755 = vsel %vm2196, %v6717, %v6522
        %v6758 = vsel %vm2196, %v6719, %v6524
        %v6761 = vsel %vm2196, %v6721, %v6526
        %v6764 = vsel %vm2196, %v6723, %v6528
        %v6767 = vsel %vm2196, %v6725, %v6530
        %v6770 = vsel %vm2196, %v6727, %v6532
        %v6773 = vsel %vm2196, %v6729, %v6534
        %v6776 = vsel %vm2196, %v6731, %v6536
        %v6779 = vsel %vm2196, %v6733, %v6538
        %v6782 = vsel %vm2196, %v6735, %v6540
        %v6784 = vld [vmem:[%s11] sm:$0xf]
        %v6785 = vld [vmem:[%s11 + $0x4] sm:$0xf]
        %v6786 = vld [vmem:[%s11 + $0x8] sm:$0xf]
        %v6787 = vld [vmem:[%s11 + $0xc] sm:$0xf]
        %v6788 = vld [vmem:[%s11 + $0x10] sm:$0xf]
        %v6789 = vld [vmem:[%s11 + $0x14] sm:$0xf]
        %v6790 = vld [vmem:[%s11 + $0x18] sm:$0xf]
        %v6791 = vld [vmem:[%s11 + $0x1c] sm:$0xf]
        %v6792 = vld [vmem:[%s11 + $0x20] sm:$0xf]
        %v6793 = vld [vmem:[%s11 + $0x24] sm:$0xf]
        %v6794 = vld [vmem:[%s11 + $0x28] sm:$0xf]
        %v6795 = vld [vmem:[%s11 + $0x2c] sm:$0xf]
        %v6796 = vld [vmem:[%s11 + $0x30] sm:$0xf]
        %v6797 = vld [vmem:[%s11 + $0x34] sm:$0xf]
        %v6798 = vld [vmem:[%s11 + $0x38] sm:$0xf]
        %v6799 = vld [vmem:[%s11 + $0x3c] sm:$0xf]
        %v6800 = vld [vmem:[%s11 + $0x40] sm:$0xf]
        %v6801 = vld [vmem:[%s11 + $0x44] sm:$0xf]
        %v6802 = vld [vmem:[%s11 + $0x48] sm:$0xf]
        %v6803 = vld [vmem:[%s11 + $0x4c] sm:$0xf]
        %v6804 = vld [vmem:[%s11 + $0x50] sm:$0xf]
        %v6805 = vld [vmem:[%s11 + $0x54] sm:$0xf]
        %v6806 = vld [vmem:[%s11 + $0x58] sm:$0xf]
        %v6807 = vld [vmem:[%s11 + $0x5c] sm:$0xf]
        %v6808 = vld [vmem:[%s11 + $0x60] sm:$0xf]
        %v6809 = vld [vmem:[%s11 + $0x64] sm:$0xf]
        %v6810 = vld [vmem:[%s11 + $0x68] sm:$0xf]
        %v6811 = vld [vmem:[%s11 + $0x6c] sm:$0xf]
        %v6812 = vld [vmem:[%s11 + $0x70] sm:$0xf]
        %v6813 = vld [vmem:[%s11 + $0x74] sm:$0xf]
        %v6814 = vld [vmem:[%s11 + $0x78] sm:$0xf]
        %v6815 = vld [vmem:[%s11 + $0x7c] sm:$0xf]
        %v6816 = vld [vmem:[%s11 + $0x80] sm:$0xf]
        %v6817 = vld [vmem:[%s11 + $0x84] sm:$0xf]
        %v6818 = vld [vmem:[%s11 + $0x88] sm:$0xf]
        %v6819 = vld [vmem:[%s11 + $0x8c] sm:$0xf]
        %v6820 = vld [vmem:[%s12] sm:$0x1]
        %v6822 = vperm.slane %v6820, 0
        %v6860 = vunpack.c.l.b16 %v6784
        %v6861 = vunpack.c.l.b16 %v6785
        %v6862 = vunpack.c.l.b16 %v6786
        %v6863 = vunpack.c.l.b16 %v6787
        %v6864 = vunpack.c.l.b16 %v6788
        %v6865 = vunpack.c.l.b16 %v6789
        %v6866 = vunpack.c.l.b16 %v6790
        %v6867 = vunpack.c.l.b16 %v6791
        %v6868 = vunpack.c.l.b16 %v6792
        %v6869 = vunpack.c.l.b16 %v6793
        %v6870 = vunpack.c.l.b16 %v6794
        %v6871 = vunpack.c.l.b16 %v6795
        %v6872 = vunpack.c.l.b16 %v6796
        %v6873 = vunpack.c.l.b16 %v6797
        %v6874 = vunpack.c.l.b16 %v6798
        %v6875 = vunpack.c.l.b16 %v6799
        %v6876 = vunpack.c.l.b16 %v6800
        %v6877 = vunpack.c.l.b16 %v6801
        %v6878 = vunpack.c.l.b16 %v6802
        %v6879 = vunpack.c.l.b16 %v6803
        %v6880 = vunpack.c.l.b16 %v6804
        %v6881 = vunpack.c.l.b16 %v6805
        %v6882 = vunpack.c.l.b16 %v6806
        %v6883 = vunpack.c.l.b16 %v6807
        %v6884 = vunpack.c.l.b16 %v6808
        %v6885 = vunpack.c.l.b16 %v6809
        %v6886 = vunpack.c.l.b16 %v6810
        %v6887 = vunpack.c.l.b16 %v6811
        %v6888 = vunpack.c.l.b16 %v6812
        %v6889 = vunpack.c.l.b16 %v6813
        %v6890 = vunpack.c.l.b16 %v6814
        %v6891 = vunpack.c.l.b16 %v6815
        %v6892 = vunpack.c.l.b16 %v6816
        %v6893 = vunpack.c.l.b16 %v6817
        %v6894 = vunpack.c.l.b16 %v6818
        %v6895 = vunpack.c.l.b16 %v6819
        %v6896 = vpack.c.b16 %v6861, %v6860
        %v6897 = vpack.c.b16 %v6863, %v6862
        %v6898 = vpack.c.b16 %v6865, %v6864
        %v6899 = vpack.c.b16 %v6867, %v6866
        %v6900 = vpack.c.b16 %v6869, %v6868
        %v6901 = vpack.c.b16 %v6871, %v6870
        %v6902 = vpack.c.b16 %v6873, %v6872
        %v6903 = vpack.c.b16 %v6875, %v6874
        %v6904 = vpack.c.b16 %v6877, %v6876
        %v6905 = vpack.c.b16 %v6879, %v6878
        %v6906 = vpack.c.b16 %v6881, %v6880
        %v6907 = vpack.c.b16 %v6883, %v6882
        %v6908 = vpack.c.b16 %v6885, %v6884
        %v6909 = vpack.c.b16 %v6887, %v6886
        %v6910 = vpack.c.b16 %v6889, %v6888
        %v6911 = vpack.c.b16 %v6891, %v6890
        %v6912 = vpack.c.b16 %v6893, %v6892
        %v6913 = vpack.c.b16 %v6895, %v6894
        %v6933 = vsel %vm478, %v6298, 0
        %v6936 = vsel %vm478, %v6301, 0
        %v6939 = vsel %vm478, %v6304, 0
        %v6942 = vsel %vm478, %v6307, 0
        %v6945 = vsel %vm478, %v6310, 0
        %v6948 = vsel %vm478, %v6313, 0
        %v6951 = vsel %vm478, %v6316, 0
        %v6954 = vsel %vm478, %v6319, 0
        %v6957 = vsel %vm478, %v6322, 0
        %v6960 = vsel %vm478, %v6325, 0
        %v6963 = vsel %vm478, %v6328, 0
        %v6966 = vsel %vm478, %v6331, 0
        %v6969 = vsel %vm478, %v6334, 0
        %v6972 = vsel %vm478, %v6337, 0
        %v6975 = vsel %vm478, %v6424, 0
        %v6978 = vsel %vm478, %v6543, 0
        %6980 = vmatpush.bf16.msra.mxu0 %v6903
        %6981 = vmatpush.bf16.msra.mxu0 %v6902
        %6982 = vmatpush.bf16.msra.mxu0 %v6901
        %6983 = vmatpush.bf16.msra.mxu0 %v6900
        %6984 = vmatpush.bf16.msra.mxu0 %v6899
        %6985 = vmatpush.bf16.msra.mxu0 %v6898
        %6986 = vmatpush.bf16.msra.mxu0 %v6897
        %6987 = vmatpush.bf16.msra.mxu0 %v6896
        %6988 = vmatmul.bf16.gmra.mxu0 %v6609
        %v6989 = vpop.f32.mrf.mxu0
        %v6990 = vadd.f32 %v6822, %v6989
        %v6991 = vpop.f32.mrf.mxu0
        %v6992 = vadd.f32 %v6822, %v6991
        %6993 = vmatmul.bf16.gmra.mxu0 %v6612
        %v6994 = vpop.f32.mrf.mxu0
        %v6995 = vadd.f32 %v6822, %v6994
        %v6996 = vpop.f32.mrf.mxu0
        %v6997 = vadd.f32 %v6822, %v6996
        %6998 = vmatmul.bf16.gmra.mxu0 %v6615
        %v6999 = vpop.f32.mrf.mxu0
        %v7000 = vadd.f32 %v6822, %v6999
        %v7001 = vpop.f32.mrf.mxu0
        %v7002 = vadd.f32 %v6822, %v7001
        %7003 = vmatmul.bf16.gmra.mxu0 %v6618
        %v7004 = vpop.f32.mrf.mxu0
        %v7005 = vadd.f32 %v6822, %v7004
        %v7006 = vpop.f32.mrf.mxu0
        %v7007 = vadd.f32 %v6822, %v7006
        %7008 = vmatmul.bf16.gmra.mxu0 %v6621
        %v7009 = vpop.f32.mrf.mxu0
        %v7010 = vadd.f32 %v6822, %v7009
        %v7011 = vpop.f32.mrf.mxu0
        %v7012 = vadd.f32 %v6822, %v7011
        %7013 = vmatmul.bf16.gmra.mxu0 %v6624
        %v7014 = vpop.f32.mrf.mxu0
        %v7015 = vadd.f32 %v6822, %v7014
        %v7016 = vpop.f32.mrf.mxu0
        %v7017 = vadd.f32 %v6822, %v7016
        %7018 = vmatmul.bf16.gmra.mxu0 %v6627
        %v7019 = vpop.f32.mrf.mxu0
        %v7020 = vadd.f32 %v6822, %v7019
        %v7021 = vpop.f32.mrf.mxu0
        %v7022 = vadd.f32 %v6822, %v7021
        %7023 = vmatmul.bf16.gmra.mxu0 %v6630
        %v7024 = vpop.f32.mrf.mxu0
        %v7025 = vadd.f32 %v6822, %v7024
        %v7026 = vpop.f32.mrf.mxu0
        %v7027 = vadd.f32 %v6822, %v7026
        %7028 = vmatmul.bf16.gmra.mxu0 %v6633
        %v7029 = vpop.f32.mrf.mxu0
        %v7030 = vadd.f32 %v6822, %v7029
        %v7031 = vpop.f32.mrf.mxu0
        %v7032 = vadd.f32 %v6822, %v7031
        %7033 = vmatmul.bf16.gmra.mxu0 %v6636
        %v7034 = vpop.f32.mrf.mxu0
        %v7035 = vadd.f32 %v6822, %v7034
        %v7036 = vpop.f32.mrf.mxu0
        %v7037 = vadd.f32 %v6822, %v7036
        %7038 = vmatmul.bf16.gmra.mxu0 %v6639
        %v7039 = vpop.f32.mrf.mxu0
        %v7040 = vadd.f32 %v6822, %v7039
        %v7041 = vpop.f32.mrf.mxu0
        %v7042 = vadd.f32 %v6822, %v7041
        %7043 = vmatmul.bf16.gmra.mxu0 %v6642
        %v7044 = vpop.f32.mrf.mxu0
        %v7045 = vadd.f32 %v6822, %v7044
        %v7046 = vpop.f32.mrf.mxu0
        %v7047 = vadd.f32 %v6822, %v7046
        %7048 = vmatmul.bf16.gmra.mxu0 %v6645
        %v7049 = vpop.f32.mrf.mxu0
        %v7050 = vadd.f32 %v6822, %v7049
        %v7051 = vpop.f32.mrf.mxu0
        %v7052 = vadd.f32 %v6822, %v7051
        %7053 = vmatmul.bf16.gmra.mxu0 %v6648
        %v7054 = vpop.f32.mrf.mxu0
        %v7055 = vadd.f32 %v6822, %v7054
        %v7056 = vpop.f32.mrf.mxu0
        %v7057 = vadd.f32 %v6822, %v7056
        %7058 = vmatmul.bf16.gmra.mxu0 %v6651
        %v7059 = vpop.f32.mrf.mxu0
        %v7060 = vadd.f32 %v6822, %v7059
        %v7061 = vpop.f32.mrf.mxu0
        %v7062 = vadd.f32 %v6822, %v7061
        %7063 = vmatmul.bf16.gmra.mxu0 %v6654
        %v7064 = vpop.f32.mrf.mxu0
        %v7065 = vadd.f32 %v6822, %v7064
        %v7066 = vpop.f32.mrf.mxu0
        %v7067 = vadd.f32 %v6822, %v7066
        %7068 = vdwg.mxu0
        %7069 = vmatpush.bf16.msra.mxu0 %v6911
        %7070 = vmatpush.bf16.msra.mxu0 %v6910
        %7071 = vmatpush.bf16.msra.mxu0 %v6909
        %7072 = vmatpush.bf16.msra.mxu0 %v6908
        %7073 = vmatpush.bf16.msra.mxu0 %v6907
        %7074 = vmatpush.bf16.msra.mxu0 %v6906
        %7075 = vmatpush.bf16.msra.mxu0 %v6905
        %7076 = vmatpush.bf16.msra.mxu0 %v6904
        %7077 = vmatmul.bf16.gmra.mxu0 %v6737
        %v7078 = vpop.f32.mrf.mxu0
        %v7079 = vadd.f32 %v6990, %v7078
        %v7080 = vpop.f32.mrf.mxu0
        %v7081 = vadd.f32 %v6992, %v7080
        %7082 = vmatmul.bf16.gmra.mxu0 %v6740
        %v7083 = vpop.f32.mrf.mxu0
        %v7084 = vadd.f32 %v6995, %v7083
        %v7085 = vpop.f32.mrf.mxu0
        %v7086 = vadd.f32 %v6997, %v7085
        %7087 = vmatmul.bf16.gmra.mxu0 %v6743
        %v7088 = vpop.f32.mrf.mxu0
        %v7089 = vadd.f32 %v7000, %v7088
        %v7090 = vpop.f32.mrf.mxu0
        %v7091 = vadd.f32 %v7002, %v7090
        %7092 = vmatmul.bf16.gmra.mxu0 %v6746
        %v7093 = vpop.f32.mrf.mxu0
        %v7094 = vadd.f32 %v7005, %v7093
        %v7095 = vpop.f32.mrf.mxu0
        %v7096 = vadd.f32 %v7007, %v7095
        %7097 = vmatmul.bf16.gmra.mxu0 %v6749
        %v7098 = vpop.f32.mrf.mxu0
        %v7099 = vadd.f32 %v7010, %v7098
        %v7100 = vpop.f32.mrf.mxu0
        %v7101 = vadd.f32 %v7012, %v7100
        %7102 = vmatmul.bf16.gmra.mxu0 %v6752
        %v7103 = vpop.f32.mrf.mxu0
        %v7104 = vadd.f32 %v7015, %v7103
        %v7105 = vpop.f32.mrf.mxu0
        %v7106 = vadd.f32 %v7017, %v7105
        %7107 = vmatmul.bf16.gmra.mxu0 %v6755
        %v7108 = vpop.f32.mrf.mxu0
        %v7109 = vadd.f32 %v7020, %v7108
        %v7110 = vpop.f32.mrf.mxu0
        %v7111 = vadd.f32 %v7022, %v7110
        %7112 = vmatmul.bf16.gmra.mxu0 %v6758
        %v7113 = vpop.f32.mrf.mxu0
        %v7114 = vadd.f32 %v7025, %v7113
        %v7115 = vpop.f32.mrf.mxu0
        %v7116 = vadd.f32 %v7027, %v7115
        %7117 = vmatmul.bf16.gmra.mxu0 %v6761
        %v7118 = vpop.f32.mrf.mxu0
        %v7119 = vadd.f32 %v7030, %v7118
        %v7120 = vpop.f32.mrf.mxu0
        %v7121 = vadd.f32 %v7032, %v7120
        %7122 = vmatmul.bf16.gmra.mxu0 %v6764
        %v7123 = vpop.f32.mrf.mxu0
        %v7124 = vadd.f32 %v7035, %v7123
        %v7125 = vpop.f32.mrf.mxu0
        %v7126 = vadd.f32 %v7037, %v7125
        %7127 = vmatmul.bf16.gmra.mxu0 %v6767
        %v7128 = vpop.f32.mrf.mxu0
        %v7129 = vadd.f32 %v7040, %v7128
        %v7130 = vpop.f32.mrf.mxu0
        %v7131 = vadd.f32 %v7042, %v7130
        %7132 = vmatmul.bf16.gmra.mxu0 %v6770
        %v7133 = vpop.f32.mrf.mxu0
        %v7134 = vadd.f32 %v7045, %v7133
        %v7135 = vpop.f32.mrf.mxu0
        %v7136 = vadd.f32 %v7047, %v7135
        %7137 = vmatmul.bf16.gmra.mxu0 %v6773
        %v7138 = vpop.f32.mrf.mxu0
        %v7139 = vadd.f32 %v7050, %v7138
        %v7140 = vpop.f32.mrf.mxu0
        %v7141 = vadd.f32 %v7052, %v7140
        %7142 = vmatmul.bf16.gmra.mxu0 %v6776
        %v7143 = vpop.f32.mrf.mxu0
        %v7144 = vadd.f32 %v7055, %v7143
        %v7145 = vpop.f32.mrf.mxu0
        %v7146 = vadd.f32 %v7057, %v7145
        %7147 = vmatmul.bf16.gmra.mxu0 %v6779
        %v7148 = vpop.f32.mrf.mxu0
        %v7149 = vadd.f32 %v7060, %v7148
        %v7150 = vpop.f32.mrf.mxu0
        %v7151 = vadd.f32 %v7062, %v7150
        %7152 = vmatmul.bf16.gmra.mxu0 %v6782
        %v7153 = vpop.f32.mrf.mxu0
        %v7154 = vadd.f32 %v7065, %v7153
        %v7155 = vpop.f32.mrf.mxu0
        %v7156 = vadd.f32 %v7067, %v7155
        %7157 = vdwg.mxu0
        %7158 = vmatpush.bf16.msra.mxu0 0
        %7159 = vmatpush.bf16.msra.mxu0 0
        %7160 = vmatpush.bf16.msra.mxu0 0
        %7161 = vmatpush.bf16.msra.mxu0 0
        %7162 = vmatpush.bf16.msra.mxu0 0
        %7163 = vmatpush.bf16.msra.mxu0 0
        %7164 = vmatpush.bf16.msra.mxu0 %v6913
        %7165 = vmatpush.bf16.msra.mxu0 %v6912
        %7166 = vmatmul.bf16.gmra.mxu0 %v6933
        %v7167 = vpop.f32.mrf.mxu0
        %v7168 = vadd.f32 %v7079, %v7167
        %v7169 = vpop.f32.mrf.mxu0
        %v7170 = vadd.f32 %v7081, %v7169
        %7171 = vmatmul.bf16.gmra.mxu0 %v6936
        %v7172 = vpop.f32.mrf.mxu0
        %v7173 = vadd.f32 %v7084, %v7172
        %v7174 = vpop.f32.mrf.mxu0
        %v7175 = vadd.f32 %v7086, %v7174
        %7176 = vmatmul.bf16.gmra.mxu0 %v6939
        %v7177 = vpop.f32.mrf.mxu0
        %v7178 = vadd.f32 %v7089, %v7177
        %v7179 = vpop.f32.mrf.mxu0
        %v7180 = vadd.f32 %v7091, %v7179
        %7181 = vmatmul.bf16.gmra.mxu0 %v6942
        %v7182 = vpop.f32.mrf.mxu0
        %v7183 = vadd.f32 %v7094, %v7182
        %v7184 = vpop.f32.mrf.mxu0
        %v7185 = vadd.f32 %v7096, %v7184
        %7186 = vmatmul.bf16.gmra.mxu0 %v6945
        %v7187 = vpop.f32.mrf.mxu0
        %v7188 = vadd.f32 %v7099, %v7187
        %v7189 = vpop.f32.mrf.mxu0
        %v7190 = vadd.f32 %v7101, %v7189
        %7191 = vmatmul.bf16.gmra.mxu0 %v6948
        %v7192 = vpop.f32.mrf.mxu0
        %v7193 = vadd.f32 %v7104, %v7192
        %v7194 = vpop.f32.mrf.mxu0
        %v7195 = vadd.f32 %v7106, %v7194
        %7196 = vmatmul.bf16.gmra.mxu0 %v6951
        %v7197 = vpop.f32.mrf.mxu0
        %v7198 = vadd.f32 %v7109, %v7197
        %v7199 = vpop.f32.mrf.mxu0
        %v7200 = vadd.f32 %v7111, %v7199
        %7201 = vmatmul.bf16.gmra.mxu0 %v6954
        %v7202 = vpop.f32.mrf.mxu0
        %v7203 = vadd.f32 %v7114, %v7202
        %v7204 = vpop.f32.mrf.mxu0
        %v7205 = vadd.f32 %v7116, %v7204
        %7206 = vmatmul.bf16.gmra.mxu0 %v6957
        %v7207 = vpop.f32.mrf.mxu0
        %v7208 = vadd.f32 %v7119, %v7207
        %v7209 = vpop.f32.mrf.mxu0
        %v7210 = vadd.f32 %v7121, %v7209
        %7211 = vmatmul.bf16.gmra.mxu0 %v6960
        %v7212 = vpop.f32.mrf.mxu0
        %v7213 = vadd.f32 %v7124, %v7212
        %v7214 = vpop.f32.mrf.mxu0
        %v7215 = vadd.f32 %v7126, %v7214
        %7216 = vmatmul.bf16.gmra.mxu0 %v6963
        %v7217 = vpop.f32.mrf.mxu0
        %v7218 = vadd.f32 %v7129, %v7217
        %v7219 = vpop.f32.mrf.mxu0
        %v7220 = vadd.f32 %v7131, %v7219
        %7221 = vmatmul.bf16.gmra.mxu0 %v6966
        %v7222 = vpop.f32.mrf.mxu0
        %v7223 = vadd.f32 %v7134, %v7222
        %v7224 = vpop.f32.mrf.mxu0
        %v7225 = vadd.f32 %v7136, %v7224
        %7226 = vmatmul.bf16.gmra.mxu0 %v6969
        %v7227 = vpop.f32.mrf.mxu0
        %v7228 = vadd.f32 %v7139, %v7227
        %v7229 = vpop.f32.mrf.mxu0
        %v7230 = vadd.f32 %v7141, %v7229
        %7231 = vmatmul.bf16.gmra.mxu0 %v6972
        %v7232 = vpop.f32.mrf.mxu0
        %v7233 = vadd.f32 %v7144, %v7232
        %v7234 = vpop.f32.mrf.mxu0
        %v7235 = vadd.f32 %v7146, %v7234
        %7236 = vmatmul.bf16.gmra.mxu0 %v6975
        %v7237 = vpop.f32.mrf.mxu0
        %v7238 = vadd.f32 %v7149, %v7237
        %v7239 = vpop.f32.mrf.mxu0
        %v7240 = vadd.f32 %v7151, %v7239
        %7241 = vmatmul.bf16.gmra.mxu0 %v6978
        %v7242 = vpop.f32.mrf.mxu0
        %v7243 = vadd.f32 %v7154, %v7242
        %v7244 = vpop.f32.mrf.mxu0
        %v7245 = vadd.f32 %v7156, %v7244
        %7246 = vdwg.mxu0
        %v7247 = vadd.f32 %v5286, %v7168
        %v7248 = vadd.f32 %v5288, %v7170
        %v7249 = vadd.f32 %v5291, %v7173
        %v7250 = vadd.f32 %v5293, %v7175
        %v7251 = vadd.f32 %v5296, %v7178
        %v7252 = vadd.f32 %v5298, %v7180
        %v7253 = vadd.f32 %v5301, %v7183
        %v7254 = vadd.f32 %v5303, %v7185
        %v7255 = vadd.f32 %v5306, %v7188
        %v7256 = vadd.f32 %v5308, %v7190
        %v7257 = vadd.f32 %v5311, %v7193
        %v7258 = vadd.f32 %v5313, %v7195
        %v7259 = vadd.f32 %v5316, %v7198
        %v7260 = vadd.f32 %v5318, %v7200
        %v7261 = vadd.f32 %v5321, %v7203
        %v7262 = vadd.f32 %v5323, %v7205
        %v7263 = vadd.f32 %v5326, %v7208
        %v7264 = vadd.f32 %v5328, %v7210
        %v7265 = vadd.f32 %v5331, %v7213
        %v7266 = vadd.f32 %v5333, %v7215
        %v7267 = vadd.f32 %v5336, %v7218
        %v7268 = vadd.f32 %v5338, %v7220
        %v7269 = vadd.f32 %v5341, %v7223
        %v7270 = vadd.f32 %v5343, %v7225
        %v7271 = vadd.f32 %v5346, %v7228
        %v7272 = vadd.f32 %v5348, %v7230
        %v7273 = vadd.f32 %v5351, %v7233
        %v7274 = vadd.f32 %v5353, %v7235
        %v7275 = vadd.f32 %v5356, %v7238
        %v7276 = vadd.f32 %v5358, %v7240
        %v7277 = vadd.f32 %v5361, %v7243
        %v7278 = vadd.f32 %v5363, %v7245
        %7279 = vst.msk [vmem:[%s433] sm:$0xff] %vm2163, %v7247
        %7280 = vst.msk [vmem:[%s433 + $0x8] sm:$0xff] %vm2163, %v7248
        %7281 = vst.msk [vmem:[%s433 + $0x10] sm:$0xff] %vm2163, %v7249
        %7282 = vst.msk [vmem:[%s433 + $0x18] sm:$0xff] %vm2163, %v7250
        %7283 = vst.msk [vmem:[%s433 + $0x20] sm:$0xff] %vm2163, %v7251
        %7284 = vst.msk [vmem:[%s433 + $0x28] sm:$0xff] %vm2163, %v7252
        %7285 = vst.msk [vmem:[%s433 + $0x30] sm:$0xff] %vm2163, %v7253
        %7286 = vst.msk [vmem:[%s433 + $0x38] sm:$0xff] %vm2163, %v7254
        %7287 = vst.msk [vmem:[%s433 + $0x40] sm:$0xff] %vm2163, %v7255
        %7288 = vst.msk [vmem:[%s433 + $0x48] sm:$0xff] %vm2163, %v7256
        %7289 = vst.msk [vmem:[%s433 + $0x50] sm:$0xff] %vm2163, %v7257
        %7290 = vst.msk [vmem:[%s433 + $0x58] sm:$0xff] %vm2163, %v7258
        %7291 = vst.msk [vmem:[%s433 + $0x60] sm:$0xff] %vm2163, %v7259
        %7292 = vst.msk [vmem:[%s433 + $0x68] sm:$0xff] %vm2163, %v7260
        %7293 = vst.msk [vmem:[%s433 + $0x70] sm:$0xff] %vm2163, %v7261
        %7294 = vst.msk [vmem:[%s433 + $0x78] sm:$0xff] %vm2163, %v7262
        %7295 = vst.msk [vmem:[%s433 + $0x80] sm:$0xff] %vm2163, %v7263
        %7296 = vst.msk [vmem:[%s433 + $0x88] sm:$0xff] %vm2163, %v7264
        %7297 = vst.msk [vmem:[%s433 + $0x90] sm:$0xff] %vm2163, %v7265
        %7298 = vst.msk [vmem:[%s433 + $0x98] sm:$0xff] %vm2163, %v7266
        %7299 = vst.msk [vmem:[%s433 + $0xa0] sm:$0xff] %vm2163, %v7267
        %7300 = vst.msk [vmem:[%s433 + $0xa8] sm:$0xff] %vm2163, %v7268
        %7301 = vst.msk [vmem:[%s433 + $0xb0] sm:$0xff] %vm2163, %v7269
        %7302 = vst.msk [vmem:[%s433 + $0xb8] sm:$0xff] %vm2163, %v7270
        %7303 = vst.msk [vmem:[%s433 + $0xc0] sm:$0xff] %vm2163, %v7271
        %7304 = vst.msk [vmem:[%s433 + $0xc8] sm:$0xff] %vm2163, %v7272
        %7305 = vst.msk [vmem:[%s433 + $0xd0] sm:$0xff] %vm2163, %v7273
        %7306 = vst.msk [vmem:[%s433 + $0xd8] sm:$0xff] %vm2163, %v7274
        %7307 = vst.msk [vmem:[%s433 + $0xe0] sm:$0xff] %vm2163, %v7275
        %7308 = vst.msk [vmem:[%s433 + $0xe8] sm:$0xff] %vm2163, %v7276
        %7309 = vst.msk [vmem:[%s433 + $0xf0] sm:$0xff] %vm2163, %v7277
        %7310 = vst.msk [vmem:[%s433 + $0xf8] sm:$0xff] %vm2163, %v7278
        %s7311 = sand.u32 %s313, 1
        %s7312 = scalar_lea.sflag [#allocation6], %s7311
        %s7313 = sand.u32 %s313, 1
        %s7314 = smul.addr %s7313, 256
        %s7315 = scalar_lea.vmem [#allocation5], %s7314
        // Predicated region
        $region73: #{tpu_custom_call.1} parent=71 // pred_check
          %p7316 = pneg %p323
        $region74: #{tpu_custom_call.1} parent=71 // pred_check_branch
          %7318 = sbr.rel (%p7316) target = $region76
        $region75: #{tpu_custom_call.1} parent=71 // pred_region
          %7320 = vsyncadd %s7312, 0
          %s7321 = smul.addr %s27, 32
          %s7322 = smul.addr %s7321, 8
          %s7323 = scalar_lea.hbm %s13, %s7322
          %s7324 = sshll.u32 %s7315, 4
          %s7325 = int_to_ptr.vmem [resolvable:$true] %s7324
          %s7326 = sshll.u32 %s7323, 4
          %s7327 = int_to_ptr.hbm [resolvable:$true] %s7326
          %7332 = dma.vmem_to_hbm [thread:$0]  %s7325, 4096, %s7327, %s7312, 128, 128, 8
        $region76: #{tpu_custom_call.1} parent=71 // pred_fallthru
          _
      $region72: #{tpu_custom_call.1} parent=5 // pred_fallthru
        _
      %p7333 = scmp.le.s32.totalorder 2, %s22
      // Predicated region
      $region77: #{tpu_custom_call.1} parent=5 // pred_check
        %p7334 = pneg %p7333
      $region78: #{tpu_custom_call.1} parent=5 // pred_check_branch
        %7336 = sbr.rel (%p7334) target = $region80
      $region79: #{tpu_custom_call.1} parent=5 // pred_region
        %s7337 = ssub.s32 %s22, 2
        // Predicated region
        $region81: #{tpu_custom_call.1} parent=79 // pred_check
          %p7338 = pneg %p329
        $region82: #{tpu_custom_call.1} parent=79 // pred_check_branch
          %7340 = sbr.rel (%p7338) target = $region84
        $region83: #{tpu_custom_call.1} parent=79 // pred_region
          %s7341 = sand.u32 %s314, 1
          %s7342 = scalar_lea.sflag [#allocation6], %s7341
          %s7343 = sand.u32 %s314, 1
          %s7344 = smul.addr %s7343, 256
          %s7345 = scalar_lea.vmem [#allocation5], %s7344
          %7347 = dma.done %s7342, 4096
        $region84: #{tpu_custom_call.1} parent=79 // pred_fallthru
          _
      $region80: #{tpu_custom_call.1} parent=5 // pred_fallthru
        _
    $region6: #{tpu_custom_call.1} parent=1 // loop_footer
      %s26 = sadd.s32 1, %s22
    $region7: #{tpu_custom_call.1} parent=1 // loop_footer_branch
      %21 = sbr.rel target = $region3
    $region8: #{tpu_custom_call.1} parent=1 // loop_exit
      _
    %7348 = vsyncpa [#allocation6], 1
    %s7349 = scalar_lea.sflag [#allocation6], 1
    %7350 = vsyncpa %s7349, 1

</llo_original>
